<compile_context>
chip_gen: v7x
topology: tpu7x:2x2x1
jax: 0.10.0
libtpu: 0.0.40
codegen_flags: <defaults>
</compile_context>

<pallas_src>
import math

import jax
import jax.numpy as jnp
from jax import lax
from jax.experimental import pallas as pl
from jax.experimental.pallas import tpu as pltpu

# ----------------------------- static hyper-params -------------------------
N_LAYERS = 2
PADDING_IDX = 0.0
D_IN = 32          # nn.Linear(d_in, d_model); packing below assumes d_in == d_model
D_MODEL = 32
D_K = 8
D_V = 8
N_HEADS = 4
D_FF = 64
LN_EPS = 1e-5      # PyTorch nn.LayerNorm default eps

# packed-parameter layout ----------------------------------------------------
#   w32  : (1 + 8*N_LAYERS, 32, 32)   fc_w, then per layer
#          [m_wq, m_wk, m_wv, m_wo, c_wq, c_wk, c_wv, c_wo]
#   wff  : (2*N_LAYERS, 32, 64)       per layer [f_w1, f_w2.T]
#   vecs : (3 + 17*N_LAYERS, 32)      fc_b, in_ln_g, in_ln_b, then per layer
#          [m_bq,m_bk,m_bv,m_bo,m_g,m_b, c_bq,c_bk,c_bv,c_bo,c_g,c_b,
#           l_g,l_b, f_b2,f_g,f_b]
#   bff1 : (N_LAYERS, 64)             per layer f_b1
N_W32_PER_LAYER = 8
N_VEC_PER_LAYER = 17


def _layer_norm(x, g, b):
    mu = jnp.mean(x, axis=-1, keepdims=True)
    var = jnp.mean((x - mu) ** 2, axis=-1, keepdims=True)
    return (x - mu) * lax.rsqrt(var + LN_EPS) * g + b


# ------------------------------ fused kernel --------------------------------
def _fused_encoder_kernel(feat_ref, pe_ref, w32_ref, wff_ref, vec_ref, bff1_ref,
                          out_ref, amask_ref):
    BS, GS, DIN = feat_ref.shape
    N = BS * GS

    def vec(i):                                    # (1, D_MODEL) bias / LN row
        return vec_ref[pl.ds(i, 1), :]

    # ---------------- PositionalEncoding + input projection ----------------
    feat = feat_ref[...] + pe_ref[...][None, :, :]              # (bs, gs, d_in)
    feat2 = feat.reshape(N, DIN)                                # flatten batch
    pad = jnp.sum(feat2, axis=-1, keepdims=True) == 0.0         # (N, 1)

    h = jnp.dot(feat2, w32_ref[0], preferred_element_type=jnp.float32) + vec(0)
    h = jnp.maximum(h, 0.0)                                     # relu(fc(feat))
    y = _layer_norm(h, vec(1), vec(2))                          # self.layer_norm
    x2 = jnp.where(pad, 0.0, y)                                 # masked_fill(mask, 0)
    x3 = x2.reshape(BS, GS, D_MODEL)

    # MultiLevelEncoder key-padding mask: (sum(out, -1) == padding_idx).
    # Computed once as a (bs, 1, gs) row (key axis on lanes) via a ones-matmul
    # so no squeeze/transpose relayout is needed; reused by every layer/head.
    ones_q = jnp.ones((BS, 1, D_MODEL), jnp.float32)
    ksum = jnp.einsum('bqd,bkd->bqk', ones_q, x3,
                      preferred_element_type=jnp.float32)       # (bs, 1, gs)
    kpad = ksum == PADDING_IDX
    amask_ref[...] = kpad.astype(jnp.float32)

    scale = 1.0 / math.sqrt(D_K)
    cscale = 1.0 / math.sqrt(GS)

    # ------------------------ encoder layers (unrolled) ---------------------
    for l in range(N_LAYERS):
        wb = 1 + l * N_W32_PER_LAYER
        vb = 3 + l * N_VEC_PER_LAYER

        def proj(widx, vidx, x=x2):
            return jnp.dot(x, w32_ref[widx],
                           preferred_element_type=jnp.float32) + vec(vidx)

        # ---- MultiHeadAttention (spatial) + residual LayerNorm ----
        q3 = proj(wb + 0, vb + 0).reshape(BS, GS, N_HEADS * D_K)
        k3 = proj(wb + 1, vb + 1).reshape(BS, GS, N_HEADS * D_K)
        v3 = proj(wb + 2, vb + 2).reshape(BS, GS, N_HEADS * D_V)
        heads = []
        for hh in range(N_HEADS):
            qh = q3[:, :, hh * D_K:(hh + 1) * D_K]
            kh = k3[:, :, hh * D_K:(hh + 1) * D_K]
            vh = v3[:, :, hh * D_V:(hh + 1) * D_V]
            att = jnp.einsum('bqd,bkd->bqk', qh, kh,
                             preferred_element_type=jnp.float32) * scale
            # matches PyTorch masked_fill(mask, -inf); a fully-padded sequence
            # yields NaN in both implementations.
            att = jnp.where(kpad, -jnp.inf, att)
            att = jax.nn.softmax(att, axis=-1)
            heads.append(jnp.einsum('bqk,bkd->bqd', att, vh,
                                    preferred_element_type=jnp.float32))
        mha2 = jnp.concatenate(heads, axis=-1).reshape(N, N_HEADS * D_V)
        mha2 = jnp.dot(mha2, w32_ref[wb + 3],
                       preferred_element_type=jnp.float32) + vec(vb + 3)
        mha2 = _layer_norm(x2 + mha2, vec(vb + 4), vec(vb + 5))

        # ---- ChannelAttention + residual LayerNorm ----
        # TODO(synk): ChannelAttention source was not provided with the module;
        # implemented as per-head transposed (channel-wise) scaled-dot attention.
        cq3 = proj(wb + 4, vb + 6).reshape(BS, GS, N_HEADS * D_K)
        ck3 = proj(wb + 5, vb + 7).reshape(BS, GS, N_HEADS * D_K)
        cv3 = proj(wb + 6, vb + 8).reshape(BS, GS, N_HEADS * D_V)
        cheads = []
        for hh in range(N_HEADS):
            qh = cq3[:, :, hh * D_K:(hh + 1) * D_K]
            kh = ck3[:, :, hh * D_K:(hh + 1) * D_K]
            vh = cv3[:, :, hh * D_V:(hh + 1) * D_V]
            catt = jnp.einsum('bqd,bqe->bde', qh, kh,
                              preferred_element_type=jnp.float32) * cscale
            catt = jax.nn.softmax(catt, axis=-1)                 # (bs, d_k, d_k)
            cheads.append(jnp.einsum('bqd,bed->bqe', vh, catt,
                                     preferred_element_type=jnp.float32))
        cha2 = jnp.concatenate(cheads, axis=-1).reshape(N, N_HEADS * D_V)
        cha2 = jnp.dot(cha2, w32_ref[wb + 7],
                       preferred_element_type=jnp.float32) + vec(vb + 9)
        cha2 = _layer_norm(x2 + cha2, vec(vb + 10), vec(vb + 11))

        # ---- EncoderLayer: lnorm1(queries + att + catt) (dropouts = id) ----
        a2 = _layer_norm(x2 + mha2 + cha2, vec(vb + 12), vec(vb + 13))

        # ---- PositionWiseFeedForward: LN(a + fc2(relu(fc1(a)))) ----
        f = jnp.dot(a2, wff_ref[2 * l],
                    preferred_element_type=jnp.float32) + bff1_ref[pl.ds(l, 1), :]
        f = jnp.maximum(f, 0.0)
        f = lax.dot_general(f, wff_ref[2 * l + 1], (((1,), (1,)), ((), ())),
                            preferred_element_type=jnp.float32) + vec(vb + 14)
        x2 = _layer_norm(a2 + f, vec(vb + 15), vec(vb + 16))

    out_ref[...] = x2.reshape(BS, GS, D_MODEL)


# ------------------------------- glue / wrapper ------------------------------
def pack_params(params):
    ip = params["input"]
    w32 = [ip["fc_w"]]
    vecs = [ip["fc_b"], ip["ln_g"], ip["ln_b"]]
    wff, bff1 = [], []
    for lp in params["layers"]:
        w32 += [lp["m_wq"], lp["m_wk"], lp["m_wv"], lp["m_wo"],
                lp["c_wq"], lp["c_wk"], lp["c_wv"], lp["c_wo"]]
        vecs += [lp["m_bq"], lp["m_bk"], lp["m_bv"], lp["m_bo"], lp["m_g"], lp["m_b"],
                 lp["c_bq"], lp["c_bk"], lp["c_bv"], lp["c_bo"], lp["c_g"], lp["c_b"],
                 lp["l_g"], lp["l_b"], lp["f_b2"], lp["f_g"], lp["f_b"]]
        wff += [lp["f_w1"], lp["f_w2"].T]
        bff1 += [lp["f_b1"]]
    w32 = jnp.stack([jnp.asarray(w, jnp.float32) for w in w32])          # (17,32,32)
    wff = jnp.stack([jnp.asarray(w, jnp.float32) for w in wff])          # (4,32,64)
    vecs = jnp.concatenate([jnp.asarray(v, jnp.float32).reshape(1, D_MODEL)
                            for v in vecs], axis=0)                      # (37,32)
    bff1 = jnp.concatenate([jnp.asarray(b, jnp.float32).reshape(1, D_FF)
                            for b in bff1], axis=0)                      # (2,64)
    return w32, wff, vecs, bff1


def make_positional_encoding(sq, d):
    # Reproduces PositionalEncoding: rowPE[r, c] = PE(c), colPE[r, c] = PE(r).
    pos = jnp.arange(sq, dtype=jnp.float32)
    div = jnp.exp(jnp.arange(0, d, 2, dtype=jnp.float32)
                  * (-(math.log(10000.0) / d)))
    ang = pos[:, None] * div[None, :]
    pe = jnp.zeros((sq, d), jnp.float32)
    pe = pe.at[:, 0::2].set(jnp.sin(ang))
    pe = pe.at[:, 1::2].set(jnp.cos(ang))
    grid_pe = pe[None, :, :] + pe[:, None, :]               # (sq, sq, d)
    return grid_pe.reshape(sq * sq, d)                      # (gs, d_in)


def transformer_encoder(x, packed, pe):
    # dropout layers are identity (eval mode); PE dropout has p=0.
    bs, gs, d_in = x.shape
    w32, wff, vecs, bff1 = packed
    out, amask = pl.pallas_call(
        _fused_encoder_kernel,
        out_shape=(jax.ShapeDtypeStruct((bs, gs, D_MODEL), jnp.float32),
                   jax.ShapeDtypeStruct((bs, 1, gs), jnp.float32)),
        grid=(1,),
        in_specs=[
            pl.BlockSpec((bs, gs, d_in), lambda i: (0, 0, 0)),
            pl.BlockSpec((gs, d_in), lambda i: (0, 0)),
            pl.BlockSpec(w32.shape, lambda i: (0, 0, 0)),
            pl.BlockSpec(wff.shape, lambda i: (0, 0, 0)),
            pl.BlockSpec(vecs.shape, lambda i: (0, 0)),
            pl.BlockSpec(bff1.shape, lambda i: (0, 0)),
        ],
        out_specs=(pl.BlockSpec((bs, gs, D_MODEL), lambda i: (0, 0, 0)),
                   pl.BlockSpec((bs, 1, gs), lambda i: (0, 0, 0))),
        compiler_params=pltpu.CompilerParams(dimension_semantics=("arbitrary",)),
    )(x, pe, w32, wff, vecs, bff1)
    attention_mask = (amask > 0.0)[:, :, None, :]           # torch (bs,1,1,gs) bool
    return out, attention_mask


# ------------------------------ parameter init ------------------------------
def _dense(key, din, dout, prefix):
    kw, kb = jax.random.split(key)
    return {prefix + "w": jax.random.normal(kw, (din, dout), jnp.float32) * 0.02,
            prefix + "b": jax.random.normal(kb, (1, dout), jnp.float32) * 0.02}


def _ln(d, prefix):
    return {prefix + "g": jnp.ones((1, d), jnp.float32),
            prefix + "b": jnp.zeros((1, d), jnp.float32)}


def init_params(key):
    keys = jax.random.split(key, 1 + N_LAYERS)
    params = {"input": {}}
    p = _dense(keys[0], D_IN, D_MODEL, "fc_")
    params["input"].update({"fc_w": p["fc_w"], "fc_b": p["fc_b"]})
    params["input"].update({"ln_g": jnp.ones((1, D_MODEL), jnp.float32),
                            "ln_b": jnp.zeros((1, D_MODEL), jnp.float32)})
    layers = []
    for li in range(N_LAYERS):
        ks = jax.random.split(keys[1 + li], 10)
        lp = {}
        lp.update(_dense(ks[0], D_MODEL, N_HEADS * D_K, "m_wq_")); lp["m_wq"], lp["m_bq"] = lp.pop("m_wq_w"), lp.pop("m_wq_b")
        lp.update(_dense(ks[1], D_MODEL, N_HEADS * D_K, "m_wk_")); lp["m_wk"], lp["m_bk"] = lp.pop("m_wk_w"), lp.pop("m_wk_b")
        lp.update(_dense(ks[2], D_MODEL, N_HEADS * D_V, "m_wv_")); lp["m_wv"], lp["m_bv"] = lp.pop("m_wv_w"), lp.pop("m_wv_b")
        lp.update(_dense(ks[3], N_HEADS * D_V, D_MODEL, "m_wo_")); lp["m_wo"], lp["m_bo"] = lp.pop("m_wo_w"), lp.pop("m_wo_b")
        lp.update(_ln(D_MODEL, "m_"))
        lp.update(_dense(ks[4], D_MODEL, N_HEADS * D_K, "c_wq_")); lp["c_wq"], lp["c_bq"] = lp.pop("c_wq_w"), lp.pop("c_wq_b")
        lp.update(_dense(ks[5], D_MODEL, N_HEADS * D_K, "c_wk_")); lp["c_wk"], lp["c_bk"] = lp.pop("c_wk_w"), lp.pop("c_wk_b")
        lp.update(_dense(ks[6], D_MODEL, N_HEADS * D_V, "c_wv_")); lp["c_wv"], lp["c_bv"] = lp.pop("c_wv_w"), lp.pop("c_wv_b")
        lp.update(_dense(ks[7], N_HEADS * D_V, D_MODEL, "c_wo_")); lp["c_wo"], lp["c_bo"] = lp.pop("c_wo_w"), lp.pop("c_wo_b")
        lp.update(_ln(D_MODEL, "c_"))
        lp.update(_ln(D_MODEL, "l_"))
        lp.update(_dense(ks[8], D_MODEL, D_FF, "f_w1_")); lp["f_w1"], lp["f_b1"] = lp.pop("f_w1_w"), lp.pop("f_w1_b")
        lp.update(_dense(ks[9], D_FF, D_MODEL, "f_w2_")); lp["f_w2"], lp["f_b2"] = lp.pop("f_w2_w"), lp.pop("f_w2_b")
        lp.update(_ln(D_MODEL, "f_"))
        layers.append(lp)
    params["layers"] = layers
    return params


# ----------------------------------- main -----------------------------------
if __name__ == "__main__":
    key = jax.random.PRNGKey(0)
    k_in, k_par = jax.random.split(key)

    bs, sq = 2, 4
    gs = sq * sq                                   # 16 grid positions (4x4)
    x = jax.random.normal(k_in, (bs, gs, D_IN), jnp.float32)

    params = init_params(k_par)
    packed = pack_params(params)                   # one-time parameter packing
    pe = make_positional_encoding(sq, D_IN)

    fwd = jax.jit(transformer_encoder)
    out, attention_mask = fwd(x, packed, pe)
    jax.block_until_ready((out, attention_mask))

    assert out.shape == (bs, gs, D_MODEL)
    assert attention_mask.shape == (bs, 1, 1, gs)
    print("KERNEL_OK")
</pallas_src>

<mosaic_0001>
module attributes {stable_mosaic.version = 11 : i64} {
  func.func @_fused_encoder_kernel(%arg0: i32, %arg1: memref<2x16x32xf32, #tpu.memory_space<vmem>>, %arg2: memref<16x32xf32, #tpu.memory_space<vmem>>, %arg3: memref<17x32x32xf32, #tpu.memory_space<vmem>>, %arg4: memref<4x32x64xf32, #tpu.memory_space<vmem>>, %arg5: memref<37x32xf32, #tpu.memory_space<vmem>>, %arg6: memref<2x64xf32, #tpu.memory_space<vmem>>, %arg7: memref<2x16x32xf32, #tpu.memory_space<vmem>>, %arg8: memref<2x1x16xf32, #tpu.memory_space<vmem>>) attributes {dimension_semantics = [#tpu.dimension_semantics<arbitrary>], iteration_bounds = array<i64: 1>, scalar_prefetch = 0 : i64, scratch_operands = 0 : i64, tpu.core_type = #tpu.core_type<tc>, window_params = [{pipeline_mode = #tpu.pipeline_mode<synchronous>, transform_indices = @transform_0, window_bounds = array<i64: 2, 16, 32>}, {pipeline_mode = #tpu.pipeline_mode<synchronous>, transform_indices = @transform_1, window_bounds = array<i64: 16, 32>}, {pipeline_mode = #tpu.pipeline_mode<synchronous>, transform_indices = @transform_2, window_bounds = array<i64: 17, 32, 32>}, {pipeline_mode = #tpu.pipeline_mode<synchronous>, transform_indices = @transform_3, window_bounds = array<i64: 4, 32, 64>}, {pipeline_mode = #tpu.pipeline_mode<synchronous>, transform_indices = @transform_4, window_bounds = array<i64: 37, 32>}, {pipeline_mode = #tpu.pipeline_mode<synchronous>, transform_indices = @transform_5, window_bounds = array<i64: 2, 64>}, {pipeline_mode = #tpu.pipeline_mode<synchronous>, transform_indices = @transform_6, window_bounds = array<i64: 2, 16, 32>}, {pipeline_mode = #tpu.pipeline_mode<synchronous>, transform_indices = @transform_7, window_bounds = array<i64: 2, 1, 16>}]} {
    %c0 = arith.constant 0 : index
    %c0_0 = arith.constant 0 : index
    %c0_1 = arith.constant 0 : index
    %0 = vector.load %arg1[%c0, %c0_0, %c0_1] : memref<2x16x32xf32, #tpu.memory_space<vmem>>, vector<2x16x32xf32>
    %c0_2 = arith.constant 0 : index
    %c0_3 = arith.constant 0 : index
    %1 = vector.load %arg2[%c0_2, %c0_3] : memref<16x32xf32, #tpu.memory_space<vmem>>, vector<16x32xf32>
    %2 = vector.shape_cast %1 : vector<16x32xf32> to vector<1x16x32xf32>
    %3 = vector.broadcast %2 : vector<1x16x32xf32> to vector<2x16x32xf32>
    %4 = arith.addf %0, %3 : vector<2x16x32xf32>
    %5 = vector.shape_cast %4 : vector<2x16x32xf32> to vector<32x32xf32>
    %cst = arith.constant dense<0.000000e+00> : vector<32xf32>
    %6 = vector.multi_reduction <add>, %5, %cst [1] : vector<32x32xf32> to vector<32xf32>
    %7 = vector.shape_cast %6 : vector<32xf32> to vector<32x1xf32>
    %cst_4 = arith.constant 0.000000e+00 : f32
    %8 = vector.broadcast %cst_4 : f32 to vector<32x1xf32>
    %9 = arith.cmpf oeq, %7, %8 : vector<32x1xf32>
    %c0_5 = arith.constant 0 : index
    %c0_6 = arith.constant 0 : index
    %c0_7 = arith.constant 0 : index
    %10 = vector.load %arg3[%c0_5, %c0_6, %c0_7] : memref<17x32x32xf32, #tpu.memory_space<vmem>>, vector<1x32x32xf32>
    %11 = vector.shape_cast %10 : vector<1x32x32xf32> to vector<32x32xf32>
    %cst_8 = arith.constant dense<0.000000e+00> : vector<32x32xf32>
    %12 = tpu.matmul %5, %11, %cst_8 {dimension_numbers = #tpu.dot_dimension_numbers<[1], [0], [0], [1], [0, 0, 1, 1], [], []>} : vector<32x32xf32>, vector<32x32xf32>, vector<32x32xf32> -> vector<32x32xf32>
    %c0_9 = arith.constant 0 : index
    %c0_10 = arith.constant 0 : index
    %13 = vector.load %arg5[%c0_9, %c0_10] : memref<37x32xf32, #tpu.memory_space<vmem>>, vector<1x32xf32>
    %14 = vector.broadcast %13 : vector<1x32xf32> to vector<32x32xf32>
    %15 = arith.addf %12, %14 : vector<32x32xf32>
    %cst_11 = arith.constant 0.000000e+00 : f32
    %16 = vector.broadcast %cst_11 : f32 to vector<32x32xf32>
    %17 = arith.maximumf %15, %16 : vector<32x32xf32>
    %c1 = arith.constant 1 : index
    %c0_12 = arith.constant 0 : index
    %18 = vector.load %arg5[%c1, %c0_12] : memref<37x32xf32, #tpu.memory_space<vmem>>, vector<1x32xf32>
    %c2 = arith.constant 2 : index
    %c0_13 = arith.constant 0 : index
    %19 = vector.load %arg5[%c2, %c0_13] : memref<37x32xf32, #tpu.memory_space<vmem>>, vector<1x32xf32>
    %cst_14 = arith.constant dense<0.000000e+00> : vector<32xf32>
    %20 = vector.multi_reduction <add>, %17, %cst_14 [1] : vector<32x32xf32> to vector<32xf32>
    %21 = vector.shape_cast %20 : vector<32xf32> to vector<32x1xf32>
    %cst_15 = arith.constant 3.200000e+01 : f32
    %22 = vector.broadcast %cst_15 : f32 to vector<32x1xf32>
    %23 = arith.divf %21, %22 : vector<32x1xf32>
    %24 = vector.broadcast %23 : vector<32x1xf32> to vector<32x32xf32>
    %25 = arith.subf %17, %24 : vector<32x32xf32>
    %26 = arith.mulf %25, %25 : vector<32x32xf32>
    %cst_16 = arith.constant dense<0.000000e+00> : vector<32xf32>
    %27 = vector.multi_reduction <add>, %26, %cst_16 [1] : vector<32x32xf32> to vector<32xf32>
    %28 = vector.shape_cast %27 : vector<32xf32> to vector<32x1xf32>
    %cst_17 = arith.constant 3.200000e+01 : f32
    %29 = vector.broadcast %cst_17 : f32 to vector<32x1xf32>
    %30 = arith.divf %28, %29 : vector<32x1xf32>
    %31 = vector.broadcast %23 : vector<32x1xf32> to vector<32x32xf32>
    %32 = arith.subf %17, %31 : vector<32x32xf32>
    %cst_18 = arith.constant 9.99999974E-6 : f32
    %33 = vector.broadcast %cst_18 : f32 to vector<32x1xf32>
    %34 = arith.addf %30, %33 : vector<32x1xf32>
    %35 = math.rsqrt %34 : vector<32x1xf32>
    %36 = vector.broadcast %35 : vector<32x1xf32> to vector<32x32xf32>
    %37 = arith.mulf %32, %36 : vector<32x32xf32>
    %38 = vector.broadcast %18 : vector<1x32xf32> to vector<32x32xf32>
    %39 = arith.mulf %37, %38 : vector<32x32xf32>
    %40 = vector.broadcast %19 : vector<1x32xf32> to vector<32x32xf32>
    %41 = arith.addf %39, %40 : vector<32x32xf32>
    %cst_19 = arith.constant 0.000000e+00 : f32
    %42 = vector.shape_cast %9 : vector<32x1xi1> to vector<32x1xi1>
    %43 = vector.broadcast %42 : vector<32x1xi1> to vector<32x32xi1>
    %44 = vector.broadcast %cst_19 : f32 to vector<32x32xf32>
    %45 = arith.select %43, %44, %41 : vector<32x32xi1>, vector<32x32xf32>
    %46 = vector.shape_cast %45 : vector<32x32xf32> to vector<2x16x32xf32>
    %cst_20 = arith.constant 1.000000e+00 : f32
    %47 = vector.broadcast %cst_20 : f32 to vector<2x1x32xf32>
    "tpu.trace_start"() <{level = 10 : i32, message = "bqd,bkd->bqk"}> : () -> ()
    %cst_21 = arith.constant dense<0.000000e+00> : vector<2x1x16xf32>
    %48 = tpu.matmul %47, %46, %cst_21 {dimension_numbers = #tpu.dot_dimension_numbers<[2], [2], [1], [1], [0, 0, 0, 1, 1, 1], [0], [0]>} : vector<2x1x32xf32>, vector<2x16x32xf32>, vector<2x1x16xf32> -> vector<2x1x16xf32>
    %cst_22 = arith.constant 0.000000e+00 : f32
    "tpu.trace_stop"() : () -> ()
    %49 = vector.broadcast %cst_22 : f32 to vector<2x1x16xf32>
    %50 = arith.cmpf oeq, %48, %49 : vector<2x1x16xf32>
    %51 = arith.extui %50 : vector<2x1x16xi1> to vector<2x1x16xi32>
    %52 = arith.sitofp %51 : vector<2x1x16xi32> to vector<2x1x16xf32>
    %c0_23 = arith.constant 0 : index
    %c0_24 = arith.constant 0 : index
    %c0_25 = arith.constant 0 : index
    %53 = vector.load %arg8[%c0_23, %c0_24, %c0_25] : memref<2x1x16xf32, #tpu.memory_space<vmem>>, vector<2x1x16xf32>
    tpu.vector_store %arg8[%c0_23, %c0_24, %c0_25], %52 {strides = array<i32>} : memref<2x1x16xf32, #tpu.memory_space<vmem>>, vector<2x1x16xf32>,
    %c1_26 = arith.constant 1 : index
    %c0_27 = arith.constant 0 : index
    %c0_28 = arith.constant 0 : index
    %54 = vector.load %arg3[%c1_26, %c0_27, %c0_28] : memref<17x32x32xf32, #tpu.memory_space<vmem>>, vector<1x32x32xf32>
    %55 = vector.shape_cast %54 : vector<1x32x32xf32> to vector<32x32xf32>
    %cst_29 = arith.constant dense<0.000000e+00> : vector<32x32xf32>
    %56 = tpu.matmul %45, %55, %cst_29 {dimension_numbers = #tpu.dot_dimension_numbers<[1], [0], [0], [1], [0, 0, 1, 1], [], []>} : vector<32x32xf32>, vector<32x32xf32>, vector<32x32xf32> -> vector<32x32xf32>
    %c3 = arith.constant 3 : index
    %c0_30 = arith.constant 0 : index
    %57 = vector.load %arg5[%c3, %c0_30] : memref<37x32xf32, #tpu.memory_space<vmem>>, vector<1x32xf32>
    %58 = vector.broadcast %57 : vector<1x32xf32> to vector<32x32xf32>
    %59 = arith.addf %56, %58 : vector<32x32xf32>
    %60 = vector.shape_cast %59 : vector<32x32xf32> to vector<2x16x32xf32>
    %c2_31 = arith.constant 2 : index
    %c0_32 = arith.constant 0 : index
    %c0_33 = arith.constant 0 : index
    %61 = vector.load %arg3[%c2_31, %c0_32, %c0_33] : memref<17x32x32xf32, #tpu.memory_space<vmem>>, vector<1x32x32xf32>
    %62 = vector.shape_cast %61 : vector<1x32x32xf32> to vector<32x32xf32>
    %cst_34 = arith.constant dense<0.000000e+00> : vector<32x32xf32>
    %63 = tpu.matmul %45, %62, %cst_34 {dimension_numbers = #tpu.dot_dimension_numbers<[1], [0], [0], [1], [0, 0, 1, 1], [], []>} : vector<32x32xf32>, vector<32x32xf32>, vector<32x32xf32> -> vector<32x32xf32>
    %c4 = arith.constant 4 : index
    %c0_35 = arith.constant 0 : index
    %64 = vector.load %arg5[%c4, %c0_35] : memref<37x32xf32, #tpu.memory_space<vmem>>, vector<1x32xf32>
    %65 = vector.broadcast %64 : vector<1x32xf32> to vector<32x32xf32>
    %66 = arith.addf %63, %65 : vector<32x32xf32>
    %67 = vector.shape_cast %66 : vector<32x32xf32> to vector<2x16x32xf32>
    %c3_36 = arith.constant 3 : index
    %c0_37 = arith.constant 0 : index
    %c0_38 = arith.constant 0 : index
    %68 = vector.load %arg3[%c3_36, %c0_37, %c0_38] : memref<17x32x32xf32, #tpu.memory_space<vmem>>, vector<1x32x32xf32>
    %69 = vector.shape_cast %68 : vector<1x32x32xf32> to vector<32x32xf32>
    %cst_39 = arith.constant dense<0.000000e+00> : vector<32x32xf32>
    %70 = tpu.matmul %45, %69, %cst_39 {dimension_numbers = #tpu.dot_dimension_numbers<[1], [0], [0], [1], [0, 0, 1, 1], [], []>} : vector<32x32xf32>, vector<32x32xf32>, vector<32x32xf32> -> vector<32x32xf32>
    %c5 = arith.constant 5 : index
    %c0_40 = arith.constant 0 : index
    %71 = vector.load %arg5[%c5, %c0_40] : memref<37x32xf32, #tpu.memory_space<vmem>>, vector<1x32xf32>
    %72 = vector.broadcast %71 : vector<1x32xf32> to vector<32x32xf32>
    %73 = arith.addf %70, %72 : vector<32x32xf32>
    %74 = vector.shape_cast %73 : vector<32x32xf32> to vector<2x16x32xf32>
    %75 = vector.extract_strided_slice %60 {offsets = [0, 0, 0], sizes = [2, 16, 8], strides = [1, 1, 1]} : vector<2x16x32xf32> to vector<2x16x8xf32>
    %76 = vector.extract_strided_slice %67 {offsets = [0, 0, 0], sizes = [2, 16, 8], strides = [1, 1, 1]} : vector<2x16x32xf32> to vector<2x16x8xf32>
    %77 = vector.extract_strided_slice %74 {offsets = [0, 0, 0], sizes = [2, 16, 8], strides = [1, 1, 1]} : vector<2x16x32xf32> to vector<2x16x8xf32>
    "tpu.trace_start"() <{level = 10 : i32, message = "bqd,bkd->bqk"}> : () -> ()
    %cst_41 = arith.constant dense<0.000000e+00> : vector<2x16x16xf32>
    %78 = tpu.matmul %75, %76, %cst_41 {dimension_numbers = #tpu.dot_dimension_numbers<[2], [2], [1], [1], [0, 0, 0, 1, 1, 1], [0], [0]>} : vector<2x16x8xf32>, vector<2x16x8xf32>, vector<2x16x16xf32> -> vector<2x16x16xf32>
    "tpu.trace_stop"() : () -> ()
    %cst_42 = arith.constant 0.353553385 : f32
    %79 = vector.broadcast %cst_42 : f32 to vector<2x16x16xf32>
    %80 = arith.mulf %78, %79 : vector<2x16x16xf32>
    %cst_43 = arith.constant 0xFF800000 : f32
    %81 = vector.shape_cast %50 : vector<2x1x16xi1> to vector<2x1x16xi1>
    %82 = vector.broadcast %81 : vector<2x1x16xi1> to vector<2x16x16xi1>
    %83 = vector.broadcast %cst_43 : f32 to vector<2x16x16xf32>
    %84 = arith.select %82, %83, %80 : vector<2x16x16xi1>, vector<2x16x16xf32>
    %cst_44 = arith.constant dense<0xFF800000> : vector<2x16xf32>
    %85 = vector.multi_reduction <maximumf>, %84, %cst_44 [2] : vector<2x16x16xf32> to vector<2x16xf32>
    %cst_45 = arith.constant 0xFF800000 : f32
    %86 = vector.broadcast %cst_45 : f32 to vector<2x16xf32>
    %87 = arith.maximumf %86, %85 : vector<2x16xf32>
    %88 = vector.shape_cast %87 : vector<2x16xf32> to vector<2x16x1xf32>
    %89 = vector.broadcast %88 : vector<2x16x1xf32> to vector<2x16x16xf32>
    %90 = arith.subf %84, %89 : vector<2x16x16xf32>
    %91 = math.exp %90 : vector<2x16x16xf32>
    %cst_46 = arith.constant dense<0.000000e+00> : vector<2x16xf32>
    %92 = vector.multi_reduction <add>, %91, %cst_46 [2] : vector<2x16x16xf32> to vector<2x16xf32>
    %93 = vector.shape_cast %92 : vector<2x16xf32> to vector<2x16x1xf32>
    %94 = vector.broadcast %93 : vector<2x16x1xf32> to vector<2x16x16xf32>
    %95 = arith.divf %91, %94 : vector<2x16x16xf32>
    "tpu.trace_start"() <{level = 10 : i32, message = "bqk,bkd->bqd"}> : () -> ()
    %cst_47 = arith.constant dense<0.000000e+00> : vector<2x16x8xf32>
    %96 = tpu.matmul %95, %77, %cst_47 {dimension_numbers = #tpu.dot_dimension_numbers<[2], [1], [1], [2], [0, 0, 0, 1, 1, 2], [0], [0]>} : vector<2x16x16xf32>, vector<2x16x8xf32>, vector<2x16x8xf32> -> vector<2x16x8xf32>
    "tpu.trace_stop"() : () -> ()
    %97 = vector.extract_strided_slice %60 {offsets = [0, 0, 8], sizes = [2, 16, 8], strides = [1, 1, 1]} : vector<2x16x32xf32> to vector<2x16x8xf32>
    %98 = vector.extract_strided_slice %67 {offsets = [0, 0, 8], sizes = [2, 16, 8], strides = [1, 1, 1]} : vector<2x16x32xf32> to vector<2x16x8xf32>
    %99 = vector.extract_strided_slice %74 {offsets = [0, 0, 8], sizes = [2, 16, 8], strides = [1, 1, 1]} : vector<2x16x32xf32> to vector<2x16x8xf32>
    "tpu.trace_start"() <{level = 10 : i32, message = "bqd,bkd->bqk"}> : () -> ()
    %cst_48 = arith.constant dense<0.000000e+00> : vector<2x16x16xf32>
    %100 = tpu.matmul %97, %98, %cst_48 {dimension_numbers = #tpu.dot_dimension_numbers<[2], [2], [1], [1], [0, 0, 0, 1, 1, 1], [0], [0]>} : vector<2x16x8xf32>, vector<2x16x8xf32>, vector<2x16x16xf32> -> vector<2x16x16xf32>
    "tpu.trace_stop"() : () -> ()
    %cst_49 = arith.constant 0.353553385 : f32
    %101 = vector.broadcast %cst_49 : f32 to vector<2x16x16xf32>
    %102 = arith.mulf %100, %101 : vector<2x16x16xf32>
    %cst_50 = arith.constant 0xFF800000 : f32
    %103 = vector.shape_cast %50 : vector<2x1x16xi1> to vector<2x1x16xi1>
    %104 = vector.broadcast %103 : vector<2x1x16xi1> to vector<2x16x16xi1>
    %105 = vector.broadcast %cst_50 : f32 to vector<2x16x16xf32>
    %106 = arith.select %104, %105, %102 : vector<2x16x16xi1>, vector<2x16x16xf32>
    %cst_51 = arith.constant dense<0xFF800000> : vector<2x16xf32>
    %107 = vector.multi_reduction <maximumf>, %106, %cst_51 [2] : vector<2x16x16xf32> to vector<2x16xf32>
    %cst_52 = arith.constant 0xFF800000 : f32
    %108 = vector.broadcast %cst_52 : f32 to vector<2x16xf32>
    %109 = arith.maximumf %108, %107 : vector<2x16xf32>
    %110 = vector.shape_cast %109 : vector<2x16xf32> to vector<2x16x1xf32>
    %111 = vector.broadcast %110 : vector<2x16x1xf32> to vector<2x16x16xf32>
    %112 = arith.subf %106, %111 : vector<2x16x16xf32>
    %113 = math.exp %112 : vector<2x16x16xf32>
    %cst_53 = arith.constant dense<0.000000e+00> : vector<2x16xf32>
    %114 = vector.multi_reduction <add>, %113, %cst_53 [2] : vector<2x16x16xf32> to vector<2x16xf32>
    %115 = vector.shape_cast %114 : vector<2x16xf32> to vector<2x16x1xf32>
    %116 = vector.broadcast %115 : vector<2x16x1xf32> to vector<2x16x16xf32>
    %117 = arith.divf %113, %116 : vector<2x16x16xf32>
    "tpu.trace_start"() <{level = 10 : i32, message = "bqk,bkd->bqd"}> : () -> ()
    %cst_54 = arith.constant dense<0.000000e+00> : vector<2x16x8xf32>
    %118 = tpu.matmul %117, %99, %cst_54 {dimension_numbers = #tpu.dot_dimension_numbers<[2], [1], [1], [2], [0, 0, 0, 1, 1, 2], [0], [0]>} : vector<2x16x16xf32>, vector<2x16x8xf32>, vector<2x16x8xf32> -> vector<2x16x8xf32>
    "tpu.trace_stop"() : () -> ()
    %119 = vector.extract_strided_slice %60 {offsets = [0, 0, 16], sizes = [2, 16, 8], strides = [1, 1, 1]} : vector<2x16x32xf32> to vector<2x16x8xf32>
    %120 = vector.extract_strided_slice %67 {offsets = [0, 0, 16], sizes = [2, 16, 8], strides = [1, 1, 1]} : vector<2x16x32xf32> to vector<2x16x8xf32>
    %121 = vector.extract_strided_slice %74 {offsets = [0, 0, 16], sizes = [2, 16, 8], strides = [1, 1, 1]} : vector<2x16x32xf32> to vector<2x16x8xf32>
    "tpu.trace_start"() <{level = 10 : i32, message = "bqd,bkd->bqk"}> : () -> ()
    %cst_55 = arith.constant dense<0.000000e+00> : vector<2x16x16xf32>
    %122 = tpu.matmul %119, %120, %cst_55 {dimension_numbers = #tpu.dot_dimension_numbers<[2], [2], [1], [1], [0, 0, 0, 1, 1, 1], [0], [0]>} : vector<2x16x8xf32>, vector<2x16x8xf32>, vector<2x16x16xf32> -> vector<2x16x16xf32>
    "tpu.trace_stop"() : () -> ()
    %cst_56 = arith.constant 0.353553385 : f32
    %123 = vector.broadcast %cst_56 : f32 to vector<2x16x16xf32>
    %124 = arith.mulf %122, %123 : vector<2x16x16xf32>
    %cst_57 = arith.constant 0xFF800000 : f32
    %125 = vector.shape_cast %50 : vector<2x1x16xi1> to vector<2x1x16xi1>
    %126 = vector.broadcast %125 : vector<2x1x16xi1> to vector<2x16x16xi1>
    %127 = vector.broadcast %cst_57 : f32 to vector<2x16x16xf32>
    %128 = arith.select %126, %127, %124 : vector<2x16x16xi1>, vector<2x16x16xf32>
    %cst_58 = arith.constant dense<0xFF800000> : vector<2x16xf32>
    %129 = vector.multi_reduction <maximumf>, %128, %cst_58 [2] : vector<2x16x16xf32> to vector<2x16xf32>
    %cst_59 = arith.constant 0xFF800000 : f32
    %130 = vector.broadcast %cst_59 : f32 to vector<2x16xf32>
    %131 = arith.maximumf %130, %129 : vector<2x16xf32>
    %132 = vector.shape_cast %131 : vector<2x16xf32> to vector<2x16x1xf32>
    %133 = vector.broadcast %132 : vector<2x16x1xf32> to vector<2x16x16xf32>
    %134 = arith.subf %128, %133 : vector<2x16x16xf32>
    %135 = math.exp %134 : vector<2x16x16xf32>
    %cst_60 = arith.constant dense<0.000000e+00> : vector<2x16xf32>
    %136 = vector.multi_reduction <add>, %135, %cst_60 [2] : vector<2x16x16xf32> to vector<2x16xf32>
    %137 = vector.shape_cast %136 : vector<2x16xf32> to vector<2x16x1xf32>
    %138 = vector.broadcast %137 : vector<2x16x1xf32> to vector<2x16x16xf32>
    %139 = arith.divf %135, %138 : vector<2x16x16xf32>
    "tpu.trace_start"() <{level = 10 : i32, message = "bqk,bkd->bqd"}> : () -> ()
    %cst_61 = arith.constant dense<0.000000e+00> : vector<2x16x8xf32>
    %140 = tpu.matmul %139, %121, %cst_61 {dimension_numbers = #tpu.dot_dimension_numbers<[2], [1], [1], [2], [0, 0, 0, 1, 1, 2], [0], [0]>} : vector<2x16x16xf32>, vector<2x16x8xf32>, vector<2x16x8xf32> -> vector<2x16x8xf32>
    "tpu.trace_stop"() : () -> ()
    %141 = vector.extract_strided_slice %60 {offsets = [0, 0, 24], sizes = [2, 16, 8], strides = [1, 1, 1]} : vector<2x16x32xf32> to vector<2x16x8xf32>
    %142 = vector.extract_strided_slice %67 {offsets = [0, 0, 24], sizes = [2, 16, 8], strides = [1, 1, 1]} : vector<2x16x32xf32> to vector<2x16x8xf32>
    %143 = vector.extract_strided_slice %74 {offsets = [0, 0, 24], sizes = [2, 16, 8], strides = [1, 1, 1]} : vector<2x16x32xf32> to vector<2x16x8xf32>
    "tpu.trace_start"() <{level = 10 : i32, message = "bqd,bkd->bqk"}> : () -> ()
    %cst_62 = arith.constant dense<0.000000e+00> : vector<2x16x16xf32>
    %144 = tpu.matmul %141, %142, %cst_62 {dimension_numbers = #tpu.dot_dimension_numbers<[2], [2], [1], [1], [0, 0, 0, 1, 1, 1], [0], [0]>} : vector<2x16x8xf32>, vector<2x16x8xf32>, vector<2x16x16xf32> -> vector<2x16x16xf32>
    "tpu.trace_stop"() : () -> ()
    %cst_63 = arith.constant 0.353553385 : f32
    %145 = vector.broadcast %cst_63 : f32 to vector<2x16x16xf32>
    %146 = arith.mulf %144, %145 : vector<2x16x16xf32>
    %cst_64 = arith.constant 0xFF800000 : f32
    %147 = vector.shape_cast %50 : vector<2x1x16xi1> to vector<2x1x16xi1>
    %148 = vector.broadcast %147 : vector<2x1x16xi1> to vector<2x16x16xi1>
    %149 = vector.broadcast %cst_64 : f32 to vector<2x16x16xf32>
    %150 = arith.select %148, %149, %146 : vector<2x16x16xi1>, vector<2x16x16xf32>
    %cst_65 = arith.constant dense<0xFF800000> : vector<2x16xf32>
    %151 = vector.multi_reduction <maximumf>, %150, %cst_65 [2] : vector<2x16x16xf32> to vector<2x16xf32>
    %cst_66 = arith.constant 0xFF800000 : f32
    %152 = vector.broadcast %cst_66 : f32 to vector<2x16xf32>
    %153 = arith.maximumf %152, %151 : vector<2x16xf32>
    %154 = vector.shape_cast %153 : vector<2x16xf32> to vector<2x16x1xf32>
    %155 = vector.broadcast %154 : vector<2x16x1xf32> to vector<2x16x16xf32>
    %156 = arith.subf %150, %155 : vector<2x16x16xf32>
    %157 = math.exp %156 : vector<2x16x16xf32>
    %cst_67 = arith.constant dense<0.000000e+00> : vector<2x16xf32>
    %158 = vector.multi_reduction <add>, %157, %cst_67 [2] : vector<2x16x16xf32> to vector<2x16xf32>
    %159 = vector.shape_cast %158 : vector<2x16xf32> to vector<2x16x1xf32>
    %160 = vector.broadcast %159 : vector<2x16x1xf32> to vector<2x16x16xf32>
    %161 = arith.divf %157, %160 : vector<2x16x16xf32>
    "tpu.trace_start"() <{level = 10 : i32, message = "bqk,bkd->bqd"}> : () -> ()
    %cst_68 = arith.constant dense<0.000000e+00> : vector<2x16x8xf32>
    %162 = tpu.matmul %161, %143, %cst_68 {dimension_numbers = #tpu.dot_dimension_numbers<[2], [1], [1], [2], [0, 0, 0, 1, 1, 2], [0], [0]>} : vector<2x16x16xf32>, vector<2x16x8xf32>, vector<2x16x8xf32> -> vector<2x16x8xf32>
    "tpu.trace_stop"() : () -> ()
    %163 = tpu.concatenate %96, %118, %140, %162 in 2 : vector<2x16x8xf32>, vector<2x16x8xf32>, vector<2x16x8xf32>, vector<2x16x8xf32> -> vector<2x16x32xf32>
    %164 = vector.shape_cast %163 : vector<2x16x32xf32> to vector<32x32xf32>
    %c4_69 = arith.constant 4 : index
    %c0_70 = arith.constant 0 : index
    %c0_71 = arith.constant 0 : index
    %165 = vector.load %arg3[%c4_69, %c0_70, %c0_71] : memref<17x32x32xf32, #tpu.memory_space<vmem>>, vector<1x32x32xf32>
    %166 = vector.shape_cast %165 : vector<1x32x32xf32> to vector<32x32xf32>
    %cst_72 = arith.constant dense<0.000000e+00> : vector<32x32xf32>
    %167 = tpu.matmul %164, %166, %cst_72 {dimension_numbers = #tpu.dot_dimension_numbers<[1], [0], [0], [1], [0, 0, 1, 1], [], []>} : vector<32x32xf32>, vector<32x32xf32>, vector<32x32xf32> -> vector<32x32xf32>
    %c6 = arith.constant 6 : index
    %c0_73 = arith.constant 0 : index
    %168 = vector.load %arg5[%c6, %c0_73] : memref<37x32xf32, #tpu.memory_space<vmem>>, vector<1x32xf32>
    %169 = vector.broadcast %168 : vector<1x32xf32> to vector<32x32xf32>
    %170 = arith.addf %167, %169 : vector<32x32xf32>
    %171 = arith.addf %45, %170 : vector<32x32xf32>
    %c7 = arith.constant 7 : index
    %c0_74 = arith.constant 0 : index
    %172 = vector.load %arg5[%c7, %c0_74] : memref<37x32xf32, #tpu.memory_space<vmem>>, vector<1x32xf32>
    %c8 = arith.constant 8 : index
    %c0_75 = arith.constant 0 : index
    %173 = vector.load %arg5[%c8, %c0_75] : memref<37x32xf32, #tpu.memory_space<vmem>>, vector<1x32xf32>
    %cst_76 = arith.constant dense<0.000000e+00> : vector<32xf32>
    %174 = vector.multi_reduction <add>, %171, %cst_76 [1] : vector<32x32xf32> to vector<32xf32>
    %175 = vector.shape_cast %174 : vector<32xf32> to vector<32x1xf32>
    %cst_77 = arith.constant 3.200000e+01 : f32
    %176 = vector.broadcast %cst_77 : f32 to vector<32x1xf32>
    %177 = arith.divf %175, %176 : vector<32x1xf32>
    %178 = vector.broadcast %177 : vector<32x1xf32> to vector<32x32xf32>
    %179 = arith.subf %171, %178 : vector<32x32xf32>
    %180 = arith.mulf %179, %179 : vector<32x32xf32>
    %cst_78 = arith.constant dense<0.000000e+00> : vector<32xf32>
    %181 = vector.multi_reduction <add>, %180, %cst_78 [1] : vector<32x32xf32> to vector<32xf32>
    %182 = vector.shape_cast %181 : vector<32xf32> to vector<32x1xf32>
    %cst_79 = arith.constant 3.200000e+01 : f32
    %183 = vector.broadcast %cst_79 : f32 to vector<32x1xf32>
    %184 = arith.divf %182, %183 : vector<32x1xf32>
    %185 = vector.broadcast %177 : vector<32x1xf32> to vector<32x32xf32>
    %186 = arith.subf %171, %185 : vector<32x32xf32>
    %cst_80 = arith.constant 9.99999974E-6 : f32
    %187 = vector.broadcast %cst_80 : f32 to vector<32x1xf32>
    %188 = arith.addf %184, %187 : vector<32x1xf32>
    %189 = math.rsqrt %188 : vector<32x1xf32>
    %190 = vector.broadcast %189 : vector<32x1xf32> to vector<32x32xf32>
    %191 = arith.mulf %186, %190 : vector<32x32xf32>
    %192 = vector.broadcast %172 : vector<1x32xf32> to vector<32x32xf32>
    %193 = arith.mulf %191, %192 : vector<32x32xf32>
    %194 = vector.broadcast %173 : vector<1x32xf32> to vector<32x32xf32>
    %195 = arith.addf %193, %194 : vector<32x32xf32>
    %c5_81 = arith.constant 5 : index
    %c0_82 = arith.constant 0 : index
    %c0_83 = arith.constant 0 : index
    %196 = vector.load %arg3[%c5_81, %c0_82, %c0_83] : memref<17x32x32xf32, #tpu.memory_space<vmem>>, vector<1x32x32xf32>
    %197 = vector.shape_cast %196 : vector<1x32x32xf32> to vector<32x32xf32>
    %cst_84 = arith.constant dense<0.000000e+00> : vector<32x32xf32>
    %198 = tpu.matmul %45, %197, %cst_84 {dimension_numbers = #tpu.dot_dimension_numbers<[1], [0], [0], [1], [0, 0, 1, 1], [], []>} : vector<32x32xf32>, vector<32x32xf32>, vector<32x32xf32> -> vector<32x32xf32>
    %c9 = arith.constant 9 : index
    %c0_85 = arith.constant 0 : index
    %199 = vector.load %arg5[%c9, %c0_85] : memref<37x32xf32, #tpu.memory_space<vmem>>, vector<1x32xf32>
    %200 = vector.broadcast %199 : vector<1x32xf32> to vector<32x32xf32>
    %201 = arith.addf %198, %200 : vector<32x32xf32>
    %202 = vector.shape_cast %201 : vector<32x32xf32> to vector<2x16x32xf32>
    %c6_86 = arith.constant 6 : index
    %c0_87 = arith.constant 0 : index
    %c0_88 = arith.constant 0 : index
    %203 = vector.load %arg3[%c6_86, %c0_87, %c0_88] : memref<17x32x32xf32, #tpu.memory_space<vmem>>, vector<1x32x32xf32>
    %204 = vector.shape_cast %203 : vector<1x32x32xf32> to vector<32x32xf32>
    %cst_89 = arith.constant dense<0.000000e+00> : vector<32x32xf32>
    %205 = tpu.matmul %45, %204, %cst_89 {dimension_numbers = #tpu.dot_dimension_numbers<[1], [0], [0], [1], [0, 0, 1, 1], [], []>} : vector<32x32xf32>, vector<32x32xf32>, vector<32x32xf32> -> vector<32x32xf32>
    %c10 = arith.constant 10 : index
    %c0_90 = arith.constant 0 : index
    %206 = vector.load %arg5[%c10, %c0_90] : memref<37x32xf32, #tpu.memory_space<vmem>>, vector<1x32xf32>
    %207 = vector.broadcast %206 : vector<1x32xf32> to vector<32x32xf32>
    %208 = arith.addf %205, %207 : vector<32x32xf32>
    %209 = vector.shape_cast %208 : vector<32x32xf32> to vector<2x16x32xf32>
    %c7_91 = arith.constant 7 : index
    %c0_92 = arith.constant 0 : index
    %c0_93 = arith.constant 0 : index
    %210 = vector.load %arg3[%c7_91, %c0_92, %c0_93] : memref<17x32x32xf32, #tpu.memory_space<vmem>>, vector<1x32x32xf32>
    %211 = vector.shape_cast %210 : vector<1x32x32xf32> to vector<32x32xf32>
    %cst_94 = arith.constant dense<0.000000e+00> : vector<32x32xf32>
    %212 = tpu.matmul %45, %211, %cst_94 {dimension_numbers = #tpu.dot_dimension_numbers<[1], [0], [0], [1], [0, 0, 1, 1], [], []>} : vector<32x32xf32>, vector<32x32xf32>, vector<32x32xf32> -> vector<32x32xf32>
    %c11 = arith.constant 11 : index
    %c0_95 = arith.constant 0 : index
    %213 = vector.load %arg5[%c11, %c0_95] : memref<37x32xf32, #tpu.memory_space<vmem>>, vector<1x32xf32>
    %214 = vector.broadcast %213 : vector<1x32xf32> to vector<32x32xf32>
    %215 = arith.addf %212, %214 : vector<32x32xf32>
    %216 = vector.shape_cast %215 : vector<32x32xf32> to vector<2x16x32xf32>
    %217 = vector.extract_strided_slice %202 {offsets = [0, 0, 0], sizes = [2, 16, 8], strides = [1, 1, 1]} : vector<2x16x32xf32> to vector<2x16x8xf32>
    %218 = vector.extract_strided_slice %209 {offsets = [0, 0, 0], sizes = [2, 16, 8], strides = [1, 1, 1]} : vector<2x16x32xf32> to vector<2x16x8xf32>
    %219 = vector.extract_strided_slice %216 {offsets = [0, 0, 0], sizes = [2, 16, 8], strides = [1, 1, 1]} : vector<2x16x32xf32> to vector<2x16x8xf32>
    "tpu.trace_start"() <{level = 10 : i32, message = "bqd,bqe->bde"}> : () -> ()
    %cst_96 = arith.constant dense<0.000000e+00> : vector<2x8x8xf32>
    %220 = tpu.matmul %217, %218, %cst_96 {dimension_numbers = #tpu.dot_dimension_numbers<[1], [1], [2], [2], [0, 0, 0, 2, 1, 2], [0], [0]>} : vector<2x16x8xf32>, vector<2x16x8xf32>, vector<2x8x8xf32> -> vector<2x8x8xf32>
    "tpu.trace_stop"() : () -> ()
    %cst_97 = arith.constant 2.500000e-01 : f32
    %221 = vector.broadcast %cst_97 : f32 to vector<2x8x8xf32>
    %222 = arith.mulf %220, %221 : vector<2x8x8xf32>
    %cst_98 = arith.constant dense<0xFF800000> : vector<2x8xf32>
    %223 = vector.multi_reduction <maximumf>, %222, %cst_98 [2] : vector<2x8x8xf32> to vector<2x8xf32>
    %cst_99 = arith.constant 0xFF800000 : f32
    %224 = vector.broadcast %cst_99 : f32 to vector<2x8xf32>
    %225 = arith.maximumf %224, %223 : vector<2x8xf32>
    %226 = vector.shape_cast %225 : vector<2x8xf32> to vector<2x8x1xf32>
    %227 = vector.broadcast %226 : vector<2x8x1xf32> to vector<2x8x8xf32>
    %228 = arith.subf %222, %227 : vector<2x8x8xf32>
    %229 = math.exp %228 : vector<2x8x8xf32>
    %cst_100 = arith.constant dense<0.000000e+00> : vector<2x8xf32>
    %230 = vector.multi_reduction <add>, %229, %cst_100 [2] : vector<2x8x8xf32> to vector<2x8xf32>
    %231 = vector.shape_cast %230 : vector<2x8xf32> to vector<2x8x1xf32>
    %232 = vector.broadcast %231 : vector<2x8x1xf32> to vector<2x8x8xf32>
    %233 = arith.divf %229, %232 : vector<2x8x8xf32>
    "tpu.trace_start"() <{level = 10 : i32, message = "bqd,bed->bqe"}> : () -> ()
    %cst_101 = arith.constant dense<0.000000e+00> : vector<2x16x8xf32>
    %234 = tpu.matmul %219, %233, %cst_101 {dimension_numbers = #tpu.dot_dimension_numbers<[2], [2], [1], [1], [0, 0, 0, 1, 1, 1], [0], [0]>} : vector<2x16x8xf32>, vector<2x8x8xf32>, vector<2x16x8xf32> -> vector<2x16x8xf32>
    "tpu.trace_stop"() : () -> ()
    %235 = vector.extract_strided_slice %202 {offsets = [0, 0, 8], sizes = [2, 16, 8], strides = [1, 1, 1]} : vector<2x16x32xf32> to vector<2x16x8xf32>
    %236 = vector.extract_strided_slice %209 {offsets = [0, 0, 8], sizes = [2, 16, 8], strides = [1, 1, 1]} : vector<2x16x32xf32> to vector<2x16x8xf32>
    %237 = vector.extract_strided_slice %216 {offsets = [0, 0, 8], sizes = [2, 16, 8], strides = [1, 1, 1]} : vector<2x16x32xf32> to vector<2x16x8xf32>
    "tpu.trace_start"() <{level = 10 : i32, message = "bqd,bqe->bde"}> : () -> ()
    %cst_102 = arith.constant dense<0.000000e+00> : vector<2x8x8xf32>
    %238 = tpu.matmul %235, %236, %cst_102 {dimension_numbers = #tpu.dot_dimension_numbers<[1], [1], [2], [2], [0, 0, 0, 2, 1, 2], [0], [0]>} : vector<2x16x8xf32>, vector<2x16x8xf32>, vector<2x8x8xf32> -> vector<2x8x8xf32>
    "tpu.trace_stop"() : () -> ()
    %cst_103 = arith.constant 2.500000e-01 : f32
    %239 = vector.broadcast %cst_103 : f32 to vector<2x8x8xf32>
    %240 = arith.mulf %238, %239 : vector<2x8x8xf32>
    %cst_104 = arith.constant dense<0xFF800000> : vector<2x8xf32>
    %241 = vector.multi_reduction <maximumf>, %240, %cst_104 [2] : vector<2x8x8xf32> to vector<2x8xf32>
    %cst_105 = arith.constant 0xFF800000 : f32
    %242 = vector.broadcast %cst_105 : f32 to vector<2x8xf32>
    %243 = arith.maximumf %242, %241 : vector<2x8xf32>
    %244 = vector.shape_cast %243 : vector<2x8xf32> to vector<2x8x1xf32>
    %245 = vector.broadcast %244 : vector<2x8x1xf32> to vector<2x8x8xf32>
    %246 = arith.subf %240, %245 : vector<2x8x8xf32>
    %247 = math.exp %246 : vector<2x8x8xf32>
    %cst_106 = arith.constant dense<0.000000e+00> : vector<2x8xf32>
    %248 = vector.multi_reduction <add>, %247, %cst_106 [2] : vector<2x8x8xf32> to vector<2x8xf32>
    %249 = vector.shape_cast %248 : vector<2x8xf32> to vector<2x8x1xf32>
    %250 = vector.broadcast %249 : vector<2x8x1xf32> to vector<2x8x8xf32>
    %251 = arith.divf %247, %250 : vector<2x8x8xf32>
    "tpu.trace_start"() <{level = 10 : i32, message = "bqd,bed->bqe"}> : () -> ()
    %cst_107 = arith.constant dense<0.000000e+00> : vector<2x16x8xf32>
    %252 = tpu.matmul %237, %251, %cst_107 {dimension_numbers = #tpu.dot_dimension_numbers<[2], [2], [1], [1], [0, 0, 0, 1, 1, 1], [0], [0]>} : vector<2x16x8xf32>, vector<2x8x8xf32>, vector<2x16x8xf32> -> vector<2x16x8xf32>
    "tpu.trace_stop"() : () -> ()
    %253 = vector.extract_strided_slice %202 {offsets = [0, 0, 16], sizes = [2, 16, 8], strides = [1, 1, 1]} : vector<2x16x32xf32> to vector<2x16x8xf32>
    %254 = vector.extract_strided_slice %209 {offsets = [0, 0, 16], sizes = [2, 16, 8], strides = [1, 1, 1]} : vector<2x16x32xf32> to vector<2x16x8xf32>
    %255 = vector.extract_strided_slice %216 {offsets = [0, 0, 16], sizes = [2, 16, 8], strides = [1, 1, 1]} : vector<2x16x32xf32> to vector<2x16x8xf32>
    "tpu.trace_start"() <{level = 10 : i32, message = "bqd,bqe->bde"}> : () -> ()
    %cst_108 = arith.constant dense<0.000000e+00> : vector<2x8x8xf32>
    %256 = tpu.matmul %253, %254, %cst_108 {dimension_numbers = #tpu.dot_dimension_numbers<[1], [1], [2], [2], [0, 0, 0, 2, 1, 2], [0], [0]>} : vector<2x16x8xf32>, vector<2x16x8xf32>, vector<2x8x8xf32> -> vector<2x8x8xf32>
    "tpu.trace_stop"() : () -> ()
    %cst_109 = arith.constant 2.500000e-01 : f32
    %257 = vector.broadcast %cst_109 : f32 to vector<2x8x8xf32>
    %258 = arith.mulf %256, %257 : vector<2x8x8xf32>
    %cst_110 = arith.constant dense<0xFF800000> : vector<2x8xf32>
    %259 = vector.multi_reduction <maximumf>, %258, %cst_110 [2] : vector<2x8x8xf32> to vector<2x8xf32>
    %cst_111 = arith.constant 0xFF800000 : f32
    %260 = vector.broadcast %cst_111 : f32 to vector<2x8xf32>
    %261 = arith.maximumf %260, %259 : vector<2x8xf32>
    %262 = vector.shape_cast %261 : vector<2x8xf32> to vector<2x8x1xf32>
    %263 = vector.broadcast %262 : vector<2x8x1xf32> to vector<2x8x8xf32>
    %264 = arith.subf %258, %263 : vector<2x8x8xf32>
    %265 = math.exp %264 : vector<2x8x8xf32>
    %cst_112 = arith.constant dense<0.000000e+00> : vector<2x8xf32>
    %266 = vector.multi_reduction <add>, %265, %cst_112 [2] : vector<2x8x8xf32> to vector<2x8xf32>
    %267 = vector.shape_cast %266 : vector<2x8xf32> to vector<2x8x1xf32>
    %268 = vector.broadcast %267 : vector<2x8x1xf32> to vector<2x8x8xf32>
    %269 = arith.divf %265, %268 : vector<2x8x8xf32>
    "tpu.trace_start"() <{level = 10 : i32, message = "bqd,bed->bqe"}> : () -> ()
    %cst_113 = arith.constant dense<0.000000e+00> : vector<2x16x8xf32>
    %270 = tpu.matmul %255, %269, %cst_113 {dimension_numbers = #tpu.dot_dimension_numbers<[2], [2], [1], [1], [0, 0, 0, 1, 1, 1], [0], [0]>} : vector<2x16x8xf32>, vector<2x8x8xf32>, vector<2x16x8xf32> -> vector<2x16x8xf32>
    "tpu.trace_stop"() : () -> ()
    %271 = vector.extract_strided_slice %202 {offsets = [0, 0, 24], sizes = [2, 16, 8], strides = [1, 1, 1]} : vector<2x16x32xf32> to vector<2x16x8xf32>
    %272 = vector.extract_strided_slice %209 {offsets = [0, 0, 24], sizes = [2, 16, 8], strides = [1, 1, 1]} : vector<2x16x32xf32> to vector<2x16x8xf32>
    %273 = vector.extract_strided_slice %216 {offsets = [0, 0, 24], sizes = [2, 16, 8], strides = [1, 1, 1]} : vector<2x16x32xf32> to vector<2x16x8xf32>
    "tpu.trace_start"() <{level = 10 : i32, message = "bqd,bqe->bde"}> : () -> ()
    %cst_114 = arith.constant dense<0.000000e+00> : vector<2x8x8xf32>
    %274 = tpu.matmul %271, %272, %cst_114 {dimension_numbers = #tpu.dot_dimension_numbers<[1], [1], [2], [2], [0, 0, 0, 2, 1, 2], [0], [0]>} : vector<2x16x8xf32>, vector<2x16x8xf32>, vector<2x8x8xf32> -> vector<2x8x8xf32>
    "tpu.trace_stop"() : () -> ()
    %cst_115 = arith.constant 2.500000e-01 : f32
    %275 = vector.broadcast %cst_115 : f32 to vector<2x8x8xf32>
    %276 = arith.mulf %274, %275 : vector<2x8x8xf32>
    %cst_116 = arith.constant dense<0xFF800000> : vector<2x8xf32>
    %277 = vector.multi_reduction <maximumf>, %276, %cst_116 [2] : vector<2x8x8xf32> to vector<2x8xf32>
    %cst_117 = arith.constant 0xFF800000 : f32
    %278 = vector.broadcast %cst_117 : f32 to vector<2x8xf32>
    %279 = arith.maximumf %278, %277 : vector<2x8xf32>
    %280 = vector.shape_cast %279 : vector<2x8xf32> to vector<2x8x1xf32>
    %281 = vector.broadcast %280 : vector<2x8x1xf32> to vector<2x8x8xf32>
    %282 = arith.subf %276, %281 : vector<2x8x8xf32>
    %283 = math.exp %282 : vector<2x8x8xf32>
    %cst_118 = arith.constant dense<0.000000e+00> : vector<2x8xf32>
    %284 = vector.multi_reduction <add>, %283, %cst_118 [2] : vector<2x8x8xf32> to vector<2x8xf32>
    %285 = vector.shape_cast %284 : vector<2x8xf32> to vector<2x8x1xf32>
    %286 = vector.broadcast %285 : vector<2x8x1xf32> to vector<2x8x8xf32>
    %287 = arith.divf %283, %286 : vector<2x8x8xf32>
    "tpu.trace_start"() <{level = 10 : i32, message = "bqd,bed->bqe"}> : () -> ()
    %cst_119 = arith.constant dense<0.000000e+00> : vector<2x16x8xf32>
    %288 = tpu.matmul %273, %287, %cst_119 {dimension_numbers = #tpu.dot_dimension_numbers<[2], [2], [1], [1], [0, 0, 0, 1, 1, 1], [0], [0]>} : vector<2x16x8xf32>, vector<2x8x8xf32>, vector<2x16x8xf32> -> vector<2x16x8xf32>
    "tpu.trace_stop"() : () -> ()
    %289 = tpu.concatenate %234, %252, %270, %288 in 2 : vector<2x16x8xf32>, vector<2x16x8xf32>, vector<2x16x8xf32>, vector<2x16x8xf32> -> vector<2x16x32xf32>
    %290 = vector.shape_cast %289 : vector<2x16x32xf32> to vector<32x32xf32>
    %c8_120 = arith.constant 8 : index
    %c0_121 = arith.constant 0 : index
    %c0_122 = arith.constant 0 : index
    %291 = vector.load %arg3[%c8_120, %c0_121, %c0_122] : memref<17x32x32xf32, #tpu.memory_space<vmem>>, vector<1x32x32xf32>
    %292 = vector.shape_cast %291 : vector<1x32x32xf32> to vector<32x32xf32>
    %cst_123 = arith.constant dense<0.000000e+00> : vector<32x32xf32>
    %293 = tpu.matmul %290, %292, %cst_123 {dimension_numbers = #tpu.dot_dimension_numbers<[1], [0], [0], [1], [0, 0, 1, 1], [], []>} : vector<32x32xf32>, vector<32x32xf32>, vector<32x32xf32> -> vector<32x32xf32>
    %c12 = arith.constant 12 : index
    %c0_124 = arith.constant 0 : index
    %294 = vector.load %arg5[%c12, %c0_124] : memref<37x32xf32, #tpu.memory_space<vmem>>, vector<1x32xf32>
    %295 = vector.broadcast %294 : vector<1x32xf32> to vector<32x32xf32>
    %296 = arith.addf %293, %295 : vector<32x32xf32>
    %297 = arith.addf %45, %296 : vector<32x32xf32>
    %c13 = arith.constant 13 : index
    %c0_125 = arith.constant 0 : index
    %298 = vector.load %arg5[%c13, %c0_125] : memref<37x32xf32, #tpu.memory_space<vmem>>, vector<1x32xf32>
    %c14 = arith.constant 14 : index
    %c0_126 = arith.constant 0 : index
    %299 = vector.load %arg5[%c14, %c0_126] : memref<37x32xf32, #tpu.memory_space<vmem>>, vector<1x32xf32>
    %cst_127 = arith.constant dense<0.000000e+00> : vector<32xf32>
    %300 = vector.multi_reduction <add>, %297, %cst_127 [1] : vector<32x32xf32> to vector<32xf32>
    %301 = vector.shape_cast %300 : vector<32xf32> to vector<32x1xf32>
    %cst_128 = arith.constant 3.200000e+01 : f32
    %302 = vector.broadcast %cst_128 : f32 to vector<32x1xf32>
    %303 = arith.divf %301, %302 : vector<32x1xf32>
    %304 = vector.broadcast %303 : vector<32x1xf32> to vector<32x32xf32>
    %305 = arith.subf %297, %304 : vector<32x32xf32>
    %306 = arith.mulf %305, %305 : vector<32x32xf32>
    %cst_129 = arith.constant dense<0.000000e+00> : vector<32xf32>
    %307 = vector.multi_reduction <add>, %306, %cst_129 [1] : vector<32x32xf32> to vector<32xf32>
    %308 = vector.shape_cast %307 : vector<32xf32> to vector<32x1xf32>
    %cst_130 = arith.constant 3.200000e+01 : f32
    %309 = vector.broadcast %cst_130 : f32 to vector<32x1xf32>
    %310 = arith.divf %308, %309 : vector<32x1xf32>
    %311 = vector.broadcast %303 : vector<32x1xf32> to vector<32x32xf32>
    %312 = arith.subf %297, %311 : vector<32x32xf32>
    %cst_131 = arith.constant 9.99999974E-6 : f32
    %313 = vector.broadcast %cst_131 : f32 to vector<32x1xf32>
    %314 = arith.addf %310, %313 : vector<32x1xf32>
    %315 = math.rsqrt %314 : vector<32x1xf32>
    %316 = vector.broadcast %315 : vector<32x1xf32> to vector<32x32xf32>
    %317 = arith.mulf %312, %316 : vector<32x32xf32>
    %318 = vector.broadcast %298 : vector<1x32xf32> to vector<32x32xf32>
    %319 = arith.mulf %317, %318 : vector<32x32xf32>
    %320 = vector.broadcast %299 : vector<1x32xf32> to vector<32x32xf32>
    %321 = arith.addf %319, %320 : vector<32x32xf32>
    %322 = arith.addf %45, %195 : vector<32x32xf32>
    %323 = arith.addf %322, %321 : vector<32x32xf32>
    %c15 = arith.constant 15 : index
    %c0_132 = arith.constant 0 : index
    %324 = vector.load %arg5[%c15, %c0_132] : memref<37x32xf32, #tpu.memory_space<vmem>>, vector<1x32xf32>
    %c16 = arith.constant 16 : index
    %c0_133 = arith.constant 0 : index
    %325 = vector.load %arg5[%c16, %c0_133] : memref<37x32xf32, #tpu.memory_space<vmem>>, vector<1x32xf32>
    %cst_134 = arith.constant dense<0.000000e+00> : vector<32xf32>
    %326 = vector.multi_reduction <add>, %323, %cst_134 [1] : vector<32x32xf32> to vector<32xf32>
    %327 = vector.shape_cast %326 : vector<32xf32> to vector<32x1xf32>
    %cst_135 = arith.constant 3.200000e+01 : f32
    %328 = vector.broadcast %cst_135 : f32 to vector<32x1xf32>
    %329 = arith.divf %327, %328 : vector<32x1xf32>
    %330 = vector.broadcast %329 : vector<32x1xf32> to vector<32x32xf32>
    %331 = arith.subf %323, %330 : vector<32x32xf32>
    %332 = arith.mulf %331, %331 : vector<32x32xf32>
    %cst_136 = arith.constant dense<0.000000e+00> : vector<32xf32>
    %333 = vector.multi_reduction <add>, %332, %cst_136 [1] : vector<32x32xf32> to vector<32xf32>
    %334 = vector.shape_cast %333 : vector<32xf32> to vector<32x1xf32>
    %cst_137 = arith.constant 3.200000e+01 : f32
    %335 = vector.broadcast %cst_137 : f32 to vector<32x1xf32>
    %336 = arith.divf %334, %335 : vector<32x1xf32>
    %337 = vector.broadcast %329 : vector<32x1xf32> to vector<32x32xf32>
    %338 = arith.subf %323, %337 : vector<32x32xf32>
    %cst_138 = arith.constant 9.99999974E-6 : f32
    %339 = vector.broadcast %cst_138 : f32 to vector<32x1xf32>
    %340 = arith.addf %336, %339 : vector<32x1xf32>
    %341 = math.rsqrt %340 : vector<32x1xf32>
    %342 = vector.broadcast %341 : vector<32x1xf32> to vector<32x32xf32>
    %343 = arith.mulf %338, %342 : vector<32x32xf32>
    %344 = vector.broadcast %324 : vector<1x32xf32> to vector<32x32xf32>
    %345 = arith.mulf %343, %344 : vector<32x32xf32>
    %346 = vector.broadcast %325 : vector<1x32xf32> to vector<32x32xf32>
    %347 = arith.addf %345, %346 : vector<32x32xf32>
    %c0_139 = arith.constant 0 : index
    %c0_140 = arith.constant 0 : index
    %c0_141 = arith.constant 0 : index
    %348 = vector.load %arg4[%c0_139, %c0_140, %c0_141] : memref<4x32x64xf32, #tpu.memory_space<vmem>>, vector<1x32x64xf32>
    %349 = vector.shape_cast %348 : vector<1x32x64xf32> to vector<32x64xf32>
    %cst_142 = arith.constant dense<0.000000e+00> : vector<32x64xf32>
    %350 = tpu.matmul %347, %349, %cst_142 {dimension_numbers = #tpu.dot_dimension_numbers<[1], [0], [0], [1], [0, 0, 1, 1], [], []>} : vector<32x32xf32>, vector<32x64xf32>, vector<32x64xf32> -> vector<32x64xf32>
    %c0_143 = arith.constant 0 : index
    %c0_144 = arith.constant 0 : index
    %351 = vector.load %arg6[%c0_143, %c0_144] : memref<2x64xf32, #tpu.memory_space<vmem>>, vector<1x64xf32>
    %352 = vector.broadcast %351 : vector<1x64xf32> to vector<32x64xf32>
    %353 = arith.addf %350, %352 : vector<32x64xf32>
    %cst_145 = arith.constant 0.000000e+00 : f32
    %354 = vector.broadcast %cst_145 : f32 to vector<32x64xf32>
    %355 = arith.maximumf %353, %354 : vector<32x64xf32>
    %c1_146 = arith.constant 1 : index
    %c0_147 = arith.constant 0 : index
    %c0_148 = arith.constant 0 : index
    %356 = vector.load %arg4[%c1_146, %c0_147, %c0_148] : memref<4x32x64xf32, #tpu.memory_space<vmem>>, vector<1x32x64xf32>
    %357 = vector.shape_cast %356 : vector<1x32x64xf32> to vector<32x64xf32>
    %cst_149 = arith.constant dense<0.000000e+00> : vector<32x32xf32>
    %358 = tpu.matmul %355, %357, %cst_149 {dimension_numbers = #tpu.dot_dimension_numbers<[1], [1], [0], [0], [0, 0, 1, 0], [], []>} : vector<32x64xf32>, vector<32x64xf32>, vector<32x32xf32> -> vector<32x32xf32>
    %c17 = arith.constant 17 : index
    %c0_150 = arith.constant 0 : index
    %359 = vector.load %arg5[%c17, %c0_150] : memref<37x32xf32, #tpu.memory_space<vmem>>, vector<1x32xf32>
    %360 = vector.broadcast %359 : vector<1x32xf32> to vector<32x32xf32>
    %361 = arith.addf %358, %360 : vector<32x32xf32>
    %362 = arith.addf %347, %361 : vector<32x32xf32>
    %c18 = arith.constant 18 : index
    %c0_151 = arith.constant 0 : index
    %363 = vector.load %arg5[%c18, %c0_151] : memref<37x32xf32, #tpu.memory_space<vmem>>, vector<1x32xf32>
    %c19 = arith.constant 19 : index
    %c0_152 = arith.constant 0 : index
    %364 = vector.load %arg5[%c19, %c0_152] : memref<37x32xf32, #tpu.memory_space<vmem>>, vector<1x32xf32>
    %cst_153 = arith.constant dense<0.000000e+00> : vector<32xf32>
    %365 = vector.multi_reduction <add>, %362, %cst_153 [1] : vector<32x32xf32> to vector<32xf32>
    %366 = vector.shape_cast %365 : vector<32xf32> to vector<32x1xf32>
    %cst_154 = arith.constant 3.200000e+01 : f32
    %367 = vector.broadcast %cst_154 : f32 to vector<32x1xf32>
    %368 = arith.divf %366, %367 : vector<32x1xf32>
    %369 = vector.broadcast %368 : vector<32x1xf32> to vector<32x32xf32>
    %370 = arith.subf %362, %369 : vector<32x32xf32>
    %371 = arith.mulf %370, %370 : vector<32x32xf32>
    %cst_155 = arith.constant dense<0.000000e+00> : vector<32xf32>
    %372 = vector.multi_reduction <add>, %371, %cst_155 [1] : vector<32x32xf32> to vector<32xf32>
    %373 = vector.shape_cast %372 : vector<32xf32> to vector<32x1xf32>
    %cst_156 = arith.constant 3.200000e+01 : f32
    %374 = vector.broadcast %cst_156 : f32 to vector<32x1xf32>
    %375 = arith.divf %373, %374 : vector<32x1xf32>
    %376 = vector.broadcast %368 : vector<32x1xf32> to vector<32x32xf32>
    %377 = arith.subf %362, %376 : vector<32x32xf32>
    %cst_157 = arith.constant 9.99999974E-6 : f32
    %378 = vector.broadcast %cst_157 : f32 to vector<32x1xf32>
    %379 = arith.addf %375, %378 : vector<32x1xf32>
    %380 = math.rsqrt %379 : vector<32x1xf32>
    %381 = vector.broadcast %380 : vector<32x1xf32> to vector<32x32xf32>
    %382 = arith.mulf %377, %381 : vector<32x32xf32>
    %383 = vector.broadcast %363 : vector<1x32xf32> to vector<32x32xf32>
    %384 = arith.mulf %382, %383 : vector<32x32xf32>
    %385 = vector.broadcast %364 : vector<1x32xf32> to vector<32x32xf32>
    %386 = arith.addf %384, %385 : vector<32x32xf32>
    %c9_158 = arith.constant 9 : index
    %c0_159 = arith.constant 0 : index
    %c0_160 = arith.constant 0 : index
    %387 = vector.load %arg3[%c9_158, %c0_159, %c0_160] : memref<17x32x32xf32, #tpu.memory_space<vmem>>, vector<1x32x32xf32>
    %388 = vector.shape_cast %387 : vector<1x32x32xf32> to vector<32x32xf32>
    %cst_161 = arith.constant dense<0.000000e+00> : vector<32x32xf32>
    %389 = tpu.matmul %386, %388, %cst_161 {dimension_numbers = #tpu.dot_dimension_numbers<[1], [0], [0], [1], [0, 0, 1, 1], [], []>} : vector<32x32xf32>, vector<32x32xf32>, vector<32x32xf32> -> vector<32x32xf32>
    %c20 = arith.constant 20 : index
    %c0_162 = arith.constant 0 : index
    %390 = vector.load %arg5[%c20, %c0_162] : memref<37x32xf32, #tpu.memory_space<vmem>>, vector<1x32xf32>
    %391 = vector.broadcast %390 : vector<1x32xf32> to vector<32x32xf32>
    %392 = arith.addf %389, %391 : vector<32x32xf32>
    %393 = vector.shape_cast %392 : vector<32x32xf32> to vector<2x16x32xf32>
    %c10_163 = arith.constant 10 : index
    %c0_164 = arith.constant 0 : index
    %c0_165 = arith.constant 0 : index
    %394 = vector.load %arg3[%c10_163, %c0_164, %c0_165] : memref<17x32x32xf32, #tpu.memory_space<vmem>>, vector<1x32x32xf32>
    %395 = vector.shape_cast %394 : vector<1x32x32xf32> to vector<32x32xf32>
    %cst_166 = arith.constant dense<0.000000e+00> : vector<32x32xf32>
    %396 = tpu.matmul %386, %395, %cst_166 {dimension_numbers = #tpu.dot_dimension_numbers<[1], [0], [0], [1], [0, 0, 1, 1], [], []>} : vector<32x32xf32>, vector<32x32xf32>, vector<32x32xf32> -> vector<32x32xf32>
    %c21 = arith.constant 21 : index
    %c0_167 = arith.constant 0 : index
    %397 = vector.load %arg5[%c21, %c0_167] : memref<37x32xf32, #tpu.memory_space<vmem>>, vector<1x32xf32>
    %398 = vector.broadcast %397 : vector<1x32xf32> to vector<32x32xf32>
    %399 = arith.addf %396, %398 : vector<32x32xf32>
    %400 = vector.shape_cast %399 : vector<32x32xf32> to vector<2x16x32xf32>
    %c11_168 = arith.constant 11 : index
    %c0_169 = arith.constant 0 : index
    %c0_170 = arith.constant 0 : index
    %401 = vector.load %arg3[%c11_168, %c0_169, %c0_170] : memref<17x32x32xf32, #tpu.memory_space<vmem>>, vector<1x32x32xf32>
    %402 = vector.shape_cast %401 : vector<1x32x32xf32> to vector<32x32xf32>
    %cst_171 = arith.constant dense<0.000000e+00> : vector<32x32xf32>
    %403 = tpu.matmul %386, %402, %cst_171 {dimension_numbers = #tpu.dot_dimension_numbers<[1], [0], [0], [1], [0, 0, 1, 1], [], []>} : vector<32x32xf32>, vector<32x32xf32>, vector<32x32xf32> -> vector<32x32xf32>
    %c22 = arith.constant 22 : index
    %c0_172 = arith.constant 0 : index
    %404 = vector.load %arg5[%c22, %c0_172] : memref<37x32xf32, #tpu.memory_space<vmem>>, vector<1x32xf32>
    %405 = vector.broadcast %404 : vector<1x32xf32> to vector<32x32xf32>
    %406 = arith.addf %403, %405 : vector<32x32xf32>
    %407 = vector.shape_cast %406 : vector<32x32xf32> to vector<2x16x32xf32>
    %408 = vector.extract_strided_slice %393 {offsets = [0, 0, 0], sizes = [2, 16, 8], strides = [1, 1, 1]} : vector<2x16x32xf32> to vector<2x16x8xf32>
    %409 = vector.extract_strided_slice %400 {offsets = [0, 0, 0], sizes = [2, 16, 8], strides = [1, 1, 1]} : vector<2x16x32xf32> to vector<2x16x8xf32>
    %410 = vector.extract_strided_slice %407 {offsets = [0, 0, 0], sizes = [2, 16, 8], strides = [1, 1, 1]} : vector<2x16x32xf32> to vector<2x16x8xf32>
    "tpu.trace_start"() <{level = 10 : i32, message = "bqd,bkd->bqk"}> : () -> ()
    %cst_173 = arith.constant dense<0.000000e+00> : vector<2x16x16xf32>
    %411 = tpu.matmul %408, %409, %cst_173 {dimension_numbers = #tpu.dot_dimension_numbers<[2], [2], [1], [1], [0, 0, 0, 1, 1, 1], [0], [0]>} : vector<2x16x8xf32>, vector<2x16x8xf32>, vector<2x16x16xf32> -> vector<2x16x16xf32>
    "tpu.trace_stop"() : () -> ()
    %cst_174 = arith.constant 0.353553385 : f32
    %412 = vector.broadcast %cst_174 : f32 to vector<2x16x16xf32>
    %413 = arith.mulf %411, %412 : vector<2x16x16xf32>
    %cst_175 = arith.constant 0xFF800000 : f32
    %414 = vector.shape_cast %50 : vector<2x1x16xi1> to vector<2x1x16xi1>
    %415 = vector.broadcast %414 : vector<2x1x16xi1> to vector<2x16x16xi1>
    %416 = vector.broadcast %cst_175 : f32 to vector<2x16x16xf32>
    %417 = arith.select %415, %416, %413 : vector<2x16x16xi1>, vector<2x16x16xf32>
    %cst_176 = arith.constant dense<0xFF800000> : vector<2x16xf32>
    %418 = vector.multi_reduction <maximumf>, %417, %cst_176 [2] : vector<2x16x16xf32> to vector<2x16xf32>
    %cst_177 = arith.constant 0xFF800000 : f32
    %419 = vector.broadcast %cst_177 : f32 to vector<2x16xf32>
    %420 = arith.maximumf %419, %418 : vector<2x16xf32>
    %421 = vector.shape_cast %420 : vector<2x16xf32> to vector<2x16x1xf32>
    %422 = vector.broadcast %421 : vector<2x16x1xf32> to vector<2x16x16xf32>
    %423 = arith.subf %417, %422 : vector<2x16x16xf32>
    %424 = math.exp %423 : vector<2x16x16xf32>
    %cst_178 = arith.constant dense<0.000000e+00> : vector<2x16xf32>
    %425 = vector.multi_reduction <add>, %424, %cst_178 [2] : vector<2x16x16xf32> to vector<2x16xf32>
    %426 = vector.shape_cast %425 : vector<2x16xf32> to vector<2x16x1xf32>
    %427 = vector.broadcast %426 : vector<2x16x1xf32> to vector<2x16x16xf32>
    %428 = arith.divf %424, %427 : vector<2x16x16xf32>
    "tpu.trace_start"() <{level = 10 : i32, message = "bqk,bkd->bqd"}> : () -> ()
    %cst_179 = arith.constant dense<0.000000e+00> : vector<2x16x8xf32>
    %429 = tpu.matmul %428, %410, %cst_179 {dimension_numbers = #tpu.dot_dimension_numbers<[2], [1], [1], [2], [0, 0, 0, 1, 1, 2], [0], [0]>} : vector<2x16x16xf32>, vector<2x16x8xf32>, vector<2x16x8xf32> -> vector<2x16x8xf32>
    "tpu.trace_stop"() : () -> ()
    %430 = vector.extract_strided_slice %393 {offsets = [0, 0, 8], sizes = [2, 16, 8], strides = [1, 1, 1]} : vector<2x16x32xf32> to vector<2x16x8xf32>
    %431 = vector.extract_strided_slice %400 {offsets = [0, 0, 8], sizes = [2, 16, 8], strides = [1, 1, 1]} : vector<2x16x32xf32> to vector<2x16x8xf32>
    %432 = vector.extract_strided_slice %407 {offsets = [0, 0, 8], sizes = [2, 16, 8], strides = [1, 1, 1]} : vector<2x16x32xf32> to vector<2x16x8xf32>
    "tpu.trace_start"() <{level = 10 : i32, message = "bqd,bkd->bqk"}> : () -> ()
    %cst_180 = arith.constant dense<0.000000e+00> : vector<2x16x16xf32>
    %433 = tpu.matmul %430, %431, %cst_180 {dimension_numbers = #tpu.dot_dimension_numbers<[2], [2], [1], [1], [0, 0, 0, 1, 1, 1], [0], [0]>} : vector<2x16x8xf32>, vector<2x16x8xf32>, vector<2x16x16xf32> -> vector<2x16x16xf32>
    "tpu.trace_stop"() : () -> ()
    %cst_181 = arith.constant 0.353553385 : f32
    %434 = vector.broadcast %cst_181 : f32 to vector<2x16x16xf32>
    %435 = arith.mulf %433, %434 : vector<2x16x16xf32>
    %cst_182 = arith.constant 0xFF800000 : f32
    %436 = vector.shape_cast %50 : vector<2x1x16xi1> to vector<2x1x16xi1>
    %437 = vector.broadcast %436 : vector<2x1x16xi1> to vector<2x16x16xi1>
    %438 = vector.broadcast %cst_182 : f32 to vector<2x16x16xf32>
    %439 = arith.select %437, %438, %435 : vector<2x16x16xi1>, vector<2x16x16xf32>
    %cst_183 = arith.constant dense<0xFF800000> : vector<2x16xf32>
    %440 = vector.multi_reduction <maximumf>, %439, %cst_183 [2] : vector<2x16x16xf32> to vector<2x16xf32>
    %cst_184 = arith.constant 0xFF800000 : f32
    %441 = vector.broadcast %cst_184 : f32 to vector<2x16xf32>
    %442 = arith.maximumf %441, %440 : vector<2x16xf32>
    %443 = vector.shape_cast %442 : vector<2x16xf32> to vector<2x16x1xf32>
    %444 = vector.broadcast %443 : vector<2x16x1xf32> to vector<2x16x16xf32>
    %445 = arith.subf %439, %444 : vector<2x16x16xf32>
    %446 = math.exp %445 : vector<2x16x16xf32>
    %cst_185 = arith.constant dense<0.000000e+00> : vector<2x16xf32>
    %447 = vector.multi_reduction <add>, %446, %cst_185 [2] : vector<2x16x16xf32> to vector<2x16xf32>
    %448 = vector.shape_cast %447 : vector<2x16xf32> to vector<2x16x1xf32>
    %449 = vector.broadcast %448 : vector<2x16x1xf32> to vector<2x16x16xf32>
    %450 = arith.divf %446, %449 : vector<2x16x16xf32>
    "tpu.trace_start"() <{level = 10 : i32, message = "bqk,bkd->bqd"}> : () -> ()
    %cst_186 = arith.constant dense<0.000000e+00> : vector<2x16x8xf32>
    %451 = tpu.matmul %450, %432, %cst_186 {dimension_numbers = #tpu.dot_dimension_numbers<[2], [1], [1], [2], [0, 0, 0, 1, 1, 2], [0], [0]>} : vector<2x16x16xf32>, vector<2x16x8xf32>, vector<2x16x8xf32> -> vector<2x16x8xf32>
    "tpu.trace_stop"() : () -> ()
    %452 = vector.extract_strided_slice %393 {offsets = [0, 0, 16], sizes = [2, 16, 8], strides = [1, 1, 1]} : vector<2x16x32xf32> to vector<2x16x8xf32>
    %453 = vector.extract_strided_slice %400 {offsets = [0, 0, 16], sizes = [2, 16, 8], strides = [1, 1, 1]} : vector<2x16x32xf32> to vector<2x16x8xf32>
    %454 = vector.extract_strided_slice %407 {offsets = [0, 0, 16], sizes = [2, 16, 8], strides = [1, 1, 1]} : vector<2x16x32xf32> to vector<2x16x8xf32>
    "tpu.trace_start"() <{level = 10 : i32, message = "bqd,bkd->bqk"}> : () -> ()
    %cst_187 = arith.constant dense<0.000000e+00> : vector<2x16x16xf32>
    %455 = tpu.matmul %452, %453, %cst_187 {dimension_numbers = #tpu.dot_dimension_numbers<[2], [2], [1], [1], [0, 0, 0, 1, 1, 1], [0], [0]>} : vector<2x16x8xf32>, vector<2x16x8xf32>, vector<2x16x16xf32> -> vector<2x16x16xf32>
    "tpu.trace_stop"() : () -> ()
    %cst_188 = arith.constant 0.353553385 : f32
    %456 = vector.broadcast %cst_188 : f32 to vector<2x16x16xf32>
    %457 = arith.mulf %455, %456 : vector<2x16x16xf32>
    %cst_189 = arith.constant 0xFF800000 : f32
    %458 = vector.shape_cast %50 : vector<2x1x16xi1> to vector<2x1x16xi1>
    %459 = vector.broadcast %458 : vector<2x1x16xi1> to vector<2x16x16xi1>
    %460 = vector.broadcast %cst_189 : f32 to vector<2x16x16xf32>
    %461 = arith.select %459, %460, %457 : vector<2x16x16xi1>, vector<2x16x16xf32>
    %cst_190 = arith.constant dense<0xFF800000> : vector<2x16xf32>
    %462 = vector.multi_reduction <maximumf>, %461, %cst_190 [2] : vector<2x16x16xf32> to vector<2x16xf32>
    %cst_191 = arith.constant 0xFF800000 : f32
    %463 = vector.broadcast %cst_191 : f32 to vector<2x16xf32>
    %464 = arith.maximumf %463, %462 : vector<2x16xf32>
    %465 = vector.shape_cast %464 : vector<2x16xf32> to vector<2x16x1xf32>
    %466 = vector.broadcast %465 : vector<2x16x1xf32> to vector<2x16x16xf32>
    %467 = arith.subf %461, %466 : vector<2x16x16xf32>
    %468 = math.exp %467 : vector<2x16x16xf32>
    %cst_192 = arith.constant dense<0.000000e+00> : vector<2x16xf32>
    %469 = vector.multi_reduction <add>, %468, %cst_192 [2] : vector<2x16x16xf32> to vector<2x16xf32>
    %470 = vector.shape_cast %469 : vector<2x16xf32> to vector<2x16x1xf32>
    %471 = vector.broadcast %470 : vector<2x16x1xf32> to vector<2x16x16xf32>
    %472 = arith.divf %468, %471 : vector<2x16x16xf32>
    "tpu.trace_start"() <{level = 10 : i32, message = "bqk,bkd->bqd"}> : () -> ()
    %cst_193 = arith.constant dense<0.000000e+00> : vector<2x16x8xf32>
    %473 = tpu.matmul %472, %454, %cst_193 {dimension_numbers = #tpu.dot_dimension_numbers<[2], [1], [1], [2], [0, 0, 0, 1, 1, 2], [0], [0]>} : vector<2x16x16xf32>, vector<2x16x8xf32>, vector<2x16x8xf32> -> vector<2x16x8xf32>
    "tpu.trace_stop"() : () -> ()
    %474 = vector.extract_strided_slice %393 {offsets = [0, 0, 24], sizes = [2, 16, 8], strides = [1, 1, 1]} : vector<2x16x32xf32> to vector<2x16x8xf32>
    %475 = vector.extract_strided_slice %400 {offsets = [0, 0, 24], sizes = [2, 16, 8], strides = [1, 1, 1]} : vector<2x16x32xf32> to vector<2x16x8xf32>
    %476 = vector.extract_strided_slice %407 {offsets = [0, 0, 24], sizes = [2, 16, 8], strides = [1, 1, 1]} : vector<2x16x32xf32> to vector<2x16x8xf32>
    "tpu.trace_start"() <{level = 10 : i32, message = "bqd,bkd->bqk"}> : () -> ()
    %cst_194 = arith.constant dense<0.000000e+00> : vector<2x16x16xf32>
    %477 = tpu.matmul %474, %475, %cst_194 {dimension_numbers = #tpu.dot_dimension_numbers<[2], [2], [1], [1], [0, 0, 0, 1, 1, 1], [0], [0]>} : vector<2x16x8xf32>, vector<2x16x8xf32>, vector<2x16x16xf32> -> vector<2x16x16xf32>
    "tpu.trace_stop"() : () -> ()
    %cst_195 = arith.constant 0.353553385 : f32
    %478 = vector.broadcast %cst_195 : f32 to vector<2x16x16xf32>
    %479 = arith.mulf %477, %478 : vector<2x16x16xf32>
    %cst_196 = arith.constant 0xFF800000 : f32
    %480 = vector.shape_cast %50 : vector<2x1x16xi1> to vector<2x1x16xi1>
    %481 = vector.broadcast %480 : vector<2x1x16xi1> to vector<2x16x16xi1>
    %482 = vector.broadcast %cst_196 : f32 to vector<2x16x16xf32>
    %483 = arith.select %481, %482, %479 : vector<2x16x16xi1>, vector<2x16x16xf32>
    %cst_197 = arith.constant dense<0xFF800000> : vector<2x16xf32>
    %484 = vector.multi_reduction <maximumf>, %483, %cst_197 [2] : vector<2x16x16xf32> to vector<2x16xf32>
    %cst_198 = arith.constant 0xFF800000 : f32
    %485 = vector.broadcast %cst_198 : f32 to vector<2x16xf32>
    %486 = arith.maximumf %485, %484 : vector<2x16xf32>
    %487 = vector.shape_cast %486 : vector<2x16xf32> to vector<2x16x1xf32>
    %488 = vector.broadcast %487 : vector<2x16x1xf32> to vector<2x16x16xf32>
    %489 = arith.subf %483, %488 : vector<2x16x16xf32>
    %490 = math.exp %489 : vector<2x16x16xf32>
    %cst_199 = arith.constant dense<0.000000e+00> : vector<2x16xf32>
    %491 = vector.multi_reduction <add>, %490, %cst_199 [2] : vector<2x16x16xf32> to vector<2x16xf32>
    %492 = vector.shape_cast %491 : vector<2x16xf32> to vector<2x16x1xf32>
    %493 = vector.broadcast %492 : vector<2x16x1xf32> to vector<2x16x16xf32>
    %494 = arith.divf %490, %493 : vector<2x16x16xf32>
    "tpu.trace_start"() <{level = 10 : i32, message = "bqk,bkd->bqd"}> : () -> ()
    %cst_200 = arith.constant dense<0.000000e+00> : vector<2x16x8xf32>
    %495 = tpu.matmul %494, %476, %cst_200 {dimension_numbers = #tpu.dot_dimension_numbers<[2], [1], [1], [2], [0, 0, 0, 1, 1, 2], [0], [0]>} : vector<2x16x16xf32>, vector<2x16x8xf32>, vector<2x16x8xf32> -> vector<2x16x8xf32>
    "tpu.trace_stop"() : () -> ()
    %496 = tpu.concatenate %429, %451, %473, %495 in 2 : vector<2x16x8xf32>, vector<2x16x8xf32>, vector<2x16x8xf32>, vector<2x16x8xf32> -> vector<2x16x32xf32>
    %497 = vector.shape_cast %496 : vector<2x16x32xf32> to vector<32x32xf32>
    %c12_201 = arith.constant 12 : index
    %c0_202 = arith.constant 0 : index
    %c0_203 = arith.constant 0 : index
    %498 = vector.load %arg3[%c12_201, %c0_202, %c0_203] : memref<17x32x32xf32, #tpu.memory_space<vmem>>, vector<1x32x32xf32>
    %499 = vector.shape_cast %498 : vector<1x32x32xf32> to vector<32x32xf32>
    %cst_204 = arith.constant dense<0.000000e+00> : vector<32x32xf32>
    %500 = tpu.matmul %497, %499, %cst_204 {dimension_numbers = #tpu.dot_dimension_numbers<[1], [0], [0], [1], [0, 0, 1, 1], [], []>} : vector<32x32xf32>, vector<32x32xf32>, vector<32x32xf32> -> vector<32x32xf32>
    %c23 = arith.constant 23 : index
    %c0_205 = arith.constant 0 : index
    %501 = vector.load %arg5[%c23, %c0_205] : memref<37x32xf32, #tpu.memory_space<vmem>>, vector<1x32xf32>
    %502 = vector.broadcast %501 : vector<1x32xf32> to vector<32x32xf32>
    %503 = arith.addf %500, %502 : vector<32x32xf32>
    %504 = arith.addf %386, %503 : vector<32x32xf32>
    %c24 = arith.constant 24 : index
    %c0_206 = arith.constant 0 : index
    %505 = vector.load %arg5[%c24, %c0_206] : memref<37x32xf32, #tpu.memory_space<vmem>>, vector<1x32xf32>
    %c25 = arith.constant 25 : index
    %c0_207 = arith.constant 0 : index
    %506 = vector.load %arg5[%c25, %c0_207] : memref<37x32xf32, #tpu.memory_space<vmem>>, vector<1x32xf32>
    %cst_208 = arith.constant dense<0.000000e+00> : vector<32xf32>
    %507 = vector.multi_reduction <add>, %504, %cst_208 [1] : vector<32x32xf32> to vector<32xf32>
    %508 = vector.shape_cast %507 : vector<32xf32> to vector<32x1xf32>
    %cst_209 = arith.constant 3.200000e+01 : f32
    %509 = vector.broadcast %cst_209 : f32 to vector<32x1xf32>
    %510 = arith.divf %508, %509 : vector<32x1xf32>
    %511 = vector.broadcast %510 : vector<32x1xf32> to vector<32x32xf32>
    %512 = arith.subf %504, %511 : vector<32x32xf32>
    %513 = arith.mulf %512, %512 : vector<32x32xf32>
    %cst_210 = arith.constant dense<0.000000e+00> : vector<32xf32>
    %514 = vector.multi_reduction <add>, %513, %cst_210 [1] : vector<32x32xf32> to vector<32xf32>
    %515 = vector.shape_cast %514 : vector<32xf32> to vector<32x1xf32>
    %cst_211 = arith.constant 3.200000e+01 : f32
    %516 = vector.broadcast %cst_211 : f32 to vector<32x1xf32>
    %517 = arith.divf %515, %516 : vector<32x1xf32>
    %518 = vector.broadcast %510 : vector<32x1xf32> to vector<32x32xf32>
    %519 = arith.subf %504, %518 : vector<32x32xf32>
    %cst_212 = arith.constant 9.99999974E-6 : f32
    %520 = vector.broadcast %cst_212 : f32 to vector<32x1xf32>
    %521 = arith.addf %517, %520 : vector<32x1xf32>
    %522 = math.rsqrt %521 : vector<32x1xf32>
    %523 = vector.broadcast %522 : vector<32x1xf32> to vector<32x32xf32>
    %524 = arith.mulf %519, %523 : vector<32x32xf32>
    %525 = vector.broadcast %505 : vector<1x32xf32> to vector<32x32xf32>
    %526 = arith.mulf %524, %525 : vector<32x32xf32>
    %527 = vector.broadcast %506 : vector<1x32xf32> to vector<32x32xf32>
    %528 = arith.addf %526, %527 : vector<32x32xf32>
    %c13_213 = arith.constant 13 : index
    %c0_214 = arith.constant 0 : index
    %c0_215 = arith.constant 0 : index
    %529 = vector.load %arg3[%c13_213, %c0_214, %c0_215] : memref<17x32x32xf32, #tpu.memory_space<vmem>>, vector<1x32x32xf32>
    %530 = vector.shape_cast %529 : vector<1x32x32xf32> to vector<32x32xf32>
    %cst_216 = arith.constant dense<0.000000e+00> : vector<32x32xf32>
    %531 = tpu.matmul %386, %530, %cst_216 {dimension_numbers = #tpu.dot_dimension_numbers<[1], [0], [0], [1], [0, 0, 1, 1], [], []>} : vector<32x32xf32>, vector<32x32xf32>, vector<32x32xf32> -> vector<32x32xf32>
    %c26 = arith.constant 26 : index
    %c0_217 = arith.constant 0 : index
    %532 = vector.load %arg5[%c26, %c0_217] : memref<37x32xf32, #tpu.memory_space<vmem>>, vector<1x32xf32>
    %533 = vector.broadcast %532 : vector<1x32xf32> to vector<32x32xf32>
    %534 = arith.addf %531, %533 : vector<32x32xf32>
    %535 = vector.shape_cast %534 : vector<32x32xf32> to vector<2x16x32xf32>
    %c14_218 = arith.constant 14 : index
    %c0_219 = arith.constant 0 : index
    %c0_220 = arith.constant 0 : index
    %536 = vector.load %arg3[%c14_218, %c0_219, %c0_220] : memref<17x32x32xf32, #tpu.memory_space<vmem>>, vector<1x32x32xf32>
    %537 = vector.shape_cast %536 : vector<1x32x32xf32> to vector<32x32xf32>
    %cst_221 = arith.constant dense<0.000000e+00> : vector<32x32xf32>
    %538 = tpu.matmul %386, %537, %cst_221 {dimension_numbers = #tpu.dot_dimension_numbers<[1], [0], [0], [1], [0, 0, 1, 1], [], []>} : vector<32x32xf32>, vector<32x32xf32>, vector<32x32xf32> -> vector<32x32xf32>
    %c27 = arith.constant 27 : index
    %c0_222 = arith.constant 0 : index
    %539 = vector.load %arg5[%c27, %c0_222] : memref<37x32xf32, #tpu.memory_space<vmem>>, vector<1x32xf32>
    %540 = vector.broadcast %539 : vector<1x32xf32> to vector<32x32xf32>
    %541 = arith.addf %538, %540 : vector<32x32xf32>
    %542 = vector.shape_cast %541 : vector<32x32xf32> to vector<2x16x32xf32>
    %c15_223 = arith.constant 15 : index
    %c0_224 = arith.constant 0 : index
    %c0_225 = arith.constant 0 : index
    %543 = vector.load %arg3[%c15_223, %c0_224, %c0_225] : memref<17x32x32xf32, #tpu.memory_space<vmem>>, vector<1x32x32xf32>
    %544 = vector.shape_cast %543 : vector<1x32x32xf32> to vector<32x32xf32>
    %cst_226 = arith.constant dense<0.000000e+00> : vector<32x32xf32>
    %545 = tpu.matmul %386, %544, %cst_226 {dimension_numbers = #tpu.dot_dimension_numbers<[1], [0], [0], [1], [0, 0, 1, 1], [], []>} : vector<32x32xf32>, vector<32x32xf32>, vector<32x32xf32> -> vector<32x32xf32>
    %c28 = arith.constant 28 : index
    %c0_227 = arith.constant 0 : index
    %546 = vector.load %arg5[%c28, %c0_227] : memref<37x32xf32, #tpu.memory_space<vmem>>, vector<1x32xf32>
    %547 = vector.broadcast %546 : vector<1x32xf32> to vector<32x32xf32>
    %548 = arith.addf %545, %547 : vector<32x32xf32>
    %549 = vector.shape_cast %548 : vector<32x32xf32> to vector<2x16x32xf32>
    %550 = vector.extract_strided_slice %535 {offsets = [0, 0, 0], sizes = [2, 16, 8], strides = [1, 1, 1]} : vector<2x16x32xf32> to vector<2x16x8xf32>
    %551 = vector.extract_strided_slice %542 {offsets = [0, 0, 0], sizes = [2, 16, 8], strides = [1, 1, 1]} : vector<2x16x32xf32> to vector<2x16x8xf32>
    %552 = vector.extract_strided_slice %549 {offsets = [0, 0, 0], sizes = [2, 16, 8], strides = [1, 1, 1]} : vector<2x16x32xf32> to vector<2x16x8xf32>
    "tpu.trace_start"() <{level = 10 : i32, message = "bqd,bqe->bde"}> : () -> ()
    %cst_228 = arith.constant dense<0.000000e+00> : vector<2x8x8xf32>
    %553 = tpu.matmul %550, %551, %cst_228 {dimension_numbers = #tpu.dot_dimension_numbers<[1], [1], [2], [2], [0, 0, 0, 2, 1, 2], [0], [0]>} : vector<2x16x8xf32>, vector<2x16x8xf32>, vector<2x8x8xf32> -> vector<2x8x8xf32>
    "tpu.trace_stop"() : () -> ()
    %cst_229 = arith.constant 2.500000e-01 : f32
    %554 = vector.broadcast %cst_229 : f32 to vector<2x8x8xf32>
    %555 = arith.mulf %553, %554 : vector<2x8x8xf32>
    %cst_230 = arith.constant dense<0xFF800000> : vector<2x8xf32>
    %556 = vector.multi_reduction <maximumf>, %555, %cst_230 [2] : vector<2x8x8xf32> to vector<2x8xf32>
    %cst_231 = arith.constant 0xFF800000 : f32
    %557 = vector.broadcast %cst_231 : f32 to vector<2x8xf32>
    %558 = arith.maximumf %557, %556 : vector<2x8xf32>
    %559 = vector.shape_cast %558 : vector<2x8xf32> to vector<2x8x1xf32>
    %560 = vector.broadcast %559 : vector<2x8x1xf32> to vector<2x8x8xf32>
    %561 = arith.subf %555, %560 : vector<2x8x8xf32>
    %562 = math.exp %561 : vector<2x8x8xf32>
    %cst_232 = arith.constant dense<0.000000e+00> : vector<2x8xf32>
    %563 = vector.multi_reduction <add>, %562, %cst_232 [2] : vector<2x8x8xf32> to vector<2x8xf32>
    %564 = vector.shape_cast %563 : vector<2x8xf32> to vector<2x8x1xf32>
    %565 = vector.broadcast %564 : vector<2x8x1xf32> to vector<2x8x8xf32>
    %566 = arith.divf %562, %565 : vector<2x8x8xf32>
    "tpu.trace_start"() <{level = 10 : i32, message = "bqd,bed->bqe"}> : () -> ()
    %cst_233 = arith.constant dense<0.000000e+00> : vector<2x16x8xf32>
    %567 = tpu.matmul %552, %566, %cst_233 {dimension_numbers = #tpu.dot_dimension_numbers<[2], [2], [1], [1], [0, 0, 0, 1, 1, 1], [0], [0]>} : vector<2x16x8xf32>, vector<2x8x8xf32>, vector<2x16x8xf32> -> vector<2x16x8xf32>
    "tpu.trace_stop"() : () -> ()
    %568 = vector.extract_strided_slice %535 {offsets = [0, 0, 8], sizes = [2, 16, 8], strides = [1, 1, 1]} : vector<2x16x32xf32> to vector<2x16x8xf32>
    %569 = vector.extract_strided_slice %542 {offsets = [0, 0, 8], sizes = [2, 16, 8], strides = [1, 1, 1]} : vector<2x16x32xf32> to vector<2x16x8xf32>
    %570 = vector.extract_strided_slice %549 {offsets = [0, 0, 8], sizes = [2, 16, 8], strides = [1, 1, 1]} : vector<2x16x32xf32> to vector<2x16x8xf32>
    "tpu.trace_start"() <{level = 10 : i32, message = "bqd,bqe->bde"}> : () -> ()
    %cst_234 = arith.constant dense<0.000000e+00> : vector<2x8x8xf32>
    %571 = tpu.matmul %568, %569, %cst_234 {dimension_numbers = #tpu.dot_dimension_numbers<[1], [1], [2], [2], [0, 0, 0, 2, 1, 2], [0], [0]>} : vector<2x16x8xf32>, vector<2x16x8xf32>, vector<2x8x8xf32> -> vector<2x8x8xf32>
    "tpu.trace_stop"() : () -> ()
    %cst_235 = arith.constant 2.500000e-01 : f32
    %572 = vector.broadcast %cst_235 : f32 to vector<2x8x8xf32>
    %573 = arith.mulf %571, %572 : vector<2x8x8xf32>
    %cst_236 = arith.constant dense<0xFF800000> : vector<2x8xf32>
    %574 = vector.multi_reduction <maximumf>, %573, %cst_236 [2] : vector<2x8x8xf32> to vector<2x8xf32>
    %cst_237 = arith.constant 0xFF800000 : f32
    %575 = vector.broadcast %cst_237 : f32 to vector<2x8xf32>
    %576 = arith.maximumf %575, %574 : vector<2x8xf32>
    %577 = vector.shape_cast %576 : vector<2x8xf32> to vector<2x8x1xf32>
    %578 = vector.broadcast %577 : vector<2x8x1xf32> to vector<2x8x8xf32>
    %579 = arith.subf %573, %578 : vector<2x8x8xf32>
    %580 = math.exp %579 : vector<2x8x8xf32>
    %cst_238 = arith.constant dense<0.000000e+00> : vector<2x8xf32>
    %581 = vector.multi_reduction <add>, %580, %cst_238 [2] : vector<2x8x8xf32> to vector<2x8xf32>
    %582 = vector.shape_cast %581 : vector<2x8xf32> to vector<2x8x1xf32>
    %583 = vector.broadcast %582 : vector<2x8x1xf32> to vector<2x8x8xf32>
    %584 = arith.divf %580, %583 : vector<2x8x8xf32>
    "tpu.trace_start"() <{level = 10 : i32, message = "bqd,bed->bqe"}> : () -> ()
    %cst_239 = arith.constant dense<0.000000e+00> : vector<2x16x8xf32>
    %585 = tpu.matmul %570, %584, %cst_239 {dimension_numbers = #tpu.dot_dimension_numbers<[2], [2], [1], [1], [0, 0, 0, 1, 1, 1], [0], [0]>} : vector<2x16x8xf32>, vector<2x8x8xf32>, vector<2x16x8xf32> -> vector<2x16x8xf32>
    "tpu.trace_stop"() : () -> ()
    %586 = vector.extract_strided_slice %535 {offsets = [0, 0, 16], sizes = [2, 16, 8], strides = [1, 1, 1]} : vector<2x16x32xf32> to vector<2x16x8xf32>
    %587 = vector.extract_strided_slice %542 {offsets = [0, 0, 16], sizes = [2, 16, 8], strides = [1, 1, 1]} : vector<2x16x32xf32> to vector<2x16x8xf32>
    %588 = vector.extract_strided_slice %549 {offsets = [0, 0, 16], sizes = [2, 16, 8], strides = [1, 1, 1]} : vector<2x16x32xf32> to vector<2x16x8xf32>
    "tpu.trace_start"() <{level = 10 : i32, message = "bqd,bqe->bde"}> : () -> ()
    %cst_240 = arith.constant dense<0.000000e+00> : vector<2x8x8xf32>
    %589 = tpu.matmul %586, %587, %cst_240 {dimension_numbers = #tpu.dot_dimension_numbers<[1], [1], [2], [2], [0, 0, 0, 2, 1, 2], [0], [0]>} : vector<2x16x8xf32>, vector<2x16x8xf32>, vector<2x8x8xf32> -> vector<2x8x8xf32>
    "tpu.trace_stop"() : () -> ()
    %cst_241 = arith.constant 2.500000e-01 : f32
    %590 = vector.broadcast %cst_241 : f32 to vector<2x8x8xf32>
    %591 = arith.mulf %589, %590 : vector<2x8x8xf32>
    %cst_242 = arith.constant dense<0xFF800000> : vector<2x8xf32>
    %592 = vector.multi_reduction <maximumf>, %591, %cst_242 [2] : vector<2x8x8xf32> to vector<2x8xf32>
    %cst_243 = arith.constant 0xFF800000 : f32
    %593 = vector.broadcast %cst_243 : f32 to vector<2x8xf32>
    %594 = arith.maximumf %593, %592 : vector<2x8xf32>
    %595 = vector.shape_cast %594 : vector<2x8xf32> to vector<2x8x1xf32>
    %596 = vector.broadcast %595 : vector<2x8x1xf32> to vector<2x8x8xf32>
    %597 = arith.subf %591, %596 : vector<2x8x8xf32>
    %598 = math.exp %597 : vector<2x8x8xf32>
    %cst_244 = arith.constant dense<0.000000e+00> : vector<2x8xf32>
    %599 = vector.multi_reduction <add>, %598, %cst_244 [2] : vector<2x8x8xf32> to vector<2x8xf32>
    %600 = vector.shape_cast %599 : vector<2x8xf32> to vector<2x8x1xf32>
    %601 = vector.broadcast %600 : vector<2x8x1xf32> to vector<2x8x8xf32>
    %602 = arith.divf %598, %601 : vector<2x8x8xf32>
    "tpu.trace_start"() <{level = 10 : i32, message = "bqd,bed->bqe"}> : () -> ()
    %cst_245 = arith.constant dense<0.000000e+00> : vector<2x16x8xf32>
    %603 = tpu.matmul %588, %602, %cst_245 {dimension_numbers = #tpu.dot_dimension_numbers<[2], [2], [1], [1], [0, 0, 0, 1, 1, 1], [0], [0]>} : vector<2x16x8xf32>, vector<2x8x8xf32>, vector<2x16x8xf32> -> vector<2x16x8xf32>
    "tpu.trace_stop"() : () -> ()
    %604 = vector.extract_strided_slice %535 {offsets = [0, 0, 24], sizes = [2, 16, 8], strides = [1, 1, 1]} : vector<2x16x32xf32> to vector<2x16x8xf32>
    %605 = vector.extract_strided_slice %542 {offsets = [0, 0, 24], sizes = [2, 16, 8], strides = [1, 1, 1]} : vector<2x16x32xf32> to vector<2x16x8xf32>
    %606 = vector.extract_strided_slice %549 {offsets = [0, 0, 24], sizes = [2, 16, 8], strides = [1, 1, 1]} : vector<2x16x32xf32> to vector<2x16x8xf32>
    "tpu.trace_start"() <{level = 10 : i32, message = "bqd,bqe->bde"}> : () -> ()
    %cst_246 = arith.constant dense<0.000000e+00> : vector<2x8x8xf32>
    %607 = tpu.matmul %604, %605, %cst_246 {dimension_numbers = #tpu.dot_dimension_numbers<[1], [1], [2], [2], [0, 0, 0, 2, 1, 2], [0], [0]>} : vector<2x16x8xf32>, vector<2x16x8xf32>, vector<2x8x8xf32> -> vector<2x8x8xf32>
    "tpu.trace_stop"() : () -> ()
    %cst_247 = arith.constant 2.500000e-01 : f32
    %608 = vector.broadcast %cst_247 : f32 to vector<2x8x8xf32>
    %609 = arith.mulf %607, %608 : vector<2x8x8xf32>
    %cst_248 = arith.constant dense<0xFF800000> : vector<2x8xf32>
    %610 = vector.multi_reduction <maximumf>, %609, %cst_248 [2] : vector<2x8x8xf32> to vector<2x8xf32>
    %cst_249 = arith.constant 0xFF800000 : f32
    %611 = vector.broadcast %cst_249 : f32 to vector<2x8xf32>
    %612 = arith.maximumf %611, %610 : vector<2x8xf32>
    %613 = vector.shape_cast %612 : vector<2x8xf32> to vector<2x8x1xf32>
    %614 = vector.broadcast %613 : vector<2x8x1xf32> to vector<2x8x8xf32>
    %615 = arith.subf %609, %614 : vector<2x8x8xf32>
    %616 = math.exp %615 : vector<2x8x8xf32>
    %cst_250 = arith.constant dense<0.000000e+00> : vector<2x8xf32>
    %617 = vector.multi_reduction <add>, %616, %cst_250 [2] : vector<2x8x8xf32> to vector<2x8xf32>
    %618 = vector.shape_cast %617 : vector<2x8xf32> to vector<2x8x1xf32>
    %619 = vector.broadcast %618 : vector<2x8x1xf32> to vector<2x8x8xf32>
    %620 = arith.divf %616, %619 : vector<2x8x8xf32>
    "tpu.trace_start"() <{level = 10 : i32, message = "bqd,bed->bqe"}> : () -> ()
    %cst_251 = arith.constant dense<0.000000e+00> : vector<2x16x8xf32>
    %621 = tpu.matmul %606, %620, %cst_251 {dimension_numbers = #tpu.dot_dimension_numbers<[2], [2], [1], [1], [0, 0, 0, 1, 1, 1], [0], [0]>} : vector<2x16x8xf32>, vector<2x8x8xf32>, vector<2x16x8xf32> -> vector<2x16x8xf32>
    "tpu.trace_stop"() : () -> ()
    %622 = tpu.concatenate %567, %585, %603, %621 in 2 : vector<2x16x8xf32>, vector<2x16x8xf32>, vector<2x16x8xf32>, vector<2x16x8xf32> -> vector<2x16x32xf32>
    %623 = vector.shape_cast %622 : vector<2x16x32xf32> to vector<32x32xf32>
    %c16_252 = arith.constant 16 : index
    %c0_253 = arith.constant 0 : index
    %c0_254 = arith.constant 0 : index
    %624 = vector.load %arg3[%c16_252, %c0_253, %c0_254] : memref<17x32x32xf32, #tpu.memory_space<vmem>>, vector<1x32x32xf32>
    %625 = vector.shape_cast %624 : vector<1x32x32xf32> to vector<32x32xf32>
    %cst_255 = arith.constant dense<0.000000e+00> : vector<32x32xf32>
    %626 = tpu.matmul %623, %625, %cst_255 {dimension_numbers = #tpu.dot_dimension_numbers<[1], [0], [0], [1], [0, 0, 1, 1], [], []>} : vector<32x32xf32>, vector<32x32xf32>, vector<32x32xf32> -> vector<32x32xf32>
    %c29 = arith.constant 29 : index
    %c0_256 = arith.constant 0 : index
    %627 = vector.load %arg5[%c29, %c0_256] : memref<37x32xf32, #tpu.memory_space<vmem>>, vector<1x32xf32>
    %628 = vector.broadcast %627 : vector<1x32xf32> to vector<32x32xf32>
    %629 = arith.addf %626, %628 : vector<32x32xf32>
    %630 = arith.addf %386, %629 : vector<32x32xf32>
    %c30 = arith.constant 30 : index
    %c0_257 = arith.constant 0 : index
    %631 = vector.load %arg5[%c30, %c0_257] : memref<37x32xf32, #tpu.memory_space<vmem>>, vector<1x32xf32>
    %c31 = arith.constant 31 : index
    %c0_258 = arith.constant 0 : index
    %632 = vector.load %arg5[%c31, %c0_258] : memref<37x32xf32, #tpu.memory_space<vmem>>, vector<1x32xf32>
    %cst_259 = arith.constant dense<0.000000e+00> : vector<32xf32>
    %633 = vector.multi_reduction <add>, %630, %cst_259 [1] : vector<32x32xf32> to vector<32xf32>
    %634 = vector.shape_cast %633 : vector<32xf32> to vector<32x1xf32>
    %cst_260 = arith.constant 3.200000e+01 : f32
    %635 = vector.broadcast %cst_260 : f32 to vector<32x1xf32>
    %636 = arith.divf %634, %635 : vector<32x1xf32>
    %637 = vector.broadcast %636 : vector<32x1xf32> to vector<32x32xf32>
    %638 = arith.subf %630, %637 : vector<32x32xf32>
    %639 = arith.mulf %638, %638 : vector<32x32xf32>
    %cst_261 = arith.constant dense<0.000000e+00> : vector<32xf32>
    %640 = vector.multi_reduction <add>, %639, %cst_261 [1] : vector<32x32xf32> to vector<32xf32>
    %641 = vector.shape_cast %640 : vector<32xf32> to vector<32x1xf32>
    %cst_262 = arith.constant 3.200000e+01 : f32
    %642 = vector.broadcast %cst_262 : f32 to vector<32x1xf32>
    %643 = arith.divf %641, %642 : vector<32x1xf32>
    %644 = vector.broadcast %636 : vector<32x1xf32> to vector<32x32xf32>
    %645 = arith.subf %630, %644 : vector<32x32xf32>
    %cst_263 = arith.constant 9.99999974E-6 : f32
    %646 = vector.broadcast %cst_263 : f32 to vector<32x1xf32>
    %647 = arith.addf %643, %646 : vector<32x1xf32>
    %648 = math.rsqrt %647 : vector<32x1xf32>
    %649 = vector.broadcast %648 : vector<32x1xf32> to vector<32x32xf32>
    %650 = arith.mulf %645, %649 : vector<32x32xf32>
    %651 = vector.broadcast %631 : vector<1x32xf32> to vector<32x32xf32>
    %652 = arith.mulf %650, %651 : vector<32x32xf32>
    %653 = vector.broadcast %632 : vector<1x32xf32> to vector<32x32xf32>
    %654 = arith.addf %652, %653 : vector<32x32xf32>
    %655 = arith.addf %386, %528 : vector<32x32xf32>
    %656 = arith.addf %655, %654 : vector<32x32xf32>
    %c32 = arith.constant 32 : index
    %c0_264 = arith.constant 0 : index
    %657 = vector.load %arg5[%c32, %c0_264] : memref<37x32xf32, #tpu.memory_space<vmem>>, vector<1x32xf32>
    %c33 = arith.constant 33 : index
    %c0_265 = arith.constant 0 : index
    %658 = vector.load %arg5[%c33, %c0_265] : memref<37x32xf32, #tpu.memory_space<vmem>>, vector<1x32xf32>
    %cst_266 = arith.constant dense<0.000000e+00> : vector<32xf32>
    %659 = vector.multi_reduction <add>, %656, %cst_266 [1] : vector<32x32xf32> to vector<32xf32>
    %660 = vector.shape_cast %659 : vector<32xf32> to vector<32x1xf32>
    %cst_267 = arith.constant 3.200000e+01 : f32
    %661 = vector.broadcast %cst_267 : f32 to vector<32x1xf32>
    %662 = arith.divf %660, %661 : vector<32x1xf32>
    %663 = vector.broadcast %662 : vector<32x1xf32> to vector<32x32xf32>
    %664 = arith.subf %656, %663 : vector<32x32xf32>
    %665 = arith.mulf %664, %664 : vector<32x32xf32>
    %cst_268 = arith.constant dense<0.000000e+00> : vector<32xf32>
    %666 = vector.multi_reduction <add>, %665, %cst_268 [1] : vector<32x32xf32> to vector<32xf32>
    %667 = vector.shape_cast %666 : vector<32xf32> to vector<32x1xf32>
    %cst_269 = arith.constant 3.200000e+01 : f32
    %668 = vector.broadcast %cst_269 : f32 to vector<32x1xf32>
    %669 = arith.divf %667, %668 : vector<32x1xf32>
    %670 = vector.broadcast %662 : vector<32x1xf32> to vector<32x32xf32>
    %671 = arith.subf %656, %670 : vector<32x32xf32>
    %cst_270 = arith.constant 9.99999974E-6 : f32
    %672 = vector.broadcast %cst_270 : f32 to vector<32x1xf32>
    %673 = arith.addf %669, %672 : vector<32x1xf32>
    %674 = math.rsqrt %673 : vector<32x1xf32>
    %675 = vector.broadcast %674 : vector<32x1xf32> to vector<32x32xf32>
    %676 = arith.mulf %671, %675 : vector<32x32xf32>
    %677 = vector.broadcast %657 : vector<1x32xf32> to vector<32x32xf32>
    %678 = arith.mulf %676, %677 : vector<32x32xf32>
    %679 = vector.broadcast %658 : vector<1x32xf32> to vector<32x32xf32>
    %680 = arith.addf %678, %679 : vector<32x32xf32>
    %c2_271 = arith.constant 2 : index
    %c0_272 = arith.constant 0 : index
    %c0_273 = arith.constant 0 : index
    %681 = vector.load %arg4[%c2_271, %c0_272, %c0_273] : memref<4x32x64xf32, #tpu.memory_space<vmem>>, vector<1x32x64xf32>
    %682 = vector.shape_cast %681 : vector<1x32x64xf32> to vector<32x64xf32>
    %cst_274 = arith.constant dense<0.000000e+00> : vector<32x64xf32>
    %683 = tpu.matmul %680, %682, %cst_274 {dimension_numbers = #tpu.dot_dimension_numbers<[1], [0], [0], [1], [0, 0, 1, 1], [], []>} : vector<32x32xf32>, vector<32x64xf32>, vector<32x64xf32> -> vector<32x64xf32>
    %c1_275 = arith.constant 1 : index
    %c0_276 = arith.constant 0 : index
    %684 = vector.load %arg6[%c1_275, %c0_276] : memref<2x64xf32, #tpu.memory_space<vmem>>, vector<1x64xf32>
    %685 = vector.broadcast %684 : vector<1x64xf32> to vector<32x64xf32>
    %686 = arith.addf %683, %685 : vector<32x64xf32>
    %cst_277 = arith.constant 0.000000e+00 : f32
    %687 = vector.broadcast %cst_277 : f32 to vector<32x64xf32>
    %688 = arith.maximumf %686, %687 : vector<32x64xf32>
    %c3_278 = arith.constant 3 : index
    %c0_279 = arith.constant 0 : index
    %c0_280 = arith.constant 0 : index
    %689 = vector.load %arg4[%c3_278, %c0_279, %c0_280] : memref<4x32x64xf32, #tpu.memory_space<vmem>>, vector<1x32x64xf32>
    %690 = vector.shape_cast %689 : vector<1x32x64xf32> to vector<32x64xf32>
    %cst_281 = arith.constant dense<0.000000e+00> : vector<32x32xf32>
    %691 = tpu.matmul %688, %690, %cst_281 {dimension_numbers = #tpu.dot_dimension_numbers<[1], [1], [0], [0], [0, 0, 1, 0], [], []>} : vector<32x64xf32>, vector<32x64xf32>, vector<32x32xf32> -> vector<32x32xf32>
    %c34 = arith.constant 34 : index
    %c0_282 = arith.constant 0 : index
    %692 = vector.load %arg5[%c34, %c0_282] : memref<37x32xf32, #tpu.memory_space<vmem>>, vector<1x32xf32>
    %693 = vector.broadcast %692 : vector<1x32xf32> to vector<32x32xf32>
    %694 = arith.addf %691, %693 : vector<32x32xf32>
    %695 = arith.addf %680, %694 : vector<32x32xf32>
    %c35 = arith.constant 35 : index
    %c0_283 = arith.constant 0 : index
    %696 = vector.load %arg5[%c35, %c0_283] : memref<37x32xf32, #tpu.memory_space<vmem>>, vector<1x32xf32>
    %c36 = arith.constant 36 : index
    %c0_284 = arith.constant 0 : index
    %697 = vector.load %arg5[%c36, %c0_284] : memref<37x32xf32, #tpu.memory_space<vmem>>, vector<1x32xf32>
    %cst_285 = arith.constant dense<0.000000e+00> : vector<32xf32>
    %698 = vector.multi_reduction <add>, %695, %cst_285 [1] : vector<32x32xf32> to vector<32xf32>
    %699 = vector.shape_cast %698 : vector<32xf32> to vector<32x1xf32>
    %cst_286 = arith.constant 3.200000e+01 : f32
    %700 = vector.broadcast %cst_286 : f32 to vector<32x1xf32>
    %701 = arith.divf %699, %700 : vector<32x1xf32>
    %702 = vector.broadcast %701 : vector<32x1xf32> to vector<32x32xf32>
    %703 = arith.subf %695, %702 : vector<32x32xf32>
    %704 = arith.mulf %703, %703 : vector<32x32xf32>
    %cst_287 = arith.constant dense<0.000000e+00> : vector<32xf32>
    %705 = vector.multi_reduction <add>, %704, %cst_287 [1] : vector<32x32xf32> to vector<32xf32>
    %706 = vector.shape_cast %705 : vector<32xf32> to vector<32x1xf32>
    %cst_288 = arith.constant 3.200000e+01 : f32
    %707 = vector.broadcast %cst_288 : f32 to vector<32x1xf32>
    %708 = arith.divf %706, %707 : vector<32x1xf32>
    %709 = vector.broadcast %701 : vector<32x1xf32> to vector<32x32xf32>
    %710 = arith.subf %695, %709 : vector<32x32xf32>
    %cst_289 = arith.constant 9.99999974E-6 : f32
    %711 = vector.broadcast %cst_289 : f32 to vector<32x1xf32>
    %712 = arith.addf %708, %711 : vector<32x1xf32>
    %713 = math.rsqrt %712 : vector<32x1xf32>
    %714 = vector.broadcast %713 : vector<32x1xf32> to vector<32x32xf32>
    %715 = arith.mulf %710, %714 : vector<32x32xf32>
    %716 = vector.broadcast %696 : vector<1x32xf32> to vector<32x32xf32>
    %717 = arith.mulf %715, %716 : vector<32x32xf32>
    %718 = vector.broadcast %697 : vector<1x32xf32> to vector<32x32xf32>
    %719 = arith.addf %717, %718 : vector<32x32xf32>
    %720 = vector.shape_cast %719 : vector<32x32xf32> to vector<2x16x32xf32>
    %c0_290 = arith.constant 0 : index
    %c0_291 = arith.constant 0 : index
    %c0_292 = arith.constant 0 : index
    %721 = vector.load %arg7[%c0_290, %c0_291, %c0_292] : memref<2x16x32xf32, #tpu.memory_space<vmem>>, vector<2x16x32xf32>
    tpu.vector_store %arg7[%c0_290, %c0_291, %c0_292], %720 {strides = array<i32>} : memref<2x16x32xf32, #tpu.memory_space<vmem>>, vector<2x16x32xf32>,
    return
  }
  func.func @transform_0(%arg0: i32) -> (i32, i32, i32) {
    %c0_i32 = arith.constant 0 : i32
    %c0_i32_0 = arith.constant 0 : i32
    %c0_i32_1 = arith.constant 0 : i32
    %c0_i32_2 = arith.constant 0 : i32
    return %c0_i32, %c0_i32_0, %c0_i32_1 : i32, i32, i32
  }
  func.func @transform_1(%arg0: i32) -> (i32, i32) {
    %c0_i32 = arith.constant 0 : i32
    %c0_i32_0 = arith.constant 0 : i32
    %c0_i32_1 = arith.constant 0 : i32
    return %c0_i32, %c0_i32_0 : i32, i32
  }
  func.func @transform_2(%arg0: i32) -> (i32, i32, i32) {
    %c0_i32 = arith.constant 0 : i32
    %c0_i32_0 = arith.constant 0 : i32
    %c0_i32_1 = arith.constant 0 : i32
    %c0_i32_2 = arith.constant 0 : i32
    return %c0_i32, %c0_i32_0, %c0_i32_1 : i32, i32, i32
  }
  func.func @transform_3(%arg0: i32) -> (i32, i32, i32) {
    %c0_i32 = arith.constant 0 : i32
    %c0_i32_0 = arith.constant 0 : i32
    %c0_i32_1 = arith.constant 0 : i32
    %c0_i32_2 = arith.constant 0 : i32
    return %c0_i32, %c0_i32_0, %c0_i32_1 : i32, i32, i32
  }
  func.func @transform_4(%arg0: i32) -> (i32, i32) {
    %c0_i32 = arith.constant 0 : i32
    %c0_i32_0 = arith.constant 0 : i32
    %c0_i32_1 = arith.constant 0 : i32
    return %c0_i32, %c0_i32_0 : i32, i32
  }
  func.func @transform_5(%arg0: i32) -> (i32, i32) {
    %c0_i32 = arith.constant 0 : i32
    %c0_i32_0 = arith.constant 0 : i32
    %c0_i32_1 = arith.constant 0 : i32
    return %c0_i32, %c0_i32_0 : i32, i32
  }
  func.func @transform_6(%arg0: i32) -> (i32, i32, i32) {
    %c0_i32 = arith.constant 0 : i32
    %c0_i32_0 = arith.constant 0 : i32
    %c0_i32_1 = arith.constant 0 : i32
    %c0_i32_2 = arith.constant 0 : i32
    return %c0_i32, %c0_i32_0, %c0_i32_1 : i32, i32, i32
  }
  func.func @transform_7(%arg0: i32) -> (i32, i32, i32) {
    %c0_i32 = arith.constant 0 : i32
    %c0_i32_0 = arith.constant 0 : i32
    %c0_i32_1 = arith.constant 0 : i32
    %c0_i32_2 = arith.constant 0 : i32
    return %c0_i32, %c0_i32_0, %c0_i32_1 : i32, i32, i32
  }
}

</mosaic_0001>

<llo_original>
// kernel: transformer_encoder.1
$region0: #{transformer_encoder.1}
  #allocation0 [shape = 'u32[]', space=smem, size = 0x4, offset = 0x4, fixed_abs, tag = 'smem constant byte address 0x4 - core index']
  #allocation1 [shape = 'u32[144,128]{1,0:T(1,128)}', space=vmem, size = 0x12000, scoped, tag = 'internal scratch']
  %s0 = inlined_call_operand.vmem [shape: f32[2,16,32], index: 0, kind: input, shape index: {}]
  %s1 = inlined_call_operand.vmem [shape: f32[16,32], index: 1, kind: input, shape index: {}]
  %s2 = inlined_call_operand.hbm [shape: f32[17,32,32], index: 2, kind: input, shape index: {}]
  %s3 = inlined_call_operand.hbm [shape: f32[4,32,64], index: 3, kind: input, shape index: {}]
  %s4 = inlined_call_operand.vmem [shape: f32[37,32], index: 4, kind: input, shape index: {}]
  %s5 = inlined_call_operand.vmem [shape: f32[2,64], index: 5, kind: input, shape index: {}]
  %s6 = inlined_call_operand.hbm [shape: f32[2,16,32], index: 6, kind: output, shape index: {0}]
  %s7 = inlined_call_operand.vmem [shape: f32[2,1,16], index: 7, kind: output, shape index: {1}]
  %8 = xla_tuple %s6, %s7
  %s9 = sld [smem:[#allocation0]]
  $region50: #{transformer_encoder.1} parent=0
    _
  %s11 = ssub.s32 1, %s9
  %s12 = scalar_select 0, %s11, %s9
  $region1: #{transformer_encoder.1} parent=0
    #allocation2 [shape = 'u8[278528]{0}', space=vmem, size = 0x44000, scoped, tag = 'input window, operand 2, single buffered']
    #allocation3 [shape = 's32[1]{0}', space=sflag, size = 0x4, scoped, tag = 'scoped memory for transformer_encoder.1']
    #allocation4 [shape = 's32[1]{0}', space=sflag, size = 0x4, scoped, tag = 'scoped memory for transformer_encoder.1']
    #allocation5 [shape = 'u8[65536]{0}', space=vmem, size = 0x10000, scoped, tag = 'input window, operand 3, single buffered']
    #allocation6 [shape = 's32[1]{0}', space=sflag, size = 0x4, scoped, tag = 'scoped memory for transformer_encoder.1']
    #allocation7 [shape = 'u8[16384]{0}', space=vmem, size = 0x4000, scoped, tag = 'output window, operand 0, single buffered']
    %13 = vsyncpa [#allocation3], 0
    %14 = vsyncpa [#allocation6], 0
    %15 = vsyncpa [#allocation4], 0
    // Predicated region
    $region2: #{transformer_encoder.1} parent=1 // pred_check
      _
    $region3: #{transformer_encoder.1} parent=1 // pred_check_branch
      %17 = sbr.rel (0) target = $region5
    $region4: #{transformer_encoder.1} parent=1 // pred_region
      _
    $region5: #{transformer_encoder.1} parent=1 // pred_fallthru
      _
    // Predicated region
    $region6: #{transformer_encoder.1} parent=1 // pred_check
      _
    $region7: #{transformer_encoder.1} parent=1 // pred_check_branch
      %19 = sbr.rel (0) target = $region9
    $region8: #{transformer_encoder.1} parent=1 // pred_region
      _
    $region9: #{transformer_encoder.1} parent=1 // pred_fallthru
      _
    // Predicated region
    $region10: #{transformer_encoder.1} parent=1 // pred_check
      _
    $region11: #{transformer_encoder.1} parent=1 // pred_check_branch
      %21 = sbr.rel (0) target = $region13
    $region12: #{transformer_encoder.1} parent=1 // pred_region
      %s23 = ssub.s32 8704, 8704
      %24 = vsyncadd [#allocation3], %s23
      %s25 = sshll.u32 [#allocation2], 4
      %s26 = int_to_ptr.vmem [resolvable:$true] %s25
      %31 = dma.hbm_to_vmem [thread:$0]  %s2, 8704, %s26, [#allocation3], 128, 128, 8
    $region13: #{transformer_encoder.1} parent=1 // pred_fallthru
      _
    // Predicated region
    $region14: #{transformer_encoder.1} parent=1 // pred_check
      _
    $region15: #{transformer_encoder.1} parent=1 // pred_check_branch
      %33 = sbr.rel (0) target = $region17
    $region16: #{transformer_encoder.1} parent=1 // pred_region
      %s35 = ssub.s32 2048, 2048
      %36 = vsyncadd [#allocation6], %s35
      %s37 = sshll.u32 [#allocation5], 4
      %s38 = int_to_ptr.vmem [resolvable:$true] %s37
      %43 = dma.hbm_to_vmem [thread:$0]  %s3, 2048, %s38, [#allocation6], 128, 128, 8
    $region17: #{transformer_encoder.1} parent=1 // pred_fallthru
      _
    // Predicated region
    $region18: #{transformer_encoder.1} parent=1 // pred_check
      _
    $region19: #{transformer_encoder.1} parent=1 // pred_check_branch
      %45 = sbr.rel (0) target = $region21
    $region20: #{transformer_encoder.1} parent=1 // pred_region
      _
    $region21: #{transformer_encoder.1} parent=1 // pred_fallthru
      _
    // Predicated region
    $region22: #{transformer_encoder.1} parent=1 // pred_check
      _
    $region23: #{transformer_encoder.1} parent=1 // pred_check_branch
      %47 = sbr.rel (0) target = $region25
    $region24: #{transformer_encoder.1} parent=1 // pred_region
      _
    $region25: #{transformer_encoder.1} parent=1 // pred_fallthru
      _
    // Predicated region
    $region26: #{transformer_encoder.1} parent=1 // pred_check
      _
    $region27: #{transformer_encoder.1} parent=1 // pred_check_branch
      %49 = sbr.rel (0) target = $region29
    $region28: #{transformer_encoder.1} parent=1 // pred_region
      %50 = dma.done [#allocation3], 8704
    $region29: #{transformer_encoder.1} parent=1 // pred_fallthru
      _
    // Predicated region
    $region30: #{transformer_encoder.1} parent=1 // pred_check
      _
    $region31: #{transformer_encoder.1} parent=1 // pred_check_branch
      %52 = sbr.rel (0) target = $region33
    $region32: #{transformer_encoder.1} parent=1 // pred_region
      %53 = dma.done [#allocation6], 2048
    $region33: #{transformer_encoder.1} parent=1 // pred_fallthru
      _
    %v54 = vld [vmem:[%s0] sm:$0xff]
    %v55 = vld [vmem:[%s0 + $0x8] sm:$0xff]
    %v56 = vld [vmem:[%s0 + $0x10] sm:$0xff]
    %v57 = vld [vmem:[%s0 + $0x18] sm:$0xff]
    %v58 = vld [vmem:[%s1] sm:$0xff]
    %v59 = vld [vmem:[%s1 + $0x8] sm:$0xff]
    %v60 = vadd.f32 %v54, %v58
    %v61 = vadd.f32 %v55, %v59
    %v62 = vadd.f32 %v56, %v58
    %v63 = vadd.f32 %v57, %v59
    %vm64 = vcmask 261120
    %v65 = vsel %vm64, %v60, 0.0
    %66 = vadd.xlane.f32.xlu0 %v65
    %v67 = vpop.xlane.xlu0 %66
    %v68 = vsel %vm64, %v61, 0.0
    %69 = vadd.xlane.f32.xlu0 %v68
    %v70 = vpop.xlane.xlu0 %69
    %v71 = vsel %vm64, %v62, 0.0
    %72 = vadd.xlane.f32.xlu0 %v71
    %v73 = vpop.xlane.xlu0 %72
    %v74 = vsel %vm64, %v63, 0.0
    %75 = vadd.xlane.f32.xlu0 %v74
    %v76 = vpop.xlane.xlu0 %75
    %vm77 = vcmp.eq.f32.partialorder %v67, 0.0
    %vm78 = vcmp.eq.f32.partialorder %v70, 0.0
    %vm79 = vcmp.eq.f32.partialorder %v73, 0.0
    %vm80 = vcmp.eq.f32.partialorder %v76, 0.0
    %v81 = vld [vmem:[#allocation2] sm:$0xff]
    %v82 = vld [vmem:[#allocation2 + $0x8] sm:$0xff]
    %v83 = vld [vmem:[#allocation2 + $0x10] sm:$0xff]
    %v84 = vld [vmem:[#allocation2 + $0x18] sm:$0xff]
    %v85 = vld [vmem:[%s4] sm:$0x1]
    %v86 = vlaneseq
    %v87 = vshrl.u32 %v86, 7
    %v88 = vsub.s32 0, %v87
    %v89 = vrot.slane %v85, %v88
    %v91 = vsel %vm64, %v60, 0
    %v94 = vsel %vm64, %v61, 0
    %v97 = vsel %vm64, %v62, 0
    %v100 = vsel %vm64, %v63, 0
    %102 = vmatprep.subr.mxu0 0.0
    %103 = vmatpush1.msra.mxu0 %v81
    %104 = vmatprep.subr.mxu0 0.0
    %105 = vmatpush1.msra.mxu0 %v82
    %106 = vmatprep.subr.mxu0 0.0
    %107 = vmatpush1.msra.mxu0 %v83
    %108 = vmatprep.subr.mxu0 0.0
    %109 = vmatpush1.msra.mxu0 %v84
    %110 = vmatprep.subr.mxu0 0.0
    %111 = vmatpush1.msra.mxu0 0.0
    %112 = vmatprep.subr.mxu0 0.0
    %113 = vmatpush1.msra.mxu0 0.0
    %114 = vmatprep.subr.mxu0 0.0
    %115 = vmatpush1.msra.mxu0 0.0
    %116 = vmatprep.subr.mxu0 0.0
    %117 = vmatpush1.msra.mxu0 0.0
    %118 = vmatprep.subr.mxu0 0.0
    %119 = vmatpush1.msra.mxu0 0.0
    %120 = vmatprep.subr.mxu0 0.0
    %121 = vmatpush1.msra.mxu0 0.0
    %122 = vmatprep.subr.mxu0 0.0
    %123 = vmatpush1.msra.mxu0 0.0
    %124 = vmatprep.subr.mxu0 0.0
    %125 = vmatpush1.msra.mxu0 0.0
    %126 = vmatprep.subr.mxu0 0.0
    %127 = vmatpush1.msra.mxu0 0.0
    %128 = vmatprep.subr.mxu0 0.0
    %129 = vmatpush1.msra.mxu0 0.0
    %130 = vmatprep.subr.mxu0 0.0
    %131 = vmatpush1.msra.mxu0 0.0
    %132 = vmatprep.subr.mxu0 0.0
    %133 = vmatpush1.msra.mxu0 0.0
    %134 = vmatprep.subr.mxu0 0.0
    %135 = vmatpush1.msra.mxu0 0.0
    %136 = vmatprep.subr.mxu0 0.0
    %137 = vmatpush1.msra.mxu0 0.0
    %138 = vmatprep.subr.mxu0 0.0
    %139 = vmatpush1.msra.mxu0 0.0
    %140 = vmatprep.subr.mxu0 0.0
    %141 = vmatpush1.msra.mxu0 0.0
    %142 = vmatprep.subr.mxu0 0.0
    %143 = vmatpush1.msra.mxu0 0.0
    %144 = vmatprep.subr.mxu0 0.0
    %145 = vmatpush1.msra.mxu0 0.0
    %146 = vmatprep.subr.mxu0 0.0
    %147 = vmatpush1.msra.mxu0 0.0
    %148 = vmatprep.subr.mxu0 0.0
    %149 = vmatpush1.msra.mxu0 0.0
    %150 = vmatprep.subr.mxu0 0.0
    %151 = vmatpush1.msra.mxu0 0.0
    %152 = vmatprep.subr.mxu0 0.0
    %153 = vmatpush1.msra.mxu0 0.0
    %154 = vmatprep.subr.mxu0 0.0
    %155 = vmatpush1.msra.mxu0 0.0
    %156 = vmatprep.subr.mxu0 0.0
    %157 = vmatpush1.msra.mxu0 0.0
    %158 = vmatprep.subr.mxu0 0.0
    %159 = vmatpush1.msra.mxu0 0.0
    %160 = vmatprep.subr.mxu0 0.0
    %161 = vmatpush1.msra.mxu0 0.0
    %162 = vmatprep.subr.mxu0 0.0
    %163 = vmatpush1.msra.mxu0 0.0
    %164 = vmatprep.subr.mxu0 0.0
    %165 = vmatpush1.msra.mxu0 0.0
    %166 = vmatprep.mubr.f32.mxu0 0.0
    %167 = vmatmul.mubr.f32.gmra.mrb[0].mxu0 %v91
    %v168 = vpop.f32.mrb[0].mxu0
    %v169 = vadd.f32 %v89, %v168
    %v170 = vpop.f32.mrb[0].mxu0
    %171 = vmatprep.mubr.f32.mxu0 0.0
    %172 = vmatmul.mubr.f32.gmra.mrb[0].mxu0 %v94
    %v173 = vpop.f32.mrb[0].mxu0
    %v174 = vadd.f32 %v89, %v173
    %v175 = vpop.f32.mrb[0].mxu0
    %176 = vmatprep.mubr.f32.mxu0 0.0
    %177 = vmatmul.mubr.f32.gmra.mrb[0].mxu0 %v97
    %v178 = vpop.f32.mrb[0].mxu0
    %v179 = vadd.f32 %v89, %v178
    %v180 = vpop.f32.mrb[0].mxu0
    %181 = vmatprep.mubr.f32.mxu0 0.0
    %182 = vmatmul.mubr.f32.gmra.mrb[0].mxu0 %v100
    %v183 = vpop.f32.mrb[0].mxu0
    %v184 = vadd.f32 %v89, %v183
    %v185 = vpop.f32.mrb[0].mxu0
    %186 = vdwg.mxu0
    %v187 = vmax.f32 %v169, 0.0
    %v188 = vmax.f32 %v174, 0.0
    %v189 = vmax.f32 %v179, 0.0
    %v190 = vmax.f32 %v184, 0.0
    %v191 = vld [vmem:[%s4 + $0x1] sm:$0x1]
    %v192 = vld [vmem:[%s4 + $0x2] sm:$0x1]
    %v193 = vsel %vm64, %v187, 0.0
    %194 = vadd.xlane.f32.xlu0 %v193
    %v195 = vpop.xlane.xlu0 %194
    %v196 = vsel %vm64, %v188, 0.0
    %197 = vadd.xlane.f32.xlu0 %v196
    %v198 = vpop.xlane.xlu0 %197
    %v199 = vsel %vm64, %v189, 0.0
    %200 = vadd.xlane.f32.xlu0 %v199
    %v201 = vpop.xlane.xlu0 %200
    %v202 = vsel %vm64, %v190, 0.0
    %203 = vadd.xlane.f32.xlu0 %v202
    %v204 = vpop.xlane.xlu0 %203
    %v205 = vrcp.pop 32.0
    %v206 = vmul.f32 %v195, %v205
    %v207 = vmul.f32 %v198, %v205
    %v208 = vmul.f32 %v201, %v205
    %v209 = vmul.f32 %v204, %v205
    %v210 = vsub.f32 %v187, %v206
    %v211 = vsub.f32 %v188, %v207
    %v212 = vsub.f32 %v189, %v208
    %v213 = vsub.f32 %v190, %v209
    %v214 = vmul.f32 %v210, %v210
    %v215 = vmul.f32 %v211, %v211
    %v216 = vmul.f32 %v212, %v212
    %v217 = vmul.f32 %v213, %v213
    %v218 = vsel %vm64, %v214, 0.0
    %219 = vadd.xlane.f32.xlu0 %v218
    %v220 = vpop.xlane.xlu0 %219
    %v221 = vsel %vm64, %v215, 0.0
    %222 = vadd.xlane.f32.xlu0 %v221
    %v223 = vpop.xlane.xlu0 %222
    %v224 = vsel %vm64, %v216, 0.0
    %225 = vadd.xlane.f32.xlu0 %v224
    %v226 = vpop.xlane.xlu0 %225
    %v227 = vsel %vm64, %v217, 0.0
    %228 = vadd.xlane.f32.xlu0 %v227
    %v229 = vpop.xlane.xlu0 %228
    %v230 = vmul.f32 %v220, %v205
    %v231 = vmul.f32 %v223, %v205
    %v232 = vmul.f32 %v226, %v205
    %v233 = vmul.f32 %v229, %v205
    %v234 = vadd.f32 %v230, 1e-05
    %v235 = vadd.f32 %v231, 1e-05
    %v236 = vadd.f32 %v232, 1e-05
    %v237 = vadd.f32 %v233, 1e-05
    %v238 = vrsqrt.pop %v234
    %v239 = vrsqrt.pop %v235
    %v240 = vrsqrt.pop %v236
    %v241 = vrsqrt.pop %v237
    %v242 = vmul.f32 %v210, %v238
    %v243 = vmul.f32 %v211, %v239
    %v244 = vmul.f32 %v212, %v240
    %v245 = vmul.f32 %v213, %v241
    %v246 = vlaneseq
    %v247 = vshrl.u32 %v246, 7
    %v248 = vsub.s32 0, %v247
    %v249 = vrot.slane %v191, %v248
    %v250 = vmul.f32 %v242, %v249
    %v251 = vmul.f32 %v243, %v249
    %v252 = vmul.f32 %v244, %v249
    %v253 = vmul.f32 %v245, %v249
    %v254 = vlaneseq
    %v255 = vshrl.u32 %v254, 7
    %v256 = vsub.s32 0, %v255
    %v257 = vrot.slane %v192, %v256
    %v258 = vadd.f32 %v250, %v257
    %v259 = vadd.f32 %v251, %v257
    %v260 = vadd.f32 %v252, %v257
    %v261 = vadd.f32 %v253, %v257
    %v262 = vsel %vm77, 1, 0
    %v263 = vsel %vm78, 1, 0
    %v264 = vsel %vm79, 1, 0
    %v265 = vsel %vm80, 1, 0
    %vm266 = vcmp.eq.s32.totalorder %v262, 1
    %vm267 = vcmp.eq.s32.totalorder %v263, 1
    %vm268 = vcmp.eq.s32.totalorder %v264, 1
    %vm269 = vcmp.eq.s32.totalorder %v265, 1
    %v270 = vsel %vm266, 0.0, %v258
    %v271 = vsel %vm267, 0.0, %v259
    %v272 = vsel %vm268, 0.0, %v260
    %v273 = vsel %vm269, 0.0, %v261
    %v275 = vsel %vm64, 1.0, 0
    %v278 = vsel %vm64, %v270, 0
    %v281 = vsel %vm64, %v271, 0
    %283 = vmatprep.subr.mxu0 0.0
    %284 = vmatpush1.xpose.msra.mxu0 %v278
    %285 = vmatprep.subr.mxu0 0.0
    %286 = vmatpush1.xpose.msra.mxu0 %v281
    %287 = vmatprep.subr.mxu0 0.0
    %288 = vmatpush1.xpose.msra.mxu0 0.0
    %289 = vmatprep.subr.mxu0 0.0
    %290 = vmatpush1.xpose.msra.mxu0 0.0
    %291 = vmatprep.subr.mxu0 0.0
    %292 = vmatpush1.xpose.msra.mxu0 0.0
    %293 = vmatprep.subr.mxu0 0.0
    %294 = vmatpush1.xpose.msra.mxu0 0.0
    %295 = vmatprep.subr.mxu0 0.0
    %296 = vmatpush1.xpose.msra.mxu0 0.0
    %297 = vmatprep.subr.mxu0 0.0
    %298 = vmatpush1.xpose.msra.mxu0 0.0
    %299 = vmatprep.subr.mxu0 0.0
    %300 = vmatpush1.xpose.msra.mxu0 0.0
    %301 = vmatprep.subr.mxu0 0.0
    %302 = vmatpush1.xpose.msra.mxu0 0.0
    %303 = vmatprep.subr.mxu0 0.0
    %304 = vmatpush1.xpose.msra.mxu0 0.0
    %305 = vmatprep.subr.mxu0 0.0
    %306 = vmatpush1.xpose.msra.mxu0 0.0
    %307 = vmatprep.subr.mxu0 0.0
    %308 = vmatpush1.xpose.msra.mxu0 0.0
    %309 = vmatprep.subr.mxu0 0.0
    %310 = vmatpush1.xpose.msra.mxu0 0.0
    %311 = vmatprep.subr.mxu0 0.0
    %312 = vmatpush1.xpose.msra.mxu0 0.0
    %313 = vmatprep.subr.mxu0 0.0
    %314 = vmatpush1.xpose.msra.mxu0 0.0
    %315 = vmatprep.subr.mxu0 0.0
    %316 = vmatpush1.xpose.msra.mxu0 0.0
    %317 = vmatprep.subr.mxu0 0.0
    %318 = vmatpush1.xpose.msra.mxu0 0.0
    %319 = vmatprep.subr.mxu0 0.0
    %320 = vmatpush1.xpose.msra.mxu0 0.0
    %321 = vmatprep.subr.mxu0 0.0
    %322 = vmatpush1.xpose.msra.mxu0 0.0
    %323 = vmatprep.subr.mxu0 0.0
    %324 = vmatpush1.xpose.msra.mxu0 0.0
    %325 = vmatprep.subr.mxu0 0.0
    %326 = vmatpush1.xpose.msra.mxu0 0.0
    %327 = vmatprep.subr.mxu0 0.0
    %328 = vmatpush1.xpose.msra.mxu0 0.0
    %329 = vmatprep.subr.mxu0 0.0
    %330 = vmatpush1.xpose.msra.mxu0 0.0
    %331 = vmatprep.subr.mxu0 0.0
    %332 = vmatpush1.xpose.msra.mxu0 0.0
    %333 = vmatprep.subr.mxu0 0.0
    %334 = vmatpush1.xpose.msra.mxu0 0.0
    %335 = vmatprep.subr.mxu0 0.0
    %336 = vmatpush1.xpose.msra.mxu0 0.0
    %337 = vmatprep.subr.mxu0 0.0
    %338 = vmatpush1.xpose.msra.mxu0 0.0
    %339 = vmatprep.subr.mxu0 0.0
    %340 = vmatpush1.xpose.msra.mxu0 0.0
    %341 = vmatprep.subr.mxu0 0.0
    %342 = vmatpush1.xpose.msra.mxu0 0.0
    %343 = vmatprep.subr.mxu0 0.0
    %344 = vmatpush1.xpose.msra.mxu0 0.0
    %345 = vmatprep.subr.mxu0 0.0
    %346 = vmatpush1.xpose.msra.mxu0 0.0
    %347 = vmatprep.mubr.f32.mxu0 0.0
    %348 = vmatmul.mubr.f32.gmra.mrb[0].mxu0 %v275
    %v349 = vpop.f32.mrb[0].mxu0
    %v350 = vadd.f32 0.0, %v349
    %v351 = vpop.f32.mrb[0].mxu0
    %352 = vdwg.mxu0
    %v354 = vsel %vm64, %v272, 0
    %v357 = vsel %vm64, %v273, 0
    %359 = vmatprep.subr.mxu0 0.0
    %360 = vmatpush1.xpose.msra.mxu0 %v354
    %361 = vmatprep.subr.mxu0 0.0
    %362 = vmatpush1.xpose.msra.mxu0 %v357
    %363 = vmatprep.subr.mxu0 0.0
    %364 = vmatpush1.xpose.msra.mxu0 0.0
    %365 = vmatprep.subr.mxu0 0.0
    %366 = vmatpush1.xpose.msra.mxu0 0.0
    %367 = vmatprep.subr.mxu0 0.0
    %368 = vmatpush1.xpose.msra.mxu0 0.0
    %369 = vmatprep.subr.mxu0 0.0
    %370 = vmatpush1.xpose.msra.mxu0 0.0
    %371 = vmatprep.subr.mxu0 0.0
    %372 = vmatpush1.xpose.msra.mxu0 0.0
    %373 = vmatprep.subr.mxu0 0.0
    %374 = vmatpush1.xpose.msra.mxu0 0.0
    %375 = vmatprep.subr.mxu0 0.0
    %376 = vmatpush1.xpose.msra.mxu0 0.0
    %377 = vmatprep.subr.mxu0 0.0
    %378 = vmatpush1.xpose.msra.mxu0 0.0
    %379 = vmatprep.subr.mxu0 0.0
    %380 = vmatpush1.xpose.msra.mxu0 0.0
    %381 = vmatprep.subr.mxu0 0.0
    %382 = vmatpush1.xpose.msra.mxu0 0.0
    %383 = vmatprep.subr.mxu0 0.0
    %384 = vmatpush1.xpose.msra.mxu0 0.0
    %385 = vmatprep.subr.mxu0 0.0
    %386 = vmatpush1.xpose.msra.mxu0 0.0
    %387 = vmatprep.subr.mxu0 0.0
    %388 = vmatpush1.xpose.msra.mxu0 0.0
    %389 = vmatprep.subr.mxu0 0.0
    %390 = vmatpush1.xpose.msra.mxu0 0.0
    %391 = vmatprep.subr.mxu0 0.0
    %392 = vmatpush1.xpose.msra.mxu0 0.0
    %393 = vmatprep.subr.mxu0 0.0
    %394 = vmatpush1.xpose.msra.mxu0 0.0
    %395 = vmatprep.subr.mxu0 0.0
    %396 = vmatpush1.xpose.msra.mxu0 0.0
    %397 = vmatprep.subr.mxu0 0.0
    %398 = vmatpush1.xpose.msra.mxu0 0.0
    %399 = vmatprep.subr.mxu0 0.0
    %400 = vmatpush1.xpose.msra.mxu0 0.0
    %401 = vmatprep.subr.mxu0 0.0
    %402 = vmatpush1.xpose.msra.mxu0 0.0
    %403 = vmatprep.subr.mxu0 0.0
    %404 = vmatpush1.xpose.msra.mxu0 0.0
    %405 = vmatprep.subr.mxu0 0.0
    %406 = vmatpush1.xpose.msra.mxu0 0.0
    %407 = vmatprep.subr.mxu0 0.0
    %408 = vmatpush1.xpose.msra.mxu0 0.0
    %409 = vmatprep.subr.mxu0 0.0
    %410 = vmatpush1.xpose.msra.mxu0 0.0
    %411 = vmatprep.subr.mxu0 0.0
    %412 = vmatpush1.xpose.msra.mxu0 0.0
    %413 = vmatprep.subr.mxu0 0.0
    %414 = vmatpush1.xpose.msra.mxu0 0.0
    %415 = vmatprep.subr.mxu0 0.0
    %416 = vmatpush1.xpose.msra.mxu0 0.0
    %417 = vmatprep.subr.mxu0 0.0
    %418 = vmatpush1.xpose.msra.mxu0 0.0
    %419 = vmatprep.subr.mxu0 0.0
    %420 = vmatpush1.xpose.msra.mxu0 0.0
    %421 = vmatprep.subr.mxu0 0.0
    %422 = vmatpush1.xpose.msra.mxu0 0.0
    %423 = vmatprep.mubr.f32.mxu0 0.0
    %424 = vmatmul.mubr.f32.gmra.mrb[0].mxu0 %v275
    %v425 = vpop.f32.mrb[0].mxu0
    %v426 = vadd.f32 0.0, %v425
    %v427 = vpop.f32.mrb[0].mxu0
    %428 = vdwg.mxu0
    %vm429 = vcmp.eq.f32.partialorder %v350, 0.0
    %vm430 = vcmp.eq.f32.partialorder %v426, 0.0
    %v431 = vsel %vm429, 1, 0
    %v432 = vsel %vm430, 1, 0
    %v433 = vcvt.s32.f32 %v431
    %v434 = vcvt.s32.f32 %v432
    %vm435 = vcmask 122880
    %436 = vst.msk [vmem:[%s7] sm:$0x1] %vm435, %v433
    %437 = vst.msk [vmem:[%s7 + $0x1] sm:$0x1] %vm435, %v434
    %s438 = scalar_lea.vmem [#allocation2], 32
    %v439 = vld [vmem:[%s438] sm:$0xff]
    %v440 = vld [vmem:[%s438 + $0x8] sm:$0xff]
    %v441 = vld [vmem:[%s438 + $0x10] sm:$0xff]
    %v442 = vld [vmem:[%s438 + $0x18] sm:$0xff]
    %v443 = vld [vmem:[%s4 + $0x3] sm:$0x1]
    %v444 = vlaneseq
    %v445 = vshrl.u32 %v444, 7
    %v446 = vsub.s32 0, %v445
    %v447 = vrot.slane %v443, %v446
    %448 = vmatprep.subr.mxu0 0.0
    %449 = vmatpush1.msra.mxu0 %v439
    %450 = vmatprep.subr.mxu0 0.0
    %451 = vmatpush1.msra.mxu0 %v440
    %452 = vmatprep.subr.mxu0 0.0
    %453 = vmatpush1.msra.mxu0 %v441
    %454 = vmatprep.subr.mxu0 0.0
    %455 = vmatpush1.msra.mxu0 %v442
    %456 = vmatprep.subr.mxu0 0.0
    %457 = vmatpush1.msra.mxu0 0.0
    %458 = vmatprep.subr.mxu0 0.0
    %459 = vmatpush1.msra.mxu0 0.0
    %460 = vmatprep.subr.mxu0 0.0
    %461 = vmatpush1.msra.mxu0 0.0
    %462 = vmatprep.subr.mxu0 0.0
    %463 = vmatpush1.msra.mxu0 0.0
    %464 = vmatprep.subr.mxu0 0.0
    %465 = vmatpush1.msra.mxu0 0.0
    %466 = vmatprep.subr.mxu0 0.0
    %467 = vmatpush1.msra.mxu0 0.0
    %468 = vmatprep.subr.mxu0 0.0
    %469 = vmatpush1.msra.mxu0 0.0
    %470 = vmatprep.subr.mxu0 0.0
    %471 = vmatpush1.msra.mxu0 0.0
    %472 = vmatprep.subr.mxu0 0.0
    %473 = vmatpush1.msra.mxu0 0.0
    %474 = vmatprep.subr.mxu0 0.0
    %475 = vmatpush1.msra.mxu0 0.0
    %476 = vmatprep.subr.mxu0 0.0
    %477 = vmatpush1.msra.mxu0 0.0
    %478 = vmatprep.subr.mxu0 0.0
    %479 = vmatpush1.msra.mxu0 0.0
    %480 = vmatprep.subr.mxu0 0.0
    %481 = vmatpush1.msra.mxu0 0.0
    %482 = vmatprep.subr.mxu0 0.0
    %483 = vmatpush1.msra.mxu0 0.0
    %484 = vmatprep.subr.mxu0 0.0
    %485 = vmatpush1.msra.mxu0 0.0
    %486 = vmatprep.subr.mxu0 0.0
    %487 = vmatpush1.msra.mxu0 0.0
    %488 = vmatprep.subr.mxu0 0.0
    %489 = vmatpush1.msra.mxu0 0.0
    %490 = vmatprep.subr.mxu0 0.0
    %491 = vmatpush1.msra.mxu0 0.0
    %492 = vmatprep.subr.mxu0 0.0
    %493 = vmatpush1.msra.mxu0 0.0
    %494 = vmatprep.subr.mxu0 0.0
    %495 = vmatpush1.msra.mxu0 0.0
    %496 = vmatprep.subr.mxu0 0.0
    %497 = vmatpush1.msra.mxu0 0.0
    %498 = vmatprep.subr.mxu0 0.0
    %499 = vmatpush1.msra.mxu0 0.0
    %500 = vmatprep.subr.mxu0 0.0
    %501 = vmatpush1.msra.mxu0 0.0
    %502 = vmatprep.subr.mxu0 0.0
    %503 = vmatpush1.msra.mxu0 0.0
    %504 = vmatprep.subr.mxu0 0.0
    %505 = vmatpush1.msra.mxu0 0.0
    %506 = vmatprep.subr.mxu0 0.0
    %507 = vmatpush1.msra.mxu0 0.0
    %508 = vmatprep.subr.mxu0 0.0
    %509 = vmatpush1.msra.mxu0 0.0
    %510 = vmatprep.subr.mxu0 0.0
    %511 = vmatpush1.msra.mxu0 0.0
    %512 = vmatprep.mubr.f32.mxu0 0.0
    %513 = vmatmul.mubr.f32.gmra.mrb[0].mxu0 %v278
    %v514 = vpop.f32.mrb[0].mxu0
    %v515 = vadd.f32 %v447, %v514
    %v516 = vpop.f32.mrb[0].mxu0
    %517 = vmatprep.mubr.f32.mxu0 0.0
    %518 = vmatmul.mubr.f32.gmra.mrb[0].mxu0 %v281
    %v519 = vpop.f32.mrb[0].mxu0
    %v520 = vadd.f32 %v447, %v519
    %v521 = vpop.f32.mrb[0].mxu0
    %522 = vmatprep.mubr.f32.mxu0 0.0
    %523 = vmatmul.mubr.f32.gmra.mrb[0].mxu0 %v354
    %v524 = vpop.f32.mrb[0].mxu0
    %v525 = vadd.f32 %v447, %v524
    %v526 = vpop.f32.mrb[0].mxu0
    %527 = vmatprep.mubr.f32.mxu0 0.0
    %528 = vmatmul.mubr.f32.gmra.mrb[0].mxu0 %v357
    %v529 = vpop.f32.mrb[0].mxu0
    %v530 = vadd.f32 %v447, %v529
    %v531 = vpop.f32.mrb[0].mxu0
    %532 = vdwg.mxu0
    %s533 = scalar_lea.vmem [#allocation2], 64
    %v534 = vld [vmem:[%s533] sm:$0xff]
    %v535 = vld [vmem:[%s533 + $0x8] sm:$0xff]
    %v536 = vld [vmem:[%s533 + $0x10] sm:$0xff]
    %v537 = vld [vmem:[%s533 + $0x18] sm:$0xff]
    %v538 = vld [vmem:[%s4 + $0x4] sm:$0x1]
    %v539 = vlaneseq
    %v540 = vshrl.u32 %v539, 7
    %v541 = vsub.s32 0, %v540
    %v542 = vrot.slane %v538, %v541
    %543 = vmatprep.subr.mxu0 0.0
    %544 = vmatpush1.msra.mxu0 %v534
    %545 = vmatprep.subr.mxu0 0.0
    %546 = vmatpush1.msra.mxu0 %v535
    %547 = vmatprep.subr.mxu0 0.0
    %548 = vmatpush1.msra.mxu0 %v536
    %549 = vmatprep.subr.mxu0 0.0
    %550 = vmatpush1.msra.mxu0 %v537
    %551 = vmatprep.subr.mxu0 0.0
    %552 = vmatpush1.msra.mxu0 0.0
    %553 = vmatprep.subr.mxu0 0.0
    %554 = vmatpush1.msra.mxu0 0.0
    %555 = vmatprep.subr.mxu0 0.0
    %556 = vmatpush1.msra.mxu0 0.0
    %557 = vmatprep.subr.mxu0 0.0
    %558 = vmatpush1.msra.mxu0 0.0
    %559 = vmatprep.subr.mxu0 0.0
    %560 = vmatpush1.msra.mxu0 0.0
    %561 = vmatprep.subr.mxu0 0.0
    %562 = vmatpush1.msra.mxu0 0.0
    %563 = vmatprep.subr.mxu0 0.0
    %564 = vmatpush1.msra.mxu0 0.0
    %565 = vmatprep.subr.mxu0 0.0
    %566 = vmatpush1.msra.mxu0 0.0
    %567 = vmatprep.subr.mxu0 0.0
    %568 = vmatpush1.msra.mxu0 0.0
    %569 = vmatprep.subr.mxu0 0.0
    %570 = vmatpush1.msra.mxu0 0.0
    %571 = vmatprep.subr.mxu0 0.0
    %572 = vmatpush1.msra.mxu0 0.0
    %573 = vmatprep.subr.mxu0 0.0
    %574 = vmatpush1.msra.mxu0 0.0
    %575 = vmatprep.subr.mxu0 0.0
    %576 = vmatpush1.msra.mxu0 0.0
    %577 = vmatprep.subr.mxu0 0.0
    %578 = vmatpush1.msra.mxu0 0.0
    %579 = vmatprep.subr.mxu0 0.0
    %580 = vmatpush1.msra.mxu0 0.0
    %581 = vmatprep.subr.mxu0 0.0
    %582 = vmatpush1.msra.mxu0 0.0
    %583 = vmatprep.subr.mxu0 0.0
    %584 = vmatpush1.msra.mxu0 0.0
    %585 = vmatprep.subr.mxu0 0.0
    %586 = vmatpush1.msra.mxu0 0.0
    %587 = vmatprep.subr.mxu0 0.0
    %588 = vmatpush1.msra.mxu0 0.0
    %589 = vmatprep.subr.mxu0 0.0
    %590 = vmatpush1.msra.mxu0 0.0
    %591 = vmatprep.subr.mxu0 0.0
    %592 = vmatpush1.msra.mxu0 0.0
    %593 = vmatprep.subr.mxu0 0.0
    %594 = vmatpush1.msra.mxu0 0.0
    %595 = vmatprep.subr.mxu0 0.0
    %596 = vmatpush1.msra.mxu0 0.0
    %597 = vmatprep.subr.mxu0 0.0
    %598 = vmatpush1.msra.mxu0 0.0
    %599 = vmatprep.subr.mxu0 0.0
    %600 = vmatpush1.msra.mxu0 0.0
    %601 = vmatprep.subr.mxu0 0.0
    %602 = vmatpush1.msra.mxu0 0.0
    %603 = vmatprep.subr.mxu0 0.0
    %604 = vmatpush1.msra.mxu0 0.0
    %605 = vmatprep.subr.mxu0 0.0
    %606 = vmatpush1.msra.mxu0 0.0
    %607 = vmatprep.mubr.f32.mxu0 0.0
    %608 = vmatmul.mubr.f32.gmra.mrb[0].mxu0 %v278
    %v609 = vpop.f32.mrb[0].mxu0
    %v610 = vadd.f32 %v542, %v609
    %v611 = vpop.f32.mrb[0].mxu0
    %612 = vmatprep.mubr.f32.mxu0 0.0
    %613 = vmatmul.mubr.f32.gmra.mrb[0].mxu0 %v281
    %v614 = vpop.f32.mrb[0].mxu0
    %v615 = vadd.f32 %v542, %v614
    %v616 = vpop.f32.mrb[0].mxu0
    %617 = vmatprep.mubr.f32.mxu0 0.0
    %618 = vmatmul.mubr.f32.gmra.mrb[0].mxu0 %v354
    %v619 = vpop.f32.mrb[0].mxu0
    %v620 = vadd.f32 %v542, %v619
    %v621 = vpop.f32.mrb[0].mxu0
    %622 = vmatprep.mubr.f32.mxu0 0.0
    %623 = vmatmul.mubr.f32.gmra.mrb[0].mxu0 %v357
    %v624 = vpop.f32.mrb[0].mxu0
    %v625 = vadd.f32 %v542, %v624
    %v626 = vpop.f32.mrb[0].mxu0
    %627 = vdwg.mxu0
    %s628 = scalar_lea.vmem [#allocation2], 96
    %v629 = vld [vmem:[%s628] sm:$0xff]
    %v630 = vld [vmem:[%s628 + $0x8] sm:$0xff]
    %v631 = vld [vmem:[%s628 + $0x10] sm:$0xff]
    %v632 = vld [vmem:[%s628 + $0x18] sm:$0xff]
    %v633 = vld [vmem:[%s4 + $0x5] sm:$0x1]
    %v634 = vlaneseq
    %v635 = vshrl.u32 %v634, 7
    %v636 = vsub.s32 0, %v635
    %v637 = vrot.slane %v633, %v636
    %638 = vmatprep.subr.mxu0 0.0
    %639 = vmatpush1.msra.mxu0 %v629
    %640 = vmatprep.subr.mxu0 0.0
    %641 = vmatpush1.msra.mxu0 %v630
    %642 = vmatprep.subr.mxu0 0.0
    %643 = vmatpush1.msra.mxu0 %v631
    %644 = vmatprep.subr.mxu0 0.0
    %645 = vmatpush1.msra.mxu0 %v632
    %646 = vmatprep.subr.mxu0 0.0
    %647 = vmatpush1.msra.mxu0 0.0
    %648 = vmatprep.subr.mxu0 0.0
    %649 = vmatpush1.msra.mxu0 0.0
    %650 = vmatprep.subr.mxu0 0.0
    %651 = vmatpush1.msra.mxu0 0.0
    %652 = vmatprep.subr.mxu0 0.0
    %653 = vmatpush1.msra.mxu0 0.0
    %654 = vmatprep.subr.mxu0 0.0
    %655 = vmatpush1.msra.mxu0 0.0
    %656 = vmatprep.subr.mxu0 0.0
    %657 = vmatpush1.msra.mxu0 0.0
    %658 = vmatprep.subr.mxu0 0.0
    %659 = vmatpush1.msra.mxu0 0.0
    %660 = vmatprep.subr.mxu0 0.0
    %661 = vmatpush1.msra.mxu0 0.0
    %662 = vmatprep.subr.mxu0 0.0
    %663 = vmatpush1.msra.mxu0 0.0
    %664 = vmatprep.subr.mxu0 0.0
    %665 = vmatpush1.msra.mxu0 0.0
    %666 = vmatprep.subr.mxu0 0.0
    %667 = vmatpush1.msra.mxu0 0.0
    %668 = vmatprep.subr.mxu0 0.0
    %669 = vmatpush1.msra.mxu0 0.0
    %670 = vmatprep.subr.mxu0 0.0
    %671 = vmatpush1.msra.mxu0 0.0
    %672 = vmatprep.subr.mxu0 0.0
    %673 = vmatpush1.msra.mxu0 0.0
    %674 = vmatprep.subr.mxu0 0.0
    %675 = vmatpush1.msra.mxu0 0.0
    %676 = vmatprep.subr.mxu0 0.0
    %677 = vmatpush1.msra.mxu0 0.0
    %678 = vmatprep.subr.mxu0 0.0
    %679 = vmatpush1.msra.mxu0 0.0
    %680 = vmatprep.subr.mxu0 0.0
    %681 = vmatpush1.msra.mxu0 0.0
    %682 = vmatprep.subr.mxu0 0.0
    %683 = vmatpush1.msra.mxu0 0.0
    %684 = vmatprep.subr.mxu0 0.0
    %685 = vmatpush1.msra.mxu0 0.0
    %686 = vmatprep.subr.mxu0 0.0
    %687 = vmatpush1.msra.mxu0 0.0
    %688 = vmatprep.subr.mxu0 0.0
    %689 = vmatpush1.msra.mxu0 0.0
    %690 = vmatprep.subr.mxu0 0.0
    %691 = vmatpush1.msra.mxu0 0.0
    %692 = vmatprep.subr.mxu0 0.0
    %693 = vmatpush1.msra.mxu0 0.0
    %694 = vmatprep.subr.mxu0 0.0
    %695 = vmatpush1.msra.mxu0 0.0
    %696 = vmatprep.subr.mxu0 0.0
    %697 = vmatpush1.msra.mxu0 0.0
    %698 = vmatprep.subr.mxu0 0.0
    %699 = vmatpush1.msra.mxu0 0.0
    %700 = vmatprep.subr.mxu0 0.0
    %701 = vmatpush1.msra.mxu0 0.0
    %702 = vmatprep.mubr.f32.mxu0 0.0
    %703 = vmatmul.mubr.f32.gmra.mrb[0].mxu0 %v278
    %v704 = vpop.f32.mrb[0].mxu0
    %v705 = vadd.f32 %v637, %v704
    %v706 = vpop.f32.mrb[0].mxu0
    %707 = vmatprep.mubr.f32.mxu0 0.0
    %708 = vmatmul.mubr.f32.gmra.mrb[0].mxu0 %v281
    %v709 = vpop.f32.mrb[0].mxu0
    %v710 = vadd.f32 %v637, %v709
    %v711 = vpop.f32.mrb[0].mxu0
    %712 = vmatprep.mubr.f32.mxu0 0.0
    %713 = vmatmul.mubr.f32.gmra.mrb[0].mxu0 %v354
    %v714 = vpop.f32.mrb[0].mxu0
    %v715 = vadd.f32 %v637, %v714
    %v716 = vpop.f32.mrb[0].mxu0
    %717 = vmatprep.mubr.f32.mxu0 0.0
    %718 = vmatmul.mubr.f32.gmra.mrb[0].mxu0 %v357
    %v719 = vpop.f32.mrb[0].mxu0
    %v720 = vadd.f32 %v637, %v719
    %v721 = vpop.f32.mrb[0].mxu0
    %722 = vdwg.mxu0
    %vm723 = vcmask 64512
    %v725 = vsel %vm723, %v515, 0
    %v728 = vsel %vm723, %v520, 0
    %v731 = vsel %vm723, %v610, 0
    %v734 = vsel %vm723, %v615, 0
    %736 = vmatprep.subr.mxu0 0.0
    %737 = vmatpush1.xpose.msra.mxu0 %v731
    %738 = vmatprep.subr.mxu0 0.0
    %739 = vmatpush1.xpose.msra.mxu0 %v734
    %740 = vmatprep.subr.mxu0 0.0
    %741 = vmatpush1.xpose.msra.mxu0 0.0
    %742 = vmatprep.subr.mxu0 0.0
    %743 = vmatpush1.xpose.msra.mxu0 0.0
    %744 = vmatprep.subr.mxu0 0.0
    %745 = vmatpush1.xpose.msra.mxu0 0.0
    %746 = vmatprep.subr.mxu0 0.0
    %747 = vmatpush1.xpose.msra.mxu0 0.0
    %748 = vmatprep.subr.mxu0 0.0
    %749 = vmatpush1.xpose.msra.mxu0 0.0
    %750 = vmatprep.subr.mxu0 0.0
    %751 = vmatpush1.xpose.msra.mxu0 0.0
    %752 = vmatprep.subr.mxu0 0.0
    %753 = vmatpush1.xpose.msra.mxu0 0.0
    %754 = vmatprep.subr.mxu0 0.0
    %755 = vmatpush1.xpose.msra.mxu0 0.0
    %756 = vmatprep.subr.mxu0 0.0
    %757 = vmatpush1.xpose.msra.mxu0 0.0
    %758 = vmatprep.subr.mxu0 0.0
    %759 = vmatpush1.xpose.msra.mxu0 0.0
    %760 = vmatprep.subr.mxu0 0.0
    %761 = vmatpush1.xpose.msra.mxu0 0.0
    %762 = vmatprep.subr.mxu0 0.0
    %763 = vmatpush1.xpose.msra.mxu0 0.0
    %764 = vmatprep.subr.mxu0 0.0
    %765 = vmatpush1.xpose.msra.mxu0 0.0
    %766 = vmatprep.subr.mxu0 0.0
    %767 = vmatpush1.xpose.msra.mxu0 0.0
    %768 = vmatprep.subr.mxu0 0.0
    %769 = vmatpush1.xpose.msra.mxu0 0.0
    %770 = vmatprep.subr.mxu0 0.0
    %771 = vmatpush1.xpose.msra.mxu0 0.0
    %772 = vmatprep.subr.mxu0 0.0
    %773 = vmatpush1.xpose.msra.mxu0 0.0
    %774 = vmatprep.subr.mxu0 0.0
    %775 = vmatpush1.xpose.msra.mxu0 0.0
    %776 = vmatprep.subr.mxu0 0.0
    %777 = vmatpush1.xpose.msra.mxu0 0.0
    %778 = vmatprep.subr.mxu0 0.0
    %779 = vmatpush1.xpose.msra.mxu0 0.0
    %780 = vmatprep.subr.mxu0 0.0
    %781 = vmatpush1.xpose.msra.mxu0 0.0
    %782 = vmatprep.subr.mxu0 0.0
    %783 = vmatpush1.xpose.msra.mxu0 0.0
    %784 = vmatprep.subr.mxu0 0.0
    %785 = vmatpush1.xpose.msra.mxu0 0.0
    %786 = vmatprep.subr.mxu0 0.0
    %787 = vmatpush1.xpose.msra.mxu0 0.0
    %788 = vmatprep.subr.mxu0 0.0
    %789 = vmatpush1.xpose.msra.mxu0 0.0
    %790 = vmatprep.subr.mxu0 0.0
    %791 = vmatpush1.xpose.msra.mxu0 0.0
    %792 = vmatprep.subr.mxu0 0.0
    %793 = vmatpush1.xpose.msra.mxu0 0.0
    %794 = vmatprep.subr.mxu0 0.0
    %795 = vmatpush1.xpose.msra.mxu0 0.0
    %796 = vmatprep.subr.mxu0 0.0
    %797 = vmatpush1.xpose.msra.mxu0 0.0
    %798 = vmatprep.subr.mxu0 0.0
    %799 = vmatpush1.xpose.msra.mxu0 0.0
    %800 = vmatprep.mubr.f32.mxu0 0.0
    %801 = vmatmul.mubr.f32.gmra.mrb[0].mxu0 %v725
    %v802 = vpop.f32.mrb[0].mxu0
    %v803 = vadd.f32 0.0, %v802
    %v804 = vpop.f32.mrb[0].mxu0
    %805 = vmatprep.mubr.f32.mxu0 0.0
    %806 = vmatmul.mubr.f32.gmra.mrb[0].mxu0 %v728
    %v807 = vpop.f32.mrb[0].mxu0
    %v808 = vadd.f32 0.0, %v807
    %v809 = vpop.f32.mrb[0].mxu0
    %810 = vdwg.mxu0
    %v812 = vsel %vm723, %v525, 0
    %v815 = vsel %vm723, %v530, 0
    %v818 = vsel %vm723, %v620, 0
    %v821 = vsel %vm723, %v625, 0
    %823 = vmatprep.subr.mxu0 0.0
    %824 = vmatpush1.xpose.msra.mxu0 %v818
    %825 = vmatprep.subr.mxu0 0.0
    %826 = vmatpush1.xpose.msra.mxu0 %v821
    %827 = vmatprep.subr.mxu0 0.0
    %828 = vmatpush1.xpose.msra.mxu0 0.0
    %829 = vmatprep.subr.mxu0 0.0
    %830 = vmatpush1.xpose.msra.mxu0 0.0
    %831 = vmatprep.subr.mxu0 0.0
    %832 = vmatpush1.xpose.msra.mxu0 0.0
    %833 = vmatprep.subr.mxu0 0.0
    %834 = vmatpush1.xpose.msra.mxu0 0.0
    %835 = vmatprep.subr.mxu0 0.0
    %836 = vmatpush1.xpose.msra.mxu0 0.0
    %837 = vmatprep.subr.mxu0 0.0
    %838 = vmatpush1.xpose.msra.mxu0 0.0
    %839 = vmatprep.subr.mxu0 0.0
    %840 = vmatpush1.xpose.msra.mxu0 0.0
    %841 = vmatprep.subr.mxu0 0.0
    %842 = vmatpush1.xpose.msra.mxu0 0.0
    %843 = vmatprep.subr.mxu0 0.0
    %844 = vmatpush1.xpose.msra.mxu0 0.0
    %845 = vmatprep.subr.mxu0 0.0
    %846 = vmatpush1.xpose.msra.mxu0 0.0
    %847 = vmatprep.subr.mxu0 0.0
    %848 = vmatpush1.xpose.msra.mxu0 0.0
    %849 = vmatprep.subr.mxu0 0.0
    %850 = vmatpush1.xpose.msra.mxu0 0.0
    %851 = vmatprep.subr.mxu0 0.0
    %852 = vmatpush1.xpose.msra.mxu0 0.0
    %853 = vmatprep.subr.mxu0 0.0
    %854 = vmatpush1.xpose.msra.mxu0 0.0
    %855 = vmatprep.subr.mxu0 0.0
    %856 = vmatpush1.xpose.msra.mxu0 0.0
    %857 = vmatprep.subr.mxu0 0.0
    %858 = vmatpush1.xpose.msra.mxu0 0.0
    %859 = vmatprep.subr.mxu0 0.0
    %860 = vmatpush1.xpose.msra.mxu0 0.0
    %861 = vmatprep.subr.mxu0 0.0
    %862 = vmatpush1.xpose.msra.mxu0 0.0
    %863 = vmatprep.subr.mxu0 0.0
    %864 = vmatpush1.xpose.msra.mxu0 0.0
    %865 = vmatprep.subr.mxu0 0.0
    %866 = vmatpush1.xpose.msra.mxu0 0.0
    %867 = vmatprep.subr.mxu0 0.0
    %868 = vmatpush1.xpose.msra.mxu0 0.0
    %869 = vmatprep.subr.mxu0 0.0
    %870 = vmatpush1.xpose.msra.mxu0 0.0
    %871 = vmatprep.subr.mxu0 0.0
    %872 = vmatpush1.xpose.msra.mxu0 0.0
    %873 = vmatprep.subr.mxu0 0.0
    %874 = vmatpush1.xpose.msra.mxu0 0.0
    %875 = vmatprep.subr.mxu0 0.0
    %876 = vmatpush1.xpose.msra.mxu0 0.0
    %877 = vmatprep.subr.mxu0 0.0
    %878 = vmatpush1.xpose.msra.mxu0 0.0
    %879 = vmatprep.subr.mxu0 0.0
    %880 = vmatpush1.xpose.msra.mxu0 0.0
    %881 = vmatprep.subr.mxu0 0.0
    %882 = vmatpush1.xpose.msra.mxu0 0.0
    %883 = vmatprep.subr.mxu0 0.0
    %884 = vmatpush1.xpose.msra.mxu0 0.0
    %885 = vmatprep.subr.mxu0 0.0
    %886 = vmatpush1.xpose.msra.mxu0 0.0
    %887 = vmatprep.mubr.f32.mxu0 0.0
    %888 = vmatmul.mubr.f32.gmra.mrb[0].mxu0 %v812
    %v889 = vpop.f32.mrb[0].mxu0
    %v890 = vadd.f32 0.0, %v889
    %v891 = vpop.f32.mrb[0].mxu0
    %892 = vmatprep.mubr.f32.mxu0 0.0
    %893 = vmatmul.mubr.f32.gmra.mrb[0].mxu0 %v815
    %v894 = vpop.f32.mrb[0].mxu0
    %v895 = vadd.f32 0.0, %v894
    %v896 = vpop.f32.mrb[0].mxu0
    %897 = vdwg.mxu0
    %v898 = vmul.f32 %v803, 0.35355338
    %v899 = vmul.f32 %v808, 0.35355338
    %v900 = vmul.f32 %v890, 0.35355338
    %v901 = vmul.f32 %v895, 0.35355338
    %v902 = vlaneseq
    %v903 = vshrl.u32 %v902, 7
    %v904 = vsub.s32 0, %v903
    %v905 = vrot.slane %v431, %v904
    %v906 = vlaneseq
    %v907 = vshrl.u32 %v906, 7
    %v908 = vsub.s32 0, %v907
    %v909 = vrot.slane %v432, %v908
    %vm910 = vcmp.eq.s32.totalorder %v905, 1
    %vm911 = vcmp.eq.s32.totalorder %v909, 1
    %v912 = vsel %vm910, -inf, %v898
    %v913 = vsel %vm910, -inf, %v899
    %v914 = vsel %vm911, -inf, %v900
    %v915 = vsel %vm911, -inf, %v901
    %vm916 = vcmask 130048
    %v917 = vsel %vm916, %v912, -inf
    %918 = vmax.xlane.f32.xlu0 %v917
    %v919 = vpop.xlane.xlu0 %918
    %v920 = vsel %vm916, %v913, -inf
    %921 = vmax.xlane.f32.xlu0 %v920
    %v922 = vpop.xlane.xlu0 %921
    %v923 = vsel %vm916, %v914, -inf
    %924 = vmax.xlane.f32.xlu0 %v923
    %v925 = vpop.xlane.xlu0 %924
    %v926 = vsel %vm916, %v915, -inf
    %927 = vmax.xlane.f32.xlu0 %v926
    %v928 = vpop.xlane.xlu0 %927
    %v929 = vsub.f32 %v912, %v919
    %v930 = vsub.f32 %v913, %v922
    %v931 = vsub.f32 %v914, %v925
    %v932 = vsub.f32 %v915, %v928
    %v933 = vmul.f32 %v929, 1.442695
    %v934 = vpow.pop %v933
    %v935 = vmul.f32 %v930, 1.442695
    %v936 = vpow.pop %v935
    %v937 = vmul.f32 %v931, 1.442695
    %v938 = vpow.pop %v937
    %v939 = vmul.f32 %v932, 1.442695
    %v940 = vpow.pop %v939
    %v941 = vsel %vm916, %v934, 0.0
    %942 = vadd.xlane.f32.xlu0 %v941
    %v943 = vpop.xlane.xlu0 %942
    %v944 = vsel %vm916, %v936, 0.0
    %945 = vadd.xlane.f32.xlu0 %v944
    %v946 = vpop.xlane.xlu0 %945
    %v947 = vsel %vm916, %v938, 0.0
    %948 = vadd.xlane.f32.xlu0 %v947
    %v949 = vpop.xlane.xlu0 %948
    %v950 = vsel %vm916, %v940, 0.0
    %951 = vadd.xlane.f32.xlu0 %v950
    %v952 = vpop.xlane.xlu0 %951
    %v953 = vrcp.pop %v943
    %v954 = vmul.f32 %v934, %v953
    %v955 = vrcp.pop %v946
    %v956 = vmul.f32 %v936, %v955
    %v957 = vrcp.pop %v949
    %v958 = vmul.f32 %v938, %v957
    %v959 = vrcp.pop %v952
    %v960 = vmul.f32 %v940, %v959
    %v962 = vsel %vm916, %v954, 0
    %v965 = vsel %vm916, %v956, 0
    %967 = vmatprep.subr.mxu0 0.0
    %968 = vmatpush1.msra.mxu0 %v705
    %969 = vmatprep.subr.mxu0 0.0
    %970 = vmatpush1.msra.mxu0 %v710
    %971 = vmatprep.subr.mxu0 0.0
    %972 = vmatpush1.msra.mxu0 0.0
    %973 = vmatprep.subr.mxu0 0.0
    %974 = vmatpush1.msra.mxu0 0.0
    %975 = vmatprep.subr.mxu0 0.0
    %976 = vmatpush1.msra.mxu0 0.0
    %977 = vmatprep.subr.mxu0 0.0
    %978 = vmatpush1.msra.mxu0 0.0
    %979 = vmatprep.subr.mxu0 0.0
    %980 = vmatpush1.msra.mxu0 0.0
    %981 = vmatprep.subr.mxu0 0.0
    %982 = vmatpush1.msra.mxu0 0.0
    %983 = vmatprep.subr.mxu0 0.0
    %984 = vmatpush1.msra.mxu0 0.0
    %985 = vmatprep.subr.mxu0 0.0
    %986 = vmatpush1.msra.mxu0 0.0
    %987 = vmatprep.subr.mxu0 0.0
    %988 = vmatpush1.msra.mxu0 0.0
    %989 = vmatprep.subr.mxu0 0.0
    %990 = vmatpush1.msra.mxu0 0.0
    %991 = vmatprep.subr.mxu0 0.0
    %992 = vmatpush1.msra.mxu0 0.0
    %993 = vmatprep.subr.mxu0 0.0
    %994 = vmatpush1.msra.mxu0 0.0
    %995 = vmatprep.subr.mxu0 0.0
    %996 = vmatpush1.msra.mxu0 0.0
    %997 = vmatprep.subr.mxu0 0.0
    %998 = vmatpush1.msra.mxu0 0.0
    %999 = vmatprep.subr.mxu0 0.0
    %1000 = vmatpush1.msra.mxu0 0.0
    %1001 = vmatprep.subr.mxu0 0.0
    %1002 = vmatpush1.msra.mxu0 0.0
    %1003 = vmatprep.subr.mxu0 0.0
    %1004 = vmatpush1.msra.mxu0 0.0
    %1005 = vmatprep.subr.mxu0 0.0
    %1006 = vmatpush1.msra.mxu0 0.0
    %1007 = vmatprep.subr.mxu0 0.0
    %1008 = vmatpush1.msra.mxu0 0.0
    %1009 = vmatprep.subr.mxu0 0.0
    %1010 = vmatpush1.msra.mxu0 0.0
    %1011 = vmatprep.subr.mxu0 0.0
    %1012 = vmatpush1.msra.mxu0 0.0
    %1013 = vmatprep.subr.mxu0 0.0
    %1014 = vmatpush1.msra.mxu0 0.0
    %1015 = vmatprep.subr.mxu0 0.0
    %1016 = vmatpush1.msra.mxu0 0.0
    %1017 = vmatprep.subr.mxu0 0.0
    %1018 = vmatpush1.msra.mxu0 0.0
    %1019 = vmatprep.subr.mxu0 0.0
    %1020 = vmatpush1.msra.mxu0 0.0
    %1021 = vmatprep.subr.mxu0 0.0
    %1022 = vmatpush1.msra.mxu0 0.0
    %1023 = vmatprep.subr.mxu0 0.0
    %1024 = vmatpush1.msra.mxu0 0.0
    %1025 = vmatprep.subr.mxu0 0.0
    %1026 = vmatpush1.msra.mxu0 0.0
    %1027 = vmatprep.subr.mxu0 0.0
    %1028 = vmatpush1.msra.mxu0 0.0
    %1029 = vmatprep.subr.mxu0 0.0
    %1030 = vmatpush1.msra.mxu0 0.0
    %1031 = vmatprep.mubr.f32.mxu0 0.0
    %1032 = vmatmul.mubr.f32.gmra.mrb[0].mxu0 %v962
    %v1033 = vpop.f32.mrb[0].mxu0
    %v1034 = vadd.f32 0.0, %v1033
    %v1035 = vpop.f32.mrb[0].mxu0
    %1036 = vmatprep.mubr.f32.mxu0 0.0
    %1037 = vmatmul.mubr.f32.gmra.mrb[0].mxu0 %v965
    %v1038 = vpop.f32.mrb[0].mxu0
    %v1039 = vadd.f32 0.0, %v1038
    %v1040 = vpop.f32.mrb[0].mxu0
    %1041 = vdwg.mxu0
    %v1043 = vsel %vm916, %v958, 0
    %v1046 = vsel %vm916, %v960, 0
    %1048 = vmatprep.subr.mxu0 0.0
    %1049 = vmatpush1.msra.mxu0 %v715
    %1050 = vmatprep.subr.mxu0 0.0
    %1051 = vmatpush1.msra.mxu0 %v720
    %1052 = vmatprep.subr.mxu0 0.0
    %1053 = vmatpush1.msra.mxu0 0.0
    %1054 = vmatprep.subr.mxu0 0.0
    %1055 = vmatpush1.msra.mxu0 0.0
    %1056 = vmatprep.subr.mxu0 0.0
    %1057 = vmatpush1.msra.mxu0 0.0
    %1058 = vmatprep.subr.mxu0 0.0
    %1059 = vmatpush1.msra.mxu0 0.0
    %1060 = vmatprep.subr.mxu0 0.0
    %1061 = vmatpush1.msra.mxu0 0.0
    %1062 = vmatprep.subr.mxu0 0.0
    %1063 = vmatpush1.msra.mxu0 0.0
    %1064 = vmatprep.subr.mxu0 0.0
    %1065 = vmatpush1.msra.mxu0 0.0
    %1066 = vmatprep.subr.mxu0 0.0
    %1067 = vmatpush1.msra.mxu0 0.0
    %1068 = vmatprep.subr.mxu0 0.0
    %1069 = vmatpush1.msra.mxu0 0.0
    %1070 = vmatprep.subr.mxu0 0.0
    %1071 = vmatpush1.msra.mxu0 0.0
    %1072 = vmatprep.subr.mxu0 0.0
    %1073 = vmatpush1.msra.mxu0 0.0
    %1074 = vmatprep.subr.mxu0 0.0
    %1075 = vmatpush1.msra.mxu0 0.0
    %1076 = vmatprep.subr.mxu0 0.0
    %1077 = vmatpush1.msra.mxu0 0.0
    %1078 = vmatprep.subr.mxu0 0.0
    %1079 = vmatpush1.msra.mxu0 0.0
    %1080 = vmatprep.subr.mxu0 0.0
    %1081 = vmatpush1.msra.mxu0 0.0
    %1082 = vmatprep.subr.mxu0 0.0
    %1083 = vmatpush1.msra.mxu0 0.0
    %1084 = vmatprep.subr.mxu0 0.0
    %1085 = vmatpush1.msra.mxu0 0.0
    %1086 = vmatprep.subr.mxu0 0.0
    %1087 = vmatpush1.msra.mxu0 0.0
    %1088 = vmatprep.subr.mxu0 0.0
    %1089 = vmatpush1.msra.mxu0 0.0
    %1090 = vmatprep.subr.mxu0 0.0
    %1091 = vmatpush1.msra.mxu0 0.0
    %1092 = vmatprep.subr.mxu0 0.0
    %1093 = vmatpush1.msra.mxu0 0.0
    %1094 = vmatprep.subr.mxu0 0.0
    %1095 = vmatpush1.msra.mxu0 0.0
    %1096 = vmatprep.subr.mxu0 0.0
    %1097 = vmatpush1.msra.mxu0 0.0
    %1098 = vmatprep.subr.mxu0 0.0
    %1099 = vmatpush1.msra.mxu0 0.0
    %1100 = vmatprep.subr.mxu0 0.0
    %1101 = vmatpush1.msra.mxu0 0.0
    %1102 = vmatprep.subr.mxu0 0.0
    %1103 = vmatpush1.msra.mxu0 0.0
    %1104 = vmatprep.subr.mxu0 0.0
    %1105 = vmatpush1.msra.mxu0 0.0
    %1106 = vmatprep.subr.mxu0 0.0
    %1107 = vmatpush1.msra.mxu0 0.0
    %1108 = vmatprep.subr.mxu0 0.0
    %1109 = vmatpush1.msra.mxu0 0.0
    %1110 = vmatprep.subr.mxu0 0.0
    %1111 = vmatpush1.msra.mxu0 0.0
    %1112 = vmatprep.mubr.f32.mxu0 0.0
    %1113 = vmatmul.mubr.f32.gmra.mrb[0].mxu0 %v1043
    %v1114 = vpop.f32.mrb[0].mxu0
    %v1115 = vadd.f32 0.0, %v1114
    %v1116 = vpop.f32.mrb[0].mxu0
    %1117 = vmatprep.mubr.f32.mxu0 0.0
    %1118 = vmatmul.mubr.f32.gmra.mrb[0].mxu0 %v1046
    %v1119 = vpop.f32.mrb[0].mxu0
    %v1120 = vadd.f32 0.0, %v1119
    %v1121 = vpop.f32.mrb[0].mxu0
    %1122 = vdwg.mxu0
    %1123 = vrot.lane.b32.xlu0 %v515, 120
    %v1124 = vpop.permute.xlu0 %1123
    %1125 = vrot.lane.b32.xlu0 %v520, 120
    %v1126 = vpop.permute.xlu0 %1125
    %1127 = vrot.lane.b32.xlu0 %v610, 120
    %v1128 = vpop.permute.xlu0 %1127
    %1129 = vrot.lane.b32.xlu0 %v615, 120
    %v1130 = vpop.permute.xlu0 %1129
    %v1131 = vsel %vm723, %v1124, 0
    %v1133 = vsel %vm723, %v1126, 0
    %v1135 = vsel %vm723, %v1128, 0
    %v1137 = vsel %vm723, %v1130, 0
    %1139 = vmatprep.subr.mxu0 0.0
    %1140 = vmatpush1.xpose.msra.mxu0 %v1135
    %1141 = vmatprep.subr.mxu0 0.0
    %1142 = vmatpush1.xpose.msra.mxu0 %v1137
    %1143 = vmatprep.subr.mxu0 0.0
    %1144 = vmatpush1.xpose.msra.mxu0 0.0
    %1145 = vmatprep.subr.mxu0 0.0
    %1146 = vmatpush1.xpose.msra.mxu0 0.0
    %1147 = vmatprep.subr.mxu0 0.0
    %1148 = vmatpush1.xpose.msra.mxu0 0.0
    %1149 = vmatprep.subr.mxu0 0.0
    %1150 = vmatpush1.xpose.msra.mxu0 0.0
    %1151 = vmatprep.subr.mxu0 0.0
    %1152 = vmatpush1.xpose.msra.mxu0 0.0
    %1153 = vmatprep.subr.mxu0 0.0
    %1154 = vmatpush1.xpose.msra.mxu0 0.0
    %1155 = vmatprep.subr.mxu0 0.0
    %1156 = vmatpush1.xpose.msra.mxu0 0.0
    %1157 = vmatprep.subr.mxu0 0.0
    %1158 = vmatpush1.xpose.msra.mxu0 0.0
    %1159 = vmatprep.subr.mxu0 0.0
    %1160 = vmatpush1.xpose.msra.mxu0 0.0
    %1161 = vmatprep.subr.mxu0 0.0
    %1162 = vmatpush1.xpose.msra.mxu0 0.0
    %1163 = vmatprep.subr.mxu0 0.0
    %1164 = vmatpush1.xpose.msra.mxu0 0.0
    %1165 = vmatprep.subr.mxu0 0.0
    %1166 = vmatpush1.xpose.msra.mxu0 0.0
    %1167 = vmatprep.subr.mxu0 0.0
    %1168 = vmatpush1.xpose.msra.mxu0 0.0
    %1169 = vmatprep.subr.mxu0 0.0
    %1170 = vmatpush1.xpose.msra.mxu0 0.0
    %1171 = vmatprep.subr.mxu0 0.0
    %1172 = vmatpush1.xpose.msra.mxu0 0.0
    %1173 = vmatprep.subr.mxu0 0.0
    %1174 = vmatpush1.xpose.msra.mxu0 0.0
    %1175 = vmatprep.subr.mxu0 0.0
    %1176 = vmatpush1.xpose.msra.mxu0 0.0
    %1177 = vmatprep.subr.mxu0 0.0
    %1178 = vmatpush1.xpose.msra.mxu0 0.0
    %1179 = vmatprep.subr.mxu0 0.0
    %1180 = vmatpush1.xpose.msra.mxu0 0.0
    %1181 = vmatprep.subr.mxu0 0.0
    %1182 = vmatpush1.xpose.msra.mxu0 0.0
    %1183 = vmatprep.subr.mxu0 0.0
    %1184 = vmatpush1.xpose.msra.mxu0 0.0
    %1185 = vmatprep.subr.mxu0 0.0
    %1186 = vmatpush1.xpose.msra.mxu0 0.0
    %1187 = vmatprep.subr.mxu0 0.0
    %1188 = vmatpush1.xpose.msra.mxu0 0.0
    %1189 = vmatprep.subr.mxu0 0.0
    %1190 = vmatpush1.xpose.msra.mxu0 0.0
    %1191 = vmatprep.subr.mxu0 0.0
    %1192 = vmatpush1.xpose.msra.mxu0 0.0
    %1193 = vmatprep.subr.mxu0 0.0
    %1194 = vmatpush1.xpose.msra.mxu0 0.0
    %1195 = vmatprep.subr.mxu0 0.0
    %1196 = vmatpush1.xpose.msra.mxu0 0.0
    %1197 = vmatprep.subr.mxu0 0.0
    %1198 = vmatpush1.xpose.msra.mxu0 0.0
    %1199 = vmatprep.subr.mxu0 0.0
    %1200 = vmatpush1.xpose.msra.mxu0 0.0
    %1201 = vmatprep.subr.mxu0 0.0
    %1202 = vmatpush1.xpose.msra.mxu0 0.0
    %1203 = vmatprep.mubr.f32.mxu0 0.0
    %1204 = vmatmul.mubr.f32.gmra.mrb[0].mxu0 %v1131
    %v1205 = vpop.f32.mrb[0].mxu0
    %v1206 = vadd.f32 0.0, %v1205
    %v1207 = vpop.f32.mrb[0].mxu0
    %1208 = vmatprep.mubr.f32.mxu0 0.0
    %1209 = vmatmul.mubr.f32.gmra.mrb[0].mxu0 %v1133
    %v1210 = vpop.f32.mrb[0].mxu0
    %v1211 = vadd.f32 0.0, %v1210
    %v1212 = vpop.f32.mrb[0].mxu0
    %1213 = vdwg.mxu0
    %1214 = vrot.lane.b32.xlu0 %v525, 120
    %v1215 = vpop.permute.xlu0 %1214
    %1216 = vrot.lane.b32.xlu0 %v530, 120
    %v1217 = vpop.permute.xlu0 %1216
    %1218 = vrot.lane.b32.xlu0 %v620, 120
    %v1219 = vpop.permute.xlu0 %1218
    %1220 = vrot.lane.b32.xlu0 %v625, 120
    %v1221 = vpop.permute.xlu0 %1220
    %v1222 = vsel %vm723, %v1215, 0
    %v1224 = vsel %vm723, %v1217, 0
    %v1226 = vsel %vm723, %v1219, 0
    %v1228 = vsel %vm723, %v1221, 0
    %1230 = vmatprep.subr.mxu0 0.0
    %1231 = vmatpush1.xpose.msra.mxu0 %v1226
    %1232 = vmatprep.subr.mxu0 0.0
    %1233 = vmatpush1.xpose.msra.mxu0 %v1228
    %1234 = vmatprep.subr.mxu0 0.0
    %1235 = vmatpush1.xpose.msra.mxu0 0.0
    %1236 = vmatprep.subr.mxu0 0.0
    %1237 = vmatpush1.xpose.msra.mxu0 0.0
    %1238 = vmatprep.subr.mxu0 0.0
    %1239 = vmatpush1.xpose.msra.mxu0 0.0
    %1240 = vmatprep.subr.mxu0 0.0
    %1241 = vmatpush1.xpose.msra.mxu0 0.0
    %1242 = vmatprep.subr.mxu0 0.0
    %1243 = vmatpush1.xpose.msra.mxu0 0.0
    %1244 = vmatprep.subr.mxu0 0.0
    %1245 = vmatpush1.xpose.msra.mxu0 0.0
    %1246 = vmatprep.subr.mxu0 0.0
    %1247 = vmatpush1.xpose.msra.mxu0 0.0
    %1248 = vmatprep.subr.mxu0 0.0
    %1249 = vmatpush1.xpose.msra.mxu0 0.0
    %1250 = vmatprep.subr.mxu0 0.0
    %1251 = vmatpush1.xpose.msra.mxu0 0.0
    %1252 = vmatprep.subr.mxu0 0.0
    %1253 = vmatpush1.xpose.msra.mxu0 0.0
    %1254 = vmatprep.subr.mxu0 0.0
    %1255 = vmatpush1.xpose.msra.mxu0 0.0
    %1256 = vmatprep.subr.mxu0 0.0
    %1257 = vmatpush1.xpose.msra.mxu0 0.0
    %1258 = vmatprep.subr.mxu0 0.0
    %1259 = vmatpush1.xpose.msra.mxu0 0.0
    %1260 = vmatprep.subr.mxu0 0.0
    %1261 = vmatpush1.xpose.msra.mxu0 0.0
    %1262 = vmatprep.subr.mxu0 0.0
    %1263 = vmatpush1.xpose.msra.mxu0 0.0
    %1264 = vmatprep.subr.mxu0 0.0
    %1265 = vmatpush1.xpose.msra.mxu0 0.0
    %1266 = vmatprep.subr.mxu0 0.0
    %1267 = vmatpush1.xpose.msra.mxu0 0.0
    %1268 = vmatprep.subr.mxu0 0.0
    %1269 = vmatpush1.xpose.msra.mxu0 0.0
    %1270 = vmatprep.subr.mxu0 0.0
    %1271 = vmatpush1.xpose.msra.mxu0 0.0
    %1272 = vmatprep.subr.mxu0 0.0
    %1273 = vmatpush1.xpose.msra.mxu0 0.0
    %1274 = vmatprep.subr.mxu0 0.0
    %1275 = vmatpush1.xpose.msra.mxu0 0.0
    %1276 = vmatprep.subr.mxu0 0.0
    %1277 = vmatpush1.xpose.msra.mxu0 0.0
    %1278 = vmatprep.subr.mxu0 0.0
    %1279 = vmatpush1.xpose.msra.mxu0 0.0
    %1280 = vmatprep.subr.mxu0 0.0
    %1281 = vmatpush1.xpose.msra.mxu0 0.0
    %1282 = vmatprep.subr.mxu0 0.0
    %1283 = vmatpush1.xpose.msra.mxu0 0.0
    %1284 = vmatprep.subr.mxu0 0.0
    %1285 = vmatpush1.xpose.msra.mxu0 0.0
    %1286 = vmatprep.subr.mxu0 0.0
    %1287 = vmatpush1.xpose.msra.mxu0 0.0
    %1288 = vmatprep.subr.mxu0 0.0
    %1289 = vmatpush1.xpose.msra.mxu0 0.0
    %1290 = vmatprep.subr.mxu0 0.0
    %1291 = vmatpush1.xpose.msra.mxu0 0.0
    %1292 = vmatprep.subr.mxu0 0.0
    %1293 = vmatpush1.xpose.msra.mxu0 0.0
    %1294 = vmatprep.mubr.f32.mxu0 0.0
    %1295 = vmatmul.mubr.f32.gmra.mrb[0].mxu0 %v1222
    %v1296 = vpop.f32.mrb[0].mxu0
    %v1297 = vadd.f32 0.0, %v1296
    %v1298 = vpop.f32.mrb[0].mxu0
    %1299 = vmatprep.mubr.f32.mxu0 0.0
    %1300 = vmatmul.mubr.f32.gmra.mrb[0].mxu0 %v1224
    %v1301 = vpop.f32.mrb[0].mxu0
    %v1302 = vadd.f32 0.0, %v1301
    %v1303 = vpop.f32.mrb[0].mxu0
    %1304 = vdwg.mxu0
    %v1305 = vmul.f32 %v1206, 0.35355338
    %v1306 = vmul.f32 %v1211, 0.35355338
    %v1307 = vmul.f32 %v1297, 0.35355338
    %v1308 = vmul.f32 %v1302, 0.35355338
    %v1309 = vsel %vm910, -inf, %v1305
    %v1310 = vsel %vm910, -inf, %v1306
    %v1311 = vsel %vm911, -inf, %v1307
    %v1312 = vsel %vm911, -inf, %v1308
    %v1313 = vsel %vm916, %v1309, -inf
    %1314 = vmax.xlane.f32.xlu0 %v1313
    %v1315 = vpop.xlane.xlu0 %1314
    %v1316 = vsel %vm916, %v1310, -inf
    %1317 = vmax.xlane.f32.xlu0 %v1316
    %v1318 = vpop.xlane.xlu0 %1317
    %v1319 = vsel %vm916, %v1311, -inf
    %1320 = vmax.xlane.f32.xlu0 %v1319
    %v1321 = vpop.xlane.xlu0 %1320
    %v1322 = vsel %vm916, %v1312, -inf
    %1323 = vmax.xlane.f32.xlu0 %v1322
    %v1324 = vpop.xlane.xlu0 %1323
    %v1325 = vsub.f32 %v1309, %v1315
    %v1326 = vsub.f32 %v1310, %v1318
    %v1327 = vsub.f32 %v1311, %v1321
    %v1328 = vsub.f32 %v1312, %v1324
    %v1329 = vmul.f32 %v1325, 1.442695
    %v1330 = vpow.pop %v1329
    %v1331 = vmul.f32 %v1326, 1.442695
    %v1332 = vpow.pop %v1331
    %v1333 = vmul.f32 %v1327, 1.442695
    %v1334 = vpow.pop %v1333
    %v1335 = vmul.f32 %v1328, 1.442695
    %v1336 = vpow.pop %v1335
    %v1337 = vsel %vm916, %v1330, 0.0
    %1338 = vadd.xlane.f32.xlu0 %v1337
    %v1339 = vpop.xlane.xlu0 %1338
    %v1340 = vsel %vm916, %v1332, 0.0
    %1341 = vadd.xlane.f32.xlu0 %v1340
    %v1342 = vpop.xlane.xlu0 %1341
    %v1343 = vsel %vm916, %v1334, 0.0
    %1344 = vadd.xlane.f32.xlu0 %v1343
    %v1345 = vpop.xlane.xlu0 %1344
    %v1346 = vsel %vm916, %v1336, 0.0
    %1347 = vadd.xlane.f32.xlu0 %v1346
    %v1348 = vpop.xlane.xlu0 %1347
    %v1349 = vrcp.pop %v1339
    %v1350 = vmul.f32 %v1330, %v1349
    %v1351 = vrcp.pop %v1342
    %v1352 = vmul.f32 %v1332, %v1351
    %v1353 = vrcp.pop %v1345
    %v1354 = vmul.f32 %v1334, %v1353
    %v1355 = vrcp.pop %v1348
    %v1356 = vmul.f32 %v1336, %v1355
    %1359 = vrot.lane.b32.xlu0 %v705, 120
    %v1360 = vpop.permute.xlu0 %1359
    %1361 = vrot.lane.b32.xlu0 %v710, 120
    %v1362 = vpop.permute.xlu0 %1361
    %v1366 = vsel %vm916, %v1350, 0
    %v1369 = vsel %vm916, %v1352, 0
    %1371 = vmatprep.subr.mxu0 0.0
    %1372 = vmatpush1.msra.mxu0 %v1360
    %1373 = vmatprep.subr.mxu0 0.0
    %1374 = vmatpush1.msra.mxu0 %v1362
    %1375 = vmatprep.subr.mxu0 0.0
    %1376 = vmatpush1.msra.mxu0 0.0
    %1377 = vmatprep.subr.mxu0 0.0
    %1378 = vmatpush1.msra.mxu0 0.0
    %1379 = vmatprep.subr.mxu0 0.0
    %1380 = vmatpush1.msra.mxu0 0.0
    %1381 = vmatprep.subr.mxu0 0.0
    %1382 = vmatpush1.msra.mxu0 0.0
    %1383 = vmatprep.subr.mxu0 0.0
    %1384 = vmatpush1.msra.mxu0 0.0
    %1385 = vmatprep.subr.mxu0 0.0
    %1386 = vmatpush1.msra.mxu0 0.0
    %1387 = vmatprep.subr.mxu0 0.0
    %1388 = vmatpush1.msra.mxu0 0.0
    %1389 = vmatprep.subr.mxu0 0.0
    %1390 = vmatpush1.msra.mxu0 0.0
    %1391 = vmatprep.subr.mxu0 0.0
    %1392 = vmatpush1.msra.mxu0 0.0
    %1393 = vmatprep.subr.mxu0 0.0
    %1394 = vmatpush1.msra.mxu0 0.0
    %1395 = vmatprep.subr.mxu0 0.0
    %1396 = vmatpush1.msra.mxu0 0.0
    %1397 = vmatprep.subr.mxu0 0.0
    %1398 = vmatpush1.msra.mxu0 0.0
    %1399 = vmatprep.subr.mxu0 0.0
    %1400 = vmatpush1.msra.mxu0 0.0
    %1401 = vmatprep.subr.mxu0 0.0
    %1402 = vmatpush1.msra.mxu0 0.0
    %1403 = vmatprep.subr.mxu0 0.0
    %1404 = vmatpush1.msra.mxu0 0.0
    %1405 = vmatprep.subr.mxu0 0.0
    %1406 = vmatpush1.msra.mxu0 0.0
    %1407 = vmatprep.subr.mxu0 0.0
    %1408 = vmatpush1.msra.mxu0 0.0
    %1409 = vmatprep.subr.mxu0 0.0
    %1410 = vmatpush1.msra.mxu0 0.0
    %1411 = vmatprep.subr.mxu0 0.0
    %1412 = vmatpush1.msra.mxu0 0.0
    %1413 = vmatprep.subr.mxu0 0.0
    %1414 = vmatpush1.msra.mxu0 0.0
    %1415 = vmatprep.subr.mxu0 0.0
    %1416 = vmatpush1.msra.mxu0 0.0
    %1417 = vmatprep.subr.mxu0 0.0
    %1418 = vmatpush1.msra.mxu0 0.0
    %1419 = vmatprep.subr.mxu0 0.0
    %1420 = vmatpush1.msra.mxu0 0.0
    %1421 = vmatprep.subr.mxu0 0.0
    %1422 = vmatpush1.msra.mxu0 0.0
    %1423 = vmatprep.subr.mxu0 0.0
    %1424 = vmatpush1.msra.mxu0 0.0
    %1425 = vmatprep.subr.mxu0 0.0
    %1426 = vmatpush1.msra.mxu0 0.0
    %1427 = vmatprep.subr.mxu0 0.0
    %1428 = vmatpush1.msra.mxu0 0.0
    %1429 = vmatprep.subr.mxu0 0.0
    %1430 = vmatpush1.msra.mxu0 0.0
    %1431 = vmatprep.subr.mxu0 0.0
    %1432 = vmatpush1.msra.mxu0 0.0
    %1433 = vmatprep.subr.mxu0 0.0
    %1434 = vmatpush1.msra.mxu0 0.0
    %1435 = vmatprep.mubr.f32.mxu0 0.0
    %1436 = vmatmul.mubr.f32.gmra.mrb[0].mxu0 %v1366
    %v1437 = vpop.f32.mrb[0].mxu0
    %v1438 = vadd.f32 0.0, %v1437
    %v1439 = vpop.f32.mrb[0].mxu0
    %1440 = vmatprep.mubr.f32.mxu0 0.0
    %1441 = vmatmul.mubr.f32.gmra.mrb[0].mxu0 %v1369
    %v1442 = vpop.f32.mrb[0].mxu0
    %v1443 = vadd.f32 0.0, %v1442
    %v1444 = vpop.f32.mrb[0].mxu0
    %1445 = vdwg.mxu0
    %1448 = vrot.lane.b32.xlu0 %v715, 120
    %v1449 = vpop.permute.xlu0 %1448
    %1450 = vrot.lane.b32.xlu0 %v720, 120
    %v1451 = vpop.permute.xlu0 %1450
    %v1455 = vsel %vm916, %v1354, 0
    %v1458 = vsel %vm916, %v1356, 0
    %1460 = vmatprep.subr.mxu0 0.0
    %1461 = vmatpush1.msra.mxu0 %v1449
    %1462 = vmatprep.subr.mxu0 0.0
    %1463 = vmatpush1.msra.mxu0 %v1451
    %1464 = vmatprep.subr.mxu0 0.0
    %1465 = vmatpush1.msra.mxu0 0.0
    %1466 = vmatprep.subr.mxu0 0.0
    %1467 = vmatpush1.msra.mxu0 0.0
    %1468 = vmatprep.subr.mxu0 0.0
    %1469 = vmatpush1.msra.mxu0 0.0
    %1470 = vmatprep.subr.mxu0 0.0
    %1471 = vmatpush1.msra.mxu0 0.0
    %1472 = vmatprep.subr.mxu0 0.0
    %1473 = vmatpush1.msra.mxu0 0.0
    %1474 = vmatprep.subr.mxu0 0.0
    %1475 = vmatpush1.msra.mxu0 0.0
    %1476 = vmatprep.subr.mxu0 0.0
    %1477 = vmatpush1.msra.mxu0 0.0
    %1478 = vmatprep.subr.mxu0 0.0
    %1479 = vmatpush1.msra.mxu0 0.0
    %1480 = vmatprep.subr.mxu0 0.0
    %1481 = vmatpush1.msra.mxu0 0.0
    %1482 = vmatprep.subr.mxu0 0.0
    %1483 = vmatpush1.msra.mxu0 0.0
    %1484 = vmatprep.subr.mxu0 0.0
    %1485 = vmatpush1.msra.mxu0 0.0
    %1486 = vmatprep.subr.mxu0 0.0
    %1487 = vmatpush1.msra.mxu0 0.0
    %1488 = vmatprep.subr.mxu0 0.0
    %1489 = vmatpush1.msra.mxu0 0.0
    %1490 = vmatprep.subr.mxu0 0.0
    %1491 = vmatpush1.msra.mxu0 0.0
    %1492 = vmatprep.subr.mxu0 0.0
    %1493 = vmatpush1.msra.mxu0 0.0
    %1494 = vmatprep.subr.mxu0 0.0
    %1495 = vmatpush1.msra.mxu0 0.0
    %1496 = vmatprep.subr.mxu0 0.0
    %1497 = vmatpush1.msra.mxu0 0.0
    %1498 = vmatprep.subr.mxu0 0.0
    %1499 = vmatpush1.msra.mxu0 0.0
    %1500 = vmatprep.subr.mxu0 0.0
    %1501 = vmatpush1.msra.mxu0 0.0
    %1502 = vmatprep.subr.mxu0 0.0
    %1503 = vmatpush1.msra.mxu0 0.0
    %1504 = vmatprep.subr.mxu0 0.0
    %1505 = vmatpush1.msra.mxu0 0.0
    %1506 = vmatprep.subr.mxu0 0.0
    %1507 = vmatpush1.msra.mxu0 0.0
    %1508 = vmatprep.subr.mxu0 0.0
    %1509 = vmatpush1.msra.mxu0 0.0
    %1510 = vmatprep.subr.mxu0 0.0
    %1511 = vmatpush1.msra.mxu0 0.0
    %1512 = vmatprep.subr.mxu0 0.0
    %1513 = vmatpush1.msra.mxu0 0.0
    %1514 = vmatprep.subr.mxu0 0.0
    %1515 = vmatpush1.msra.mxu0 0.0
    %1516 = vmatprep.subr.mxu0 0.0
    %1517 = vmatpush1.msra.mxu0 0.0
    %1518 = vmatprep.subr.mxu0 0.0
    %1519 = vmatpush1.msra.mxu0 0.0
    %1520 = vmatprep.subr.mxu0 0.0
    %1521 = vmatpush1.msra.mxu0 0.0
    %1522 = vmatprep.subr.mxu0 0.0
    %1523 = vmatpush1.msra.mxu0 0.0
    %1524 = vmatprep.mubr.f32.mxu0 0.0
    %1525 = vmatmul.mubr.f32.gmra.mrb[0].mxu0 %v1455
    %v1526 = vpop.f32.mrb[0].mxu0
    %v1527 = vadd.f32 0.0, %v1526
    %v1528 = vpop.f32.mrb[0].mxu0
    %1529 = vmatprep.mubr.f32.mxu0 0.0
    %1530 = vmatmul.mubr.f32.gmra.mrb[0].mxu0 %v1458
    %v1531 = vpop.f32.mrb[0].mxu0
    %v1532 = vadd.f32 0.0, %v1531
    %v1533 = vpop.f32.mrb[0].mxu0
    %1534 = vdwg.mxu0
    %1535 = vrot.lane.b32.xlu0 %v515, 112
    %v1536 = vpop.permute.xlu0 %1535
    %1537 = vrot.lane.b32.xlu0 %v520, 112
    %v1538 = vpop.permute.xlu0 %1537
    %1539 = vrot.lane.b32.xlu0 %v610, 112
    %v1540 = vpop.permute.xlu0 %1539
    %1541 = vrot.lane.b32.xlu0 %v615, 112
    %v1542 = vpop.permute.xlu0 %1541
    %v1543 = vsel %vm723, %v1536, 0
    %v1545 = vsel %vm723, %v1538, 0
    %v1547 = vsel %vm723, %v1540, 0
    %v1549 = vsel %vm723, %v1542, 0
    %1551 = vmatprep.subr.mxu0 0.0
    %1552 = vmatpush1.xpose.msra.mxu0 %v1547
    %1553 = vmatprep.subr.mxu0 0.0
    %1554 = vmatpush1.xpose.msra.mxu0 %v1549
    %1555 = vmatprep.subr.mxu0 0.0
    %1556 = vmatpush1.xpose.msra.mxu0 0.0
    %1557 = vmatprep.subr.mxu0 0.0
    %1558 = vmatpush1.xpose.msra.mxu0 0.0
    %1559 = vmatprep.subr.mxu0 0.0
    %1560 = vmatpush1.xpose.msra.mxu0 0.0
    %1561 = vmatprep.subr.mxu0 0.0
    %1562 = vmatpush1.xpose.msra.mxu0 0.0
    %1563 = vmatprep.subr.mxu0 0.0
    %1564 = vmatpush1.xpose.msra.mxu0 0.0
    %1565 = vmatprep.subr.mxu0 0.0
    %1566 = vmatpush1.xpose.msra.mxu0 0.0
    %1567 = vmatprep.subr.mxu0 0.0
    %1568 = vmatpush1.xpose.msra.mxu0 0.0
    %1569 = vmatprep.subr.mxu0 0.0
    %1570 = vmatpush1.xpose.msra.mxu0 0.0
    %1571 = vmatprep.subr.mxu0 0.0
    %1572 = vmatpush1.xpose.msra.mxu0 0.0
    %1573 = vmatprep.subr.mxu0 0.0
    %1574 = vmatpush1.xpose.msra.mxu0 0.0
    %1575 = vmatprep.subr.mxu0 0.0
    %1576 = vmatpush1.xpose.msra.mxu0 0.0
    %1577 = vmatprep.subr.mxu0 0.0
    %1578 = vmatpush1.xpose.msra.mxu0 0.0
    %1579 = vmatprep.subr.mxu0 0.0
    %1580 = vmatpush1.xpose.msra.mxu0 0.0
    %1581 = vmatprep.subr.mxu0 0.0
    %1582 = vmatpush1.xpose.msra.mxu0 0.0
    %1583 = vmatprep.subr.mxu0 0.0
    %1584 = vmatpush1.xpose.msra.mxu0 0.0
    %1585 = vmatprep.subr.mxu0 0.0
    %1586 = vmatpush1.xpose.msra.mxu0 0.0
    %1587 = vmatprep.subr.mxu0 0.0
    %1588 = vmatpush1.xpose.msra.mxu0 0.0
    %1589 = vmatprep.subr.mxu0 0.0
    %1590 = vmatpush1.xpose.msra.mxu0 0.0
    %1591 = vmatprep.subr.mxu0 0.0
    %1592 = vmatpush1.xpose.msra.mxu0 0.0
    %1593 = vmatprep.subr.mxu0 0.0
    %1594 = vmatpush1.xpose.msra.mxu0 0.0
    %1595 = vmatprep.subr.mxu0 0.0
    %1596 = vmatpush1.xpose.msra.mxu0 0.0
    %1597 = vmatprep.subr.mxu0 0.0
    %1598 = vmatpush1.xpose.msra.mxu0 0.0
    %1599 = vmatprep.subr.mxu0 0.0
    %1600 = vmatpush1.xpose.msra.mxu0 0.0
    %1601 = vmatprep.subr.mxu0 0.0
    %1602 = vmatpush1.xpose.msra.mxu0 0.0
    %1603 = vmatprep.subr.mxu0 0.0
    %1604 = vmatpush1.xpose.msra.mxu0 0.0
    %1605 = vmatprep.subr.mxu0 0.0
    %1606 = vmatpush1.xpose.msra.mxu0 0.0
    %1607 = vmatprep.subr.mxu0 0.0
    %1608 = vmatpush1.xpose.msra.mxu0 0.0
    %1609 = vmatprep.subr.mxu0 0.0
    %1610 = vmatpush1.xpose.msra.mxu0 0.0
    %1611 = vmatprep.subr.mxu0 0.0
    %1612 = vmatpush1.xpose.msra.mxu0 0.0
    %1613 = vmatprep.subr.mxu0 0.0
    %1614 = vmatpush1.xpose.msra.mxu0 0.0
    %1615 = vmatprep.mubr.f32.mxu0 0.0
    %1616 = vmatmul.mubr.f32.gmra.mrb[0].mxu0 %v1543
    %v1617 = vpop.f32.mrb[0].mxu0
    %v1618 = vadd.f32 0.0, %v1617
    %v1619 = vpop.f32.mrb[0].mxu0
    %1620 = vmatprep.mubr.f32.mxu0 0.0
    %1621 = vmatmul.mubr.f32.gmra.mrb[0].mxu0 %v1545
    %v1622 = vpop.f32.mrb[0].mxu0
    %v1623 = vadd.f32 0.0, %v1622
    %v1624 = vpop.f32.mrb[0].mxu0
    %1625 = vdwg.mxu0
    %1626 = vrot.lane.b32.xlu0 %v525, 112
    %v1627 = vpop.permute.xlu0 %1626
    %1628 = vrot.lane.b32.xlu0 %v530, 112
    %v1629 = vpop.permute.xlu0 %1628
    %1630 = vrot.lane.b32.xlu0 %v620, 112
    %v1631 = vpop.permute.xlu0 %1630
    %1632 = vrot.lane.b32.xlu0 %v625, 112
    %v1633 = vpop.permute.xlu0 %1632
    %v1634 = vsel %vm723, %v1627, 0
    %v1636 = vsel %vm723, %v1629, 0
    %v1638 = vsel %vm723, %v1631, 0
    %v1640 = vsel %vm723, %v1633, 0
    %1642 = vmatprep.subr.mxu0 0.0
    %1643 = vmatpush1.xpose.msra.mxu0 %v1638
    %1644 = vmatprep.subr.mxu0 0.0
    %1645 = vmatpush1.xpose.msra.mxu0 %v1640
    %1646 = vmatprep.subr.mxu0 0.0
    %1647 = vmatpush1.xpose.msra.mxu0 0.0
    %1648 = vmatprep.subr.mxu0 0.0
    %1649 = vmatpush1.xpose.msra.mxu0 0.0
    %1650 = vmatprep.subr.mxu0 0.0
    %1651 = vmatpush1.xpose.msra.mxu0 0.0
    %1652 = vmatprep.subr.mxu0 0.0
    %1653 = vmatpush1.xpose.msra.mxu0 0.0
    %1654 = vmatprep.subr.mxu0 0.0
    %1655 = vmatpush1.xpose.msra.mxu0 0.0
    %1656 = vmatprep.subr.mxu0 0.0
    %1657 = vmatpush1.xpose.msra.mxu0 0.0
    %1658 = vmatprep.subr.mxu0 0.0
    %1659 = vmatpush1.xpose.msra.mxu0 0.0
    %1660 = vmatprep.subr.mxu0 0.0
    %1661 = vmatpush1.xpose.msra.mxu0 0.0
    %1662 = vmatprep.subr.mxu0 0.0
    %1663 = vmatpush1.xpose.msra.mxu0 0.0
    %1664 = vmatprep.subr.mxu0 0.0
    %1665 = vmatpush1.xpose.msra.mxu0 0.0
    %1666 = vmatprep.subr.mxu0 0.0
    %1667 = vmatpush1.xpose.msra.mxu0 0.0
    %1668 = vmatprep.subr.mxu0 0.0
    %1669 = vmatpush1.xpose.msra.mxu0 0.0
    %1670 = vmatprep.subr.mxu0 0.0
    %1671 = vmatpush1.xpose.msra.mxu0 0.0
    %1672 = vmatprep.subr.mxu0 0.0
    %1673 = vmatpush1.xpose.msra.mxu0 0.0
    %1674 = vmatprep.subr.mxu0 0.0
    %1675 = vmatpush1.xpose.msra.mxu0 0.0
    %1676 = vmatprep.subr.mxu0 0.0
    %1677 = vmatpush1.xpose.msra.mxu0 0.0
    %1678 = vmatprep.subr.mxu0 0.0
    %1679 = vmatpush1.xpose.msra.mxu0 0.0
    %1680 = vmatprep.subr.mxu0 0.0
    %1681 = vmatpush1.xpose.msra.mxu0 0.0
    %1682 = vmatprep.subr.mxu0 0.0
    %1683 = vmatpush1.xpose.msra.mxu0 0.0
    %1684 = vmatprep.subr.mxu0 0.0
    %1685 = vmatpush1.xpose.msra.mxu0 0.0
    %1686 = vmatprep.subr.mxu0 0.0
    %1687 = vmatpush1.xpose.msra.mxu0 0.0
    %1688 = vmatprep.subr.mxu0 0.0
    %1689 = vmatpush1.xpose.msra.mxu0 0.0
    %1690 = vmatprep.subr.mxu0 0.0
    %1691 = vmatpush1.xpose.msra.mxu0 0.0
    %1692 = vmatprep.subr.mxu0 0.0
    %1693 = vmatpush1.xpose.msra.mxu0 0.0
    %1694 = vmatprep.subr.mxu0 0.0
    %1695 = vmatpush1.xpose.msra.mxu0 0.0
    %1696 = vmatprep.subr.mxu0 0.0
    %1697 = vmatpush1.xpose.msra.mxu0 0.0
    %1698 = vmatprep.subr.mxu0 0.0
    %1699 = vmatpush1.xpose.msra.mxu0 0.0
    %1700 = vmatprep.subr.mxu0 0.0
    %1701 = vmatpush1.xpose.msra.mxu0 0.0
    %1702 = vmatprep.subr.mxu0 0.0
    %1703 = vmatpush1.xpose.msra.mxu0 0.0
    %1704 = vmatprep.subr.mxu0 0.0
    %1705 = vmatpush1.xpose.msra.mxu0 0.0
    %1706 = vmatprep.mubr.f32.mxu0 0.0
    %1707 = vmatmul.mubr.f32.gmra.mrb[0].mxu0 %v1634
    %v1708 = vpop.f32.mrb[0].mxu0
    %v1709 = vadd.f32 0.0, %v1708
    %v1710 = vpop.f32.mrb[0].mxu0
    %1711 = vmatprep.mubr.f32.mxu0 0.0
    %1712 = vmatmul.mubr.f32.gmra.mrb[0].mxu0 %v1636
    %v1713 = vpop.f32.mrb[0].mxu0
    %v1714 = vadd.f32 0.0, %v1713
    %v1715 = vpop.f32.mrb[0].mxu0
    %1716 = vdwg.mxu0
    %v1717 = vmul.f32 %v1618, 0.35355338
    %v1718 = vmul.f32 %v1623, 0.35355338
    %v1719 = vmul.f32 %v1709, 0.35355338
    %v1720 = vmul.f32 %v1714, 0.35355338
    %v1721 = vsel %vm910, -inf, %v1717
    %v1722 = vsel %vm910, -inf, %v1718
    %v1723 = vsel %vm911, -inf, %v1719
    %v1724 = vsel %vm911, -inf, %v1720
    %v1725 = vsel %vm916, %v1721, -inf
    %1726 = vmax.xlane.f32.xlu0 %v1725
    %v1727 = vpop.xlane.xlu0 %1726
    %v1728 = vsel %vm916, %v1722, -inf
    %1729 = vmax.xlane.f32.xlu0 %v1728
    %v1730 = vpop.xlane.xlu0 %1729
    %v1731 = vsel %vm916, %v1723, -inf
    %1732 = vmax.xlane.f32.xlu0 %v1731
    %v1733 = vpop.xlane.xlu0 %1732
    %v1734 = vsel %vm916, %v1724, -inf
    %1735 = vmax.xlane.f32.xlu0 %v1734
    %v1736 = vpop.xlane.xlu0 %1735
    %v1737 = vsub.f32 %v1721, %v1727
    %v1738 = vsub.f32 %v1722, %v1730
    %v1739 = vsub.f32 %v1723, %v1733
    %v1740 = vsub.f32 %v1724, %v1736
    %v1741 = vmul.f32 %v1737, 1.442695
    %v1742 = vpow.pop %v1741
    %v1743 = vmul.f32 %v1738, 1.442695
    %v1744 = vpow.pop %v1743
    %v1745 = vmul.f32 %v1739, 1.442695
    %v1746 = vpow.pop %v1745
    %v1747 = vmul.f32 %v1740, 1.442695
    %v1748 = vpow.pop %v1747
    %v1749 = vsel %vm916, %v1742, 0.0
    %1750 = vadd.xlane.f32.xlu0 %v1749
    %v1751 = vpop.xlane.xlu0 %1750
    %v1752 = vsel %vm916, %v1744, 0.0
    %1753 = vadd.xlane.f32.xlu0 %v1752
    %v1754 = vpop.xlane.xlu0 %1753
    %v1755 = vsel %vm916, %v1746, 0.0
    %1756 = vadd.xlane.f32.xlu0 %v1755
    %v1757 = vpop.xlane.xlu0 %1756
    %v1758 = vsel %vm916, %v1748, 0.0
    %1759 = vadd.xlane.f32.xlu0 %v1758
    %v1760 = vpop.xlane.xlu0 %1759
    %v1761 = vrcp.pop %v1751
    %v1762 = vmul.f32 %v1742, %v1761
    %v1763 = vrcp.pop %v1754
    %v1764 = vmul.f32 %v1744, %v1763
    %v1765 = vrcp.pop %v1757
    %v1766 = vmul.f32 %v1746, %v1765
    %v1767 = vrcp.pop %v1760
    %v1768 = vmul.f32 %v1748, %v1767
    %1769 = vrot.lane.b32.xlu0 %v705, 112
    %v1770 = vpop.permute.xlu0 %1769
    %1771 = vrot.lane.b32.xlu0 %v710, 112
    %v1772 = vpop.permute.xlu0 %1771
    %v1776 = vsel %vm916, %v1762, 0
    %v1779 = vsel %vm916, %v1764, 0
    %1781 = vmatprep.subr.mxu0 0.0
    %1782 = vmatpush1.msra.mxu0 %v1770
    %1783 = vmatprep.subr.mxu0 0.0
    %1784 = vmatpush1.msra.mxu0 %v1772
    %1785 = vmatprep.subr.mxu0 0.0
    %1786 = vmatpush1.msra.mxu0 0.0
    %1787 = vmatprep.subr.mxu0 0.0
    %1788 = vmatpush1.msra.mxu0 0.0
    %1789 = vmatprep.subr.mxu0 0.0
    %1790 = vmatpush1.msra.mxu0 0.0
    %1791 = vmatprep.subr.mxu0 0.0
    %1792 = vmatpush1.msra.mxu0 0.0
    %1793 = vmatprep.subr.mxu0 0.0
    %1794 = vmatpush1.msra.mxu0 0.0
    %1795 = vmatprep.subr.mxu0 0.0
    %1796 = vmatpush1.msra.mxu0 0.0
    %1797 = vmatprep.subr.mxu0 0.0
    %1798 = vmatpush1.msra.mxu0 0.0
    %1799 = vmatprep.subr.mxu0 0.0
    %1800 = vmatpush1.msra.mxu0 0.0
    %1801 = vmatprep.subr.mxu0 0.0
    %1802 = vmatpush1.msra.mxu0 0.0
    %1803 = vmatprep.subr.mxu0 0.0
    %1804 = vmatpush1.msra.mxu0 0.0
    %1805 = vmatprep.subr.mxu0 0.0
    %1806 = vmatpush1.msra.mxu0 0.0
    %1807 = vmatprep.subr.mxu0 0.0
    %1808 = vmatpush1.msra.mxu0 0.0
    %1809 = vmatprep.subr.mxu0 0.0
    %1810 = vmatpush1.msra.mxu0 0.0
    %1811 = vmatprep.subr.mxu0 0.0
    %1812 = vmatpush1.msra.mxu0 0.0
    %1813 = vmatprep.subr.mxu0 0.0
    %1814 = vmatpush1.msra.mxu0 0.0
    %1815 = vmatprep.subr.mxu0 0.0
    %1816 = vmatpush1.msra.mxu0 0.0
    %1817 = vmatprep.subr.mxu0 0.0
    %1818 = vmatpush1.msra.mxu0 0.0
    %1819 = vmatprep.subr.mxu0 0.0
    %1820 = vmatpush1.msra.mxu0 0.0
    %1821 = vmatprep.subr.mxu0 0.0
    %1822 = vmatpush1.msra.mxu0 0.0
    %1823 = vmatprep.subr.mxu0 0.0
    %1824 = vmatpush1.msra.mxu0 0.0
    %1825 = vmatprep.subr.mxu0 0.0
    %1826 = vmatpush1.msra.mxu0 0.0
    %1827 = vmatprep.subr.mxu0 0.0
    %1828 = vmatpush1.msra.mxu0 0.0
    %1829 = vmatprep.subr.mxu0 0.0
    %1830 = vmatpush1.msra.mxu0 0.0
    %1831 = vmatprep.subr.mxu0 0.0
    %1832 = vmatpush1.msra.mxu0 0.0
    %1833 = vmatprep.subr.mxu0 0.0
    %1834 = vmatpush1.msra.mxu0 0.0
    %1835 = vmatprep.subr.mxu0 0.0
    %1836 = vmatpush1.msra.mxu0 0.0
    %1837 = vmatprep.subr.mxu0 0.0
    %1838 = vmatpush1.msra.mxu0 0.0
    %1839 = vmatprep.subr.mxu0 0.0
    %1840 = vmatpush1.msra.mxu0 0.0
    %1841 = vmatprep.subr.mxu0 0.0
    %1842 = vmatpush1.msra.mxu0 0.0
    %1843 = vmatprep.subr.mxu0 0.0
    %1844 = vmatpush1.msra.mxu0 0.0
    %1845 = vmatprep.mubr.f32.mxu0 0.0
    %1846 = vmatmul.mubr.f32.gmra.mrb[0].mxu0 %v1776
    %v1847 = vpop.f32.mrb[0].mxu0
    %v1848 = vadd.f32 0.0, %v1847
    %v1849 = vpop.f32.mrb[0].mxu0
    %1850 = vmatprep.mubr.f32.mxu0 0.0
    %1851 = vmatmul.mubr.f32.gmra.mrb[0].mxu0 %v1779
    %v1852 = vpop.f32.mrb[0].mxu0
    %v1853 = vadd.f32 0.0, %v1852
    %v1854 = vpop.f32.mrb[0].mxu0
    %1855 = vdwg.mxu0
    %1856 = vrot.lane.b32.xlu0 %v715, 112
    %v1857 = vpop.permute.xlu0 %1856
    %1858 = vrot.lane.b32.xlu0 %v720, 112
    %v1859 = vpop.permute.xlu0 %1858
    %v1863 = vsel %vm916, %v1766, 0
    %v1866 = vsel %vm916, %v1768, 0
    %1868 = vmatprep.subr.mxu0 0.0
    %1869 = vmatpush1.msra.mxu0 %v1857
    %1870 = vmatprep.subr.mxu0 0.0
    %1871 = vmatpush1.msra.mxu0 %v1859
    %1872 = vmatprep.subr.mxu0 0.0
    %1873 = vmatpush1.msra.mxu0 0.0
    %1874 = vmatprep.subr.mxu0 0.0
    %1875 = vmatpush1.msra.mxu0 0.0
    %1876 = vmatprep.subr.mxu0 0.0
    %1877 = vmatpush1.msra.mxu0 0.0
    %1878 = vmatprep.subr.mxu0 0.0
    %1879 = vmatpush1.msra.mxu0 0.0
    %1880 = vmatprep.subr.mxu0 0.0
    %1881 = vmatpush1.msra.mxu0 0.0
    %1882 = vmatprep.subr.mxu0 0.0
    %1883 = vmatpush1.msra.mxu0 0.0
    %1884 = vmatprep.subr.mxu0 0.0
    %1885 = vmatpush1.msra.mxu0 0.0
    %1886 = vmatprep.subr.mxu0 0.0
    %1887 = vmatpush1.msra.mxu0 0.0
    %1888 = vmatprep.subr.mxu0 0.0
    %1889 = vmatpush1.msra.mxu0 0.0
    %1890 = vmatprep.subr.mxu0 0.0
    %1891 = vmatpush1.msra.mxu0 0.0
    %1892 = vmatprep.subr.mxu0 0.0
    %1893 = vmatpush1.msra.mxu0 0.0
    %1894 = vmatprep.subr.mxu0 0.0
    %1895 = vmatpush1.msra.mxu0 0.0
    %1896 = vmatprep.subr.mxu0 0.0
    %1897 = vmatpush1.msra.mxu0 0.0
    %1898 = vmatprep.subr.mxu0 0.0
    %1899 = vmatpush1.msra.mxu0 0.0
    %1900 = vmatprep.subr.mxu0 0.0
    %1901 = vmatpush1.msra.mxu0 0.0
    %1902 = vmatprep.subr.mxu0 0.0
    %1903 = vmatpush1.msra.mxu0 0.0
    %1904 = vmatprep.subr.mxu0 0.0
    %1905 = vmatpush1.msra.mxu0 0.0
    %1906 = vmatprep.subr.mxu0 0.0
    %1907 = vmatpush1.msra.mxu0 0.0
    %1908 = vmatprep.subr.mxu0 0.0
    %1909 = vmatpush1.msra.mxu0 0.0
    %1910 = vmatprep.subr.mxu0 0.0
    %1911 = vmatpush1.msra.mxu0 0.0
    %1912 = vmatprep.subr.mxu0 0.0
    %1913 = vmatpush1.msra.mxu0 0.0
    %1914 = vmatprep.subr.mxu0 0.0
    %1915 = vmatpush1.msra.mxu0 0.0
    %1916 = vmatprep.subr.mxu0 0.0
    %1917 = vmatpush1.msra.mxu0 0.0
    %1918 = vmatprep.subr.mxu0 0.0
    %1919 = vmatpush1.msra.mxu0 0.0
    %1920 = vmatprep.subr.mxu0 0.0
    %1921 = vmatpush1.msra.mxu0 0.0
    %1922 = vmatprep.subr.mxu0 0.0
    %1923 = vmatpush1.msra.mxu0 0.0
    %1924 = vmatprep.subr.mxu0 0.0
    %1925 = vmatpush1.msra.mxu0 0.0
    %1926 = vmatprep.subr.mxu0 0.0
    %1927 = vmatpush1.msra.mxu0 0.0
    %1928 = vmatprep.subr.mxu0 0.0
    %1929 = vmatpush1.msra.mxu0 0.0
    %1930 = vmatprep.subr.mxu0 0.0
    %1931 = vmatpush1.msra.mxu0 0.0
    %1932 = vmatprep.mubr.f32.mxu0 0.0
    %1933 = vmatmul.mubr.f32.gmra.mrb[0].mxu0 %v1863
    %v1934 = vpop.f32.mrb[0].mxu0
    %v1935 = vadd.f32 0.0, %v1934
    %v1936 = vpop.f32.mrb[0].mxu0
    %1937 = vmatprep.mubr.f32.mxu0 0.0
    %1938 = vmatmul.mubr.f32.gmra.mrb[0].mxu0 %v1866
    %v1939 = vpop.f32.mrb[0].mxu0
    %v1940 = vadd.f32 0.0, %v1939
    %v1941 = vpop.f32.mrb[0].mxu0
    %1942 = vdwg.mxu0
    %1943 = vrot.lane.b32.xlu0 %v515, 104
    %v1944 = vpop.permute.xlu0 %1943
    %1945 = vrot.lane.b32.xlu0 %v520, 104
    %v1946 = vpop.permute.xlu0 %1945
    %1947 = vrot.lane.b32.xlu0 %v610, 104
    %v1948 = vpop.permute.xlu0 %1947
    %1949 = vrot.lane.b32.xlu0 %v615, 104
    %v1950 = vpop.permute.xlu0 %1949
    %v1951 = vsel %vm723, %v1944, 0
    %v1953 = vsel %vm723, %v1946, 0
    %v1955 = vsel %vm723, %v1948, 0
    %v1957 = vsel %vm723, %v1950, 0
    %1959 = vmatprep.subr.mxu0 0.0
    %1960 = vmatpush1.xpose.msra.mxu0 %v1955
    %1961 = vmatprep.subr.mxu0 0.0
    %1962 = vmatpush1.xpose.msra.mxu0 %v1957
    %1963 = vmatprep.subr.mxu0 0.0
    %1964 = vmatpush1.xpose.msra.mxu0 0.0
    %1965 = vmatprep.subr.mxu0 0.0
    %1966 = vmatpush1.xpose.msra.mxu0 0.0
    %1967 = vmatprep.subr.mxu0 0.0
    %1968 = vmatpush1.xpose.msra.mxu0 0.0
    %1969 = vmatprep.subr.mxu0 0.0
    %1970 = vmatpush1.xpose.msra.mxu0 0.0
    %1971 = vmatprep.subr.mxu0 0.0
    %1972 = vmatpush1.xpose.msra.mxu0 0.0
    %1973 = vmatprep.subr.mxu0 0.0
    %1974 = vmatpush1.xpose.msra.mxu0 0.0
    %1975 = vmatprep.subr.mxu0 0.0
    %1976 = vmatpush1.xpose.msra.mxu0 0.0
    %1977 = vmatprep.subr.mxu0 0.0
    %1978 = vmatpush1.xpose.msra.mxu0 0.0
    %1979 = vmatprep.subr.mxu0 0.0
    %1980 = vmatpush1.xpose.msra.mxu0 0.0
    %1981 = vmatprep.subr.mxu0 0.0
    %1982 = vmatpush1.xpose.msra.mxu0 0.0
    %1983 = vmatprep.subr.mxu0 0.0
    %1984 = vmatpush1.xpose.msra.mxu0 0.0
    %1985 = vmatprep.subr.mxu0 0.0
    %1986 = vmatpush1.xpose.msra.mxu0 0.0
    %1987 = vmatprep.subr.mxu0 0.0
    %1988 = vmatpush1.xpose.msra.mxu0 0.0
    %1989 = vmatprep.subr.mxu0 0.0
    %1990 = vmatpush1.xpose.msra.mxu0 0.0
    %1991 = vmatprep.subr.mxu0 0.0
    %1992 = vmatpush1.xpose.msra.mxu0 0.0
    %1993 = vmatprep.subr.mxu0 0.0
    %1994 = vmatpush1.xpose.msra.mxu0 0.0
    %1995 = vmatprep.subr.mxu0 0.0
    %1996 = vmatpush1.xpose.msra.mxu0 0.0
    %1997 = vmatprep.subr.mxu0 0.0
    %1998 = vmatpush1.xpose.msra.mxu0 0.0
    %1999 = vmatprep.subr.mxu0 0.0
    %2000 = vmatpush1.xpose.msra.mxu0 0.0
    %2001 = vmatprep.subr.mxu0 0.0
    %2002 = vmatpush1.xpose.msra.mxu0 0.0
    %2003 = vmatprep.subr.mxu0 0.0
    %2004 = vmatpush1.xpose.msra.mxu0 0.0
    %2005 = vmatprep.subr.mxu0 0.0
    %2006 = vmatpush1.xpose.msra.mxu0 0.0
    %2007 = vmatprep.subr.mxu0 0.0
    %2008 = vmatpush1.xpose.msra.mxu0 0.0
    %2009 = vmatprep.subr.mxu0 0.0
    %2010 = vmatpush1.xpose.msra.mxu0 0.0
    %2011 = vmatprep.subr.mxu0 0.0
    %2012 = vmatpush1.xpose.msra.mxu0 0.0
    %2013 = vmatprep.subr.mxu0 0.0
    %2014 = vmatpush1.xpose.msra.mxu0 0.0
    %2015 = vmatprep.subr.mxu0 0.0
    %2016 = vmatpush1.xpose.msra.mxu0 0.0
    %2017 = vmatprep.subr.mxu0 0.0
    %2018 = vmatpush1.xpose.msra.mxu0 0.0
    %2019 = vmatprep.subr.mxu0 0.0
    %2020 = vmatpush1.xpose.msra.mxu0 0.0
    %2021 = vmatprep.subr.mxu0 0.0
    %2022 = vmatpush1.xpose.msra.mxu0 0.0
    %2023 = vmatprep.mubr.f32.mxu0 0.0
    %2024 = vmatmul.mubr.f32.gmra.mrb[0].mxu0 %v1951
    %v2025 = vpop.f32.mrb[0].mxu0
    %v2026 = vadd.f32 0.0, %v2025
    %v2027 = vpop.f32.mrb[0].mxu0
    %2028 = vmatprep.mubr.f32.mxu0 0.0
    %2029 = vmatmul.mubr.f32.gmra.mrb[0].mxu0 %v1953
    %v2030 = vpop.f32.mrb[0].mxu0
    %v2031 = vadd.f32 0.0, %v2030
    %v2032 = vpop.f32.mrb[0].mxu0
    %2033 = vdwg.mxu0
    %2034 = vrot.lane.b32.xlu0 %v525, 104
    %v2035 = vpop.permute.xlu0 %2034
    %2036 = vrot.lane.b32.xlu0 %v530, 104
    %v2037 = vpop.permute.xlu0 %2036
    %2038 = vrot.lane.b32.xlu0 %v620, 104
    %v2039 = vpop.permute.xlu0 %2038
    %2040 = vrot.lane.b32.xlu0 %v625, 104
    %v2041 = vpop.permute.xlu0 %2040
    %v2042 = vsel %vm723, %v2035, 0
    %v2044 = vsel %vm723, %v2037, 0
    %v2046 = vsel %vm723, %v2039, 0
    %v2048 = vsel %vm723, %v2041, 0
    %2050 = vmatprep.subr.mxu0 0.0
    %2051 = vmatpush1.xpose.msra.mxu0 %v2046
    %2052 = vmatprep.subr.mxu0 0.0
    %2053 = vmatpush1.xpose.msra.mxu0 %v2048
    %2054 = vmatprep.subr.mxu0 0.0
    %2055 = vmatpush1.xpose.msra.mxu0 0.0
    %2056 = vmatprep.subr.mxu0 0.0
    %2057 = vmatpush1.xpose.msra.mxu0 0.0
    %2058 = vmatprep.subr.mxu0 0.0
    %2059 = vmatpush1.xpose.msra.mxu0 0.0
    %2060 = vmatprep.subr.mxu0 0.0
    %2061 = vmatpush1.xpose.msra.mxu0 0.0
    %2062 = vmatprep.subr.mxu0 0.0
    %2063 = vmatpush1.xpose.msra.mxu0 0.0
    %2064 = vmatprep.subr.mxu0 0.0
    %2065 = vmatpush1.xpose.msra.mxu0 0.0
    %2066 = vmatprep.subr.mxu0 0.0
    %2067 = vmatpush1.xpose.msra.mxu0 0.0
    %2068 = vmatprep.subr.mxu0 0.0
    %2069 = vmatpush1.xpose.msra.mxu0 0.0
    %2070 = vmatprep.subr.mxu0 0.0
    %2071 = vmatpush1.xpose.msra.mxu0 0.0
    %2072 = vmatprep.subr.mxu0 0.0
    %2073 = vmatpush1.xpose.msra.mxu0 0.0
    %2074 = vmatprep.subr.mxu0 0.0
    %2075 = vmatpush1.xpose.msra.mxu0 0.0
    %2076 = vmatprep.subr.mxu0 0.0
    %2077 = vmatpush1.xpose.msra.mxu0 0.0
    %2078 = vmatprep.subr.mxu0 0.0
    %2079 = vmatpush1.xpose.msra.mxu0 0.0
    %2080 = vmatprep.subr.mxu0 0.0
    %2081 = vmatpush1.xpose.msra.mxu0 0.0
    %2082 = vmatprep.subr.mxu0 0.0
    %2083 = vmatpush1.xpose.msra.mxu0 0.0
    %2084 = vmatprep.subr.mxu0 0.0
    %2085 = vmatpush1.xpose.msra.mxu0 0.0
    %2086 = vmatprep.subr.mxu0 0.0
    %2087 = vmatpush1.xpose.msra.mxu0 0.0
    %2088 = vmatprep.subr.mxu0 0.0
    %2089 = vmatpush1.xpose.msra.mxu0 0.0
    %2090 = vmatprep.subr.mxu0 0.0
    %2091 = vmatpush1.xpose.msra.mxu0 0.0
    %2092 = vmatprep.subr.mxu0 0.0
    %2093 = vmatpush1.xpose.msra.mxu0 0.0
    %2094 = vmatprep.subr.mxu0 0.0
    %2095 = vmatpush1.xpose.msra.mxu0 0.0
    %2096 = vmatprep.subr.mxu0 0.0
    %2097 = vmatpush1.xpose.msra.mxu0 0.0
    %2098 = vmatprep.subr.mxu0 0.0
    %2099 = vmatpush1.xpose.msra.mxu0 0.0
    %2100 = vmatprep.subr.mxu0 0.0
    %2101 = vmatpush1.xpose.msra.mxu0 0.0
    %2102 = vmatprep.subr.mxu0 0.0
    %2103 = vmatpush1.xpose.msra.mxu0 0.0
    %2104 = vmatprep.subr.mxu0 0.0
    %2105 = vmatpush1.xpose.msra.mxu0 0.0
    %2106 = vmatprep.subr.mxu0 0.0
    %2107 = vmatpush1.xpose.msra.mxu0 0.0
    %2108 = vmatprep.subr.mxu0 0.0
    %2109 = vmatpush1.xpose.msra.mxu0 0.0
    %2110 = vmatprep.subr.mxu0 0.0
    %2111 = vmatpush1.xpose.msra.mxu0 0.0
    %2112 = vmatprep.subr.mxu0 0.0
    %2113 = vmatpush1.xpose.msra.mxu0 0.0
    %2114 = vmatprep.mubr.f32.mxu0 0.0
    %2115 = vmatmul.mubr.f32.gmra.mrb[0].mxu0 %v2042
    %v2116 = vpop.f32.mrb[0].mxu0
    %v2117 = vadd.f32 0.0, %v2116
    %v2118 = vpop.f32.mrb[0].mxu0
    %2119 = vmatprep.mubr.f32.mxu0 0.0
    %2120 = vmatmul.mubr.f32.gmra.mrb[0].mxu0 %v2044
    %v2121 = vpop.f32.mrb[0].mxu0
    %v2122 = vadd.f32 0.0, %v2121
    %v2123 = vpop.f32.mrb[0].mxu0
    %2124 = vdwg.mxu0
    %v2125 = vmul.f32 %v2026, 0.35355338
    %v2126 = vmul.f32 %v2031, 0.35355338
    %v2127 = vmul.f32 %v2117, 0.35355338
    %v2128 = vmul.f32 %v2122, 0.35355338
    %v2129 = vsel %vm910, -inf, %v2125
    %v2130 = vsel %vm910, -inf, %v2126
    %v2131 = vsel %vm911, -inf, %v2127
    %v2132 = vsel %vm911, -inf, %v2128
    %v2133 = vsel %vm916, %v2129, -inf
    %2134 = vmax.xlane.f32.xlu0 %v2133
    %v2135 = vpop.xlane.xlu0 %2134
    %v2136 = vsel %vm916, %v2130, -inf
    %2137 = vmax.xlane.f32.xlu0 %v2136
    %v2138 = vpop.xlane.xlu0 %2137
    %v2139 = vsel %vm916, %v2131, -inf
    %2140 = vmax.xlane.f32.xlu0 %v2139
    %v2141 = vpop.xlane.xlu0 %2140
    %v2142 = vsel %vm916, %v2132, -inf
    %2143 = vmax.xlane.f32.xlu0 %v2142
    %v2144 = vpop.xlane.xlu0 %2143
    %v2145 = vsub.f32 %v2129, %v2135
    %v2146 = vsub.f32 %v2130, %v2138
    %v2147 = vsub.f32 %v2131, %v2141
    %v2148 = vsub.f32 %v2132, %v2144
    %v2149 = vmul.f32 %v2145, 1.442695
    %v2150 = vpow.pop %v2149
    %v2151 = vmul.f32 %v2146, 1.442695
    %v2152 = vpow.pop %v2151
    %v2153 = vmul.f32 %v2147, 1.442695
    %v2154 = vpow.pop %v2153
    %v2155 = vmul.f32 %v2148, 1.442695
    %v2156 = vpow.pop %v2155
    %v2157 = vsel %vm916, %v2150, 0.0
    %2158 = vadd.xlane.f32.xlu0 %v2157
    %v2159 = vpop.xlane.xlu0 %2158
    %v2160 = vsel %vm916, %v2152, 0.0
    %2161 = vadd.xlane.f32.xlu0 %v2160
    %v2162 = vpop.xlane.xlu0 %2161
    %v2163 = vsel %vm916, %v2154, 0.0
    %2164 = vadd.xlane.f32.xlu0 %v2163
    %v2165 = vpop.xlane.xlu0 %2164
    %v2166 = vsel %vm916, %v2156, 0.0
    %2167 = vadd.xlane.f32.xlu0 %v2166
    %v2168 = vpop.xlane.xlu0 %2167
    %v2169 = vrcp.pop %v2159
    %v2170 = vmul.f32 %v2150, %v2169
    %v2171 = vrcp.pop %v2162
    %v2172 = vmul.f32 %v2152, %v2171
    %v2173 = vrcp.pop %v2165
    %v2174 = vmul.f32 %v2154, %v2173
    %v2175 = vrcp.pop %v2168
    %v2176 = vmul.f32 %v2156, %v2175
    %2177 = vrot.lane.b32.xlu0 %v705, 104
    %v2178 = vpop.permute.xlu0 %2177
    %2179 = vrot.lane.b32.xlu0 %v710, 104
    %v2180 = vpop.permute.xlu0 %2179
    %v2184 = vsel %vm916, %v2170, 0
    %v2187 = vsel %vm916, %v2172, 0
    %2189 = vmatprep.subr.mxu0 0.0
    %2190 = vmatpush1.msra.mxu0 %v2178
    %2191 = vmatprep.subr.mxu0 0.0
    %2192 = vmatpush1.msra.mxu0 %v2180
    %2193 = vmatprep.subr.mxu0 0.0
    %2194 = vmatpush1.msra.mxu0 0.0
    %2195 = vmatprep.subr.mxu0 0.0
    %2196 = vmatpush1.msra.mxu0 0.0
    %2197 = vmatprep.subr.mxu0 0.0
    %2198 = vmatpush1.msra.mxu0 0.0
    %2199 = vmatprep.subr.mxu0 0.0
    %2200 = vmatpush1.msra.mxu0 0.0
    %2201 = vmatprep.subr.mxu0 0.0
    %2202 = vmatpush1.msra.mxu0 0.0
    %2203 = vmatprep.subr.mxu0 0.0
    %2204 = vmatpush1.msra.mxu0 0.0
    %2205 = vmatprep.subr.mxu0 0.0
    %2206 = vmatpush1.msra.mxu0 0.0
    %2207 = vmatprep.subr.mxu0 0.0
    %2208 = vmatpush1.msra.mxu0 0.0
    %2209 = vmatprep.subr.mxu0 0.0
    %2210 = vmatpush1.msra.mxu0 0.0
    %2211 = vmatprep.subr.mxu0 0.0
    %2212 = vmatpush1.msra.mxu0 0.0
    %2213 = vmatprep.subr.mxu0 0.0
    %2214 = vmatpush1.msra.mxu0 0.0
    %2215 = vmatprep.subr.mxu0 0.0
    %2216 = vmatpush1.msra.mxu0 0.0
    %2217 = vmatprep.subr.mxu0 0.0
    %2218 = vmatpush1.msra.mxu0 0.0
    %2219 = vmatprep.subr.mxu0 0.0
    %2220 = vmatpush1.msra.mxu0 0.0
    %2221 = vmatprep.subr.mxu0 0.0
    %2222 = vmatpush1.msra.mxu0 0.0
    %2223 = vmatprep.subr.mxu0 0.0
    %2224 = vmatpush1.msra.mxu0 0.0
    %2225 = vmatprep.subr.mxu0 0.0
    %2226 = vmatpush1.msra.mxu0 0.0
    %2227 = vmatprep.subr.mxu0 0.0
    %2228 = vmatpush1.msra.mxu0 0.0
    %2229 = vmatprep.subr.mxu0 0.0
    %2230 = vmatpush1.msra.mxu0 0.0
    %2231 = vmatprep.subr.mxu0 0.0
    %2232 = vmatpush1.msra.mxu0 0.0
    %2233 = vmatprep.subr.mxu0 0.0
    %2234 = vmatpush1.msra.mxu0 0.0
    %2235 = vmatprep.subr.mxu0 0.0
    %2236 = vmatpush1.msra.mxu0 0.0
    %2237 = vmatprep.subr.mxu0 0.0
    %2238 = vmatpush1.msra.mxu0 0.0
    %2239 = vmatprep.subr.mxu0 0.0
    %2240 = vmatpush1.msra.mxu0 0.0
    %2241 = vmatprep.subr.mxu0 0.0
    %2242 = vmatpush1.msra.mxu0 0.0
    %2243 = vmatprep.subr.mxu0 0.0
    %2244 = vmatpush1.msra.mxu0 0.0
    %2245 = vmatprep.subr.mxu0 0.0
    %2246 = vmatpush1.msra.mxu0 0.0
    %2247 = vmatprep.subr.mxu0 0.0
    %2248 = vmatpush1.msra.mxu0 0.0
    %2249 = vmatprep.subr.mxu0 0.0
    %2250 = vmatpush1.msra.mxu0 0.0
    %2251 = vmatprep.subr.mxu0 0.0
    %2252 = vmatpush1.msra.mxu0 0.0
    %2253 = vmatprep.mubr.f32.mxu0 0.0
    %2254 = vmatmul.mubr.f32.gmra.mrb[0].mxu0 %v2184
    %v2255 = vpop.f32.mrb[0].mxu0
    %v2256 = vadd.f32 0.0, %v2255
    %v2257 = vpop.f32.mrb[0].mxu0
    %2258 = vmatprep.mubr.f32.mxu0 0.0
    %2259 = vmatmul.mubr.f32.gmra.mrb[0].mxu0 %v2187
    %v2260 = vpop.f32.mrb[0].mxu0
    %v2261 = vadd.f32 0.0, %v2260
    %v2262 = vpop.f32.mrb[0].mxu0
    %2263 = vdwg.mxu0
    %2264 = vrot.lane.b32.xlu0 %v715, 104
    %v2265 = vpop.permute.xlu0 %2264
    %2266 = vrot.lane.b32.xlu0 %v720, 104
    %v2267 = vpop.permute.xlu0 %2266
    %v2271 = vsel %vm916, %v2174, 0
    %v2274 = vsel %vm916, %v2176, 0
    %2276 = vmatprep.subr.mxu0 0.0
    %2277 = vmatpush1.msra.mxu0 %v2265
    %2278 = vmatprep.subr.mxu0 0.0
    %2279 = vmatpush1.msra.mxu0 %v2267
    %2280 = vmatprep.subr.mxu0 0.0
    %2281 = vmatpush1.msra.mxu0 0.0
    %2282 = vmatprep.subr.mxu0 0.0
    %2283 = vmatpush1.msra.mxu0 0.0
    %2284 = vmatprep.subr.mxu0 0.0
    %2285 = vmatpush1.msra.mxu0 0.0
    %2286 = vmatprep.subr.mxu0 0.0
    %2287 = vmatpush1.msra.mxu0 0.0
    %2288 = vmatprep.subr.mxu0 0.0
    %2289 = vmatpush1.msra.mxu0 0.0
    %2290 = vmatprep.subr.mxu0 0.0
    %2291 = vmatpush1.msra.mxu0 0.0
    %2292 = vmatprep.subr.mxu0 0.0
    %2293 = vmatpush1.msra.mxu0 0.0
    %2294 = vmatprep.subr.mxu0 0.0
    %2295 = vmatpush1.msra.mxu0 0.0
    %2296 = vmatprep.subr.mxu0 0.0
    %2297 = vmatpush1.msra.mxu0 0.0
    %2298 = vmatprep.subr.mxu0 0.0
    %2299 = vmatpush1.msra.mxu0 0.0
    %2300 = vmatprep.subr.mxu0 0.0
    %2301 = vmatpush1.msra.mxu0 0.0
    %2302 = vmatprep.subr.mxu0 0.0
    %2303 = vmatpush1.msra.mxu0 0.0
    %2304 = vmatprep.subr.mxu0 0.0
    %2305 = vmatpush1.msra.mxu0 0.0
    %2306 = vmatprep.subr.mxu0 0.0
    %2307 = vmatpush1.msra.mxu0 0.0
    %2308 = vmatprep.subr.mxu0 0.0
    %2309 = vmatpush1.msra.mxu0 0.0
    %2310 = vmatprep.subr.mxu0 0.0
    %2311 = vmatpush1.msra.mxu0 0.0
    %2312 = vmatprep.subr.mxu0 0.0
    %2313 = vmatpush1.msra.mxu0 0.0
    %2314 = vmatprep.subr.mxu0 0.0
    %2315 = vmatpush1.msra.mxu0 0.0
    %2316 = vmatprep.subr.mxu0 0.0
    %2317 = vmatpush1.msra.mxu0 0.0
    %2318 = vmatprep.subr.mxu0 0.0
    %2319 = vmatpush1.msra.mxu0 0.0
    %2320 = vmatprep.subr.mxu0 0.0
    %2321 = vmatpush1.msra.mxu0 0.0
    %2322 = vmatprep.subr.mxu0 0.0
    %2323 = vmatpush1.msra.mxu0 0.0
    %2324 = vmatprep.subr.mxu0 0.0
    %2325 = vmatpush1.msra.mxu0 0.0
    %2326 = vmatprep.subr.mxu0 0.0
    %2327 = vmatpush1.msra.mxu0 0.0
    %2328 = vmatprep.subr.mxu0 0.0
    %2329 = vmatpush1.msra.mxu0 0.0
    %2330 = vmatprep.subr.mxu0 0.0
    %2331 = vmatpush1.msra.mxu0 0.0
    %2332 = vmatprep.subr.mxu0 0.0
    %2333 = vmatpush1.msra.mxu0 0.0
    %2334 = vmatprep.subr.mxu0 0.0
    %2335 = vmatpush1.msra.mxu0 0.0
    %2336 = vmatprep.subr.mxu0 0.0
    %2337 = vmatpush1.msra.mxu0 0.0
    %2338 = vmatprep.subr.mxu0 0.0
    %2339 = vmatpush1.msra.mxu0 0.0
    %2340 = vmatprep.mubr.f32.mxu0 0.0
    %2341 = vmatmul.mubr.f32.gmra.mrb[0].mxu0 %v2271
    %v2342 = vpop.f32.mrb[0].mxu0
    %v2343 = vadd.f32 0.0, %v2342
    %v2344 = vpop.f32.mrb[0].mxu0
    %2345 = vmatprep.mubr.f32.mxu0 0.0
    %2346 = vmatmul.mubr.f32.gmra.mrb[0].mxu0 %v2274
    %v2347 = vpop.f32.mrb[0].mxu0
    %v2348 = vadd.f32 0.0, %v2347
    %v2349 = vpop.f32.mrb[0].mxu0
    %2350 = vdwg.mxu0
    %2355 = vrot.lane.b32.xlu0 %v1438, 8
    %v2356 = vpop.permute.xlu0 %2355
    %2357 = vrot.lane.b32.xlu0 %v1443, 8
    %v2358 = vpop.permute.xlu0 %2357
    %2359 = vrot.lane.b32.xlu0 %v1527, 8
    %v2360 = vpop.permute.xlu0 %2359
    %2361 = vrot.lane.b32.xlu0 %v1532, 8
    %v2362 = vpop.permute.xlu0 %2361
    %2371 = vrot.lane.b32.xlu0 %v1848, 16
    %v2372 = vpop.permute.xlu0 %2371
    %2373 = vrot.lane.b32.xlu0 %v1853, 16
    %v2374 = vpop.permute.xlu0 %2373
    %2375 = vrot.lane.b32.xlu0 %v1935, 16
    %v2376 = vpop.permute.xlu0 %2375
    %2377 = vrot.lane.b32.xlu0 %v1940, 16
    %v2378 = vpop.permute.xlu0 %2377
    %2387 = vrot.lane.b32.xlu0 %v2256, 24
    %v2388 = vpop.permute.xlu0 %2387
    %2389 = vrot.lane.b32.xlu0 %v2261, 24
    %v2390 = vpop.permute.xlu0 %2389
    %2391 = vrot.lane.b32.xlu0 %v2343, 24
    %v2392 = vpop.permute.xlu0 %2391
    %2393 = vrot.lane.b32.xlu0 %v2348, 24
    %v2394 = vpop.permute.xlu0 %2393
    %v2399 = vsel %vm723, %v1034, %v2356
    %v2400 = vsel %vm723, %v1039, %v2358
    %v2401 = vsel %vm723, %v1115, %v2360
    %v2402 = vsel %vm723, %v1120, %v2362
    %v2403 = vsel %vm916, %v2399, %v2372
    %v2404 = vsel %vm916, %v2400, %v2374
    %v2405 = vsel %vm916, %v2401, %v2376
    %v2406 = vsel %vm916, %v2402, %v2378
    %vm2407 = vcmask 195584
    %v2408 = vsel %vm2407, %v2403, %v2388
    %v2409 = vsel %vm2407, %v2404, %v2390
    %v2410 = vsel %vm2407, %v2405, %v2392
    %v2411 = vsel %vm2407, %v2406, %v2394
    %s2412 = scalar_lea.vmem [#allocation2], 128
    %v2413 = vld [vmem:[%s2412] sm:$0xff]
    %v2414 = vld [vmem:[%s2412 + $0x8] sm:$0xff]
    %v2415 = vld [vmem:[%s2412 + $0x10] sm:$0xff]
    %v2416 = vld [vmem:[%s2412 + $0x18] sm:$0xff]
    %v2417 = vld [vmem:[%s4 + $0x6] sm:$0x1]
    %v2418 = vlaneseq
    %v2419 = vshrl.u32 %v2418, 7
    %v2420 = vsub.s32 0, %v2419
    %v2421 = vrot.slane %v2417, %v2420
    %v2423 = vsel %vm64, %v2408, 0
    %v2426 = vsel %vm64, %v2409, 0
    %v2429 = vsel %vm64, %v2410, 0
    %v2432 = vsel %vm64, %v2411, 0
    %2434 = vmatprep.subr.mxu0 0.0
    %2435 = vmatpush1.msra.mxu0 %v2413
    %2436 = vmatprep.subr.mxu0 0.0
    %2437 = vmatpush1.msra.mxu0 %v2414
    %2438 = vmatprep.subr.mxu0 0.0
    %2439 = vmatpush1.msra.mxu0 %v2415
    %2440 = vmatprep.subr.mxu0 0.0
    %2441 = vmatpush1.msra.mxu0 %v2416
    %2442 = vmatprep.subr.mxu0 0.0
    %2443 = vmatpush1.msra.mxu0 0.0
    %2444 = vmatprep.subr.mxu0 0.0
    %2445 = vmatpush1.msra.mxu0 0.0
    %2446 = vmatprep.subr.mxu0 0.0
    %2447 = vmatpush1.msra.mxu0 0.0
    %2448 = vmatprep.subr.mxu0 0.0
    %2449 = vmatpush1.msra.mxu0 0.0
    %2450 = vmatprep.subr.mxu0 0.0
    %2451 = vmatpush1.msra.mxu0 0.0
    %2452 = vmatprep.subr.mxu0 0.0
    %2453 = vmatpush1.msra.mxu0 0.0
    %2454 = vmatprep.subr.mxu0 0.0
    %2455 = vmatpush1.msra.mxu0 0.0
    %2456 = vmatprep.subr.mxu0 0.0
    %2457 = vmatpush1.msra.mxu0 0.0
    %2458 = vmatprep.subr.mxu0 0.0
    %2459 = vmatpush1.msra.mxu0 0.0
    %2460 = vmatprep.subr.mxu0 0.0
    %2461 = vmatpush1.msra.mxu0 0.0
    %2462 = vmatprep.subr.mxu0 0.0
    %2463 = vmatpush1.msra.mxu0 0.0
    %2464 = vmatprep.subr.mxu0 0.0
    %2465 = vmatpush1.msra.mxu0 0.0
    %2466 = vmatprep.subr.mxu0 0.0
    %2467 = vmatpush1.msra.mxu0 0.0
    %2468 = vmatprep.subr.mxu0 0.0
    %2469 = vmatpush1.msra.mxu0 0.0
    %2470 = vmatprep.subr.mxu0 0.0
    %2471 = vmatpush1.msra.mxu0 0.0
    %2472 = vmatprep.subr.mxu0 0.0
    %2473 = vmatpush1.msra.mxu0 0.0
    %2474 = vmatprep.subr.mxu0 0.0
    %2475 = vmatpush1.msra.mxu0 0.0
    %2476 = vmatprep.subr.mxu0 0.0
    %2477 = vmatpush1.msra.mxu0 0.0
    %2478 = vmatprep.subr.mxu0 0.0
    %2479 = vmatpush1.msra.mxu0 0.0
    %2480 = vmatprep.subr.mxu0 0.0
    %2481 = vmatpush1.msra.mxu0 0.0
    %2482 = vmatprep.subr.mxu0 0.0
    %2483 = vmatpush1.msra.mxu0 0.0
    %2484 = vmatprep.subr.mxu0 0.0
    %2485 = vmatpush1.msra.mxu0 0.0
    %2486 = vmatprep.subr.mxu0 0.0
    %2487 = vmatpush1.msra.mxu0 0.0
    %2488 = vmatprep.subr.mxu0 0.0
    %2489 = vmatpush1.msra.mxu0 0.0
    %2490 = vmatprep.subr.mxu0 0.0
    %2491 = vmatpush1.msra.mxu0 0.0
    %2492 = vmatprep.subr.mxu0 0.0
    %2493 = vmatpush1.msra.mxu0 0.0
    %2494 = vmatprep.subr.mxu0 0.0
    %2495 = vmatpush1.msra.mxu0 0.0
    %2496 = vmatprep.subr.mxu0 0.0
    %2497 = vmatpush1.msra.mxu0 0.0
    %2498 = vmatprep.mubr.f32.mxu0 0.0
    %2499 = vmatmul.mubr.f32.gmra.mrb[0].mxu0 %v2423
    %v2500 = vpop.f32.mrb[0].mxu0
    %v2501 = vadd.f32 %v2421, %v2500
    %v2502 = vpop.f32.mrb[0].mxu0
    %2503 = vmatprep.mubr.f32.mxu0 0.0
    %2504 = vmatmul.mubr.f32.gmra.mrb[0].mxu0 %v2426
    %v2505 = vpop.f32.mrb[0].mxu0
    %v2506 = vadd.f32 %v2421, %v2505
    %v2507 = vpop.f32.mrb[0].mxu0
    %2508 = vmatprep.mubr.f32.mxu0 0.0
    %2509 = vmatmul.mubr.f32.gmra.mrb[0].mxu0 %v2429
    %v2510 = vpop.f32.mrb[0].mxu0
    %v2511 = vadd.f32 %v2421, %v2510
    %v2512 = vpop.f32.mrb[0].mxu0
    %2513 = vmatprep.mubr.f32.mxu0 0.0
    %2514 = vmatmul.mubr.f32.gmra.mrb[0].mxu0 %v2432
    %v2515 = vpop.f32.mrb[0].mxu0
    %v2516 = vadd.f32 %v2421, %v2515
    %v2517 = vpop.f32.mrb[0].mxu0
    %2518 = vdwg.mxu0
    %v2519 = vadd.f32 %v270, %v2501
    %v2520 = vadd.f32 %v271, %v2506
    %v2521 = vadd.f32 %v272, %v2511
    %v2522 = vadd.f32 %v273, %v2516
    %v2523 = vld [vmem:[%s4 + $0x7] sm:$0x1]
    %v2524 = vld [vmem:[%s4 + $0x8] sm:$0x1]
    %v2525 = vsel %vm64, %v2519, 0.0
    %2526 = vadd.xlane.f32.xlu0 %v2525
    %v2527 = vpop.xlane.xlu0 %2526
    %v2528 = vsel %vm64, %v2520, 0.0
    %2529 = vadd.xlane.f32.xlu0 %v2528
    %v2530 = vpop.xlane.xlu0 %2529
    %v2531 = vsel %vm64, %v2521, 0.0
    %2532 = vadd.xlane.f32.xlu0 %v2531
    %v2533 = vpop.xlane.xlu0 %2532
    %v2534 = vsel %vm64, %v2522, 0.0
    %2535 = vadd.xlane.f32.xlu0 %v2534
    %v2536 = vpop.xlane.xlu0 %2535
    %v2537 = vmul.f32 %v2527, %v205
    %v2538 = vmul.f32 %v2530, %v205
    %v2539 = vmul.f32 %v2533, %v205
    %v2540 = vmul.f32 %v2536, %v205
    %v2541 = vsub.f32 %v2519, %v2537
    %v2542 = vsub.f32 %v2520, %v2538
    %v2543 = vsub.f32 %v2521, %v2539
    %v2544 = vsub.f32 %v2522, %v2540
    %v2545 = vmul.f32 %v2541, %v2541
    %v2546 = vmul.f32 %v2542, %v2542
    %v2547 = vmul.f32 %v2543, %v2543
    %v2548 = vmul.f32 %v2544, %v2544
    %v2549 = vsel %vm64, %v2545, 0.0
    %2550 = vadd.xlane.f32.xlu0 %v2549
    %v2551 = vpop.xlane.xlu0 %2550
    %v2552 = vsel %vm64, %v2546, 0.0
    %2553 = vadd.xlane.f32.xlu0 %v2552
    %v2554 = vpop.xlane.xlu0 %2553
    %v2555 = vsel %vm64, %v2547, 0.0
    %2556 = vadd.xlane.f32.xlu0 %v2555
    %v2557 = vpop.xlane.xlu0 %2556
    %v2558 = vsel %vm64, %v2548, 0.0
    %2559 = vadd.xlane.f32.xlu0 %v2558
    %v2560 = vpop.xlane.xlu0 %2559
    %v2561 = vmul.f32 %v2551, %v205
    %v2562 = vmul.f32 %v2554, %v205
    %v2563 = vmul.f32 %v2557, %v205
    %v2564 = vmul.f32 %v2560, %v205
    %v2565 = vadd.f32 %v2561, 1e-05
    %v2566 = vadd.f32 %v2562, 1e-05
    %v2567 = vadd.f32 %v2563, 1e-05
    %v2568 = vadd.f32 %v2564, 1e-05
    %v2569 = vrsqrt.pop %v2565
    %v2570 = vrsqrt.pop %v2566
    %v2571 = vrsqrt.pop %v2567
    %v2572 = vrsqrt.pop %v2568
    %v2573 = vmul.f32 %v2541, %v2569
    %v2574 = vmul.f32 %v2542, %v2570
    %v2575 = vmul.f32 %v2543, %v2571
    %v2576 = vmul.f32 %v2544, %v2572
    %v2577 = vlaneseq
    %v2578 = vshrl.u32 %v2577, 7
    %v2579 = vsub.s32 0, %v2578
    %v2580 = vrot.slane %v2523, %v2579
    %v2581 = vmul.f32 %v2573, %v2580
    %v2582 = vmul.f32 %v2574, %v2580
    %v2583 = vmul.f32 %v2575, %v2580
    %v2584 = vmul.f32 %v2576, %v2580
    %v2585 = vlaneseq
    %v2586 = vshrl.u32 %v2585, 7
    %v2587 = vsub.s32 0, %v2586
    %v2588 = vrot.slane %v2524, %v2587
    %v2589 = vadd.f32 %v2581, %v2588
    %v2590 = vadd.f32 %v2582, %v2588
    %v2591 = vadd.f32 %v2583, %v2588
    %v2592 = vadd.f32 %v2584, %v2588
    %s2593 = scalar_lea.vmem [#allocation2], 160
    %v2594 = vld [vmem:[%s2593] sm:$0xff]
    %v2595 = vld [vmem:[%s2593 + $0x8] sm:$0xff]
    %v2596 = vld [vmem:[%s2593 + $0x10] sm:$0xff]
    %v2597 = vld [vmem:[%s2593 + $0x18] sm:$0xff]
    %v2598 = vld [vmem:[%s4 + $0x9] sm:$0x1]
    %v2599 = vlaneseq
    %v2600 = vshrl.u32 %v2599, 7
    %v2601 = vsub.s32 0, %v2600
    %v2602 = vrot.slane %v2598, %v2601
    %2603 = vmatprep.subr.mxu0 0.0
    %2604 = vmatpush1.msra.mxu0 %v2594
    %2605 = vmatprep.subr.mxu0 0.0
    %2606 = vmatpush1.msra.mxu0 %v2595
    %2607 = vmatprep.subr.mxu0 0.0
    %2608 = vmatpush1.msra.mxu0 %v2596
    %2609 = vmatprep.subr.mxu0 0.0
    %2610 = vmatpush1.msra.mxu0 %v2597
    %2611 = vmatprep.subr.mxu0 0.0
    %2612 = vmatpush1.msra.mxu0 0.0
    %2613 = vmatprep.subr.mxu0 0.0
    %2614 = vmatpush1.msra.mxu0 0.0
    %2615 = vmatprep.subr.mxu0 0.0
    %2616 = vmatpush1.msra.mxu0 0.0
    %2617 = vmatprep.subr.mxu0 0.0
    %2618 = vmatpush1.msra.mxu0 0.0
    %2619 = vmatprep.subr.mxu0 0.0
    %2620 = vmatpush1.msra.mxu0 0.0
    %2621 = vmatprep.subr.mxu0 0.0
    %2622 = vmatpush1.msra.mxu0 0.0
    %2623 = vmatprep.subr.mxu0 0.0
    %2624 = vmatpush1.msra.mxu0 0.0
    %2625 = vmatprep.subr.mxu0 0.0
    %2626 = vmatpush1.msra.mxu0 0.0
    %2627 = vmatprep.subr.mxu0 0.0
    %2628 = vmatpush1.msra.mxu0 0.0
    %2629 = vmatprep.subr.mxu0 0.0
    %2630 = vmatpush1.msra.mxu0 0.0
    %2631 = vmatprep.subr.mxu0 0.0
    %2632 = vmatpush1.msra.mxu0 0.0
    %2633 = vmatprep.subr.mxu0 0.0
    %2634 = vmatpush1.msra.mxu0 0.0
    %2635 = vmatprep.subr.mxu0 0.0
    %2636 = vmatpush1.msra.mxu0 0.0
    %2637 = vmatprep.subr.mxu0 0.0
    %2638 = vmatpush1.msra.mxu0 0.0
    %2639 = vmatprep.subr.mxu0 0.0
    %2640 = vmatpush1.msra.mxu0 0.0
    %2641 = vmatprep.subr.mxu0 0.0
    %2642 = vmatpush1.msra.mxu0 0.0
    %2643 = vmatprep.subr.mxu0 0.0
    %2644 = vmatpush1.msra.mxu0 0.0
    %2645 = vmatprep.subr.mxu0 0.0
    %2646 = vmatpush1.msra.mxu0 0.0
    %2647 = vmatprep.subr.mxu0 0.0
    %2648 = vmatpush1.msra.mxu0 0.0
    %2649 = vmatprep.subr.mxu0 0.0
    %2650 = vmatpush1.msra.mxu0 0.0
    %2651 = vmatprep.subr.mxu0 0.0
    %2652 = vmatpush1.msra.mxu0 0.0
    %2653 = vmatprep.subr.mxu0 0.0
    %2654 = vmatpush1.msra.mxu0 0.0
    %2655 = vmatprep.subr.mxu0 0.0
    %2656 = vmatpush1.msra.mxu0 0.0
    %2657 = vmatprep.subr.mxu0 0.0
    %2658 = vmatpush1.msra.mxu0 0.0
    %2659 = vmatprep.subr.mxu0 0.0
    %2660 = vmatpush1.msra.mxu0 0.0
    %2661 = vmatprep.subr.mxu0 0.0
    %2662 = vmatpush1.msra.mxu0 0.0
    %2663 = vmatprep.subr.mxu0 0.0
    %2664 = vmatpush1.msra.mxu0 0.0
    %2665 = vmatprep.subr.mxu0 0.0
    %2666 = vmatpush1.msra.mxu0 0.0
    %2667 = vmatprep.mubr.f32.mxu0 0.0
    %2668 = vmatmul.mubr.f32.gmra.mrb[0].mxu0 %v278
    %v2669 = vpop.f32.mrb[0].mxu0
    %v2670 = vadd.f32 %v2602, %v2669
    %v2671 = vpop.f32.mrb[0].mxu0
    %2672 = vmatprep.mubr.f32.mxu0 0.0
    %2673 = vmatmul.mubr.f32.gmra.mrb[0].mxu0 %v281
    %v2674 = vpop.f32.mrb[0].mxu0
    %v2675 = vadd.f32 %v2602, %v2674
    %v2676 = vpop.f32.mrb[0].mxu0
    %2677 = vmatprep.mubr.f32.mxu0 0.0
    %2678 = vmatmul.mubr.f32.gmra.mrb[0].mxu0 %v354
    %v2679 = vpop.f32.mrb[0].mxu0
    %v2680 = vadd.f32 %v2602, %v2679
    %v2681 = vpop.f32.mrb[0].mxu0
    %2682 = vmatprep.mubr.f32.mxu0 0.0
    %2683 = vmatmul.mubr.f32.gmra.mrb[0].mxu0 %v357
    %v2684 = vpop.f32.mrb[0].mxu0
    %v2685 = vadd.f32 %v2602, %v2684
    %v2686 = vpop.f32.mrb[0].mxu0
    %2687 = vdwg.mxu0
    %s2688 = scalar_lea.vmem [#allocation2], 192
    %v2689 = vld [vmem:[%s2688] sm:$0xff]
    %v2690 = vld [vmem:[%s2688 + $0x8] sm:$0xff]
    %v2691 = vld [vmem:[%s2688 + $0x10] sm:$0xff]
    %v2692 = vld [vmem:[%s2688 + $0x18] sm:$0xff]
    %v2693 = vld [vmem:[%s4 + $0xa] sm:$0x1]
    %v2694 = vlaneseq
    %v2695 = vshrl.u32 %v2694, 7
    %v2696 = vsub.s32 0, %v2695
    %v2697 = vrot.slane %v2693, %v2696
    %2698 = vmatprep.subr.mxu0 0.0
    %2699 = vmatpush1.msra.mxu0 %v2689
    %2700 = vmatprep.subr.mxu0 0.0
    %2701 = vmatpush1.msra.mxu0 %v2690
    %2702 = vmatprep.subr.mxu0 0.0
    %2703 = vmatpush1.msra.mxu0 %v2691
    %2704 = vmatprep.subr.mxu0 0.0
    %2705 = vmatpush1.msra.mxu0 %v2692
    %2706 = vmatprep.subr.mxu0 0.0
    %2707 = vmatpush1.msra.mxu0 0.0
    %2708 = vmatprep.subr.mxu0 0.0
    %2709 = vmatpush1.msra.mxu0 0.0
    %2710 = vmatprep.subr.mxu0 0.0
    %2711 = vmatpush1.msra.mxu0 0.0
    %2712 = vmatprep.subr.mxu0 0.0
    %2713 = vmatpush1.msra.mxu0 0.0
    %2714 = vmatprep.subr.mxu0 0.0
    %2715 = vmatpush1.msra.mxu0 0.0
    %2716 = vmatprep.subr.mxu0 0.0
    %2717 = vmatpush1.msra.mxu0 0.0
    %2718 = vmatprep.subr.mxu0 0.0
    %2719 = vmatpush1.msra.mxu0 0.0
    %2720 = vmatprep.subr.mxu0 0.0
    %2721 = vmatpush1.msra.mxu0 0.0
    %2722 = vmatprep.subr.mxu0 0.0
    %2723 = vmatpush1.msra.mxu0 0.0
    %2724 = vmatprep.subr.mxu0 0.0
    %2725 = vmatpush1.msra.mxu0 0.0
    %2726 = vmatprep.subr.mxu0 0.0
    %2727 = vmatpush1.msra.mxu0 0.0
    %2728 = vmatprep.subr.mxu0 0.0
    %2729 = vmatpush1.msra.mxu0 0.0
    %2730 = vmatprep.subr.mxu0 0.0
    %2731 = vmatpush1.msra.mxu0 0.0
    %2732 = vmatprep.subr.mxu0 0.0
    %2733 = vmatpush1.msra.mxu0 0.0
    %2734 = vmatprep.subr.mxu0 0.0
    %2735 = vmatpush1.msra.mxu0 0.0
    %2736 = vmatprep.subr.mxu0 0.0
    %2737 = vmatpush1.msra.mxu0 0.0
    %2738 = vmatprep.subr.mxu0 0.0
    %2739 = vmatpush1.msra.mxu0 0.0
    %2740 = vmatprep.subr.mxu0 0.0
    %2741 = vmatpush1.msra.mxu0 0.0
    %2742 = vmatprep.subr.mxu0 0.0
    %2743 = vmatpush1.msra.mxu0 0.0
    %2744 = vmatprep.subr.mxu0 0.0
    %2745 = vmatpush1.msra.mxu0 0.0
    %2746 = vmatprep.subr.mxu0 0.0
    %2747 = vmatpush1.msra.mxu0 0.0
    %2748 = vmatprep.subr.mxu0 0.0
    %2749 = vmatpush1.msra.mxu0 0.0
    %2750 = vmatprep.subr.mxu0 0.0
    %2751 = vmatpush1.msra.mxu0 0.0
    %2752 = vmatprep.subr.mxu0 0.0
    %2753 = vmatpush1.msra.mxu0 0.0
    %2754 = vmatprep.subr.mxu0 0.0
    %2755 = vmatpush1.msra.mxu0 0.0
    %2756 = vmatprep.subr.mxu0 0.0
    %2757 = vmatpush1.msra.mxu0 0.0
    %2758 = vmatprep.subr.mxu0 0.0
    %2759 = vmatpush1.msra.mxu0 0.0
    %2760 = vmatprep.subr.mxu0 0.0
    %2761 = vmatpush1.msra.mxu0 0.0
    %2762 = vmatprep.mubr.f32.mxu0 0.0
    %2763 = vmatmul.mubr.f32.gmra.mrb[0].mxu0 %v278
    %v2764 = vpop.f32.mrb[0].mxu0
    %v2765 = vadd.f32 %v2697, %v2764
    %v2766 = vpop.f32.mrb[0].mxu0
    %2767 = vmatprep.mubr.f32.mxu0 0.0
    %2768 = vmatmul.mubr.f32.gmra.mrb[0].mxu0 %v281
    %v2769 = vpop.f32.mrb[0].mxu0
    %v2770 = vadd.f32 %v2697, %v2769
    %v2771 = vpop.f32.mrb[0].mxu0
    %2772 = vmatprep.mubr.f32.mxu0 0.0
    %2773 = vmatmul.mubr.f32.gmra.mrb[0].mxu0 %v354
    %v2774 = vpop.f32.mrb[0].mxu0
    %v2775 = vadd.f32 %v2697, %v2774
    %v2776 = vpop.f32.mrb[0].mxu0
    %2777 = vmatprep.mubr.f32.mxu0 0.0
    %2778 = vmatmul.mubr.f32.gmra.mrb[0].mxu0 %v357
    %v2779 = vpop.f32.mrb[0].mxu0
    %v2780 = vadd.f32 %v2697, %v2779
    %v2781 = vpop.f32.mrb[0].mxu0
    %2782 = vdwg.mxu0
    %s2783 = scalar_lea.vmem [#allocation2], 224
    %v2784 = vld [vmem:[%s2783] sm:$0xff]
    %v2785 = vld [vmem:[%s2783 + $0x8] sm:$0xff]
    %v2786 = vld [vmem:[%s2783 + $0x10] sm:$0xff]
    %v2787 = vld [vmem:[%s2783 + $0x18] sm:$0xff]
    %v2788 = vld [vmem:[%s4 + $0xb] sm:$0x1]
    %v2789 = vlaneseq
    %v2790 = vshrl.u32 %v2789, 7
    %v2791 = vsub.s32 0, %v2790
    %v2792 = vrot.slane %v2788, %v2791
    %2793 = vmatprep.subr.mxu0 0.0
    %2794 = vmatpush1.msra.mxu0 %v2784
    %2795 = vmatprep.subr.mxu0 0.0
    %2796 = vmatpush1.msra.mxu0 %v2785
    %2797 = vmatprep.subr.mxu0 0.0
    %2798 = vmatpush1.msra.mxu0 %v2786
    %2799 = vmatprep.subr.mxu0 0.0
    %2800 = vmatpush1.msra.mxu0 %v2787
    %2801 = vmatprep.subr.mxu0 0.0
    %2802 = vmatpush1.msra.mxu0 0.0
    %2803 = vmatprep.subr.mxu0 0.0
    %2804 = vmatpush1.msra.mxu0 0.0
    %2805 = vmatprep.subr.mxu0 0.0
    %2806 = vmatpush1.msra.mxu0 0.0
    %2807 = vmatprep.subr.mxu0 0.0
    %2808 = vmatpush1.msra.mxu0 0.0
    %2809 = vmatprep.subr.mxu0 0.0
    %2810 = vmatpush1.msra.mxu0 0.0
    %2811 = vmatprep.subr.mxu0 0.0
    %2812 = vmatpush1.msra.mxu0 0.0
    %2813 = vmatprep.subr.mxu0 0.0
    %2814 = vmatpush1.msra.mxu0 0.0
    %2815 = vmatprep.subr.mxu0 0.0
    %2816 = vmatpush1.msra.mxu0 0.0
    %2817 = vmatprep.subr.mxu0 0.0
    %2818 = vmatpush1.msra.mxu0 0.0
    %2819 = vmatprep.subr.mxu0 0.0
    %2820 = vmatpush1.msra.mxu0 0.0
    %2821 = vmatprep.subr.mxu0 0.0
    %2822 = vmatpush1.msra.mxu0 0.0
    %2823 = vmatprep.subr.mxu0 0.0
    %2824 = vmatpush1.msra.mxu0 0.0
    %2825 = vmatprep.subr.mxu0 0.0
    %2826 = vmatpush1.msra.mxu0 0.0
    %2827 = vmatprep.subr.mxu0 0.0
    %2828 = vmatpush1.msra.mxu0 0.0
    %2829 = vmatprep.subr.mxu0 0.0
    %2830 = vmatpush1.msra.mxu0 0.0
    %2831 = vmatprep.subr.mxu0 0.0
    %2832 = vmatpush1.msra.mxu0 0.0
    %2833 = vmatprep.subr.mxu0 0.0
    %2834 = vmatpush1.msra.mxu0 0.0
    %2835 = vmatprep.subr.mxu0 0.0
    %2836 = vmatpush1.msra.mxu0 0.0
    %2837 = vmatprep.subr.mxu0 0.0
    %2838 = vmatpush1.msra.mxu0 0.0
    %2839 = vmatprep.subr.mxu0 0.0
    %2840 = vmatpush1.msra.mxu0 0.0
    %2841 = vmatprep.subr.mxu0 0.0
    %2842 = vmatpush1.msra.mxu0 0.0
    %2843 = vmatprep.subr.mxu0 0.0
    %2844 = vmatpush1.msra.mxu0 0.0
    %2845 = vmatprep.subr.mxu0 0.0
    %2846 = vmatpush1.msra.mxu0 0.0
    %2847 = vmatprep.subr.mxu0 0.0
    %2848 = vmatpush1.msra.mxu0 0.0
    %2849 = vmatprep.subr.mxu0 0.0
    %2850 = vmatpush1.msra.mxu0 0.0
    %2851 = vmatprep.subr.mxu0 0.0
    %2852 = vmatpush1.msra.mxu0 0.0
    %2853 = vmatprep.subr.mxu0 0.0
    %2854 = vmatpush1.msra.mxu0 0.0
    %2855 = vmatprep.subr.mxu0 0.0
    %2856 = vmatpush1.msra.mxu0 0.0
    %2857 = vmatprep.mubr.f32.mxu0 0.0
    %2858 = vmatmul.mubr.f32.gmra.mrb[0].mxu0 %v278
    %v2859 = vpop.f32.mrb[0].mxu0
    %v2860 = vadd.f32 %v2792, %v2859
    %v2861 = vpop.f32.mrb[0].mxu0
    %2862 = vmatprep.mubr.f32.mxu0 0.0
    %2863 = vmatmul.mubr.f32.gmra.mrb[0].mxu0 %v281
    %v2864 = vpop.f32.mrb[0].mxu0
    %v2865 = vadd.f32 %v2792, %v2864
    %v2866 = vpop.f32.mrb[0].mxu0
    %2867 = vmatprep.mubr.f32.mxu0 0.0
    %2868 = vmatmul.mubr.f32.gmra.mrb[0].mxu0 %v354
    %v2869 = vpop.f32.mrb[0].mxu0
    %v2870 = vadd.f32 %v2792, %v2869
    %v2871 = vpop.f32.mrb[0].mxu0
    %2872 = vmatprep.mubr.f32.mxu0 0.0
    %2873 = vmatmul.mubr.f32.gmra.mrb[0].mxu0 %v357
    %v2874 = vpop.f32.mrb[0].mxu0
    %v2875 = vadd.f32 %v2792, %v2874
    %v2876 = vpop.f32.mrb[0].mxu0
    %2877 = vdwg.mxu0
    %2878 = vxpose.xlu0.b32.start [1/16] %v2670, 128
    %2879 = vxpose.xlu0.b32.cont [2/16] %v2675, 128
    %2880 = vxpose.xlu0.b32.cont [3/16] 0.0, 128
    %2881 = vxpose.xlu0.b32.cont [4/16] 0.0, 128
    %2882 = vxpose.xlu0.b32.cont [5/16] 0.0, 128
    %2883 = vxpose.xlu0.b32.cont [6/16] 0.0, 128
    %2884 = vxpose.xlu0.b32.cont [7/16] 0.0, 128
    %2885 = vxpose.xlu0.b32.cont [8/16] 0.0, 128
    %2886 = vxpose.xlu0.b32.cont [9/16] 0.0, 128
    %2887 = vxpose.xlu0.b32.cont [10/16] 0.0, 128
    %2888 = vxpose.xlu0.b32.cont [11/16] 0.0, 128
    %2889 = vxpose.xlu0.b32.cont [12/16] 0.0, 128
    %2890 = vxpose.xlu0.b32.cont [13/16] 0.0, 128
    %2891 = vxpose.xlu0.b32.cont [14/16] 0.0, 128
    %2892 = vxpose.xlu0.b32.cont [15/16] 0.0, 128
    %2893 = vxpose.xlu0.b32.end [16/16] 0.0, 128
    %v2894 = vpop.trf.xlu0
    %v2895 = vpop.trf.xlu0
    %v2896 = vpop.trf.xlu0
    %v2897 = vpop.trf.xlu0
    %v2898 = vpop.trf.xlu0
    %v2899 = vpop.trf.xlu0
    %v2900 = vpop.trf.xlu0
    %v2901 = vpop.trf.xlu0
    %v2902 = vpop.trf.xlu0
    %v2903 = vpop.trf.xlu0
    %v2904 = vpop.trf.xlu0
    %v2905 = vpop.trf.xlu0
    %v2906 = vpop.trf.xlu0
    %v2907 = vpop.trf.xlu0
    %v2908 = vpop.trf.xlu0
    %v2909 = vpop.trf.xlu0
    %v2911 = vsel %vm916, %v2894, 0
    %2913 = vmatprep.subr.mxu0 0.0
    %2914 = vmatpush1.msra.mxu0 %v2765
    %2915 = vmatprep.subr.mxu0 0.0
    %2916 = vmatpush1.msra.mxu0 %v2770
    %2917 = vmatprep.subr.mxu0 0.0
    %2918 = vmatpush1.msra.mxu0 0.0
    %2919 = vmatprep.subr.mxu0 0.0
    %2920 = vmatpush1.msra.mxu0 0.0
    %2921 = vmatprep.subr.mxu0 0.0
    %2922 = vmatpush1.msra.mxu0 0.0
    %2923 = vmatprep.subr.mxu0 0.0
    %2924 = vmatpush1.msra.mxu0 0.0
    %2925 = vmatprep.subr.mxu0 0.0
    %2926 = vmatpush1.msra.mxu0 0.0
    %2927 = vmatprep.subr.mxu0 0.0
    %2928 = vmatpush1.msra.mxu0 0.0
    %2929 = vmatprep.subr.mxu0 0.0
    %2930 = vmatpush1.msra.mxu0 0.0
    %2931 = vmatprep.subr.mxu0 0.0
    %2932 = vmatpush1.msra.mxu0 0.0
    %2933 = vmatprep.subr.mxu0 0.0
    %2934 = vmatpush1.msra.mxu0 0.0
    %2935 = vmatprep.subr.mxu0 0.0
    %2936 = vmatpush1.msra.mxu0 0.0
    %2937 = vmatprep.subr.mxu0 0.0
    %2938 = vmatpush1.msra.mxu0 0.0
    %2939 = vmatprep.subr.mxu0 0.0
    %2940 = vmatpush1.msra.mxu0 0.0
    %2941 = vmatprep.subr.mxu0 0.0
    %2942 = vmatpush1.msra.mxu0 0.0
    %2943 = vmatprep.subr.mxu0 0.0
    %2944 = vmatpush1.msra.mxu0 0.0
    %2945 = vmatprep.subr.mxu0 0.0
    %2946 = vmatpush1.msra.mxu0 0.0
    %2947 = vmatprep.subr.mxu0 0.0
    %2948 = vmatpush1.msra.mxu0 0.0
    %2949 = vmatprep.subr.mxu0 0.0
    %2950 = vmatpush1.msra.mxu0 0.0
    %2951 = vmatprep.subr.mxu0 0.0
    %2952 = vmatpush1.msra.mxu0 0.0
    %2953 = vmatprep.subr.mxu0 0.0
    %2954 = vmatpush1.msra.mxu0 0.0
    %2955 = vmatprep.subr.mxu0 0.0
    %2956 = vmatpush1.msra.mxu0 0.0
    %2957 = vmatprep.subr.mxu0 0.0
    %2958 = vmatpush1.msra.mxu0 0.0
    %2959 = vmatprep.subr.mxu0 0.0
    %2960 = vmatpush1.msra.mxu0 0.0
    %2961 = vmatprep.subr.mxu0 0.0
    %2962 = vmatpush1.msra.mxu0 0.0
    %2963 = vmatprep.subr.mxu0 0.0
    %2964 = vmatpush1.msra.mxu0 0.0
    %2965 = vmatprep.subr.mxu0 0.0
    %2966 = vmatpush1.msra.mxu0 0.0
    %2967 = vmatprep.subr.mxu0 0.0
    %2968 = vmatpush1.msra.mxu0 0.0
    %2969 = vmatprep.subr.mxu0 0.0
    %2970 = vmatpush1.msra.mxu0 0.0
    %2971 = vmatprep.subr.mxu0 0.0
    %2972 = vmatpush1.msra.mxu0 0.0
    %2973 = vmatprep.subr.mxu0 0.0
    %2974 = vmatpush1.msra.mxu0 0.0
    %2975 = vmatprep.subr.mxu0 0.0
    %2976 = vmatpush1.msra.mxu0 0.0
    %2977 = vmatprep.mubr.f32.mxu0 0.0
    %2978 = vmatmul.mubr.f32.gmra.mrb[0].mxu0 %v2911
    %v2979 = vpop.f32.mrb[0].mxu0
    %v2980 = vadd.f32 0.0, %v2979
    %v2981 = vpop.f32.mrb[0].mxu0
    %2982 = vdwg.mxu0
    %2983 = vxpose.xlu0.b32.start [1/16] %v2680, 128
    %2984 = vxpose.xlu0.b32.cont [2/16] %v2685, 128
    %2985 = vxpose.xlu0.b32.cont [3/16] 0.0, 128
    %2986 = vxpose.xlu0.b32.cont [4/16] 0.0, 128
    %2987 = vxpose.xlu0.b32.cont [5/16] 0.0, 128
    %2988 = vxpose.xlu0.b32.cont [6/16] 0.0, 128
    %2989 = vxpose.xlu0.b32.cont [7/16] 0.0, 128
    %2990 = vxpose.xlu0.b32.cont [8/16] 0.0, 128
    %2991 = vxpose.xlu0.b32.cont [9/16] 0.0, 128
    %2992 = vxpose.xlu0.b32.cont [10/16] 0.0, 128
    %2993 = vxpose.xlu0.b32.cont [11/16] 0.0, 128
    %2994 = vxpose.xlu0.b32.cont [12/16] 0.0, 128
    %2995 = vxpose.xlu0.b32.cont [13/16] 0.0, 128
    %2996 = vxpose.xlu0.b32.cont [14/16] 0.0, 128
    %2997 = vxpose.xlu0.b32.cont [15/16] 0.0, 128
    %2998 = vxpose.xlu0.b32.end [16/16] 0.0, 128
    %v2999 = vpop.trf.xlu0
    %v3000 = vpop.trf.xlu0
    %v3001 = vpop.trf.xlu0
    %v3002 = vpop.trf.xlu0
    %v3003 = vpop.trf.xlu0
    %v3004 = vpop.trf.xlu0
    %v3005 = vpop.trf.xlu0
    %v3006 = vpop.trf.xlu0
    %v3007 = vpop.trf.xlu0
    %v3008 = vpop.trf.xlu0
    %v3009 = vpop.trf.xlu0
    %v3010 = vpop.trf.xlu0
    %v3011 = vpop.trf.xlu0
    %v3012 = vpop.trf.xlu0
    %v3013 = vpop.trf.xlu0
    %v3014 = vpop.trf.xlu0
    %v3016 = vsel %vm916, %v2999, 0
    %3018 = vmatprep.subr.mxu0 0.0
    %3019 = vmatpush1.msra.mxu0 %v2775
    %3020 = vmatprep.subr.mxu0 0.0
    %3021 = vmatpush1.msra.mxu0 %v2780
    %3022 = vmatprep.subr.mxu0 0.0
    %3023 = vmatpush1.msra.mxu0 0.0
    %3024 = vmatprep.subr.mxu0 0.0
    %3025 = vmatpush1.msra.mxu0 0.0
    %3026 = vmatprep.subr.mxu0 0.0
    %3027 = vmatpush1.msra.mxu0 0.0
    %3028 = vmatprep.subr.mxu0 0.0
    %3029 = vmatpush1.msra.mxu0 0.0
    %3030 = vmatprep.subr.mxu0 0.0
    %3031 = vmatpush1.msra.mxu0 0.0
    %3032 = vmatprep.subr.mxu0 0.0
    %3033 = vmatpush1.msra.mxu0 0.0
    %3034 = vmatprep.subr.mxu0 0.0
    %3035 = vmatpush1.msra.mxu0 0.0
    %3036 = vmatprep.subr.mxu0 0.0
    %3037 = vmatpush1.msra.mxu0 0.0
    %3038 = vmatprep.subr.mxu0 0.0
    %3039 = vmatpush1.msra.mxu0 0.0
    %3040 = vmatprep.subr.mxu0 0.0
    %3041 = vmatpush1.msra.mxu0 0.0
    %3042 = vmatprep.subr.mxu0 0.0
    %3043 = vmatpush1.msra.mxu0 0.0
    %3044 = vmatprep.subr.mxu0 0.0
    %3045 = vmatpush1.msra.mxu0 0.0
    %3046 = vmatprep.subr.mxu0 0.0
    %3047 = vmatpush1.msra.mxu0 0.0
    %3048 = vmatprep.subr.mxu0 0.0
    %3049 = vmatpush1.msra.mxu0 0.0
    %3050 = vmatprep.subr.mxu0 0.0
    %3051 = vmatpush1.msra.mxu0 0.0
    %3052 = vmatprep.subr.mxu0 0.0
    %3053 = vmatpush1.msra.mxu0 0.0
    %3054 = vmatprep.subr.mxu0 0.0
    %3055 = vmatpush1.msra.mxu0 0.0
    %3056 = vmatprep.subr.mxu0 0.0
    %3057 = vmatpush1.msra.mxu0 0.0
    %3058 = vmatprep.subr.mxu0 0.0
    %3059 = vmatpush1.msra.mxu0 0.0
    %3060 = vmatprep.subr.mxu0 0.0
    %3061 = vmatpush1.msra.mxu0 0.0
    %3062 = vmatprep.subr.mxu0 0.0
    %3063 = vmatpush1.msra.mxu0 0.0
    %3064 = vmatprep.subr.mxu0 0.0
    %3065 = vmatpush1.msra.mxu0 0.0
    %3066 = vmatprep.subr.mxu0 0.0
    %3067 = vmatpush1.msra.mxu0 0.0
    %3068 = vmatprep.subr.mxu0 0.0
    %3069 = vmatpush1.msra.mxu0 0.0
    %3070 = vmatprep.subr.mxu0 0.0
    %3071 = vmatpush1.msra.mxu0 0.0
    %3072 = vmatprep.subr.mxu0 0.0
    %3073 = vmatpush1.msra.mxu0 0.0
    %3074 = vmatprep.subr.mxu0 0.0
    %3075 = vmatpush1.msra.mxu0 0.0
    %3076 = vmatprep.subr.mxu0 0.0
    %3077 = vmatpush1.msra.mxu0 0.0
    %3078 = vmatprep.subr.mxu0 0.0
    %3079 = vmatpush1.msra.mxu0 0.0
    %3080 = vmatprep.subr.mxu0 0.0
    %3081 = vmatpush1.msra.mxu0 0.0
    %3082 = vmatprep.mubr.f32.mxu0 0.0
    %3083 = vmatmul.mubr.f32.gmra.mrb[0].mxu0 %v3016
    %v3084 = vpop.f32.mrb[0].mxu0
    %v3085 = vadd.f32 0.0, %v3084
    %v3086 = vpop.f32.mrb[0].mxu0
    %3087 = vdwg.mxu0
    %v3088 = vmul.f32 %v2980, 0.25
    %v3089 = vmul.f32 %v3085, 0.25
    %v3090 = vsel %vm723, %v3088, -inf
    %3091 = vmax.xlane.f32.xlu0 %v3090
    %v3092 = vpop.xlane.xlu0 %3091
    %v3093 = vsel %vm723, %v3089, -inf
    %3094 = vmax.xlane.f32.xlu0 %v3093
    %v3095 = vpop.xlane.xlu0 %3094
    %v3096 = vsub.f32 %v3088, %v3092
    %v3097 = vsub.f32 %v3089, %v3095
    %v3098 = vmul.f32 %v3096, 1.442695
    %v3099 = vpow.pop %v3098
    %v3100 = vmul.f32 %v3097, 1.442695
    %v3101 = vpow.pop %v3100
    %v3102 = vsel %vm723, %v3099, 0.0
    %3103 = vadd.xlane.f32.xlu0 %v3102
    %v3104 = vpop.xlane.xlu0 %3103
    %v3105 = vsel %vm723, %v3101, 0.0
    %3106 = vadd.xlane.f32.xlu0 %v3105
    %v3107 = vpop.xlane.xlu0 %3106
    %v3108 = vrcp.pop %v3104
    %v3109 = vmul.f32 %v3099, %v3108
    %v3110 = vrcp.pop %v3107
    %v3111 = vmul.f32 %v3101, %v3110
    %v3113 = vsel %vm723, %v2860, 0
    %v3116 = vsel %vm723, %v2865, 0
    %v3119 = vsel %vm723, %v3109, 0
    %3121 = vmatprep.subr.mxu0 0.0
    %3122 = vmatpush1.xpose.msra.mxu0 %v3119
    %3123 = vmatprep.subr.mxu0 0.0
    %3124 = vmatpush1.xpose.msra.mxu0 0.0
    %3125 = vmatprep.subr.mxu0 0.0
    %3126 = vmatpush1.xpose.msra.mxu0 0.0
    %3127 = vmatprep.subr.mxu0 0.0
    %3128 = vmatpush1.xpose.msra.mxu0 0.0
    %3129 = vmatprep.subr.mxu0 0.0
    %3130 = vmatpush1.xpose.msra.mxu0 0.0
    %3131 = vmatprep.subr.mxu0 0.0
    %3132 = vmatpush1.xpose.msra.mxu0 0.0
    %3133 = vmatprep.subr.mxu0 0.0
    %3134 = vmatpush1.xpose.msra.mxu0 0.0
    %3135 = vmatprep.subr.mxu0 0.0
    %3136 = vmatpush1.xpose.msra.mxu0 0.0
    %3137 = vmatprep.subr.mxu0 0.0
    %3138 = vmatpush1.xpose.msra.mxu0 0.0
    %3139 = vmatprep.subr.mxu0 0.0
    %3140 = vmatpush1.xpose.msra.mxu0 0.0
    %3141 = vmatprep.subr.mxu0 0.0
    %3142 = vmatpush1.xpose.msra.mxu0 0.0
    %3143 = vmatprep.subr.mxu0 0.0
    %3144 = vmatpush1.xpose.msra.mxu0 0.0
    %3145 = vmatprep.subr.mxu0 0.0
    %3146 = vmatpush1.xpose.msra.mxu0 0.0
    %3147 = vmatprep.subr.mxu0 0.0
    %3148 = vmatpush1.xpose.msra.mxu0 0.0
    %3149 = vmatprep.subr.mxu0 0.0
    %3150 = vmatpush1.xpose.msra.mxu0 0.0
    %3151 = vmatprep.subr.mxu0 0.0
    %3152 = vmatpush1.xpose.msra.mxu0 0.0
    %3153 = vmatprep.subr.mxu0 0.0
    %3154 = vmatpush1.xpose.msra.mxu0 0.0
    %3155 = vmatprep.subr.mxu0 0.0
    %3156 = vmatpush1.xpose.msra.mxu0 0.0
    %3157 = vmatprep.subr.mxu0 0.0
    %3158 = vmatpush1.xpose.msra.mxu0 0.0
    %3159 = vmatprep.subr.mxu0 0.0
    %3160 = vmatpush1.xpose.msra.mxu0 0.0
    %3161 = vmatprep.subr.mxu0 0.0
    %3162 = vmatpush1.xpose.msra.mxu0 0.0
    %3163 = vmatprep.subr.mxu0 0.0
    %3164 = vmatpush1.xpose.msra.mxu0 0.0
    %3165 = vmatprep.subr.mxu0 0.0
    %3166 = vmatpush1.xpose.msra.mxu0 0.0
    %3167 = vmatprep.subr.mxu0 0.0
    %3168 = vmatpush1.xpose.msra.mxu0 0.0
    %3169 = vmatprep.subr.mxu0 0.0
    %3170 = vmatpush1.xpose.msra.mxu0 0.0
    %3171 = vmatprep.subr.mxu0 0.0
    %3172 = vmatpush1.xpose.msra.mxu0 0.0
    %3173 = vmatprep.subr.mxu0 0.0
    %3174 = vmatpush1.xpose.msra.mxu0 0.0
    %3175 = vmatprep.subr.mxu0 0.0
    %3176 = vmatpush1.xpose.msra.mxu0 0.0
    %3177 = vmatprep.subr.mxu0 0.0
    %3178 = vmatpush1.xpose.msra.mxu0 0.0
    %3179 = vmatprep.subr.mxu0 0.0
    %3180 = vmatpush1.xpose.msra.mxu0 0.0
    %3181 = vmatprep.subr.mxu0 0.0
    %3182 = vmatpush1.xpose.msra.mxu0 0.0
    %3183 = vmatprep.subr.mxu0 0.0
    %3184 = vmatpush1.xpose.msra.mxu0 0.0
    %3185 = vmatprep.mubr.f32.mxu0 0.0
    %3186 = vmatmul.mubr.f32.gmra.mrb[0].mxu0 %v3113
    %v3187 = vpop.f32.mrb[0].mxu0
    %v3188 = vadd.f32 0.0, %v3187
    %v3189 = vpop.f32.mrb[0].mxu0
    %3190 = vmatprep.mubr.f32.mxu0 0.0
    %3191 = vmatmul.mubr.f32.gmra.mrb[0].mxu0 %v3116
    %v3192 = vpop.f32.mrb[0].mxu0
    %v3193 = vadd.f32 0.0, %v3192
    %v3194 = vpop.f32.mrb[0].mxu0
    %3195 = vdwg.mxu0
    %v3197 = vsel %vm723, %v2870, 0
    %v3200 = vsel %vm723, %v2875, 0
    %v3203 = vsel %vm723, %v3111, 0
    %3205 = vmatprep.subr.mxu0 0.0
    %3206 = vmatpush1.xpose.msra.mxu0 %v3203
    %3207 = vmatprep.subr.mxu0 0.0
    %3208 = vmatpush1.xpose.msra.mxu0 0.0
    %3209 = vmatprep.subr.mxu0 0.0
    %3210 = vmatpush1.xpose.msra.mxu0 0.0
    %3211 = vmatprep.subr.mxu0 0.0
    %3212 = vmatpush1.xpose.msra.mxu0 0.0
    %3213 = vmatprep.subr.mxu0 0.0
    %3214 = vmatpush1.xpose.msra.mxu0 0.0
    %3215 = vmatprep.subr.mxu0 0.0
    %3216 = vmatpush1.xpose.msra.mxu0 0.0
    %3217 = vmatprep.subr.mxu0 0.0
    %3218 = vmatpush1.xpose.msra.mxu0 0.0
    %3219 = vmatprep.subr.mxu0 0.0
    %3220 = vmatpush1.xpose.msra.mxu0 0.0
    %3221 = vmatprep.subr.mxu0 0.0
    %3222 = vmatpush1.xpose.msra.mxu0 0.0
    %3223 = vmatprep.subr.mxu0 0.0
    %3224 = vmatpush1.xpose.msra.mxu0 0.0
    %3225 = vmatprep.subr.mxu0 0.0
    %3226 = vmatpush1.xpose.msra.mxu0 0.0
    %3227 = vmatprep.subr.mxu0 0.0
    %3228 = vmatpush1.xpose.msra.mxu0 0.0
    %3229 = vmatprep.subr.mxu0 0.0
    %3230 = vmatpush1.xpose.msra.mxu0 0.0
    %3231 = vmatprep.subr.mxu0 0.0
    %3232 = vmatpush1.xpose.msra.mxu0 0.0
    %3233 = vmatprep.subr.mxu0 0.0
    %3234 = vmatpush1.xpose.msra.mxu0 0.0
    %3235 = vmatprep.subr.mxu0 0.0
    %3236 = vmatpush1.xpose.msra.mxu0 0.0
    %3237 = vmatprep.subr.mxu0 0.0
    %3238 = vmatpush1.xpose.msra.mxu0 0.0
    %3239 = vmatprep.subr.mxu0 0.0
    %3240 = vmatpush1.xpose.msra.mxu0 0.0
    %3241 = vmatprep.subr.mxu0 0.0
    %3242 = vmatpush1.xpose.msra.mxu0 0.0
    %3243 = vmatprep.subr.mxu0 0.0
    %3244 = vmatpush1.xpose.msra.mxu0 0.0
    %3245 = vmatprep.subr.mxu0 0.0
    %3246 = vmatpush1.xpose.msra.mxu0 0.0
    %3247 = vmatprep.subr.mxu0 0.0
    %3248 = vmatpush1.xpose.msra.mxu0 0.0
    %3249 = vmatprep.subr.mxu0 0.0
    %3250 = vmatpush1.xpose.msra.mxu0 0.0
    %3251 = vmatprep.subr.mxu0 0.0
    %3252 = vmatpush1.xpose.msra.mxu0 0.0
    %3253 = vmatprep.subr.mxu0 0.0
    %3254 = vmatpush1.xpose.msra.mxu0 0.0
    %3255 = vmatprep.subr.mxu0 0.0
    %3256 = vmatpush1.xpose.msra.mxu0 0.0
    %3257 = vmatprep.subr.mxu0 0.0
    %3258 = vmatpush1.xpose.msra.mxu0 0.0
    %3259 = vmatprep.subr.mxu0 0.0
    %3260 = vmatpush1.xpose.msra.mxu0 0.0
    %3261 = vmatprep.subr.mxu0 0.0
    %3262 = vmatpush1.xpose.msra.mxu0 0.0
    %3263 = vmatprep.subr.mxu0 0.0
    %3264 = vmatpush1.xpose.msra.mxu0 0.0
    %3265 = vmatprep.subr.mxu0 0.0
    %3266 = vmatpush1.xpose.msra.mxu0 0.0
    %3267 = vmatprep.subr.mxu0 0.0
    %3268 = vmatpush1.xpose.msra.mxu0 0.0
    %3269 = vmatprep.mubr.f32.mxu0 0.0
    %3270 = vmatmul.mubr.f32.gmra.mrb[0].mxu0 %v3197
    %v3271 = vpop.f32.mrb[0].mxu0
    %v3272 = vadd.f32 0.0, %v3271
    %v3273 = vpop.f32.mrb[0].mxu0
    %3274 = vmatprep.mubr.f32.mxu0 0.0
    %3275 = vmatmul.mubr.f32.gmra.mrb[0].mxu0 %v3200
    %v3276 = vpop.f32.mrb[0].mxu0
    %v3277 = vadd.f32 0.0, %v3276
    %v3278 = vpop.f32.mrb[0].mxu0
    %3279 = vdwg.mxu0
    %3282 = vrot.lane.b32.xlu0 %v2670, 120
    %v3283 = vpop.permute.xlu0 %3282
    %3284 = vrot.lane.b32.xlu0 %v2675, 120
    %v3285 = vpop.permute.xlu0 %3284
    %3288 = vxpose.xlu0.b32.start [1/16] %v3283, 128
    %3289 = vxpose.xlu0.b32.cont [2/16] %v3285, 128
    %3290 = vxpose.xlu0.b32.cont [3/16] 0.0, 128
    %3291 = vxpose.xlu0.b32.cont [4/16] 0.0, 128
    %3292 = vxpose.xlu0.b32.cont [5/16] 0.0, 128
    %3293 = vxpose.xlu0.b32.cont [6/16] 0.0, 128
    %3294 = vxpose.xlu0.b32.cont [7/16] 0.0, 128
    %3295 = vxpose.xlu0.b32.cont [8/16] 0.0, 128
    %3296 = vxpose.xlu0.b32.cont [9/16] 0.0, 128
    %3297 = vxpose.xlu0.b32.cont [10/16] 0.0, 128
    %3298 = vxpose.xlu0.b32.cont [11/16] 0.0, 128
    %3299 = vxpose.xlu0.b32.cont [12/16] 0.0, 128
    %3300 = vxpose.xlu0.b32.cont [13/16] 0.0, 128
    %3301 = vxpose.xlu0.b32.cont [14/16] 0.0, 128
    %3302 = vxpose.xlu0.b32.cont [15/16] 0.0, 128
    %3303 = vxpose.xlu0.b32.end [16/16] 0.0, 128
    %v3304 = vpop.trf.xlu0
    %v3305 = vpop.trf.xlu0
    %v3306 = vpop.trf.xlu0
    %v3307 = vpop.trf.xlu0
    %v3308 = vpop.trf.xlu0
    %v3309 = vpop.trf.xlu0
    %v3310 = vpop.trf.xlu0
    %v3311 = vpop.trf.xlu0
    %v3312 = vpop.trf.xlu0
    %v3313 = vpop.trf.xlu0
    %v3314 = vpop.trf.xlu0
    %v3315 = vpop.trf.xlu0
    %v3316 = vpop.trf.xlu0
    %v3317 = vpop.trf.xlu0
    %v3318 = vpop.trf.xlu0
    %v3319 = vpop.trf.xlu0
    %3322 = vrot.lane.b32.xlu0 %v2765, 120
    %v3323 = vpop.permute.xlu0 %3322
    %3324 = vrot.lane.b32.xlu0 %v2770, 120
    %v3325 = vpop.permute.xlu0 %3324
    %v3329 = vsel %vm916, %v3304, 0
    %3331 = vmatprep.subr.mxu0 0.0
    %3332 = vmatpush1.msra.mxu0 %v3323
    %3333 = vmatprep.subr.mxu0 0.0
    %3334 = vmatpush1.msra.mxu0 %v3325
    %3335 = vmatprep.subr.mxu0 0.0
    %3336 = vmatpush1.msra.mxu0 0.0
    %3337 = vmatprep.subr.mxu0 0.0
    %3338 = vmatpush1.msra.mxu0 0.0
    %3339 = vmatprep.subr.mxu0 0.0
    %3340 = vmatpush1.msra.mxu0 0.0
    %3341 = vmatprep.subr.mxu0 0.0
    %3342 = vmatpush1.msra.mxu0 0.0
    %3343 = vmatprep.subr.mxu0 0.0
    %3344 = vmatpush1.msra.mxu0 0.0
    %3345 = vmatprep.subr.mxu0 0.0
    %3346 = vmatpush1.msra.mxu0 0.0
    %3347 = vmatprep.subr.mxu0 0.0
    %3348 = vmatpush1.msra.mxu0 0.0
    %3349 = vmatprep.subr.mxu0 0.0
    %3350 = vmatpush1.msra.mxu0 0.0
    %3351 = vmatprep.subr.mxu0 0.0
    %3352 = vmatpush1.msra.mxu0 0.0
    %3353 = vmatprep.subr.mxu0 0.0
    %3354 = vmatpush1.msra.mxu0 0.0
    %3355 = vmatprep.subr.mxu0 0.0
    %3356 = vmatpush1.msra.mxu0 0.0
    %3357 = vmatprep.subr.mxu0 0.0
    %3358 = vmatpush1.msra.mxu0 0.0
    %3359 = vmatprep.subr.mxu0 0.0
    %3360 = vmatpush1.msra.mxu0 0.0
    %3361 = vmatprep.subr.mxu0 0.0
    %3362 = vmatpush1.msra.mxu0 0.0
    %3363 = vmatprep.subr.mxu0 0.0
    %3364 = vmatpush1.msra.mxu0 0.0
    %3365 = vmatprep.subr.mxu0 0.0
    %3366 = vmatpush1.msra.mxu0 0.0
    %3367 = vmatprep.subr.mxu0 0.0
    %3368 = vmatpush1.msra.mxu0 0.0
    %3369 = vmatprep.subr.mxu0 0.0
    %3370 = vmatpush1.msra.mxu0 0.0
    %3371 = vmatprep.subr.mxu0 0.0
    %3372 = vmatpush1.msra.mxu0 0.0
    %3373 = vmatprep.subr.mxu0 0.0
    %3374 = vmatpush1.msra.mxu0 0.0
    %3375 = vmatprep.subr.mxu0 0.0
    %3376 = vmatpush1.msra.mxu0 0.0
    %3377 = vmatprep.subr.mxu0 0.0
    %3378 = vmatpush1.msra.mxu0 0.0
    %3379 = vmatprep.subr.mxu0 0.0
    %3380 = vmatpush1.msra.mxu0 0.0
    %3381 = vmatprep.subr.mxu0 0.0
    %3382 = vmatpush1.msra.mxu0 0.0
    %3383 = vmatprep.subr.mxu0 0.0
    %3384 = vmatpush1.msra.mxu0 0.0
    %3385 = vmatprep.subr.mxu0 0.0
    %3386 = vmatpush1.msra.mxu0 0.0
    %3387 = vmatprep.subr.mxu0 0.0
    %3388 = vmatpush1.msra.mxu0 0.0
    %3389 = vmatprep.subr.mxu0 0.0
    %3390 = vmatpush1.msra.mxu0 0.0
    %3391 = vmatprep.subr.mxu0 0.0
    %3392 = vmatpush1.msra.mxu0 0.0
    %3393 = vmatprep.subr.mxu0 0.0
    %3394 = vmatpush1.msra.mxu0 0.0
    %3395 = vmatprep.mubr.f32.mxu0 0.0
    %3396 = vmatmul.mubr.f32.gmra.mrb[0].mxu0 %v3329
    %v3397 = vpop.f32.mrb[0].mxu0
    %v3398 = vadd.f32 0.0, %v3397
    %v3399 = vpop.f32.mrb[0].mxu0
    %3400 = vdwg.mxu0
    %3403 = vrot.lane.b32.xlu0 %v2680, 120
    %v3404 = vpop.permute.xlu0 %3403
    %3405 = vrot.lane.b32.xlu0 %v2685, 120
    %v3406 = vpop.permute.xlu0 %3405
    %3409 = vxpose.xlu0.b32.start [1/16] %v3404, 128
    %3410 = vxpose.xlu0.b32.cont [2/16] %v3406, 128
    %3411 = vxpose.xlu0.b32.cont [3/16] 0.0, 128
    %3412 = vxpose.xlu0.b32.cont [4/16] 0.0, 128
    %3413 = vxpose.xlu0.b32.cont [5/16] 0.0, 128
    %3414 = vxpose.xlu0.b32.cont [6/16] 0.0, 128
    %3415 = vxpose.xlu0.b32.cont [7/16] 0.0, 128
    %3416 = vxpose.xlu0.b32.cont [8/16] 0.0, 128
    %3417 = vxpose.xlu0.b32.cont [9/16] 0.0, 128
    %3418 = vxpose.xlu0.b32.cont [10/16] 0.0, 128
    %3419 = vxpose.xlu0.b32.cont [11/16] 0.0, 128
    %3420 = vxpose.xlu0.b32.cont [12/16] 0.0, 128
    %3421 = vxpose.xlu0.b32.cont [13/16] 0.0, 128
    %3422 = vxpose.xlu0.b32.cont [14/16] 0.0, 128
    %3423 = vxpose.xlu0.b32.cont [15/16] 0.0, 128
    %3424 = vxpose.xlu0.b32.end [16/16] 0.0, 128
    %v3425 = vpop.trf.xlu0
    %v3426 = vpop.trf.xlu0
    %v3427 = vpop.trf.xlu0
    %v3428 = vpop.trf.xlu0
    %v3429 = vpop.trf.xlu0
    %v3430 = vpop.trf.xlu0
    %v3431 = vpop.trf.xlu0
    %v3432 = vpop.trf.xlu0
    %v3433 = vpop.trf.xlu0
    %v3434 = vpop.trf.xlu0
    %v3435 = vpop.trf.xlu0
    %v3436 = vpop.trf.xlu0
    %v3437 = vpop.trf.xlu0
    %v3438 = vpop.trf.xlu0
    %v3439 = vpop.trf.xlu0
    %v3440 = vpop.trf.xlu0
    %3443 = vrot.lane.b32.xlu0 %v2775, 120
    %v3444 = vpop.permute.xlu0 %3443
    %3445 = vrot.lane.b32.xlu0 %v2780, 120
    %v3446 = vpop.permute.xlu0 %3445
    %v3450 = vsel %vm916, %v3425, 0
    %3452 = vmatprep.subr.mxu0 0.0
    %3453 = vmatpush1.msra.mxu0 %v3444
    %3454 = vmatprep.subr.mxu0 0.0
    %3455 = vmatpush1.msra.mxu0 %v3446
    %3456 = vmatprep.subr.mxu0 0.0
    %3457 = vmatpush1.msra.mxu0 0.0
    %3458 = vmatprep.subr.mxu0 0.0
    %3459 = vmatpush1.msra.mxu0 0.0
    %3460 = vmatprep.subr.mxu0 0.0
    %3461 = vmatpush1.msra.mxu0 0.0
    %3462 = vmatprep.subr.mxu0 0.0
    %3463 = vmatpush1.msra.mxu0 0.0
    %3464 = vmatprep.subr.mxu0 0.0
    %3465 = vmatpush1.msra.mxu0 0.0
    %3466 = vmatprep.subr.mxu0 0.0
    %3467 = vmatpush1.msra.mxu0 0.0
    %3468 = vmatprep.subr.mxu0 0.0
    %3469 = vmatpush1.msra.mxu0 0.0
    %3470 = vmatprep.subr.mxu0 0.0
    %3471 = vmatpush1.msra.mxu0 0.0
    %3472 = vmatprep.subr.mxu0 0.0
    %3473 = vmatpush1.msra.mxu0 0.0
    %3474 = vmatprep.subr.mxu0 0.0
    %3475 = vmatpush1.msra.mxu0 0.0
    %3476 = vmatprep.subr.mxu0 0.0
    %3477 = vmatpush1.msra.mxu0 0.0
    %3478 = vmatprep.subr.mxu0 0.0
    %3479 = vmatpush1.msra.mxu0 0.0
    %3480 = vmatprep.subr.mxu0 0.0
    %3481 = vmatpush1.msra.mxu0 0.0
    %3482 = vmatprep.subr.mxu0 0.0
    %3483 = vmatpush1.msra.mxu0 0.0
    %3484 = vmatprep.subr.mxu0 0.0
    %3485 = vmatpush1.msra.mxu0 0.0
    %3486 = vmatprep.subr.mxu0 0.0
    %3487 = vmatpush1.msra.mxu0 0.0
    %3488 = vmatprep.subr.mxu0 0.0
    %3489 = vmatpush1.msra.mxu0 0.0
    %3490 = vmatprep.subr.mxu0 0.0
    %3491 = vmatpush1.msra.mxu0 0.0
    %3492 = vmatprep.subr.mxu0 0.0
    %3493 = vmatpush1.msra.mxu0 0.0
    %3494 = vmatprep.subr.mxu0 0.0
    %3495 = vmatpush1.msra.mxu0 0.0
    %3496 = vmatprep.subr.mxu0 0.0
    %3497 = vmatpush1.msra.mxu0 0.0
    %3498 = vmatprep.subr.mxu0 0.0
    %3499 = vmatpush1.msra.mxu0 0.0
    %3500 = vmatprep.subr.mxu0 0.0
    %3501 = vmatpush1.msra.mxu0 0.0
    %3502 = vmatprep.subr.mxu0 0.0
    %3503 = vmatpush1.msra.mxu0 0.0
    %3504 = vmatprep.subr.mxu0 0.0
    %3505 = vmatpush1.msra.mxu0 0.0
    %3506 = vmatprep.subr.mxu0 0.0
    %3507 = vmatpush1.msra.mxu0 0.0
    %3508 = vmatprep.subr.mxu0 0.0
    %3509 = vmatpush1.msra.mxu0 0.0
    %3510 = vmatprep.subr.mxu0 0.0
    %3511 = vmatpush1.msra.mxu0 0.0
    %3512 = vmatprep.subr.mxu0 0.0
    %3513 = vmatpush1.msra.mxu0 0.0
    %3514 = vmatprep.subr.mxu0 0.0
    %3515 = vmatpush1.msra.mxu0 0.0
    %3516 = vmatprep.mubr.f32.mxu0 0.0
    %3517 = vmatmul.mubr.f32.gmra.mrb[0].mxu0 %v3450
    %v3518 = vpop.f32.mrb[0].mxu0
    %v3519 = vadd.f32 0.0, %v3518
    %v3520 = vpop.f32.mrb[0].mxu0
    %3521 = vdwg.mxu0
    %v3522 = vmul.f32 %v3398, 0.25
    %v3523 = vmul.f32 %v3519, 0.25
    %v3524 = vsel %vm723, %v3522, -inf
    %3525 = vmax.xlane.f32.xlu0 %v3524
    %v3526 = vpop.xlane.xlu0 %3525
    %v3527 = vsel %vm723, %v3523, -inf
    %3528 = vmax.xlane.f32.xlu0 %v3527
    %v3529 = vpop.xlane.xlu0 %3528
    %v3530 = vsub.f32 %v3522, %v3526
    %v3531 = vsub.f32 %v3523, %v3529
    %v3532 = vmul.f32 %v3530, 1.442695
    %v3533 = vpow.pop %v3532
    %v3534 = vmul.f32 %v3531, 1.442695
    %v3535 = vpow.pop %v3534
    %v3536 = vsel %vm723, %v3533, 0.0
    %3537 = vadd.xlane.f32.xlu0 %v3536
    %v3538 = vpop.xlane.xlu0 %3537
    %v3539 = vsel %vm723, %v3535, 0.0
    %3540 = vadd.xlane.f32.xlu0 %v3539
    %v3541 = vpop.xlane.xlu0 %3540
    %v3542 = vrcp.pop %v3538
    %v3543 = vmul.f32 %v3533, %v3542
    %v3544 = vrcp.pop %v3541
    %v3545 = vmul.f32 %v3535, %v3544
    %3546 = vrot.lane.b32.xlu0 %v2860, 120
    %v3547 = vpop.permute.xlu0 %3546
    %3548 = vrot.lane.b32.xlu0 %v2865, 120
    %v3549 = vpop.permute.xlu0 %3548
    %v3550 = vsel %vm723, %v3547, 0
    %v3552 = vsel %vm723, %v3549, 0
    %v3555 = vsel %vm723, %v3543, 0
    %3557 = vmatprep.subr.mxu0 0.0
    %3558 = vmatpush1.xpose.msra.mxu0 %v3555
    %3559 = vmatprep.subr.mxu0 0.0
    %3560 = vmatpush1.xpose.msra.mxu0 0.0
    %3561 = vmatprep.subr.mxu0 0.0
    %3562 = vmatpush1.xpose.msra.mxu0 0.0
    %3563 = vmatprep.subr.mxu0 0.0
    %3564 = vmatpush1.xpose.msra.mxu0 0.0
    %3565 = vmatprep.subr.mxu0 0.0
    %3566 = vmatpush1.xpose.msra.mxu0 0.0
    %3567 = vmatprep.subr.mxu0 0.0
    %3568 = vmatpush1.xpose.msra.mxu0 0.0
    %3569 = vmatprep.subr.mxu0 0.0
    %3570 = vmatpush1.xpose.msra.mxu0 0.0
    %3571 = vmatprep.subr.mxu0 0.0
    %3572 = vmatpush1.xpose.msra.mxu0 0.0
    %3573 = vmatprep.subr.mxu0 0.0
    %3574 = vmatpush1.xpose.msra.mxu0 0.0
    %3575 = vmatprep.subr.mxu0 0.0
    %3576 = vmatpush1.xpose.msra.mxu0 0.0
    %3577 = vmatprep.subr.mxu0 0.0
    %3578 = vmatpush1.xpose.msra.mxu0 0.0
    %3579 = vmatprep.subr.mxu0 0.0
    %3580 = vmatpush1.xpose.msra.mxu0 0.0
    %3581 = vmatprep.subr.mxu0 0.0
    %3582 = vmatpush1.xpose.msra.mxu0 0.0
    %3583 = vmatprep.subr.mxu0 0.0
    %3584 = vmatpush1.xpose.msra.mxu0 0.0
    %3585 = vmatprep.subr.mxu0 0.0
    %3586 = vmatpush1.xpose.msra.mxu0 0.0
    %3587 = vmatprep.subr.mxu0 0.0
    %3588 = vmatpush1.xpose.msra.mxu0 0.0
    %3589 = vmatprep.subr.mxu0 0.0
    %3590 = vmatpush1.xpose.msra.mxu0 0.0
    %3591 = vmatprep.subr.mxu0 0.0
    %3592 = vmatpush1.xpose.msra.mxu0 0.0
    %3593 = vmatprep.subr.mxu0 0.0
    %3594 = vmatpush1.xpose.msra.mxu0 0.0
    %3595 = vmatprep.subr.mxu0 0.0
    %3596 = vmatpush1.xpose.msra.mxu0 0.0
    %3597 = vmatprep.subr.mxu0 0.0
    %3598 = vmatpush1.xpose.msra.mxu0 0.0
    %3599 = vmatprep.subr.mxu0 0.0
    %3600 = vmatpush1.xpose.msra.mxu0 0.0
    %3601 = vmatprep.subr.mxu0 0.0
    %3602 = vmatpush1.xpose.msra.mxu0 0.0
    %3603 = vmatprep.subr.mxu0 0.0
    %3604 = vmatpush1.xpose.msra.mxu0 0.0
    %3605 = vmatprep.subr.mxu0 0.0
    %3606 = vmatpush1.xpose.msra.mxu0 0.0
    %3607 = vmatprep.subr.mxu0 0.0
    %3608 = vmatpush1.xpose.msra.mxu0 0.0
    %3609 = vmatprep.subr.mxu0 0.0
    %3610 = vmatpush1.xpose.msra.mxu0 0.0
    %3611 = vmatprep.subr.mxu0 0.0
    %3612 = vmatpush1.xpose.msra.mxu0 0.0
    %3613 = vmatprep.subr.mxu0 0.0
    %3614 = vmatpush1.xpose.msra.mxu0 0.0
    %3615 = vmatprep.subr.mxu0 0.0
    %3616 = vmatpush1.xpose.msra.mxu0 0.0
    %3617 = vmatprep.subr.mxu0 0.0
    %3618 = vmatpush1.xpose.msra.mxu0 0.0
    %3619 = vmatprep.subr.mxu0 0.0
    %3620 = vmatpush1.xpose.msra.mxu0 0.0
    %3621 = vmatprep.mubr.f32.mxu0 0.0
    %3622 = vmatmul.mubr.f32.gmra.mrb[0].mxu0 %v3550
    %v3623 = vpop.f32.mrb[0].mxu0
    %v3624 = vadd.f32 0.0, %v3623
    %v3625 = vpop.f32.mrb[0].mxu0
    %3626 = vmatprep.mubr.f32.mxu0 0.0
    %3627 = vmatmul.mubr.f32.gmra.mrb[0].mxu0 %v3552
    %v3628 = vpop.f32.mrb[0].mxu0
    %v3629 = vadd.f32 0.0, %v3628
    %v3630 = vpop.f32.mrb[0].mxu0
    %3631 = vdwg.mxu0
    %3632 = vrot.lane.b32.xlu0 %v2870, 120
    %v3633 = vpop.permute.xlu0 %3632
    %3634 = vrot.lane.b32.xlu0 %v2875, 120
    %v3635 = vpop.permute.xlu0 %3634
    %v3636 = vsel %vm723, %v3633, 0
    %v3638 = vsel %vm723, %v3635, 0
    %v3641 = vsel %vm723, %v3545, 0
    %3643 = vmatprep.subr.mxu0 0.0
    %3644 = vmatpush1.xpose.msra.mxu0 %v3641
    %3645 = vmatprep.subr.mxu0 0.0
    %3646 = vmatpush1.xpose.msra.mxu0 0.0
    %3647 = vmatprep.subr.mxu0 0.0
    %3648 = vmatpush1.xpose.msra.mxu0 0.0
    %3649 = vmatprep.subr.mxu0 0.0
    %3650 = vmatpush1.xpose.msra.mxu0 0.0
    %3651 = vmatprep.subr.mxu0 0.0
    %3652 = vmatpush1.xpose.msra.mxu0 0.0
    %3653 = vmatprep.subr.mxu0 0.0
    %3654 = vmatpush1.xpose.msra.mxu0 0.0
    %3655 = vmatprep.subr.mxu0 0.0
    %3656 = vmatpush1.xpose.msra.mxu0 0.0
    %3657 = vmatprep.subr.mxu0 0.0
    %3658 = vmatpush1.xpose.msra.mxu0 0.0
    %3659 = vmatprep.subr.mxu0 0.0
    %3660 = vmatpush1.xpose.msra.mxu0 0.0
    %3661 = vmatprep.subr.mxu0 0.0
    %3662 = vmatpush1.xpose.msra.mxu0 0.0
    %3663 = vmatprep.subr.mxu0 0.0
    %3664 = vmatpush1.xpose.msra.mxu0 0.0
    %3665 = vmatprep.subr.mxu0 0.0
    %3666 = vmatpush1.xpose.msra.mxu0 0.0
    %3667 = vmatprep.subr.mxu0 0.0
    %3668 = vmatpush1.xpose.msra.mxu0 0.0
    %3669 = vmatprep.subr.mxu0 0.0
    %3670 = vmatpush1.xpose.msra.mxu0 0.0
    %3671 = vmatprep.subr.mxu0 0.0
    %3672 = vmatpush1.xpose.msra.mxu0 0.0
    %3673 = vmatprep.subr.mxu0 0.0
    %3674 = vmatpush1.xpose.msra.mxu0 0.0
    %3675 = vmatprep.subr.mxu0 0.0
    %3676 = vmatpush1.xpose.msra.mxu0 0.0
    %3677 = vmatprep.subr.mxu0 0.0
    %3678 = vmatpush1.xpose.msra.mxu0 0.0
    %3679 = vmatprep.subr.mxu0 0.0
    %3680 = vmatpush1.xpose.msra.mxu0 0.0
    %3681 = vmatprep.subr.mxu0 0.0
    %3682 = vmatpush1.xpose.msra.mxu0 0.0
    %3683 = vmatprep.subr.mxu0 0.0
    %3684 = vmatpush1.xpose.msra.mxu0 0.0
    %3685 = vmatprep.subr.mxu0 0.0
    %3686 = vmatpush1.xpose.msra.mxu0 0.0
    %3687 = vmatprep.subr.mxu0 0.0
    %3688 = vmatpush1.xpose.msra.mxu0 0.0
    %3689 = vmatprep.subr.mxu0 0.0
    %3690 = vmatpush1.xpose.msra.mxu0 0.0
    %3691 = vmatprep.subr.mxu0 0.0
    %3692 = vmatpush1.xpose.msra.mxu0 0.0
    %3693 = vmatprep.subr.mxu0 0.0
    %3694 = vmatpush1.xpose.msra.mxu0 0.0
    %3695 = vmatprep.subr.mxu0 0.0
    %3696 = vmatpush1.xpose.msra.mxu0 0.0
    %3697 = vmatprep.subr.mxu0 0.0
    %3698 = vmatpush1.xpose.msra.mxu0 0.0
    %3699 = vmatprep.subr.mxu0 0.0
    %3700 = vmatpush1.xpose.msra.mxu0 0.0
    %3701 = vmatprep.subr.mxu0 0.0
    %3702 = vmatpush1.xpose.msra.mxu0 0.0
    %3703 = vmatprep.subr.mxu0 0.0
    %3704 = vmatpush1.xpose.msra.mxu0 0.0
    %3705 = vmatprep.subr.mxu0 0.0
    %3706 = vmatpush1.xpose.msra.mxu0 0.0
    %3707 = vmatprep.mubr.f32.mxu0 0.0
    %3708 = vmatmul.mubr.f32.gmra.mrb[0].mxu0 %v3636
    %v3709 = vpop.f32.mrb[0].mxu0
    %v3710 = vadd.f32 0.0, %v3709
    %v3711 = vpop.f32.mrb[0].mxu0
    %3712 = vmatprep.mubr.f32.mxu0 0.0
    %3713 = vmatmul.mubr.f32.gmra.mrb[0].mxu0 %v3638
    %v3714 = vpop.f32.mrb[0].mxu0
    %v3715 = vadd.f32 0.0, %v3714
    %v3716 = vpop.f32.mrb[0].mxu0
    %3717 = vdwg.mxu0
    %3718 = vrot.lane.b32.xlu0 %v2670, 112
    %v3719 = vpop.permute.xlu0 %3718
    %3720 = vrot.lane.b32.xlu0 %v2675, 112
    %v3721 = vpop.permute.xlu0 %3720
    %3724 = vxpose.xlu0.b32.start [1/16] %v3719, 128
    %3725 = vxpose.xlu0.b32.cont [2/16] %v3721, 128
    %3726 = vxpose.xlu0.b32.cont [3/16] 0.0, 128
    %3727 = vxpose.xlu0.b32.cont [4/16] 0.0, 128
    %3728 = vxpose.xlu0.b32.cont [5/16] 0.0, 128
    %3729 = vxpose.xlu0.b32.cont [6/16] 0.0, 128
    %3730 = vxpose.xlu0.b32.cont [7/16] 0.0, 128
    %3731 = vxpose.xlu0.b32.cont [8/16] 0.0, 128
    %3732 = vxpose.xlu0.b32.cont [9/16] 0.0, 128
    %3733 = vxpose.xlu0.b32.cont [10/16] 0.0, 128
    %3734 = vxpose.xlu0.b32.cont [11/16] 0.0, 128
    %3735 = vxpose.xlu0.b32.cont [12/16] 0.0, 128
    %3736 = vxpose.xlu0.b32.cont [13/16] 0.0, 128
    %3737 = vxpose.xlu0.b32.cont [14/16] 0.0, 128
    %3738 = vxpose.xlu0.b32.cont [15/16] 0.0, 128
    %3739 = vxpose.xlu0.b32.end [16/16] 0.0, 128
    %v3740 = vpop.trf.xlu0
    %v3741 = vpop.trf.xlu0
    %v3742 = vpop.trf.xlu0
    %v3743 = vpop.trf.xlu0
    %v3744 = vpop.trf.xlu0
    %v3745 = vpop.trf.xlu0
    %v3746 = vpop.trf.xlu0
    %v3747 = vpop.trf.xlu0
    %v3748 = vpop.trf.xlu0
    %v3749 = vpop.trf.xlu0
    %v3750 = vpop.trf.xlu0
    %v3751 = vpop.trf.xlu0
    %v3752 = vpop.trf.xlu0
    %v3753 = vpop.trf.xlu0
    %v3754 = vpop.trf.xlu0
    %v3755 = vpop.trf.xlu0
    %3756 = vrot.lane.b32.xlu0 %v2765, 112
    %v3757 = vpop.permute.xlu0 %3756
    %3758 = vrot.lane.b32.xlu0 %v2770, 112
    %v3759 = vpop.permute.xlu0 %3758
    %v3763 = vsel %vm916, %v3740, 0
    %3765 = vmatprep.subr.mxu0 0.0
    %3766 = vmatpush1.msra.mxu0 %v3757
    %3767 = vmatprep.subr.mxu0 0.0
    %3768 = vmatpush1.msra.mxu0 %v3759
    %3769 = vmatprep.subr.mxu0 0.0
    %3770 = vmatpush1.msra.mxu0 0.0
    %3771 = vmatprep.subr.mxu0 0.0
    %3772 = vmatpush1.msra.mxu0 0.0
    %3773 = vmatprep.subr.mxu0 0.0
    %3774 = vmatpush1.msra.mxu0 0.0
    %3775 = vmatprep.subr.mxu0 0.0
    %3776 = vmatpush1.msra.mxu0 0.0
    %3777 = vmatprep.subr.mxu0 0.0
    %3778 = vmatpush1.msra.mxu0 0.0
    %3779 = vmatprep.subr.mxu0 0.0
    %3780 = vmatpush1.msra.mxu0 0.0
    %3781 = vmatprep.subr.mxu0 0.0
    %3782 = vmatpush1.msra.mxu0 0.0
    %3783 = vmatprep.subr.mxu0 0.0
    %3784 = vmatpush1.msra.mxu0 0.0
    %3785 = vmatprep.subr.mxu0 0.0
    %3786 = vmatpush1.msra.mxu0 0.0
    %3787 = vmatprep.subr.mxu0 0.0
    %3788 = vmatpush1.msra.mxu0 0.0
    %3789 = vmatprep.subr.mxu0 0.0
    %3790 = vmatpush1.msra.mxu0 0.0
    %3791 = vmatprep.subr.mxu0 0.0
    %3792 = vmatpush1.msra.mxu0 0.0
    %3793 = vmatprep.subr.mxu0 0.0
    %3794 = vmatpush1.msra.mxu0 0.0
    %3795 = vmatprep.subr.mxu0 0.0
    %3796 = vmatpush1.msra.mxu0 0.0
    %3797 = vmatprep.subr.mxu0 0.0
    %3798 = vmatpush1.msra.mxu0 0.0
    %3799 = vmatprep.subr.mxu0 0.0
    %3800 = vmatpush1.msra.mxu0 0.0
    %3801 = vmatprep.subr.mxu0 0.0
    %3802 = vmatpush1.msra.mxu0 0.0
    %3803 = vmatprep.subr.mxu0 0.0
    %3804 = vmatpush1.msra.mxu0 0.0
    %3805 = vmatprep.subr.mxu0 0.0
    %3806 = vmatpush1.msra.mxu0 0.0
    %3807 = vmatprep.subr.mxu0 0.0
    %3808 = vmatpush1.msra.mxu0 0.0
    %3809 = vmatprep.subr.mxu0 0.0
    %3810 = vmatpush1.msra.mxu0 0.0
    %3811 = vmatprep.subr.mxu0 0.0
    %3812 = vmatpush1.msra.mxu0 0.0
    %3813 = vmatprep.subr.mxu0 0.0
    %3814 = vmatpush1.msra.mxu0 0.0
    %3815 = vmatprep.subr.mxu0 0.0
    %3816 = vmatpush1.msra.mxu0 0.0
    %3817 = vmatprep.subr.mxu0 0.0
    %3818 = vmatpush1.msra.mxu0 0.0
    %3819 = vmatprep.subr.mxu0 0.0
    %3820 = vmatpush1.msra.mxu0 0.0
    %3821 = vmatprep.subr.mxu0 0.0
    %3822 = vmatpush1.msra.mxu0 0.0
    %3823 = vmatprep.subr.mxu0 0.0
    %3824 = vmatpush1.msra.mxu0 0.0
    %3825 = vmatprep.subr.mxu0 0.0
    %3826 = vmatpush1.msra.mxu0 0.0
    %3827 = vmatprep.subr.mxu0 0.0
    %3828 = vmatpush1.msra.mxu0 0.0
    %3829 = vmatprep.mubr.f32.mxu0 0.0
    %3830 = vmatmul.mubr.f32.gmra.mrb[0].mxu0 %v3763
    %v3831 = vpop.f32.mrb[0].mxu0
    %v3832 = vadd.f32 0.0, %v3831
    %v3833 = vpop.f32.mrb[0].mxu0
    %3834 = vdwg.mxu0
    %3835 = vrot.lane.b32.xlu0 %v2680, 112
    %v3836 = vpop.permute.xlu0 %3835
    %3837 = vrot.lane.b32.xlu0 %v2685, 112
    %v3838 = vpop.permute.xlu0 %3837
    %3841 = vxpose.xlu0.b32.start [1/16] %v3836, 128
    %3842 = vxpose.xlu0.b32.cont [2/16] %v3838, 128
    %3843 = vxpose.xlu0.b32.cont [3/16] 0.0, 128
    %3844 = vxpose.xlu0.b32.cont [4/16] 0.0, 128
    %3845 = vxpose.xlu0.b32.cont [5/16] 0.0, 128
    %3846 = vxpose.xlu0.b32.cont [6/16] 0.0, 128
    %3847 = vxpose.xlu0.b32.cont [7/16] 0.0, 128
    %3848 = vxpose.xlu0.b32.cont [8/16] 0.0, 128
    %3849 = vxpose.xlu0.b32.cont [9/16] 0.0, 128
    %3850 = vxpose.xlu0.b32.cont [10/16] 0.0, 128
    %3851 = vxpose.xlu0.b32.cont [11/16] 0.0, 128
    %3852 = vxpose.xlu0.b32.cont [12/16] 0.0, 128
    %3853 = vxpose.xlu0.b32.cont [13/16] 0.0, 128
    %3854 = vxpose.xlu0.b32.cont [14/16] 0.0, 128
    %3855 = vxpose.xlu0.b32.cont [15/16] 0.0, 128
    %3856 = vxpose.xlu0.b32.end [16/16] 0.0, 128
    %v3857 = vpop.trf.xlu0
    %v3858 = vpop.trf.xlu0
    %v3859 = vpop.trf.xlu0
    %v3860 = vpop.trf.xlu0
    %v3861 = vpop.trf.xlu0
    %v3862 = vpop.trf.xlu0
    %v3863 = vpop.trf.xlu0
    %v3864 = vpop.trf.xlu0
    %v3865 = vpop.trf.xlu0
    %v3866 = vpop.trf.xlu0
    %v3867 = vpop.trf.xlu0
    %v3868 = vpop.trf.xlu0
    %v3869 = vpop.trf.xlu0
    %v3870 = vpop.trf.xlu0
    %v3871 = vpop.trf.xlu0
    %v3872 = vpop.trf.xlu0
    %3873 = vrot.lane.b32.xlu0 %v2775, 112
    %v3874 = vpop.permute.xlu0 %3873
    %3875 = vrot.lane.b32.xlu0 %v2780, 112
    %v3876 = vpop.permute.xlu0 %3875
    %v3880 = vsel %vm916, %v3857, 0
    %3882 = vmatprep.subr.mxu0 0.0
    %3883 = vmatpush1.msra.mxu0 %v3874
    %3884 = vmatprep.subr.mxu0 0.0
    %3885 = vmatpush1.msra.mxu0 %v3876
    %3886 = vmatprep.subr.mxu0 0.0
    %3887 = vmatpush1.msra.mxu0 0.0
    %3888 = vmatprep.subr.mxu0 0.0
    %3889 = vmatpush1.msra.mxu0 0.0
    %3890 = vmatprep.subr.mxu0 0.0
    %3891 = vmatpush1.msra.mxu0 0.0
    %3892 = vmatprep.subr.mxu0 0.0
    %3893 = vmatpush1.msra.mxu0 0.0
    %3894 = vmatprep.subr.mxu0 0.0
    %3895 = vmatpush1.msra.mxu0 0.0
    %3896 = vmatprep.subr.mxu0 0.0
    %3897 = vmatpush1.msra.mxu0 0.0
    %3898 = vmatprep.subr.mxu0 0.0
    %3899 = vmatpush1.msra.mxu0 0.0
    %3900 = vmatprep.subr.mxu0 0.0
    %3901 = vmatpush1.msra.mxu0 0.0
    %3902 = vmatprep.subr.mxu0 0.0
    %3903 = vmatpush1.msra.mxu0 0.0
    %3904 = vmatprep.subr.mxu0 0.0
    %3905 = vmatpush1.msra.mxu0 0.0
    %3906 = vmatprep.subr.mxu0 0.0
    %3907 = vmatpush1.msra.mxu0 0.0
    %3908 = vmatprep.subr.mxu0 0.0
    %3909 = vmatpush1.msra.mxu0 0.0
    %3910 = vmatprep.subr.mxu0 0.0
    %3911 = vmatpush1.msra.mxu0 0.0
    %3912 = vmatprep.subr.mxu0 0.0
    %3913 = vmatpush1.msra.mxu0 0.0
    %3914 = vmatprep.subr.mxu0 0.0
    %3915 = vmatpush1.msra.mxu0 0.0
    %3916 = vmatprep.subr.mxu0 0.0
    %3917 = vmatpush1.msra.mxu0 0.0
    %3918 = vmatprep.subr.mxu0 0.0
    %3919 = vmatpush1.msra.mxu0 0.0
    %3920 = vmatprep.subr.mxu0 0.0
    %3921 = vmatpush1.msra.mxu0 0.0
    %3922 = vmatprep.subr.mxu0 0.0
    %3923 = vmatpush1.msra.mxu0 0.0
    %3924 = vmatprep.subr.mxu0 0.0
    %3925 = vmatpush1.msra.mxu0 0.0
    %3926 = vmatprep.subr.mxu0 0.0
    %3927 = vmatpush1.msra.mxu0 0.0
    %3928 = vmatprep.subr.mxu0 0.0
    %3929 = vmatpush1.msra.mxu0 0.0
    %3930 = vmatprep.subr.mxu0 0.0
    %3931 = vmatpush1.msra.mxu0 0.0
    %3932 = vmatprep.subr.mxu0 0.0
    %3933 = vmatpush1.msra.mxu0 0.0
    %3934 = vmatprep.subr.mxu0 0.0
    %3935 = vmatpush1.msra.mxu0 0.0
    %3936 = vmatprep.subr.mxu0 0.0
    %3937 = vmatpush1.msra.mxu0 0.0
    %3938 = vmatprep.subr.mxu0 0.0
    %3939 = vmatpush1.msra.mxu0 0.0
    %3940 = vmatprep.subr.mxu0 0.0
    %3941 = vmatpush1.msra.mxu0 0.0
    %3942 = vmatprep.subr.mxu0 0.0
    %3943 = vmatpush1.msra.mxu0 0.0
    %3944 = vmatprep.subr.mxu0 0.0
    %3945 = vmatpush1.msra.mxu0 0.0
    %3946 = vmatprep.mubr.f32.mxu0 0.0
    %3947 = vmatmul.mubr.f32.gmra.mrb[0].mxu0 %v3880
    %v3948 = vpop.f32.mrb[0].mxu0
    %v3949 = vadd.f32 0.0, %v3948
    %v3950 = vpop.f32.mrb[0].mxu0
    %3951 = vdwg.mxu0
    %v3952 = vmul.f32 %v3832, 0.25
    %v3953 = vmul.f32 %v3949, 0.25
    %v3954 = vsel %vm723, %v3952, -inf
    %3955 = vmax.xlane.f32.xlu0 %v3954
    %v3956 = vpop.xlane.xlu0 %3955
    %v3957 = vsel %vm723, %v3953, -inf
    %3958 = vmax.xlane.f32.xlu0 %v3957
    %v3959 = vpop.xlane.xlu0 %3958
    %v3960 = vsub.f32 %v3952, %v3956
    %v3961 = vsub.f32 %v3953, %v3959
    %v3962 = vmul.f32 %v3960, 1.442695
    %v3963 = vpow.pop %v3962
    %v3964 = vmul.f32 %v3961, 1.442695
    %v3965 = vpow.pop %v3964
    %v3966 = vsel %vm723, %v3963, 0.0
    %3967 = vadd.xlane.f32.xlu0 %v3966
    %v3968 = vpop.xlane.xlu0 %3967
    %v3969 = vsel %vm723, %v3965, 0.0
    %3970 = vadd.xlane.f32.xlu0 %v3969
    %v3971 = vpop.xlane.xlu0 %3970
    %v3972 = vrcp.pop %v3968
    %v3973 = vmul.f32 %v3963, %v3972
    %v3974 = vrcp.pop %v3971
    %v3975 = vmul.f32 %v3965, %v3974
    %3976 = vrot.lane.b32.xlu0 %v2860, 112
    %v3977 = vpop.permute.xlu0 %3976
    %3978 = vrot.lane.b32.xlu0 %v2865, 112
    %v3979 = vpop.permute.xlu0 %3978
    %v3980 = vsel %vm723, %v3977, 0
    %v3982 = vsel %vm723, %v3979, 0
    %v3985 = vsel %vm723, %v3973, 0
    %3987 = vmatprep.subr.mxu0 0.0
    %3988 = vmatpush1.xpose.msra.mxu0 %v3985
    %3989 = vmatprep.subr.mxu0 0.0
    %3990 = vmatpush1.xpose.msra.mxu0 0.0
    %3991 = vmatprep.subr.mxu0 0.0
    %3992 = vmatpush1.xpose.msra.mxu0 0.0
    %3993 = vmatprep.subr.mxu0 0.0
    %3994 = vmatpush1.xpose.msra.mxu0 0.0
    %3995 = vmatprep.subr.mxu0 0.0
    %3996 = vmatpush1.xpose.msra.mxu0 0.0
    %3997 = vmatprep.subr.mxu0 0.0
    %3998 = vmatpush1.xpose.msra.mxu0 0.0
    %3999 = vmatprep.subr.mxu0 0.0
    %4000 = vmatpush1.xpose.msra.mxu0 0.0
    %4001 = vmatprep.subr.mxu0 0.0
    %4002 = vmatpush1.xpose.msra.mxu0 0.0
    %4003 = vmatprep.subr.mxu0 0.0
    %4004 = vmatpush1.xpose.msra.mxu0 0.0
    %4005 = vmatprep.subr.mxu0 0.0
    %4006 = vmatpush1.xpose.msra.mxu0 0.0
    %4007 = vmatprep.subr.mxu0 0.0
    %4008 = vmatpush1.xpose.msra.mxu0 0.0
    %4009 = vmatprep.subr.mxu0 0.0
    %4010 = vmatpush1.xpose.msra.mxu0 0.0
    %4011 = vmatprep.subr.mxu0 0.0
    %4012 = vmatpush1.xpose.msra.mxu0 0.0
    %4013 = vmatprep.subr.mxu0 0.0
    %4014 = vmatpush1.xpose.msra.mxu0 0.0
    %4015 = vmatprep.subr.mxu0 0.0
    %4016 = vmatpush1.xpose.msra.mxu0 0.0
    %4017 = vmatprep.subr.mxu0 0.0
    %4018 = vmatpush1.xpose.msra.mxu0 0.0
    %4019 = vmatprep.subr.mxu0 0.0
    %4020 = vmatpush1.xpose.msra.mxu0 0.0
    %4021 = vmatprep.subr.mxu0 0.0
    %4022 = vmatpush1.xpose.msra.mxu0 0.0
    %4023 = vmatprep.subr.mxu0 0.0
    %4024 = vmatpush1.xpose.msra.mxu0 0.0
    %4025 = vmatprep.subr.mxu0 0.0
    %4026 = vmatpush1.xpose.msra.mxu0 0.0
    %4027 = vmatprep.subr.mxu0 0.0
    %4028 = vmatpush1.xpose.msra.mxu0 0.0
    %4029 = vmatprep.subr.mxu0 0.0
    %4030 = vmatpush1.xpose.msra.mxu0 0.0
    %4031 = vmatprep.subr.mxu0 0.0
    %4032 = vmatpush1.xpose.msra.mxu0 0.0
    %4033 = vmatprep.subr.mxu0 0.0
    %4034 = vmatpush1.xpose.msra.mxu0 0.0
    %4035 = vmatprep.subr.mxu0 0.0
    %4036 = vmatpush1.xpose.msra.mxu0 0.0
    %4037 = vmatprep.subr.mxu0 0.0
    %4038 = vmatpush1.xpose.msra.mxu0 0.0
    %4039 = vmatprep.subr.mxu0 0.0
    %4040 = vmatpush1.xpose.msra.mxu0 0.0
    %4041 = vmatprep.subr.mxu0 0.0
    %4042 = vmatpush1.xpose.msra.mxu0 0.0
    %4043 = vmatprep.subr.mxu0 0.0
    %4044 = vmatpush1.xpose.msra.mxu0 0.0
    %4045 = vmatprep.subr.mxu0 0.0
    %4046 = vmatpush1.xpose.msra.mxu0 0.0
    %4047 = vmatprep.subr.mxu0 0.0
    %4048 = vmatpush1.xpose.msra.mxu0 0.0
    %4049 = vmatprep.subr.mxu0 0.0
    %4050 = vmatpush1.xpose.msra.mxu0 0.0
    %4051 = vmatprep.mubr.f32.mxu0 0.0
    %4052 = vmatmul.mubr.f32.gmra.mrb[0].mxu0 %v3980
    %v4053 = vpop.f32.mrb[0].mxu0
    %v4054 = vadd.f32 0.0, %v4053
    %v4055 = vpop.f32.mrb[0].mxu0
    %4056 = vmatprep.mubr.f32.mxu0 0.0
    %4057 = vmatmul.mubr.f32.gmra.mrb[0].mxu0 %v3982
    %v4058 = vpop.f32.mrb[0].mxu0
    %v4059 = vadd.f32 0.0, %v4058
    %v4060 = vpop.f32.mrb[0].mxu0
    %4061 = vdwg.mxu0
    %4062 = vrot.lane.b32.xlu0 %v2870, 112
    %v4063 = vpop.permute.xlu0 %4062
    %4064 = vrot.lane.b32.xlu0 %v2875, 112
    %v4065 = vpop.permute.xlu0 %4064
    %v4066 = vsel %vm723, %v4063, 0
    %v4068 = vsel %vm723, %v4065, 0
    %v4071 = vsel %vm723, %v3975, 0
    %4073 = vmatprep.subr.mxu0 0.0
    %4074 = vmatpush1.xpose.msra.mxu0 %v4071
    %4075 = vmatprep.subr.mxu0 0.0
    %4076 = vmatpush1.xpose.msra.mxu0 0.0
    %4077 = vmatprep.subr.mxu0 0.0
    %4078 = vmatpush1.xpose.msra.mxu0 0.0
    %4079 = vmatprep.subr.mxu0 0.0
    %4080 = vmatpush1.xpose.msra.mxu0 0.0
    %4081 = vmatprep.subr.mxu0 0.0
    %4082 = vmatpush1.xpose.msra.mxu0 0.0
    %4083 = vmatprep.subr.mxu0 0.0
    %4084 = vmatpush1.xpose.msra.mxu0 0.0
    %4085 = vmatprep.subr.mxu0 0.0
    %4086 = vmatpush1.xpose.msra.mxu0 0.0
    %4087 = vmatprep.subr.mxu0 0.0
    %4088 = vmatpush1.xpose.msra.mxu0 0.0
    %4089 = vmatprep.subr.mxu0 0.0
    %4090 = vmatpush1.xpose.msra.mxu0 0.0
    %4091 = vmatprep.subr.mxu0 0.0
    %4092 = vmatpush1.xpose.msra.mxu0 0.0
    %4093 = vmatprep.subr.mxu0 0.0
    %4094 = vmatpush1.xpose.msra.mxu0 0.0
    %4095 = vmatprep.subr.mxu0 0.0
    %4096 = vmatpush1.xpose.msra.mxu0 0.0
    %4097 = vmatprep.subr.mxu0 0.0
    %4098 = vmatpush1.xpose.msra.mxu0 0.0
    %4099 = vmatprep.subr.mxu0 0.0
    %4100 = vmatpush1.xpose.msra.mxu0 0.0
    %4101 = vmatprep.subr.mxu0 0.0
    %4102 = vmatpush1.xpose.msra.mxu0 0.0
    %4103 = vmatprep.subr.mxu0 0.0
    %4104 = vmatpush1.xpose.msra.mxu0 0.0
    %4105 = vmatprep.subr.mxu0 0.0
    %4106 = vmatpush1.xpose.msra.mxu0 0.0
    %4107 = vmatprep.subr.mxu0 0.0
    %4108 = vmatpush1.xpose.msra.mxu0 0.0
    %4109 = vmatprep.subr.mxu0 0.0
    %4110 = vmatpush1.xpose.msra.mxu0 0.0
    %4111 = vmatprep.subr.mxu0 0.0
    %4112 = vmatpush1.xpose.msra.mxu0 0.0
    %4113 = vmatprep.subr.mxu0 0.0
    %4114 = vmatpush1.xpose.msra.mxu0 0.0
    %4115 = vmatprep.subr.mxu0 0.0
    %4116 = vmatpush1.xpose.msra.mxu0 0.0
    %4117 = vmatprep.subr.mxu0 0.0
    %4118 = vmatpush1.xpose.msra.mxu0 0.0
    %4119 = vmatprep.subr.mxu0 0.0
    %4120 = vmatpush1.xpose.msra.mxu0 0.0
    %4121 = vmatprep.subr.mxu0 0.0
    %4122 = vmatpush1.xpose.msra.mxu0 0.0
    %4123 = vmatprep.subr.mxu0 0.0
    %4124 = vmatpush1.xpose.msra.mxu0 0.0
    %4125 = vmatprep.subr.mxu0 0.0
    %4126 = vmatpush1.xpose.msra.mxu0 0.0
    %4127 = vmatprep.subr.mxu0 0.0
    %4128 = vmatpush1.xpose.msra.mxu0 0.0
    %4129 = vmatprep.subr.mxu0 0.0
    %4130 = vmatpush1.xpose.msra.mxu0 0.0
    %4131 = vmatprep.subr.mxu0 0.0
    %4132 = vmatpush1.xpose.msra.mxu0 0.0
    %4133 = vmatprep.subr.mxu0 0.0
    %4134 = vmatpush1.xpose.msra.mxu0 0.0
    %4135 = vmatprep.subr.mxu0 0.0
    %4136 = vmatpush1.xpose.msra.mxu0 0.0
    %4137 = vmatprep.mubr.f32.mxu0 0.0
    %4138 = vmatmul.mubr.f32.gmra.mrb[0].mxu0 %v4066
    %v4139 = vpop.f32.mrb[0].mxu0
    %v4140 = vadd.f32 0.0, %v4139
    %v4141 = vpop.f32.mrb[0].mxu0
    %4142 = vmatprep.mubr.f32.mxu0 0.0
    %4143 = vmatmul.mubr.f32.gmra.mrb[0].mxu0 %v4068
    %v4144 = vpop.f32.mrb[0].mxu0
    %v4145 = vadd.f32 0.0, %v4144
    %v4146 = vpop.f32.mrb[0].mxu0
    %4147 = vdwg.mxu0
    %4148 = vrot.lane.b32.xlu0 %v2670, 104
    %v4149 = vpop.permute.xlu0 %4148
    %4150 = vrot.lane.b32.xlu0 %v2675, 104
    %v4151 = vpop.permute.xlu0 %4150
    %4154 = vxpose.xlu0.b32.start [1/16] %v4149, 128
    %4155 = vxpose.xlu0.b32.cont [2/16] %v4151, 128
    %4156 = vxpose.xlu0.b32.cont [3/16] 0.0, 128
    %4157 = vxpose.xlu0.b32.cont [4/16] 0.0, 128
    %4158 = vxpose.xlu0.b32.cont [5/16] 0.0, 128
    %4159 = vxpose.xlu0.b32.cont [6/16] 0.0, 128
    %4160 = vxpose.xlu0.b32.cont [7/16] 0.0, 128
    %4161 = vxpose.xlu0.b32.cont [8/16] 0.0, 128
    %4162 = vxpose.xlu0.b32.cont [9/16] 0.0, 128
    %4163 = vxpose.xlu0.b32.cont [10/16] 0.0, 128
    %4164 = vxpose.xlu0.b32.cont [11/16] 0.0, 128
    %4165 = vxpose.xlu0.b32.cont [12/16] 0.0, 128
    %4166 = vxpose.xlu0.b32.cont [13/16] 0.0, 128
    %4167 = vxpose.xlu0.b32.cont [14/16] 0.0, 128
    %4168 = vxpose.xlu0.b32.cont [15/16] 0.0, 128
    %4169 = vxpose.xlu0.b32.end [16/16] 0.0, 128
    %v4170 = vpop.trf.xlu0
    %v4171 = vpop.trf.xlu0
    %v4172 = vpop.trf.xlu0
    %v4173 = vpop.trf.xlu0
    %v4174 = vpop.trf.xlu0
    %v4175 = vpop.trf.xlu0
    %v4176 = vpop.trf.xlu0
    %v4177 = vpop.trf.xlu0
    %v4178 = vpop.trf.xlu0
    %v4179 = vpop.trf.xlu0
    %v4180 = vpop.trf.xlu0
    %v4181 = vpop.trf.xlu0
    %v4182 = vpop.trf.xlu0
    %v4183 = vpop.trf.xlu0
    %v4184 = vpop.trf.xlu0
    %v4185 = vpop.trf.xlu0
    %4186 = vrot.lane.b32.xlu0 %v2765, 104
    %v4187 = vpop.permute.xlu0 %4186
    %4188 = vrot.lane.b32.xlu0 %v2770, 104
    %v4189 = vpop.permute.xlu0 %4188
    %v4193 = vsel %vm916, %v4170, 0
    %4195 = vmatprep.subr.mxu0 0.0
    %4196 = vmatpush1.msra.mxu0 %v4187
    %4197 = vmatprep.subr.mxu0 0.0
    %4198 = vmatpush1.msra.mxu0 %v4189
    %4199 = vmatprep.subr.mxu0 0.0
    %4200 = vmatpush1.msra.mxu0 0.0
    %4201 = vmatprep.subr.mxu0 0.0
    %4202 = vmatpush1.msra.mxu0 0.0
    %4203 = vmatprep.subr.mxu0 0.0
    %4204 = vmatpush1.msra.mxu0 0.0
    %4205 = vmatprep.subr.mxu0 0.0
    %4206 = vmatpush1.msra.mxu0 0.0
    %4207 = vmatprep.subr.mxu0 0.0
    %4208 = vmatpush1.msra.mxu0 0.0
    %4209 = vmatprep.subr.mxu0 0.0
    %4210 = vmatpush1.msra.mxu0 0.0
    %4211 = vmatprep.subr.mxu0 0.0
    %4212 = vmatpush1.msra.mxu0 0.0
    %4213 = vmatprep.subr.mxu0 0.0
    %4214 = vmatpush1.msra.mxu0 0.0
    %4215 = vmatprep.subr.mxu0 0.0
    %4216 = vmatpush1.msra.mxu0 0.0
    %4217 = vmatprep.subr.mxu0 0.0
    %4218 = vmatpush1.msra.mxu0 0.0
    %4219 = vmatprep.subr.mxu0 0.0
    %4220 = vmatpush1.msra.mxu0 0.0
    %4221 = vmatprep.subr.mxu0 0.0
    %4222 = vmatpush1.msra.mxu0 0.0
    %4223 = vmatprep.subr.mxu0 0.0
    %4224 = vmatpush1.msra.mxu0 0.0
    %4225 = vmatprep.subr.mxu0 0.0
    %4226 = vmatpush1.msra.mxu0 0.0
    %4227 = vmatprep.subr.mxu0 0.0
    %4228 = vmatpush1.msra.mxu0 0.0
    %4229 = vmatprep.subr.mxu0 0.0
    %4230 = vmatpush1.msra.mxu0 0.0
    %4231 = vmatprep.subr.mxu0 0.0
    %4232 = vmatpush1.msra.mxu0 0.0
    %4233 = vmatprep.subr.mxu0 0.0
    %4234 = vmatpush1.msra.mxu0 0.0
    %4235 = vmatprep.subr.mxu0 0.0
    %4236 = vmatpush1.msra.mxu0 0.0
    %4237 = vmatprep.subr.mxu0 0.0
    %4238 = vmatpush1.msra.mxu0 0.0
    %4239 = vmatprep.subr.mxu0 0.0
    %4240 = vmatpush1.msra.mxu0 0.0
    %4241 = vmatprep.subr.mxu0 0.0
    %4242 = vmatpush1.msra.mxu0 0.0
    %4243 = vmatprep.subr.mxu0 0.0
    %4244 = vmatpush1.msra.mxu0 0.0
    %4245 = vmatprep.subr.mxu0 0.0
    %4246 = vmatpush1.msra.mxu0 0.0
    %4247 = vmatprep.subr.mxu0 0.0
    %4248 = vmatpush1.msra.mxu0 0.0
    %4249 = vmatprep.subr.mxu0 0.0
    %4250 = vmatpush1.msra.mxu0 0.0
    %4251 = vmatprep.subr.mxu0 0.0
    %4252 = vmatpush1.msra.mxu0 0.0
    %4253 = vmatprep.subr.mxu0 0.0
    %4254 = vmatpush1.msra.mxu0 0.0
    %4255 = vmatprep.subr.mxu0 0.0
    %4256 = vmatpush1.msra.mxu0 0.0
    %4257 = vmatprep.subr.mxu0 0.0
    %4258 = vmatpush1.msra.mxu0 0.0
    %4259 = vmatprep.mubr.f32.mxu0 0.0
    %4260 = vmatmul.mubr.f32.gmra.mrb[0].mxu0 %v4193
    %v4261 = vpop.f32.mrb[0].mxu0
    %v4262 = vadd.f32 0.0, %v4261
    %v4263 = vpop.f32.mrb[0].mxu0
    %4264 = vdwg.mxu0
    %4265 = vrot.lane.b32.xlu0 %v2680, 104
    %v4266 = vpop.permute.xlu0 %4265
    %4267 = vrot.lane.b32.xlu0 %v2685, 104
    %v4268 = vpop.permute.xlu0 %4267
    %4271 = vxpose.xlu0.b32.start [1/16] %v4266, 128
    %4272 = vxpose.xlu0.b32.cont [2/16] %v4268, 128
    %4273 = vxpose.xlu0.b32.cont [3/16] 0.0, 128
    %4274 = vxpose.xlu0.b32.cont [4/16] 0.0, 128
    %4275 = vxpose.xlu0.b32.cont [5/16] 0.0, 128
    %4276 = vxpose.xlu0.b32.cont [6/16] 0.0, 128
    %4277 = vxpose.xlu0.b32.cont [7/16] 0.0, 128
    %4278 = vxpose.xlu0.b32.cont [8/16] 0.0, 128
    %4279 = vxpose.xlu0.b32.cont [9/16] 0.0, 128
    %4280 = vxpose.xlu0.b32.cont [10/16] 0.0, 128
    %4281 = vxpose.xlu0.b32.cont [11/16] 0.0, 128
    %4282 = vxpose.xlu0.b32.cont [12/16] 0.0, 128
    %4283 = vxpose.xlu0.b32.cont [13/16] 0.0, 128
    %4284 = vxpose.xlu0.b32.cont [14/16] 0.0, 128
    %4285 = vxpose.xlu0.b32.cont [15/16] 0.0, 128
    %4286 = vxpose.xlu0.b32.end [16/16] 0.0, 128
    %v4287 = vpop.trf.xlu0
    %v4288 = vpop.trf.xlu0
    %v4289 = vpop.trf.xlu0
    %v4290 = vpop.trf.xlu0
    %v4291 = vpop.trf.xlu0
    %v4292 = vpop.trf.xlu0
    %v4293 = vpop.trf.xlu0
    %v4294 = vpop.trf.xlu0
    %v4295 = vpop.trf.xlu0
    %v4296 = vpop.trf.xlu0
    %v4297 = vpop.trf.xlu0
    %v4298 = vpop.trf.xlu0
    %v4299 = vpop.trf.xlu0
    %v4300 = vpop.trf.xlu0
    %v4301 = vpop.trf.xlu0
    %v4302 = vpop.trf.xlu0
    %4303 = vrot.lane.b32.xlu0 %v2775, 104
    %v4304 = vpop.permute.xlu0 %4303
    %4305 = vrot.lane.b32.xlu0 %v2780, 104
    %v4306 = vpop.permute.xlu0 %4305
    %v4310 = vsel %vm916, %v4287, 0
    %4312 = vmatprep.subr.mxu0 0.0
    %4313 = vmatpush1.msra.mxu0 %v4304
    %4314 = vmatprep.subr.mxu0 0.0
    %4315 = vmatpush1.msra.mxu0 %v4306
    %4316 = vmatprep.subr.mxu0 0.0
    %4317 = vmatpush1.msra.mxu0 0.0
    %4318 = vmatprep.subr.mxu0 0.0
    %4319 = vmatpush1.msra.mxu0 0.0
    %4320 = vmatprep.subr.mxu0 0.0
    %4321 = vmatpush1.msra.mxu0 0.0
    %4322 = vmatprep.subr.mxu0 0.0
    %4323 = vmatpush1.msra.mxu0 0.0
    %4324 = vmatprep.subr.mxu0 0.0
    %4325 = vmatpush1.msra.mxu0 0.0
    %4326 = vmatprep.subr.mxu0 0.0
    %4327 = vmatpush1.msra.mxu0 0.0
    %4328 = vmatprep.subr.mxu0 0.0
    %4329 = vmatpush1.msra.mxu0 0.0
    %4330 = vmatprep.subr.mxu0 0.0
    %4331 = vmatpush1.msra.mxu0 0.0
    %4332 = vmatprep.subr.mxu0 0.0
    %4333 = vmatpush1.msra.mxu0 0.0
    %4334 = vmatprep.subr.mxu0 0.0
    %4335 = vmatpush1.msra.mxu0 0.0
    %4336 = vmatprep.subr.mxu0 0.0
    %4337 = vmatpush1.msra.mxu0 0.0
    %4338 = vmatprep.subr.mxu0 0.0
    %4339 = vmatpush1.msra.mxu0 0.0
    %4340 = vmatprep.subr.mxu0 0.0
    %4341 = vmatpush1.msra.mxu0 0.0
    %4342 = vmatprep.subr.mxu0 0.0
    %4343 = vmatpush1.msra.mxu0 0.0
    %4344 = vmatprep.subr.mxu0 0.0
    %4345 = vmatpush1.msra.mxu0 0.0
    %4346 = vmatprep.subr.mxu0 0.0
    %4347 = vmatpush1.msra.mxu0 0.0
    %4348 = vmatprep.subr.mxu0 0.0
    %4349 = vmatpush1.msra.mxu0 0.0
    %4350 = vmatprep.subr.mxu0 0.0
    %4351 = vmatpush1.msra.mxu0 0.0
    %4352 = vmatprep.subr.mxu0 0.0
    %4353 = vmatpush1.msra.mxu0 0.0
    %4354 = vmatprep.subr.mxu0 0.0
    %4355 = vmatpush1.msra.mxu0 0.0
    %4356 = vmatprep.subr.mxu0 0.0
    %4357 = vmatpush1.msra.mxu0 0.0
    %4358 = vmatprep.subr.mxu0 0.0
    %4359 = vmatpush1.msra.mxu0 0.0
    %4360 = vmatprep.subr.mxu0 0.0
    %4361 = vmatpush1.msra.mxu0 0.0
    %4362 = vmatprep.subr.mxu0 0.0
    %4363 = vmatpush1.msra.mxu0 0.0
    %4364 = vmatprep.subr.mxu0 0.0
    %4365 = vmatpush1.msra.mxu0 0.0
    %4366 = vmatprep.subr.mxu0 0.0
    %4367 = vmatpush1.msra.mxu0 0.0
    %4368 = vmatprep.subr.mxu0 0.0
    %4369 = vmatpush1.msra.mxu0 0.0
    %4370 = vmatprep.subr.mxu0 0.0
    %4371 = vmatpush1.msra.mxu0 0.0
    %4372 = vmatprep.subr.mxu0 0.0
    %4373 = vmatpush1.msra.mxu0 0.0
    %4374 = vmatprep.subr.mxu0 0.0
    %4375 = vmatpush1.msra.mxu0 0.0
    %4376 = vmatprep.mubr.f32.mxu0 0.0
    %4377 = vmatmul.mubr.f32.gmra.mrb[0].mxu0 %v4310
    %v4378 = vpop.f32.mrb[0].mxu0
    %v4379 = vadd.f32 0.0, %v4378
    %v4380 = vpop.f32.mrb[0].mxu0
    %4381 = vdwg.mxu0
    %v4382 = vmul.f32 %v4262, 0.25
    %v4383 = vmul.f32 %v4379, 0.25
    %v4384 = vsel %vm723, %v4382, -inf
    %4385 = vmax.xlane.f32.xlu0 %v4384
    %v4386 = vpop.xlane.xlu0 %4385
    %v4387 = vsel %vm723, %v4383, -inf
    %4388 = vmax.xlane.f32.xlu0 %v4387
    %v4389 = vpop.xlane.xlu0 %4388
    %v4390 = vsub.f32 %v4382, %v4386
    %v4391 = vsub.f32 %v4383, %v4389
    %v4392 = vmul.f32 %v4390, 1.442695
    %v4393 = vpow.pop %v4392
    %v4394 = vmul.f32 %v4391, 1.442695
    %v4395 = vpow.pop %v4394
    %v4396 = vsel %vm723, %v4393, 0.0
    %4397 = vadd.xlane.f32.xlu0 %v4396
    %v4398 = vpop.xlane.xlu0 %4397
    %v4399 = vsel %vm723, %v4395, 0.0
    %4400 = vadd.xlane.f32.xlu0 %v4399
    %v4401 = vpop.xlane.xlu0 %4400
    %v4402 = vrcp.pop %v4398
    %v4403 = vmul.f32 %v4393, %v4402
    %v4404 = vrcp.pop %v4401
    %v4405 = vmul.f32 %v4395, %v4404
    %4406 = vrot.lane.b32.xlu0 %v2860, 104
    %v4407 = vpop.permute.xlu0 %4406
    %4408 = vrot.lane.b32.xlu0 %v2865, 104
    %v4409 = vpop.permute.xlu0 %4408
    %v4410 = vsel %vm723, %v4407, 0
    %v4412 = vsel %vm723, %v4409, 0
    %v4415 = vsel %vm723, %v4403, 0
    %4417 = vmatprep.subr.mxu0 0.0
    %4418 = vmatpush1.xpose.msra.mxu0 %v4415
    %4419 = vmatprep.subr.mxu0 0.0
    %4420 = vmatpush1.xpose.msra.mxu0 0.0
    %4421 = vmatprep.subr.mxu0 0.0
    %4422 = vmatpush1.xpose.msra.mxu0 0.0
    %4423 = vmatprep.subr.mxu0 0.0
    %4424 = vmatpush1.xpose.msra.mxu0 0.0
    %4425 = vmatprep.subr.mxu0 0.0
    %4426 = vmatpush1.xpose.msra.mxu0 0.0
    %4427 = vmatprep.subr.mxu0 0.0
    %4428 = vmatpush1.xpose.msra.mxu0 0.0
    %4429 = vmatprep.subr.mxu0 0.0
    %4430 = vmatpush1.xpose.msra.mxu0 0.0
    %4431 = vmatprep.subr.mxu0 0.0
    %4432 = vmatpush1.xpose.msra.mxu0 0.0
    %4433 = vmatprep.subr.mxu0 0.0
    %4434 = vmatpush1.xpose.msra.mxu0 0.0
    %4435 = vmatprep.subr.mxu0 0.0
    %4436 = vmatpush1.xpose.msra.mxu0 0.0
    %4437 = vmatprep.subr.mxu0 0.0
    %4438 = vmatpush1.xpose.msra.mxu0 0.0
    %4439 = vmatprep.subr.mxu0 0.0
    %4440 = vmatpush1.xpose.msra.mxu0 0.0
    %4441 = vmatprep.subr.mxu0 0.0
    %4442 = vmatpush1.xpose.msra.mxu0 0.0
    %4443 = vmatprep.subr.mxu0 0.0
    %4444 = vmatpush1.xpose.msra.mxu0 0.0
    %4445 = vmatprep.subr.mxu0 0.0
    %4446 = vmatpush1.xpose.msra.mxu0 0.0
    %4447 = vmatprep.subr.mxu0 0.0
    %4448 = vmatpush1.xpose.msra.mxu0 0.0
    %4449 = vmatprep.subr.mxu0 0.0
    %4450 = vmatpush1.xpose.msra.mxu0 0.0
    %4451 = vmatprep.subr.mxu0 0.0
    %4452 = vmatpush1.xpose.msra.mxu0 0.0
    %4453 = vmatprep.subr.mxu0 0.0
    %4454 = vmatpush1.xpose.msra.mxu0 0.0
    %4455 = vmatprep.subr.mxu0 0.0
    %4456 = vmatpush1.xpose.msra.mxu0 0.0
    %4457 = vmatprep.subr.mxu0 0.0
    %4458 = vmatpush1.xpose.msra.mxu0 0.0
    %4459 = vmatprep.subr.mxu0 0.0
    %4460 = vmatpush1.xpose.msra.mxu0 0.0
    %4461 = vmatprep.subr.mxu0 0.0
    %4462 = vmatpush1.xpose.msra.mxu0 0.0
    %4463 = vmatprep.subr.mxu0 0.0
    %4464 = vmatpush1.xpose.msra.mxu0 0.0
    %4465 = vmatprep.subr.mxu0 0.0
    %4466 = vmatpush1.xpose.msra.mxu0 0.0
    %4467 = vmatprep.subr.mxu0 0.0
    %4468 = vmatpush1.xpose.msra.mxu0 0.0
    %4469 = vmatprep.subr.mxu0 0.0
    %4470 = vmatpush1.xpose.msra.mxu0 0.0
    %4471 = vmatprep.subr.mxu0 0.0
    %4472 = vmatpush1.xpose.msra.mxu0 0.0
    %4473 = vmatprep.subr.mxu0 0.0
    %4474 = vmatpush1.xpose.msra.mxu0 0.0
    %4475 = vmatprep.subr.mxu0 0.0
    %4476 = vmatpush1.xpose.msra.mxu0 0.0
    %4477 = vmatprep.subr.mxu0 0.0
    %4478 = vmatpush1.xpose.msra.mxu0 0.0
    %4479 = vmatprep.subr.mxu0 0.0
    %4480 = vmatpush1.xpose.msra.mxu0 0.0
    %4481 = vmatprep.mubr.f32.mxu0 0.0
    %4482 = vmatmul.mubr.f32.gmra.mrb[0].mxu0 %v4410
    %v4483 = vpop.f32.mrb[0].mxu0
    %v4484 = vadd.f32 0.0, %v4483
    %v4485 = vpop.f32.mrb[0].mxu0
    %4486 = vmatprep.mubr.f32.mxu0 0.0
    %4487 = vmatmul.mubr.f32.gmra.mrb[0].mxu0 %v4412
    %v4488 = vpop.f32.mrb[0].mxu0
    %v4489 = vadd.f32 0.0, %v4488
    %v4490 = vpop.f32.mrb[0].mxu0
    %4491 = vdwg.mxu0
    %4492 = vrot.lane.b32.xlu0 %v2870, 104
    %v4493 = vpop.permute.xlu0 %4492
    %4494 = vrot.lane.b32.xlu0 %v2875, 104
    %v4495 = vpop.permute.xlu0 %4494
    %v4496 = vsel %vm723, %v4493, 0
    %v4498 = vsel %vm723, %v4495, 0
    %v4501 = vsel %vm723, %v4405, 0
    %4503 = vmatprep.subr.mxu0 0.0
    %4504 = vmatpush1.xpose.msra.mxu0 %v4501
    %4505 = vmatprep.subr.mxu0 0.0
    %4506 = vmatpush1.xpose.msra.mxu0 0.0
    %4507 = vmatprep.subr.mxu0 0.0
    %4508 = vmatpush1.xpose.msra.mxu0 0.0
    %4509 = vmatprep.subr.mxu0 0.0
    %4510 = vmatpush1.xpose.msra.mxu0 0.0
    %4511 = vmatprep.subr.mxu0 0.0
    %4512 = vmatpush1.xpose.msra.mxu0 0.0
    %4513 = vmatprep.subr.mxu0 0.0
    %4514 = vmatpush1.xpose.msra.mxu0 0.0
    %4515 = vmatprep.subr.mxu0 0.0
    %4516 = vmatpush1.xpose.msra.mxu0 0.0
    %4517 = vmatprep.subr.mxu0 0.0
    %4518 = vmatpush1.xpose.msra.mxu0 0.0
    %4519 = vmatprep.subr.mxu0 0.0
    %4520 = vmatpush1.xpose.msra.mxu0 0.0
    %4521 = vmatprep.subr.mxu0 0.0
    %4522 = vmatpush1.xpose.msra.mxu0 0.0
    %4523 = vmatprep.subr.mxu0 0.0
    %4524 = vmatpush1.xpose.msra.mxu0 0.0
    %4525 = vmatprep.subr.mxu0 0.0
    %4526 = vmatpush1.xpose.msra.mxu0 0.0
    %4527 = vmatprep.subr.mxu0 0.0
    %4528 = vmatpush1.xpose.msra.mxu0 0.0
    %4529 = vmatprep.subr.mxu0 0.0
    %4530 = vmatpush1.xpose.msra.mxu0 0.0
    %4531 = vmatprep.subr.mxu0 0.0
    %4532 = vmatpush1.xpose.msra.mxu0 0.0
    %4533 = vmatprep.subr.mxu0 0.0
    %4534 = vmatpush1.xpose.msra.mxu0 0.0
    %4535 = vmatprep.subr.mxu0 0.0
    %4536 = vmatpush1.xpose.msra.mxu0 0.0
    %4537 = vmatprep.subr.mxu0 0.0
    %4538 = vmatpush1.xpose.msra.mxu0 0.0
    %4539 = vmatprep.subr.mxu0 0.0
    %4540 = vmatpush1.xpose.msra.mxu0 0.0
    %4541 = vmatprep.subr.mxu0 0.0
    %4542 = vmatpush1.xpose.msra.mxu0 0.0
    %4543 = vmatprep.subr.mxu0 0.0
    %4544 = vmatpush1.xpose.msra.mxu0 0.0
    %4545 = vmatprep.subr.mxu0 0.0
    %4546 = vmatpush1.xpose.msra.mxu0 0.0
    %4547 = vmatprep.subr.mxu0 0.0
    %4548 = vmatpush1.xpose.msra.mxu0 0.0
    %4549 = vmatprep.subr.mxu0 0.0
    %4550 = vmatpush1.xpose.msra.mxu0 0.0
    %4551 = vmatprep.subr.mxu0 0.0
    %4552 = vmatpush1.xpose.msra.mxu0 0.0
    %4553 = vmatprep.subr.mxu0 0.0
    %4554 = vmatpush1.xpose.msra.mxu0 0.0
    %4555 = vmatprep.subr.mxu0 0.0
    %4556 = vmatpush1.xpose.msra.mxu0 0.0
    %4557 = vmatprep.subr.mxu0 0.0
    %4558 = vmatpush1.xpose.msra.mxu0 0.0
    %4559 = vmatprep.subr.mxu0 0.0
    %4560 = vmatpush1.xpose.msra.mxu0 0.0
    %4561 = vmatprep.subr.mxu0 0.0
    %4562 = vmatpush1.xpose.msra.mxu0 0.0
    %4563 = vmatprep.subr.mxu0 0.0
    %4564 = vmatpush1.xpose.msra.mxu0 0.0
    %4565 = vmatprep.subr.mxu0 0.0
    %4566 = vmatpush1.xpose.msra.mxu0 0.0
    %4567 = vmatprep.mubr.f32.mxu0 0.0
    %4568 = vmatmul.mubr.f32.gmra.mrb[0].mxu0 %v4496
    %v4569 = vpop.f32.mrb[0].mxu0
    %v4570 = vadd.f32 0.0, %v4569
    %v4571 = vpop.f32.mrb[0].mxu0
    %4572 = vmatprep.mubr.f32.mxu0 0.0
    %4573 = vmatmul.mubr.f32.gmra.mrb[0].mxu0 %v4498
    %v4574 = vpop.f32.mrb[0].mxu0
    %v4575 = vadd.f32 0.0, %v4574
    %v4576 = vpop.f32.mrb[0].mxu0
    %4577 = vdwg.mxu0
    %4582 = vrot.lane.b32.xlu0 %v3624, 8
    %v4583 = vpop.permute.xlu0 %4582
    %4584 = vrot.lane.b32.xlu0 %v3629, 8
    %v4585 = vpop.permute.xlu0 %4584
    %4586 = vrot.lane.b32.xlu0 %v3710, 8
    %v4587 = vpop.permute.xlu0 %4586
    %4588 = vrot.lane.b32.xlu0 %v3715, 8
    %v4589 = vpop.permute.xlu0 %4588
    %4598 = vrot.lane.b32.xlu0 %v4054, 16
    %v4599 = vpop.permute.xlu0 %4598
    %4600 = vrot.lane.b32.xlu0 %v4059, 16
    %v4601 = vpop.permute.xlu0 %4600
    %4602 = vrot.lane.b32.xlu0 %v4140, 16
    %v4603 = vpop.permute.xlu0 %4602
    %4604 = vrot.lane.b32.xlu0 %v4145, 16
    %v4605 = vpop.permute.xlu0 %4604
    %4614 = vrot.lane.b32.xlu0 %v4484, 24
    %v4615 = vpop.permute.xlu0 %4614
    %4616 = vrot.lane.b32.xlu0 %v4489, 24
    %v4617 = vpop.permute.xlu0 %4616
    %4618 = vrot.lane.b32.xlu0 %v4570, 24
    %v4619 = vpop.permute.xlu0 %4618
    %4620 = vrot.lane.b32.xlu0 %v4575, 24
    %v4621 = vpop.permute.xlu0 %4620
    %v4626 = vsel %vm723, %v3188, %v4583
    %v4627 = vsel %vm723, %v3193, %v4585
    %v4628 = vsel %vm723, %v3272, %v4587
    %v4629 = vsel %vm723, %v3277, %v4589
    %v4630 = vsel %vm916, %v4626, %v4599
    %v4631 = vsel %vm916, %v4627, %v4601
    %v4632 = vsel %vm916, %v4628, %v4603
    %v4633 = vsel %vm916, %v4629, %v4605
    %v4634 = vsel %vm2407, %v4630, %v4615
    %v4635 = vsel %vm2407, %v4631, %v4617
    %v4636 = vsel %vm2407, %v4632, %v4619
    %v4637 = vsel %vm2407, %v4633, %v4621
    %s4638 = scalar_lea.vmem [#allocation2], 256
    %v4639 = vld [vmem:[%s4638] sm:$0xff]
    %v4640 = vld [vmem:[%s4638 + $0x8] sm:$0xff]
    %v4641 = vld [vmem:[%s4638 + $0x10] sm:$0xff]
    %v4642 = vld [vmem:[%s4638 + $0x18] sm:$0xff]
    %v4643 = vld [vmem:[%s4 + $0xc] sm:$0x1]
    %v4644 = vlaneseq
    %v4645 = vshrl.u32 %v4644, 7
    %v4646 = vsub.s32 0, %v4645
    %v4647 = vrot.slane %v4643, %v4646
    %v4649 = vsel %vm64, %v4634, 0
    %v4652 = vsel %vm64, %v4635, 0
    %v4655 = vsel %vm64, %v4636, 0
    %v4658 = vsel %vm64, %v4637, 0
    %4660 = vmatprep.subr.mxu0 0.0
    %4661 = vmatpush1.msra.mxu0 %v4639
    %4662 = vmatprep.subr.mxu0 0.0
    %4663 = vmatpush1.msra.mxu0 %v4640
    %4664 = vmatprep.subr.mxu0 0.0
    %4665 = vmatpush1.msra.mxu0 %v4641
    %4666 = vmatprep.subr.mxu0 0.0
    %4667 = vmatpush1.msra.mxu0 %v4642
    %4668 = vmatprep.subr.mxu0 0.0
    %4669 = vmatpush1.msra.mxu0 0.0
    %4670 = vmatprep.subr.mxu0 0.0
    %4671 = vmatpush1.msra.mxu0 0.0
    %4672 = vmatprep.subr.mxu0 0.0
    %4673 = vmatpush1.msra.mxu0 0.0
    %4674 = vmatprep.subr.mxu0 0.0
    %4675 = vmatpush1.msra.mxu0 0.0
    %4676 = vmatprep.subr.mxu0 0.0
    %4677 = vmatpush1.msra.mxu0 0.0
    %4678 = vmatprep.subr.mxu0 0.0
    %4679 = vmatpush1.msra.mxu0 0.0
    %4680 = vmatprep.subr.mxu0 0.0
    %4681 = vmatpush1.msra.mxu0 0.0
    %4682 = vmatprep.subr.mxu0 0.0
    %4683 = vmatpush1.msra.mxu0 0.0
    %4684 = vmatprep.subr.mxu0 0.0
    %4685 = vmatpush1.msra.mxu0 0.0
    %4686 = vmatprep.subr.mxu0 0.0
    %4687 = vmatpush1.msra.mxu0 0.0
    %4688 = vmatprep.subr.mxu0 0.0
    %4689 = vmatpush1.msra.mxu0 0.0
    %4690 = vmatprep.subr.mxu0 0.0
    %4691 = vmatpush1.msra.mxu0 0.0
    %4692 = vmatprep.subr.mxu0 0.0
    %4693 = vmatpush1.msra.mxu0 0.0
    %4694 = vmatprep.subr.mxu0 0.0
    %4695 = vmatpush1.msra.mxu0 0.0
    %4696 = vmatprep.subr.mxu0 0.0
    %4697 = vmatpush1.msra.mxu0 0.0
    %4698 = vmatprep.subr.mxu0 0.0
    %4699 = vmatpush1.msra.mxu0 0.0
    %4700 = vmatprep.subr.mxu0 0.0
    %4701 = vmatpush1.msra.mxu0 0.0
    %4702 = vmatprep.subr.mxu0 0.0
    %4703 = vmatpush1.msra.mxu0 0.0
    %4704 = vmatprep.subr.mxu0 0.0
    %4705 = vmatpush1.msra.mxu0 0.0
    %4706 = vmatprep.subr.mxu0 0.0
    %4707 = vmatpush1.msra.mxu0 0.0
    %4708 = vmatprep.subr.mxu0 0.0
    %4709 = vmatpush1.msra.mxu0 0.0
    %4710 = vmatprep.subr.mxu0 0.0
    %4711 = vmatpush1.msra.mxu0 0.0
    %4712 = vmatprep.subr.mxu0 0.0
    %4713 = vmatpush1.msra.mxu0 0.0
    %4714 = vmatprep.subr.mxu0 0.0
    %4715 = vmatpush1.msra.mxu0 0.0
    %4716 = vmatprep.subr.mxu0 0.0
    %4717 = vmatpush1.msra.mxu0 0.0
    %4718 = vmatprep.subr.mxu0 0.0
    %4719 = vmatpush1.msra.mxu0 0.0
    %4720 = vmatprep.subr.mxu0 0.0
    %4721 = vmatpush1.msra.mxu0 0.0
    %4722 = vmatprep.subr.mxu0 0.0
    %4723 = vmatpush1.msra.mxu0 0.0
    %4724 = vmatprep.mubr.f32.mxu0 0.0
    %4725 = vmatmul.mubr.f32.gmra.mrb[0].mxu0 %v4649
    %v4726 = vpop.f32.mrb[0].mxu0
    %v4727 = vadd.f32 %v4647, %v4726
    %v4728 = vpop.f32.mrb[0].mxu0
    %4729 = vmatprep.mubr.f32.mxu0 0.0
    %4730 = vmatmul.mubr.f32.gmra.mrb[0].mxu0 %v4652
    %v4731 = vpop.f32.mrb[0].mxu0
    %v4732 = vadd.f32 %v4647, %v4731
    %v4733 = vpop.f32.mrb[0].mxu0
    %4734 = vmatprep.mubr.f32.mxu0 0.0
    %4735 = vmatmul.mubr.f32.gmra.mrb[0].mxu0 %v4655
    %v4736 = vpop.f32.mrb[0].mxu0
    %v4737 = vadd.f32 %v4647, %v4736
    %v4738 = vpop.f32.mrb[0].mxu0
    %4739 = vmatprep.mubr.f32.mxu0 0.0
    %4740 = vmatmul.mubr.f32.gmra.mrb[0].mxu0 %v4658
    %v4741 = vpop.f32.mrb[0].mxu0
    %v4742 = vadd.f32 %v4647, %v4741
    %v4743 = vpop.f32.mrb[0].mxu0
    %4744 = vdwg.mxu0
    %v4745 = vadd.f32 %v270, %v4727
    %v4746 = vadd.f32 %v271, %v4732
    %v4747 = vadd.f32 %v272, %v4737
    %v4748 = vadd.f32 %v273, %v4742
    %v4749 = vld [vmem:[%s4 + $0xd] sm:$0x1]
    %v4750 = vld [vmem:[%s4 + $0xe] sm:$0x1]
    %v4751 = vsel %vm64, %v4745, 0.0
    %4752 = vadd.xlane.f32.xlu0 %v4751
    %v4753 = vpop.xlane.xlu0 %4752
    %v4754 = vsel %vm64, %v4746, 0.0
    %4755 = vadd.xlane.f32.xlu0 %v4754
    %v4756 = vpop.xlane.xlu0 %4755
    %v4757 = vsel %vm64, %v4747, 0.0
    %4758 = vadd.xlane.f32.xlu0 %v4757
    %v4759 = vpop.xlane.xlu0 %4758
    %v4760 = vsel %vm64, %v4748, 0.0
    %4761 = vadd.xlane.f32.xlu0 %v4760
    %v4762 = vpop.xlane.xlu0 %4761
    %v4763 = vmul.f32 %v4753, %v205
    %v4764 = vmul.f32 %v4756, %v205
    %v4765 = vmul.f32 %v4759, %v205
    %v4766 = vmul.f32 %v4762, %v205
    %v4767 = vsub.f32 %v4745, %v4763
    %v4768 = vsub.f32 %v4746, %v4764
    %v4769 = vsub.f32 %v4747, %v4765
    %v4770 = vsub.f32 %v4748, %v4766
    %v4771 = vmul.f32 %v4767, %v4767
    %v4772 = vmul.f32 %v4768, %v4768
    %v4773 = vmul.f32 %v4769, %v4769
    %v4774 = vmul.f32 %v4770, %v4770
    %v4775 = vsel %vm64, %v4771, 0.0
    %4776 = vadd.xlane.f32.xlu0 %v4775
    %v4777 = vpop.xlane.xlu0 %4776
    %v4778 = vsel %vm64, %v4772, 0.0
    %4779 = vadd.xlane.f32.xlu0 %v4778
    %v4780 = vpop.xlane.xlu0 %4779
    %v4781 = vsel %vm64, %v4773, 0.0
    %4782 = vadd.xlane.f32.xlu0 %v4781
    %v4783 = vpop.xlane.xlu0 %4782
    %v4784 = vsel %vm64, %v4774, 0.0
    %4785 = vadd.xlane.f32.xlu0 %v4784
    %v4786 = vpop.xlane.xlu0 %4785
    %v4787 = vmul.f32 %v4777, %v205
    %v4788 = vmul.f32 %v4780, %v205
    %v4789 = vmul.f32 %v4783, %v205
    %v4790 = vmul.f32 %v4786, %v205
    %v4791 = vadd.f32 %v4787, 1e-05
    %v4792 = vadd.f32 %v4788, 1e-05
    %v4793 = vadd.f32 %v4789, 1e-05
    %v4794 = vadd.f32 %v4790, 1e-05
    %v4795 = vrsqrt.pop %v4791
    %v4796 = vrsqrt.pop %v4792
    %v4797 = vrsqrt.pop %v4793
    %v4798 = vrsqrt.pop %v4794
    %v4799 = vmul.f32 %v4767, %v4795
    %v4800 = vmul.f32 %v4768, %v4796
    %v4801 = vmul.f32 %v4769, %v4797
    %v4802 = vmul.f32 %v4770, %v4798
    %v4803 = vlaneseq
    %v4804 = vshrl.u32 %v4803, 7
    %v4805 = vsub.s32 0, %v4804
    %v4806 = vrot.slane %v4749, %v4805
    %v4807 = vmul.f32 %v4799, %v4806
    %v4808 = vmul.f32 %v4800, %v4806
    %v4809 = vmul.f32 %v4801, %v4806
    %v4810 = vmul.f32 %v4802, %v4806
    %v4811 = vlaneseq
    %v4812 = vshrl.u32 %v4811, 7
    %v4813 = vsub.s32 0, %v4812
    %v4814 = vrot.slane %v4750, %v4813
    %v4815 = vadd.f32 %v4807, %v4814
    %v4816 = vadd.f32 %v4808, %v4814
    %v4817 = vadd.f32 %v4809, %v4814
    %v4818 = vadd.f32 %v4810, %v4814
    %v4819 = vadd.f32 %v270, %v2589
    %v4820 = vadd.f32 %v271, %v2590
    %v4821 = vadd.f32 %v272, %v2591
    %v4822 = vadd.f32 %v273, %v2592
    %v4823 = vadd.f32 %v4819, %v4815
    %v4824 = vadd.f32 %v4820, %v4816
    %v4825 = vadd.f32 %v4821, %v4817
    %v4826 = vadd.f32 %v4822, %v4818
    %v4827 = vld [vmem:[%s4 + $0xf] sm:$0x1]
    %v4828 = vld [vmem:[%s4 + $0x10] sm:$0x1]
    %v4829 = vsel %vm64, %v4823, 0.0
    %4830 = vadd.xlane.f32.xlu0 %v4829
    %v4831 = vpop.xlane.xlu0 %4830
    %v4832 = vsel %vm64, %v4824, 0.0
    %4833 = vadd.xlane.f32.xlu0 %v4832
    %v4834 = vpop.xlane.xlu0 %4833
    %v4835 = vsel %vm64, %v4825, 0.0
    %4836 = vadd.xlane.f32.xlu0 %v4835
    %v4837 = vpop.xlane.xlu0 %4836
    %v4838 = vsel %vm64, %v4826, 0.0
    %4839 = vadd.xlane.f32.xlu0 %v4838
    %v4840 = vpop.xlane.xlu0 %4839
    %v4841 = vmul.f32 %v4831, %v205
    %v4842 = vmul.f32 %v4834, %v205
    %v4843 = vmul.f32 %v4837, %v205
    %v4844 = vmul.f32 %v4840, %v205
    %v4845 = vsub.f32 %v4823, %v4841
    %v4846 = vsub.f32 %v4824, %v4842
    %v4847 = vsub.f32 %v4825, %v4843
    %v4848 = vsub.f32 %v4826, %v4844
    %v4849 = vmul.f32 %v4845, %v4845
    %v4850 = vmul.f32 %v4846, %v4846
    %v4851 = vmul.f32 %v4847, %v4847
    %v4852 = vmul.f32 %v4848, %v4848
    %v4853 = vsel %vm64, %v4849, 0.0
    %4854 = vadd.xlane.f32.xlu0 %v4853
    %v4855 = vpop.xlane.xlu0 %4854
    %v4856 = vsel %vm64, %v4850, 0.0
    %4857 = vadd.xlane.f32.xlu0 %v4856
    %v4858 = vpop.xlane.xlu0 %4857
    %v4859 = vsel %vm64, %v4851, 0.0
    %4860 = vadd.xlane.f32.xlu0 %v4859
    %v4861 = vpop.xlane.xlu0 %4860
    %v4862 = vsel %vm64, %v4852, 0.0
    %4863 = vadd.xlane.f32.xlu0 %v4862
    %v4864 = vpop.xlane.xlu0 %4863
    %v4865 = vmul.f32 %v4855, %v205
    %v4866 = vmul.f32 %v4858, %v205
    %v4867 = vmul.f32 %v4861, %v205
    %v4868 = vmul.f32 %v4864, %v205
    %v4869 = vadd.f32 %v4865, 1e-05
    %v4870 = vadd.f32 %v4866, 1e-05
    %v4871 = vadd.f32 %v4867, 1e-05
    %v4872 = vadd.f32 %v4868, 1e-05
    %v4873 = vrsqrt.pop %v4869
    %v4874 = vrsqrt.pop %v4870
    %v4875 = vrsqrt.pop %v4871
    %v4876 = vrsqrt.pop %v4872
    %v4877 = vmul.f32 %v4845, %v4873
    %v4878 = vmul.f32 %v4846, %v4874
    %v4879 = vmul.f32 %v4847, %v4875
    %v4880 = vmul.f32 %v4848, %v4876
    %v4881 = vlaneseq
    %v4882 = vshrl.u32 %v4881, 7
    %v4883 = vsub.s32 0, %v4882
    %v4884 = vrot.slane %v4827, %v4883
    %v4885 = vmul.f32 %v4877, %v4884
    %v4886 = vmul.f32 %v4878, %v4884
    %v4887 = vmul.f32 %v4879, %v4884
    %v4888 = vmul.f32 %v4880, %v4884
    %v4889 = vlaneseq
    %v4890 = vshrl.u32 %v4889, 7
    %v4891 = vsub.s32 0, %v4890
    %v4892 = vrot.slane %v4828, %v4891
    %v4893 = vadd.f32 %v4885, %v4892
    %v4894 = vadd.f32 %v4886, %v4892
    %v4895 = vadd.f32 %v4887, %v4892
    %v4896 = vadd.f32 %v4888, %v4892
    %v4897 = vld [vmem:[#allocation5] sm:$0xff]
    %v4898 = vld [vmem:[#allocation5 + $0x8] sm:$0xff]
    %v4899 = vld [vmem:[#allocation5 + $0x10] sm:$0xff]
    %v4900 = vld [vmem:[#allocation5 + $0x18] sm:$0xff]
    %v4901 = vld [vmem:[%s5] sm:$0x1]
    %v4902 = vlaneseq
    %v4903 = vshrl.u32 %v4902, 7
    %v4904 = vsub.s32 0, %v4903
    %v4905 = vrot.slane %v4901, %v4904
    %v4907 = vsel %vm64, %v4893, 0
    %v4910 = vsel %vm64, %v4894, 0
    %v4913 = vsel %vm64, %v4895, 0
    %v4916 = vsel %vm64, %v4896, 0
    %4918 = vmatprep.subr.mxu0 0.0
    %4919 = vmatpush1.msra.mxu0 %v4897
    %4920 = vmatprep.subr.mxu0 0.0
    %4921 = vmatpush1.msra.mxu0 %v4898
    %4922 = vmatprep.subr.mxu0 0.0
    %4923 = vmatpush1.msra.mxu0 %v4899
    %4924 = vmatprep.subr.mxu0 0.0
    %4925 = vmatpush1.msra.mxu0 %v4900
    %4926 = vmatprep.subr.mxu0 0.0
    %4927 = vmatpush1.msra.mxu0 0.0
    %4928 = vmatprep.subr.mxu0 0.0
    %4929 = vmatpush1.msra.mxu0 0.0
    %4930 = vmatprep.subr.mxu0 0.0
    %4931 = vmatpush1.msra.mxu0 0.0
    %4932 = vmatprep.subr.mxu0 0.0
    %4933 = vmatpush1.msra.mxu0 0.0
    %4934 = vmatprep.subr.mxu0 0.0
    %4935 = vmatpush1.msra.mxu0 0.0
    %4936 = vmatprep.subr.mxu0 0.0
    %4937 = vmatpush1.msra.mxu0 0.0
    %4938 = vmatprep.subr.mxu0 0.0
    %4939 = vmatpush1.msra.mxu0 0.0
    %4940 = vmatprep.subr.mxu0 0.0
    %4941 = vmatpush1.msra.mxu0 0.0
    %4942 = vmatprep.subr.mxu0 0.0
    %4943 = vmatpush1.msra.mxu0 0.0
    %4944 = vmatprep.subr.mxu0 0.0
    %4945 = vmatpush1.msra.mxu0 0.0
    %4946 = vmatprep.subr.mxu0 0.0
    %4947 = vmatpush1.msra.mxu0 0.0
    %4948 = vmatprep.subr.mxu0 0.0
    %4949 = vmatpush1.msra.mxu0 0.0
    %4950 = vmatprep.subr.mxu0 0.0
    %4951 = vmatpush1.msra.mxu0 0.0
    %4952 = vmatprep.subr.mxu0 0.0
    %4953 = vmatpush1.msra.mxu0 0.0
    %4954 = vmatprep.subr.mxu0 0.0
    %4955 = vmatpush1.msra.mxu0 0.0
    %4956 = vmatprep.subr.mxu0 0.0
    %4957 = vmatpush1.msra.mxu0 0.0
    %4958 = vmatprep.subr.mxu0 0.0
    %4959 = vmatpush1.msra.mxu0 0.0
    %4960 = vmatprep.subr.mxu0 0.0
    %4961 = vmatpush1.msra.mxu0 0.0
    %4962 = vmatprep.subr.mxu0 0.0
    %4963 = vmatpush1.msra.mxu0 0.0
    %4964 = vmatprep.subr.mxu0 0.0
    %4965 = vmatpush1.msra.mxu0 0.0
    %4966 = vmatprep.subr.mxu0 0.0
    %4967 = vmatpush1.msra.mxu0 0.0
    %4968 = vmatprep.subr.mxu0 0.0
    %4969 = vmatpush1.msra.mxu0 0.0
    %4970 = vmatprep.subr.mxu0 0.0
    %4971 = vmatpush1.msra.mxu0 0.0
    %4972 = vmatprep.subr.mxu0 0.0
    %4973 = vmatpush1.msra.mxu0 0.0
    %4974 = vmatprep.subr.mxu0 0.0
    %4975 = vmatpush1.msra.mxu0 0.0
    %4976 = vmatprep.subr.mxu0 0.0
    %4977 = vmatpush1.msra.mxu0 0.0
    %4978 = vmatprep.subr.mxu0 0.0
    %4979 = vmatpush1.msra.mxu0 0.0
    %4980 = vmatprep.subr.mxu0 0.0
    %4981 = vmatpush1.msra.mxu0 0.0
    %4982 = vmatprep.mubr.f32.mxu0 0.0
    %4983 = vmatmul.mubr.f32.gmra.mrb[0].mxu0 %v4907
    %v4984 = vpop.f32.mrb[0].mxu0
    %v4985 = vadd.f32 %v4905, %v4984
    %v4986 = vpop.f32.mrb[0].mxu0
    %4987 = vmatprep.mubr.f32.mxu0 0.0
    %4988 = vmatmul.mubr.f32.gmra.mrb[0].mxu0 %v4910
    %v4989 = vpop.f32.mrb[0].mxu0
    %v4990 = vadd.f32 %v4905, %v4989
    %v4991 = vpop.f32.mrb[0].mxu0
    %4992 = vmatprep.mubr.f32.mxu0 0.0
    %4993 = vmatmul.mubr.f32.gmra.mrb[0].mxu0 %v4913
    %v4994 = vpop.f32.mrb[0].mxu0
    %v4995 = vadd.f32 %v4905, %v4994
    %v4996 = vpop.f32.mrb[0].mxu0
    %4997 = vmatprep.mubr.f32.mxu0 0.0
    %4998 = vmatmul.mubr.f32.gmra.mrb[0].mxu0 %v4916
    %v4999 = vpop.f32.mrb[0].mxu0
    %v5000 = vadd.f32 %v4905, %v4999
    %v5001 = vpop.f32.mrb[0].mxu0
    %5002 = vdwg.mxu0
    %v5003 = vmax.f32 %v4985, 0.0
    %v5004 = vmax.f32 %v4990, 0.0
    %v5005 = vmax.f32 %v4995, 0.0
    %v5006 = vmax.f32 %v5000, 0.0
    %s5007 = scalar_lea.vmem [#allocation5], 32
    %v5008 = vld [vmem:[%s5007] sm:$0xff]
    %v5009 = vld [vmem:[%s5007 + $0x8] sm:$0xff]
    %v5010 = vld [vmem:[%s5007 + $0x10] sm:$0xff]
    %v5011 = vld [vmem:[%s5007 + $0x18] sm:$0xff]
    %v5012 = vld [vmem:[%s4 + $0x11] sm:$0x1]
    %v5013 = vlaneseq
    %v5014 = vshrl.u32 %v5013, 7
    %v5015 = vsub.s32 0, %v5014
    %v5016 = vrot.slane %v5012, %v5015
    %vm5017 = vcmask 523264
    %v5019 = vsel %vm5017, %v5003, 0
    %v5022 = vsel %vm5017, %v5004, 0
    %v5025 = vsel %vm5017, %v5005, 0
    %v5028 = vsel %vm5017, %v5006, 0
    %v5031 = vsel %vm5017, %v5008, 0
    %v5034 = vsel %vm5017, %v5009, 0
    %v5037 = vsel %vm5017, %v5010, 0
    %v5040 = vsel %vm5017, %v5011, 0
    %5042 = vmatprep.subr.mxu0 0.0
    %5043 = vmatpush1.xpose.msra.mxu0 %v5031
    %5044 = vmatprep.subr.mxu0 0.0
    %5045 = vmatpush1.xpose.msra.mxu0 %v5034
    %5046 = vmatprep.subr.mxu0 0.0
    %5047 = vmatpush1.xpose.msra.mxu0 %v5037
    %5048 = vmatprep.subr.mxu0 0.0
    %5049 = vmatpush1.xpose.msra.mxu0 %v5040
    %5050 = vmatprep.subr.mxu0 0.0
    %5051 = vmatpush1.xpose.msra.mxu0 0.0
    %5052 = vmatprep.subr.mxu0 0.0
    %5053 = vmatpush1.xpose.msra.mxu0 0.0
    %5054 = vmatprep.subr.mxu0 0.0
    %5055 = vmatpush1.xpose.msra.mxu0 0.0
    %5056 = vmatprep.subr.mxu0 0.0
    %5057 = vmatpush1.xpose.msra.mxu0 0.0
    %5058 = vmatprep.subr.mxu0 0.0
    %5059 = vmatpush1.xpose.msra.mxu0 0.0
    %5060 = vmatprep.subr.mxu0 0.0
    %5061 = vmatpush1.xpose.msra.mxu0 0.0
    %5062 = vmatprep.subr.mxu0 0.0
    %5063 = vmatpush1.xpose.msra.mxu0 0.0
    %5064 = vmatprep.subr.mxu0 0.0
    %5065 = vmatpush1.xpose.msra.mxu0 0.0
    %5066 = vmatprep.subr.mxu0 0.0
    %5067 = vmatpush1.xpose.msra.mxu0 0.0
    %5068 = vmatprep.subr.mxu0 0.0
    %5069 = vmatpush1.xpose.msra.mxu0 0.0
    %5070 = vmatprep.subr.mxu0 0.0
    %5071 = vmatpush1.xpose.msra.mxu0 0.0
    %5072 = vmatprep.subr.mxu0 0.0
    %5073 = vmatpush1.xpose.msra.mxu0 0.0
    %5074 = vmatprep.subr.mxu0 0.0
    %5075 = vmatpush1.xpose.msra.mxu0 0.0
    %5076 = vmatprep.subr.mxu0 0.0
    %5077 = vmatpush1.xpose.msra.mxu0 0.0
    %5078 = vmatprep.subr.mxu0 0.0
    %5079 = vmatpush1.xpose.msra.mxu0 0.0
    %5080 = vmatprep.subr.mxu0 0.0
    %5081 = vmatpush1.xpose.msra.mxu0 0.0
    %5082 = vmatprep.subr.mxu0 0.0
    %5083 = vmatpush1.xpose.msra.mxu0 0.0
    %5084 = vmatprep.subr.mxu0 0.0
    %5085 = vmatpush1.xpose.msra.mxu0 0.0
    %5086 = vmatprep.subr.mxu0 0.0
    %5087 = vmatpush1.xpose.msra.mxu0 0.0
    %5088 = vmatprep.subr.mxu0 0.0
    %5089 = vmatpush1.xpose.msra.mxu0 0.0
    %5090 = vmatprep.subr.mxu0 0.0
    %5091 = vmatpush1.xpose.msra.mxu0 0.0
    %5092 = vmatprep.subr.mxu0 0.0
    %5093 = vmatpush1.xpose.msra.mxu0 0.0
    %5094 = vmatprep.subr.mxu0 0.0
    %5095 = vmatpush1.xpose.msra.mxu0 0.0
    %5096 = vmatprep.subr.mxu0 0.0
    %5097 = vmatpush1.xpose.msra.mxu0 0.0
    %5098 = vmatprep.subr.mxu0 0.0
    %5099 = vmatpush1.xpose.msra.mxu0 0.0
    %5100 = vmatprep.subr.mxu0 0.0
    %5101 = vmatpush1.xpose.msra.mxu0 0.0
    %5102 = vmatprep.subr.mxu0 0.0
    %5103 = vmatpush1.xpose.msra.mxu0 0.0
    %5104 = vmatprep.subr.mxu0 0.0
    %5105 = vmatpush1.xpose.msra.mxu0 0.0
    %5106 = vmatprep.mubr.f32.mxu0 0.0
    %5107 = vmatmul.mubr.f32.gmra.mrb[0].mxu0 %v5019
    %v5108 = vpop.f32.mrb[0].mxu0
    %v5109 = vadd.f32 %v5016, %v5108
    %v5110 = vpop.f32.mrb[0].mxu0
    %5111 = vmatprep.mubr.f32.mxu0 0.0
    %5112 = vmatmul.mubr.f32.gmra.mrb[0].mxu0 %v5022
    %v5113 = vpop.f32.mrb[0].mxu0
    %v5114 = vadd.f32 %v5016, %v5113
    %v5115 = vpop.f32.mrb[0].mxu0
    %5116 = vmatprep.mubr.f32.mxu0 0.0
    %5117 = vmatmul.mubr.f32.gmra.mrb[0].mxu0 %v5025
    %v5118 = vpop.f32.mrb[0].mxu0
    %v5119 = vadd.f32 %v5016, %v5118
    %v5120 = vpop.f32.mrb[0].mxu0
    %5121 = vmatprep.mubr.f32.mxu0 0.0
    %5122 = vmatmul.mubr.f32.gmra.mrb[0].mxu0 %v5028
    %v5123 = vpop.f32.mrb[0].mxu0
    %v5124 = vadd.f32 %v5016, %v5123
    %v5125 = vpop.f32.mrb[0].mxu0
    %5126 = vdwg.mxu0
    %v5127 = vadd.f32 %v4893, %v5109
    %v5128 = vadd.f32 %v4894, %v5114
    %v5129 = vadd.f32 %v4895, %v5119
    %v5130 = vadd.f32 %v4896, %v5124
    %v5131 = vld [vmem:[%s4 + $0x12] sm:$0x1]
    %v5132 = vld [vmem:[%s4 + $0x13] sm:$0x1]
    %v5133 = vsel %vm64, %v5127, 0.0
    %5134 = vadd.xlane.f32.xlu0 %v5133
    %v5135 = vpop.xlane.xlu0 %5134
    %v5136 = vsel %vm64, %v5128, 0.0
    %5137 = vadd.xlane.f32.xlu0 %v5136
    %v5138 = vpop.xlane.xlu0 %5137
    %v5139 = vsel %vm64, %v5129, 0.0
    %5140 = vadd.xlane.f32.xlu0 %v5139
    %v5141 = vpop.xlane.xlu0 %5140
    %v5142 = vsel %vm64, %v5130, 0.0
    %5143 = vadd.xlane.f32.xlu0 %v5142
    %v5144 = vpop.xlane.xlu0 %5143
    %v5145 = vmul.f32 %v5135, %v205
    %v5146 = vmul.f32 %v5138, %v205
    %v5147 = vmul.f32 %v5141, %v205
    %v5148 = vmul.f32 %v5144, %v205
    %v5149 = vsub.f32 %v5127, %v5145
    %v5150 = vsub.f32 %v5128, %v5146
    %v5151 = vsub.f32 %v5129, %v5147
    %v5152 = vsub.f32 %v5130, %v5148
    %v5153 = vmul.f32 %v5149, %v5149
    %v5154 = vmul.f32 %v5150, %v5150
    %v5155 = vmul.f32 %v5151, %v5151
    %v5156 = vmul.f32 %v5152, %v5152
    %v5157 = vsel %vm64, %v5153, 0.0
    %5158 = vadd.xlane.f32.xlu0 %v5157
    %v5159 = vpop.xlane.xlu0 %5158
    %v5160 = vsel %vm64, %v5154, 0.0
    %5161 = vadd.xlane.f32.xlu0 %v5160
    %v5162 = vpop.xlane.xlu0 %5161
    %v5163 = vsel %vm64, %v5155, 0.0
    %5164 = vadd.xlane.f32.xlu0 %v5163
    %v5165 = vpop.xlane.xlu0 %5164
    %v5166 = vsel %vm64, %v5156, 0.0
    %5167 = vadd.xlane.f32.xlu0 %v5166
    %v5168 = vpop.xlane.xlu0 %5167
    %v5169 = vmul.f32 %v5159, %v205
    %v5170 = vmul.f32 %v5162, %v205
    %v5171 = vmul.f32 %v5165, %v205
    %v5172 = vmul.f32 %v5168, %v205
    %v5173 = vadd.f32 %v5169, 1e-05
    %v5174 = vadd.f32 %v5170, 1e-05
    %v5175 = vadd.f32 %v5171, 1e-05
    %v5176 = vadd.f32 %v5172, 1e-05
    %v5177 = vrsqrt.pop %v5173
    %v5178 = vrsqrt.pop %v5174
    %v5179 = vrsqrt.pop %v5175
    %v5180 = vrsqrt.pop %v5176
    %v5181 = vmul.f32 %v5149, %v5177
    %v5182 = vmul.f32 %v5150, %v5178
    %v5183 = vmul.f32 %v5151, %v5179
    %v5184 = vmul.f32 %v5152, %v5180
    %v5185 = vlaneseq
    %v5186 = vshrl.u32 %v5185, 7
    %v5187 = vsub.s32 0, %v5186
    %v5188 = vrot.slane %v5131, %v5187
    %v5189 = vmul.f32 %v5181, %v5188
    %v5190 = vmul.f32 %v5182, %v5188
    %v5191 = vmul.f32 %v5183, %v5188
    %v5192 = vmul.f32 %v5184, %v5188
    %v5193 = vlaneseq
    %v5194 = vshrl.u32 %v5193, 7
    %v5195 = vsub.s32 0, %v5194
    %v5196 = vrot.slane %v5132, %v5195
    %v5197 = vadd.f32 %v5189, %v5196
    %v5198 = vadd.f32 %v5190, %v5196
    %v5199 = vadd.f32 %v5191, %v5196
    %v5200 = vadd.f32 %v5192, %v5196
    %s5201 = scalar_lea.vmem [#allocation2], 288
    %v5202 = vld [vmem:[%s5201] sm:$0xff]
    %v5203 = vld [vmem:[%s5201 + $0x8] sm:$0xff]
    %v5204 = vld [vmem:[%s5201 + $0x10] sm:$0xff]
    %v5205 = vld [vmem:[%s5201 + $0x18] sm:$0xff]
    %v5206 = vld [vmem:[%s4 + $0x14] sm:$0x1]
    %v5207 = vlaneseq
    %v5208 = vshrl.u32 %v5207, 7
    %v5209 = vsub.s32 0, %v5208
    %v5210 = vrot.slane %v5206, %v5209
    %v5212 = vsel %vm64, %v5197, 0
    %v5215 = vsel %vm64, %v5198, 0
    %v5218 = vsel %vm64, %v5199, 0
    %v5221 = vsel %vm64, %v5200, 0
    %5223 = vmatprep.subr.mxu0 0.0
    %5224 = vmatpush1.msra.mxu0 %v5202
    %5225 = vmatprep.subr.mxu0 0.0
    %5226 = vmatpush1.msra.mxu0 %v5203
    %5227 = vmatprep.subr.mxu0 0.0
    %5228 = vmatpush1.msra.mxu0 %v5204
    %5229 = vmatprep.subr.mxu0 0.0
    %5230 = vmatpush1.msra.mxu0 %v5205
    %5231 = vmatprep.subr.mxu0 0.0
    %5232 = vmatpush1.msra.mxu0 0.0
    %5233 = vmatprep.subr.mxu0 0.0
    %5234 = vmatpush1.msra.mxu0 0.0
    %5235 = vmatprep.subr.mxu0 0.0
    %5236 = vmatpush1.msra.mxu0 0.0
    %5237 = vmatprep.subr.mxu0 0.0
    %5238 = vmatpush1.msra.mxu0 0.0
    %5239 = vmatprep.subr.mxu0 0.0
    %5240 = vmatpush1.msra.mxu0 0.0
    %5241 = vmatprep.subr.mxu0 0.0
    %5242 = vmatpush1.msra.mxu0 0.0
    %5243 = vmatprep.subr.mxu0 0.0
    %5244 = vmatpush1.msra.mxu0 0.0
    %5245 = vmatprep.subr.mxu0 0.0
    %5246 = vmatpush1.msra.mxu0 0.0
    %5247 = vmatprep.subr.mxu0 0.0
    %5248 = vmatpush1.msra.mxu0 0.0
    %5249 = vmatprep.subr.mxu0 0.0
    %5250 = vmatpush1.msra.mxu0 0.0
    %5251 = vmatprep.subr.mxu0 0.0
    %5252 = vmatpush1.msra.mxu0 0.0
    %5253 = vmatprep.subr.mxu0 0.0
    %5254 = vmatpush1.msra.mxu0 0.0
    %5255 = vmatprep.subr.mxu0 0.0
    %5256 = vmatpush1.msra.mxu0 0.0
    %5257 = vmatprep.subr.mxu0 0.0
    %5258 = vmatpush1.msra.mxu0 0.0
    %5259 = vmatprep.subr.mxu0 0.0
    %5260 = vmatpush1.msra.mxu0 0.0
    %5261 = vmatprep.subr.mxu0 0.0
    %5262 = vmatpush1.msra.mxu0 0.0
    %5263 = vmatprep.subr.mxu0 0.0
    %5264 = vmatpush1.msra.mxu0 0.0
    %5265 = vmatprep.subr.mxu0 0.0
    %5266 = vmatpush1.msra.mxu0 0.0
    %5267 = vmatprep.subr.mxu0 0.0
    %5268 = vmatpush1.msra.mxu0 0.0
    %5269 = vmatprep.subr.mxu0 0.0
    %5270 = vmatpush1.msra.mxu0 0.0
    %5271 = vmatprep.subr.mxu0 0.0
    %5272 = vmatpush1.msra.mxu0 0.0
    %5273 = vmatprep.subr.mxu0 0.0
    %5274 = vmatpush1.msra.mxu0 0.0
    %5275 = vmatprep.subr.mxu0 0.0
    %5276 = vmatpush1.msra.mxu0 0.0
    %5277 = vmatprep.subr.mxu0 0.0
    %5278 = vmatpush1.msra.mxu0 0.0
    %5279 = vmatprep.subr.mxu0 0.0
    %5280 = vmatpush1.msra.mxu0 0.0
    %5281 = vmatprep.subr.mxu0 0.0
    %5282 = vmatpush1.msra.mxu0 0.0
    %5283 = vmatprep.subr.mxu0 0.0
    %5284 = vmatpush1.msra.mxu0 0.0
    %5285 = vmatprep.subr.mxu0 0.0
    %5286 = vmatpush1.msra.mxu0 0.0
    %5287 = vmatprep.mubr.f32.mxu0 0.0
    %5288 = vmatmul.mubr.f32.gmra.mrb[0].mxu0 %v5212
    %v5289 = vpop.f32.mrb[0].mxu0
    %v5290 = vadd.f32 %v5210, %v5289
    %v5291 = vpop.f32.mrb[0].mxu0
    %5292 = vmatprep.mubr.f32.mxu0 0.0
    %5293 = vmatmul.mubr.f32.gmra.mrb[0].mxu0 %v5215
    %v5294 = vpop.f32.mrb[0].mxu0
    %v5295 = vadd.f32 %v5210, %v5294
    %v5296 = vpop.f32.mrb[0].mxu0
    %5297 = vmatprep.mubr.f32.mxu0 0.0
    %5298 = vmatmul.mubr.f32.gmra.mrb[0].mxu0 %v5218
    %v5299 = vpop.f32.mrb[0].mxu0
    %v5300 = vadd.f32 %v5210, %v5299
    %v5301 = vpop.f32.mrb[0].mxu0
    %5302 = vmatprep.mubr.f32.mxu0 0.0
    %5303 = vmatmul.mubr.f32.gmra.mrb[0].mxu0 %v5221
    %v5304 = vpop.f32.mrb[0].mxu0
    %v5305 = vadd.f32 %v5210, %v5304
    %v5306 = vpop.f32.mrb[0].mxu0
    %5307 = vdwg.mxu0
    %s5308 = scalar_lea.vmem [#allocation2], 320
    %v5309 = vld [vmem:[%s5308] sm:$0xff]
    %v5310 = vld [vmem:[%s5308 + $0x8] sm:$0xff]
    %v5311 = vld [vmem:[%s5308 + $0x10] sm:$0xff]
    %v5312 = vld [vmem:[%s5308 + $0x18] sm:$0xff]
    %v5313 = vld [vmem:[%s4 + $0x15] sm:$0x1]
    %v5314 = vlaneseq
    %v5315 = vshrl.u32 %v5314, 7
    %v5316 = vsub.s32 0, %v5315
    %v5317 = vrot.slane %v5313, %v5316
    %5318 = vmatprep.subr.mxu0 0.0
    %5319 = vmatpush1.msra.mxu0 %v5309
    %5320 = vmatprep.subr.mxu0 0.0
    %5321 = vmatpush1.msra.mxu0 %v5310
    %5322 = vmatprep.subr.mxu0 0.0
    %5323 = vmatpush1.msra.mxu0 %v5311
    %5324 = vmatprep.subr.mxu0 0.0
    %5325 = vmatpush1.msra.mxu0 %v5312
    %5326 = vmatprep.subr.mxu0 0.0
    %5327 = vmatpush1.msra.mxu0 0.0
    %5328 = vmatprep.subr.mxu0 0.0
    %5329 = vmatpush1.msra.mxu0 0.0
    %5330 = vmatprep.subr.mxu0 0.0
    %5331 = vmatpush1.msra.mxu0 0.0
    %5332 = vmatprep.subr.mxu0 0.0
    %5333 = vmatpush1.msra.mxu0 0.0
    %5334 = vmatprep.subr.mxu0 0.0
    %5335 = vmatpush1.msra.mxu0 0.0
    %5336 = vmatprep.subr.mxu0 0.0
    %5337 = vmatpush1.msra.mxu0 0.0
    %5338 = vmatprep.subr.mxu0 0.0
    %5339 = vmatpush1.msra.mxu0 0.0
    %5340 = vmatprep.subr.mxu0 0.0
    %5341 = vmatpush1.msra.mxu0 0.0
    %5342 = vmatprep.subr.mxu0 0.0
    %5343 = vmatpush1.msra.mxu0 0.0
    %5344 = vmatprep.subr.mxu0 0.0
    %5345 = vmatpush1.msra.mxu0 0.0
    %5346 = vmatprep.subr.mxu0 0.0
    %5347 = vmatpush1.msra.mxu0 0.0
    %5348 = vmatprep.subr.mxu0 0.0
    %5349 = vmatpush1.msra.mxu0 0.0
    %5350 = vmatprep.subr.mxu0 0.0
    %5351 = vmatpush1.msra.mxu0 0.0
    %5352 = vmatprep.subr.mxu0 0.0
    %5353 = vmatpush1.msra.mxu0 0.0
    %5354 = vmatprep.subr.mxu0 0.0
    %5355 = vmatpush1.msra.mxu0 0.0
    %5356 = vmatprep.subr.mxu0 0.0
    %5357 = vmatpush1.msra.mxu0 0.0
    %5358 = vmatprep.subr.mxu0 0.0
    %5359 = vmatpush1.msra.mxu0 0.0
    %5360 = vmatprep.subr.mxu0 0.0
    %5361 = vmatpush1.msra.mxu0 0.0
    %5362 = vmatprep.subr.mxu0 0.0
    %5363 = vmatpush1.msra.mxu0 0.0
    %5364 = vmatprep.subr.mxu0 0.0
    %5365 = vmatpush1.msra.mxu0 0.0
    %5366 = vmatprep.subr.mxu0 0.0
    %5367 = vmatpush1.msra.mxu0 0.0
    %5368 = vmatprep.subr.mxu0 0.0
    %5369 = vmatpush1.msra.mxu0 0.0
    %5370 = vmatprep.subr.mxu0 0.0
    %5371 = vmatpush1.msra.mxu0 0.0
    %5372 = vmatprep.subr.mxu0 0.0
    %5373 = vmatpush1.msra.mxu0 0.0
    %5374 = vmatprep.subr.mxu0 0.0
    %5375 = vmatpush1.msra.mxu0 0.0
    %5376 = vmatprep.subr.mxu0 0.0
    %5377 = vmatpush1.msra.mxu0 0.0
    %5378 = vmatprep.subr.mxu0 0.0
    %5379 = vmatpush1.msra.mxu0 0.0
    %5380 = vmatprep.subr.mxu0 0.0
    %5381 = vmatpush1.msra.mxu0 0.0
    %5382 = vmatprep.mubr.f32.mxu0 0.0
    %5383 = vmatmul.mubr.f32.gmra.mrb[0].mxu0 %v5212
    %v5384 = vpop.f32.mrb[0].mxu0
    %v5385 = vadd.f32 %v5317, %v5384
    %v5386 = vpop.f32.mrb[0].mxu0
    %5387 = vmatprep.mubr.f32.mxu0 0.0
    %5388 = vmatmul.mubr.f32.gmra.mrb[0].mxu0 %v5215
    %v5389 = vpop.f32.mrb[0].mxu0
    %v5390 = vadd.f32 %v5317, %v5389
    %v5391 = vpop.f32.mrb[0].mxu0
    %5392 = vmatprep.mubr.f32.mxu0 0.0
    %5393 = vmatmul.mubr.f32.gmra.mrb[0].mxu0 %v5218
    %v5394 = vpop.f32.mrb[0].mxu0
    %v5395 = vadd.f32 %v5317, %v5394
    %v5396 = vpop.f32.mrb[0].mxu0
    %5397 = vmatprep.mubr.f32.mxu0 0.0
    %5398 = vmatmul.mubr.f32.gmra.mrb[0].mxu0 %v5221
    %v5399 = vpop.f32.mrb[0].mxu0
    %v5400 = vadd.f32 %v5317, %v5399
    %v5401 = vpop.f32.mrb[0].mxu0
    %5402 = vdwg.mxu0
    %s5403 = scalar_lea.vmem [#allocation2], 352
    %v5404 = vld [vmem:[%s5403] sm:$0xff]
    %v5405 = vld [vmem:[%s5403 + $0x8] sm:$0xff]
    %v5406 = vld [vmem:[%s5403 + $0x10] sm:$0xff]
    %v5407 = vld [vmem:[%s5403 + $0x18] sm:$0xff]
    %v5408 = vld [vmem:[%s4 + $0x16] sm:$0x1]
    %v5409 = vlaneseq
    %v5410 = vshrl.u32 %v5409, 7
    %v5411 = vsub.s32 0, %v5410
    %v5412 = vrot.slane %v5408, %v5411
    %5413 = vmatprep.subr.mxu0 0.0
    %5414 = vmatpush1.msra.mxu0 %v5404
    %5415 = vmatprep.subr.mxu0 0.0
    %5416 = vmatpush1.msra.mxu0 %v5405
    %5417 = vmatprep.subr.mxu0 0.0
    %5418 = vmatpush1.msra.mxu0 %v5406
    %5419 = vmatprep.subr.mxu0 0.0
    %5420 = vmatpush1.msra.mxu0 %v5407
    %5421 = vmatprep.subr.mxu0 0.0
    %5422 = vmatpush1.msra.mxu0 0.0
    %5423 = vmatprep.subr.mxu0 0.0
    %5424 = vmatpush1.msra.mxu0 0.0
    %5425 = vmatprep.subr.mxu0 0.0
    %5426 = vmatpush1.msra.mxu0 0.0
    %5427 = vmatprep.subr.mxu0 0.0
    %5428 = vmatpush1.msra.mxu0 0.0
    %5429 = vmatprep.subr.mxu0 0.0
    %5430 = vmatpush1.msra.mxu0 0.0
    %5431 = vmatprep.subr.mxu0 0.0
    %5432 = vmatpush1.msra.mxu0 0.0
    %5433 = vmatprep.subr.mxu0 0.0
    %5434 = vmatpush1.msra.mxu0 0.0
    %5435 = vmatprep.subr.mxu0 0.0
    %5436 = vmatpush1.msra.mxu0 0.0
    %5437 = vmatprep.subr.mxu0 0.0
    %5438 = vmatpush1.msra.mxu0 0.0
    %5439 = vmatprep.subr.mxu0 0.0
    %5440 = vmatpush1.msra.mxu0 0.0
    %5441 = vmatprep.subr.mxu0 0.0
    %5442 = vmatpush1.msra.mxu0 0.0
    %5443 = vmatprep.subr.mxu0 0.0
    %5444 = vmatpush1.msra.mxu0 0.0
    %5445 = vmatprep.subr.mxu0 0.0
    %5446 = vmatpush1.msra.mxu0 0.0
    %5447 = vmatprep.subr.mxu0 0.0
    %5448 = vmatpush1.msra.mxu0 0.0
    %5449 = vmatprep.subr.mxu0 0.0
    %5450 = vmatpush1.msra.mxu0 0.0
    %5451 = vmatprep.subr.mxu0 0.0
    %5452 = vmatpush1.msra.mxu0 0.0
    %5453 = vmatprep.subr.mxu0 0.0
    %5454 = vmatpush1.msra.mxu0 0.0
    %5455 = vmatprep.subr.mxu0 0.0
    %5456 = vmatpush1.msra.mxu0 0.0
    %5457 = vmatprep.subr.mxu0 0.0
    %5458 = vmatpush1.msra.mxu0 0.0
    %5459 = vmatprep.subr.mxu0 0.0
    %5460 = vmatpush1.msra.mxu0 0.0
    %5461 = vmatprep.subr.mxu0 0.0
    %5462 = vmatpush1.msra.mxu0 0.0
    %5463 = vmatprep.subr.mxu0 0.0
    %5464 = vmatpush1.msra.mxu0 0.0
    %5465 = vmatprep.subr.mxu0 0.0
    %5466 = vmatpush1.msra.mxu0 0.0
    %5467 = vmatprep.subr.mxu0 0.0
    %5468 = vmatpush1.msra.mxu0 0.0
    %5469 = vmatprep.subr.mxu0 0.0
    %5470 = vmatpush1.msra.mxu0 0.0
    %5471 = vmatprep.subr.mxu0 0.0
    %5472 = vmatpush1.msra.mxu0 0.0
    %5473 = vmatprep.subr.mxu0 0.0
    %5474 = vmatpush1.msra.mxu0 0.0
    %5475 = vmatprep.subr.mxu0 0.0
    %5476 = vmatpush1.msra.mxu0 0.0
    %5477 = vmatprep.mubr.f32.mxu0 0.0
    %5478 = vmatmul.mubr.f32.gmra.mrb[0].mxu0 %v5212
    %v5479 = vpop.f32.mrb[0].mxu0
    %v5480 = vadd.f32 %v5412, %v5479
    %v5481 = vpop.f32.mrb[0].mxu0
    %5482 = vmatprep.mubr.f32.mxu0 0.0
    %5483 = vmatmul.mubr.f32.gmra.mrb[0].mxu0 %v5215
    %v5484 = vpop.f32.mrb[0].mxu0
    %v5485 = vadd.f32 %v5412, %v5484
    %v5486 = vpop.f32.mrb[0].mxu0
    %5487 = vmatprep.mubr.f32.mxu0 0.0
    %5488 = vmatmul.mubr.f32.gmra.mrb[0].mxu0 %v5218
    %v5489 = vpop.f32.mrb[0].mxu0
    %v5490 = vadd.f32 %v5412, %v5489
    %v5491 = vpop.f32.mrb[0].mxu0
    %5492 = vmatprep.mubr.f32.mxu0 0.0
    %5493 = vmatmul.mubr.f32.gmra.mrb[0].mxu0 %v5221
    %v5494 = vpop.f32.mrb[0].mxu0
    %v5495 = vadd.f32 %v5412, %v5494
    %v5496 = vpop.f32.mrb[0].mxu0
    %5497 = vdwg.mxu0
    %v5499 = vsel %vm723, %v5290, 0
    %v5502 = vsel %vm723, %v5295, 0
    %v5505 = vsel %vm723, %v5385, 0
    %v5508 = vsel %vm723, %v5390, 0
    %5510 = vmatprep.subr.mxu0 0.0
    %5511 = vmatpush1.xpose.msra.mxu0 %v5505
    %5512 = vmatprep.subr.mxu0 0.0
    %5513 = vmatpush1.xpose.msra.mxu0 %v5508
    %5514 = vmatprep.subr.mxu0 0.0
    %5515 = vmatpush1.xpose.msra.mxu0 0.0
    %5516 = vmatprep.subr.mxu0 0.0
    %5517 = vmatpush1.xpose.msra.mxu0 0.0
    %5518 = vmatprep.subr.mxu0 0.0
    %5519 = vmatpush1.xpose.msra.mxu0 0.0
    %5520 = vmatprep.subr.mxu0 0.0
    %5521 = vmatpush1.xpose.msra.mxu0 0.0
    %5522 = vmatprep.subr.mxu0 0.0
    %5523 = vmatpush1.xpose.msra.mxu0 0.0
    %5524 = vmatprep.subr.mxu0 0.0
    %5525 = vmatpush1.xpose.msra.mxu0 0.0
    %5526 = vmatprep.subr.mxu0 0.0
    %5527 = vmatpush1.xpose.msra.mxu0 0.0
    %5528 = vmatprep.subr.mxu0 0.0
    %5529 = vmatpush1.xpose.msra.mxu0 0.0
    %5530 = vmatprep.subr.mxu0 0.0
    %5531 = vmatpush1.xpose.msra.mxu0 0.0
    %5532 = vmatprep.subr.mxu0 0.0
    %5533 = vmatpush1.xpose.msra.mxu0 0.0
    %5534 = vmatprep.subr.mxu0 0.0
    %5535 = vmatpush1.xpose.msra.mxu0 0.0
    %5536 = vmatprep.subr.mxu0 0.0
    %5537 = vmatpush1.xpose.msra.mxu0 0.0
    %5538 = vmatprep.subr.mxu0 0.0
    %5539 = vmatpush1.xpose.msra.mxu0 0.0
    %5540 = vmatprep.subr.mxu0 0.0
    %5541 = vmatpush1.xpose.msra.mxu0 0.0
    %5542 = vmatprep.subr.mxu0 0.0
    %5543 = vmatpush1.xpose.msra.mxu0 0.0
    %5544 = vmatprep.subr.mxu0 0.0
    %5545 = vmatpush1.xpose.msra.mxu0 0.0
    %5546 = vmatprep.subr.mxu0 0.0
    %5547 = vmatpush1.xpose.msra.mxu0 0.0
    %5548 = vmatprep.subr.mxu0 0.0
    %5549 = vmatpush1.xpose.msra.mxu0 0.0
    %5550 = vmatprep.subr.mxu0 0.0
    %5551 = vmatpush1.xpose.msra.mxu0 0.0
    %5552 = vmatprep.subr.mxu0 0.0
    %5553 = vmatpush1.xpose.msra.mxu0 0.0
    %5554 = vmatprep.subr.mxu0 0.0
    %5555 = vmatpush1.xpose.msra.mxu0 0.0
    %5556 = vmatprep.subr.mxu0 0.0
    %5557 = vmatpush1.xpose.msra.mxu0 0.0
    %5558 = vmatprep.subr.mxu0 0.0
    %5559 = vmatpush1.xpose.msra.mxu0 0.0
    %5560 = vmatprep.subr.mxu0 0.0
    %5561 = vmatpush1.xpose.msra.mxu0 0.0
    %5562 = vmatprep.subr.mxu0 0.0
    %5563 = vmatpush1.xpose.msra.mxu0 0.0
    %5564 = vmatprep.subr.mxu0 0.0
    %5565 = vmatpush1.xpose.msra.mxu0 0.0
    %5566 = vmatprep.subr.mxu0 0.0
    %5567 = vmatpush1.xpose.msra.mxu0 0.0
    %5568 = vmatprep.subr.mxu0 0.0
    %5569 = vmatpush1.xpose.msra.mxu0 0.0
    %5570 = vmatprep.subr.mxu0 0.0
    %5571 = vmatpush1.xpose.msra.mxu0 0.0
    %5572 = vmatprep.subr.mxu0 0.0
    %5573 = vmatpush1.xpose.msra.mxu0 0.0
    %5574 = vmatprep.mubr.f32.mxu0 0.0
    %5575 = vmatmul.mubr.f32.gmra.mrb[0].mxu0 %v5499
    %v5576 = vpop.f32.mrb[0].mxu0
    %v5577 = vadd.f32 0.0, %v5576
    %v5578 = vpop.f32.mrb[0].mxu0
    %5579 = vmatprep.mubr.f32.mxu0 0.0
    %5580 = vmatmul.mubr.f32.gmra.mrb[0].mxu0 %v5502
    %v5581 = vpop.f32.mrb[0].mxu0
    %v5582 = vadd.f32 0.0, %v5581
    %v5583 = vpop.f32.mrb[0].mxu0
    %5584 = vdwg.mxu0
    %v5586 = vsel %vm723, %v5300, 0
    %v5589 = vsel %vm723, %v5305, 0
    %v5592 = vsel %vm723, %v5395, 0
    %v5595 = vsel %vm723, %v5400, 0
    %5597 = vmatprep.subr.mxu0 0.0
    %5598 = vmatpush1.xpose.msra.mxu0 %v5592
    %5599 = vmatprep.subr.mxu0 0.0
    %5600 = vmatpush1.xpose.msra.mxu0 %v5595
    %5601 = vmatprep.subr.mxu0 0.0
    %5602 = vmatpush1.xpose.msra.mxu0 0.0
    %5603 = vmatprep.subr.mxu0 0.0
    %5604 = vmatpush1.xpose.msra.mxu0 0.0
    %5605 = vmatprep.subr.mxu0 0.0
    %5606 = vmatpush1.xpose.msra.mxu0 0.0
    %5607 = vmatprep.subr.mxu0 0.0
    %5608 = vmatpush1.xpose.msra.mxu0 0.0
    %5609 = vmatprep.subr.mxu0 0.0
    %5610 = vmatpush1.xpose.msra.mxu0 0.0
    %5611 = vmatprep.subr.mxu0 0.0
    %5612 = vmatpush1.xpose.msra.mxu0 0.0
    %5613 = vmatprep.subr.mxu0 0.0
    %5614 = vmatpush1.xpose.msra.mxu0 0.0
    %5615 = vmatprep.subr.mxu0 0.0
    %5616 = vmatpush1.xpose.msra.mxu0 0.0
    %5617 = vmatprep.subr.mxu0 0.0
    %5618 = vmatpush1.xpose.msra.mxu0 0.0
    %5619 = vmatprep.subr.mxu0 0.0
    %5620 = vmatpush1.xpose.msra.mxu0 0.0
    %5621 = vmatprep.subr.mxu0 0.0
    %5622 = vmatpush1.xpose.msra.mxu0 0.0
    %5623 = vmatprep.subr.mxu0 0.0
    %5624 = vmatpush1.xpose.msra.mxu0 0.0
    %5625 = vmatprep.subr.mxu0 0.0
    %5626 = vmatpush1.xpose.msra.mxu0 0.0
    %5627 = vmatprep.subr.mxu0 0.0
    %5628 = vmatpush1.xpose.msra.mxu0 0.0
    %5629 = vmatprep.subr.mxu0 0.0
    %5630 = vmatpush1.xpose.msra.mxu0 0.0
    %5631 = vmatprep.subr.mxu0 0.0
    %5632 = vmatpush1.xpose.msra.mxu0 0.0
    %5633 = vmatprep.subr.mxu0 0.0
    %5634 = vmatpush1.xpose.msra.mxu0 0.0
    %5635 = vmatprep.subr.mxu0 0.0
    %5636 = vmatpush1.xpose.msra.mxu0 0.0
    %5637 = vmatprep.subr.mxu0 0.0
    %5638 = vmatpush1.xpose.msra.mxu0 0.0
    %5639 = vmatprep.subr.mxu0 0.0
    %5640 = vmatpush1.xpose.msra.mxu0 0.0
    %5641 = vmatprep.subr.mxu0 0.0
    %5642 = vmatpush1.xpose.msra.mxu0 0.0
    %5643 = vmatprep.subr.mxu0 0.0
    %5644 = vmatpush1.xpose.msra.mxu0 0.0
    %5645 = vmatprep.subr.mxu0 0.0
    %5646 = vmatpush1.xpose.msra.mxu0 0.0
    %5647 = vmatprep.subr.mxu0 0.0
    %5648 = vmatpush1.xpose.msra.mxu0 0.0
    %5649 = vmatprep.subr.mxu0 0.0
    %5650 = vmatpush1.xpose.msra.mxu0 0.0
    %5651 = vmatprep.subr.mxu0 0.0
    %5652 = vmatpush1.xpose.msra.mxu0 0.0
    %5653 = vmatprep.subr.mxu0 0.0
    %5654 = vmatpush1.xpose.msra.mxu0 0.0
    %5655 = vmatprep.subr.mxu0 0.0
    %5656 = vmatpush1.xpose.msra.mxu0 0.0
    %5657 = vmatprep.subr.mxu0 0.0
    %5658 = vmatpush1.xpose.msra.mxu0 0.0
    %5659 = vmatprep.subr.mxu0 0.0
    %5660 = vmatpush1.xpose.msra.mxu0 0.0
    %5661 = vmatprep.mubr.f32.mxu0 0.0
    %5662 = vmatmul.mubr.f32.gmra.mrb[0].mxu0 %v5586
    %v5663 = vpop.f32.mrb[0].mxu0
    %v5664 = vadd.f32 0.0, %v5663
    %v5665 = vpop.f32.mrb[0].mxu0
    %5666 = vmatprep.mubr.f32.mxu0 0.0
    %5667 = vmatmul.mubr.f32.gmra.mrb[0].mxu0 %v5589
    %v5668 = vpop.f32.mrb[0].mxu0
    %v5669 = vadd.f32 0.0, %v5668
    %v5670 = vpop.f32.mrb[0].mxu0
    %5671 = vdwg.mxu0
    %v5672 = vmul.f32 %v5577, 0.35355338
    %v5673 = vmul.f32 %v5582, 0.35355338
    %v5674 = vmul.f32 %v5664, 0.35355338
    %v5675 = vmul.f32 %v5669, 0.35355338
    %v5676 = vsel %vm910, -inf, %v5672
    %v5677 = vsel %vm910, -inf, %v5673
    %v5678 = vsel %vm911, -inf, %v5674
    %v5679 = vsel %vm911, -inf, %v5675
    %v5680 = vsel %vm916, %v5676, -inf
    %5681 = vmax.xlane.f32.xlu0 %v5680
    %v5682 = vpop.xlane.xlu0 %5681
    %v5683 = vsel %vm916, %v5677, -inf
    %5684 = vmax.xlane.f32.xlu0 %v5683
    %v5685 = vpop.xlane.xlu0 %5684
    %v5686 = vsel %vm916, %v5678, -inf
    %5687 = vmax.xlane.f32.xlu0 %v5686
    %v5688 = vpop.xlane.xlu0 %5687
    %v5689 = vsel %vm916, %v5679, -inf
    %5690 = vmax.xlane.f32.xlu0 %v5689
    %v5691 = vpop.xlane.xlu0 %5690
    %v5692 = vsub.f32 %v5676, %v5682
    %v5693 = vsub.f32 %v5677, %v5685
    %v5694 = vsub.f32 %v5678, %v5688
    %v5695 = vsub.f32 %v5679, %v5691
    %v5696 = vmul.f32 %v5692, 1.442695
    %v5697 = vpow.pop %v5696
    %v5698 = vmul.f32 %v5693, 1.442695
    %v5699 = vpow.pop %v5698
    %v5700 = vmul.f32 %v5694, 1.442695
    %v5701 = vpow.pop %v5700
    %v5702 = vmul.f32 %v5695, 1.442695
    %v5703 = vpow.pop %v5702
    %v5704 = vsel %vm916, %v5697, 0.0
    %5705 = vadd.xlane.f32.xlu0 %v5704
    %v5706 = vpop.xlane.xlu0 %5705
    %v5707 = vsel %vm916, %v5699, 0.0
    %5708 = vadd.xlane.f32.xlu0 %v5707
    %v5709 = vpop.xlane.xlu0 %5708
    %v5710 = vsel %vm916, %v5701, 0.0
    %5711 = vadd.xlane.f32.xlu0 %v5710
    %v5712 = vpop.xlane.xlu0 %5711
    %v5713 = vsel %vm916, %v5703, 0.0
    %5714 = vadd.xlane.f32.xlu0 %v5713
    %v5715 = vpop.xlane.xlu0 %5714
    %v5716 = vrcp.pop %v5706
    %v5717 = vmul.f32 %v5697, %v5716
    %v5718 = vrcp.pop %v5709
    %v5719 = vmul.f32 %v5699, %v5718
    %v5720 = vrcp.pop %v5712
    %v5721 = vmul.f32 %v5701, %v5720
    %v5722 = vrcp.pop %v5715
    %v5723 = vmul.f32 %v5703, %v5722
    %v5725 = vsel %vm916, %v5717, 0
    %v5728 = vsel %vm916, %v5719, 0
    %5730 = vmatprep.subr.mxu0 0.0
    %5731 = vmatpush1.msra.mxu0 %v5480
    %5732 = vmatprep.subr.mxu0 0.0
    %5733 = vmatpush1.msra.mxu0 %v5485
    %5734 = vmatprep.subr.mxu0 0.0
    %5735 = vmatpush1.msra.mxu0 0.0
    %5736 = vmatprep.subr.mxu0 0.0
    %5737 = vmatpush1.msra.mxu0 0.0
    %5738 = vmatprep.subr.mxu0 0.0
    %5739 = vmatpush1.msra.mxu0 0.0
    %5740 = vmatprep.subr.mxu0 0.0
    %5741 = vmatpush1.msra.mxu0 0.0
    %5742 = vmatprep.subr.mxu0 0.0
    %5743 = vmatpush1.msra.mxu0 0.0
    %5744 = vmatprep.subr.mxu0 0.0
    %5745 = vmatpush1.msra.mxu0 0.0
    %5746 = vmatprep.subr.mxu0 0.0
    %5747 = vmatpush1.msra.mxu0 0.0
    %5748 = vmatprep.subr.mxu0 0.0
    %5749 = vmatpush1.msra.mxu0 0.0
    %5750 = vmatprep.subr.mxu0 0.0
    %5751 = vmatpush1.msra.mxu0 0.0
    %5752 = vmatprep.subr.mxu0 0.0
    %5753 = vmatpush1.msra.mxu0 0.0
    %5754 = vmatprep.subr.mxu0 0.0
    %5755 = vmatpush1.msra.mxu0 0.0
    %5756 = vmatprep.subr.mxu0 0.0
    %5757 = vmatpush1.msra.mxu0 0.0
    %5758 = vmatprep.subr.mxu0 0.0
    %5759 = vmatpush1.msra.mxu0 0.0
    %5760 = vmatprep.subr.mxu0 0.0
    %5761 = vmatpush1.msra.mxu0 0.0
    %5762 = vmatprep.subr.mxu0 0.0
    %5763 = vmatpush1.msra.mxu0 0.0
    %5764 = vmatprep.subr.mxu0 0.0
    %5765 = vmatpush1.msra.mxu0 0.0
    %5766 = vmatprep.subr.mxu0 0.0
    %5767 = vmatpush1.msra.mxu0 0.0
    %5768 = vmatprep.subr.mxu0 0.0
    %5769 = vmatpush1.msra.mxu0 0.0
    %5770 = vmatprep.subr.mxu0 0.0
    %5771 = vmatpush1.msra.mxu0 0.0
    %5772 = vmatprep.subr.mxu0 0.0
    %5773 = vmatpush1.msra.mxu0 0.0
    %5774 = vmatprep.subr.mxu0 0.0
    %5775 = vmatpush1.msra.mxu0 0.0
    %5776 = vmatprep.subr.mxu0 0.0
    %5777 = vmatpush1.msra.mxu0 0.0
    %5778 = vmatprep.subr.mxu0 0.0
    %5779 = vmatpush1.msra.mxu0 0.0
    %5780 = vmatprep.subr.mxu0 0.0
    %5781 = vmatpush1.msra.mxu0 0.0
    %5782 = vmatprep.subr.mxu0 0.0
    %5783 = vmatpush1.msra.mxu0 0.0
    %5784 = vmatprep.subr.mxu0 0.0
    %5785 = vmatpush1.msra.mxu0 0.0
    %5786 = vmatprep.subr.mxu0 0.0
    %5787 = vmatpush1.msra.mxu0 0.0
    %5788 = vmatprep.subr.mxu0 0.0
    %5789 = vmatpush1.msra.mxu0 0.0
    %5790 = vmatprep.subr.mxu0 0.0
    %5791 = vmatpush1.msra.mxu0 0.0
    %5792 = vmatprep.subr.mxu0 0.0
    %5793 = vmatpush1.msra.mxu0 0.0
    %5794 = vmatprep.mubr.f32.mxu0 0.0
    %5795 = vmatmul.mubr.f32.gmra.mrb[0].mxu0 %v5725
    %v5796 = vpop.f32.mrb[0].mxu0
    %v5797 = vadd.f32 0.0, %v5796
    %v5798 = vpop.f32.mrb[0].mxu0
    %5799 = vmatprep.mubr.f32.mxu0 0.0
    %5800 = vmatmul.mubr.f32.gmra.mrb[0].mxu0 %v5728
    %v5801 = vpop.f32.mrb[0].mxu0
    %v5802 = vadd.f32 0.0, %v5801
    %v5803 = vpop.f32.mrb[0].mxu0
    %5804 = vdwg.mxu0
    %v5806 = vsel %vm916, %v5721, 0
    %v5809 = vsel %vm916, %v5723, 0
    %5811 = vmatprep.subr.mxu0 0.0
    %5812 = vmatpush1.msra.mxu0 %v5490
    %5813 = vmatprep.subr.mxu0 0.0
    %5814 = vmatpush1.msra.mxu0 %v5495
    %5815 = vmatprep.subr.mxu0 0.0
    %5816 = vmatpush1.msra.mxu0 0.0
    %5817 = vmatprep.subr.mxu0 0.0
    %5818 = vmatpush1.msra.mxu0 0.0
    %5819 = vmatprep.subr.mxu0 0.0
    %5820 = vmatpush1.msra.mxu0 0.0
    %5821 = vmatprep.subr.mxu0 0.0
    %5822 = vmatpush1.msra.mxu0 0.0
    %5823 = vmatprep.subr.mxu0 0.0
    %5824 = vmatpush1.msra.mxu0 0.0
    %5825 = vmatprep.subr.mxu0 0.0
    %5826 = vmatpush1.msra.mxu0 0.0
    %5827 = vmatprep.subr.mxu0 0.0
    %5828 = vmatpush1.msra.mxu0 0.0
    %5829 = vmatprep.subr.mxu0 0.0
    %5830 = vmatpush1.msra.mxu0 0.0
    %5831 = vmatprep.subr.mxu0 0.0
    %5832 = vmatpush1.msra.mxu0 0.0
    %5833 = vmatprep.subr.mxu0 0.0
    %5834 = vmatpush1.msra.mxu0 0.0
    %5835 = vmatprep.subr.mxu0 0.0
    %5836 = vmatpush1.msra.mxu0 0.0
    %5837 = vmatprep.subr.mxu0 0.0
    %5838 = vmatpush1.msra.mxu0 0.0
    %5839 = vmatprep.subr.mxu0 0.0
    %5840 = vmatpush1.msra.mxu0 0.0
    %5841 = vmatprep.subr.mxu0 0.0
    %5842 = vmatpush1.msra.mxu0 0.0
    %5843 = vmatprep.subr.mxu0 0.0
    %5844 = vmatpush1.msra.mxu0 0.0
    %5845 = vmatprep.subr.mxu0 0.0
    %5846 = vmatpush1.msra.mxu0 0.0
    %5847 = vmatprep.subr.mxu0 0.0
    %5848 = vmatpush1.msra.mxu0 0.0
    %5849 = vmatprep.subr.mxu0 0.0
    %5850 = vmatpush1.msra.mxu0 0.0
    %5851 = vmatprep.subr.mxu0 0.0
    %5852 = vmatpush1.msra.mxu0 0.0
    %5853 = vmatprep.subr.mxu0 0.0
    %5854 = vmatpush1.msra.mxu0 0.0
    %5855 = vmatprep.subr.mxu0 0.0
    %5856 = vmatpush1.msra.mxu0 0.0
    %5857 = vmatprep.subr.mxu0 0.0
    %5858 = vmatpush1.msra.mxu0 0.0
    %5859 = vmatprep.subr.mxu0 0.0
    %5860 = vmatpush1.msra.mxu0 0.0
    %5861 = vmatprep.subr.mxu0 0.0
    %5862 = vmatpush1.msra.mxu0 0.0
    %5863 = vmatprep.subr.mxu0 0.0
    %5864 = vmatpush1.msra.mxu0 0.0
    %5865 = vmatprep.subr.mxu0 0.0
    %5866 = vmatpush1.msra.mxu0 0.0
    %5867 = vmatprep.subr.mxu0 0.0
    %5868 = vmatpush1.msra.mxu0 0.0
    %5869 = vmatprep.subr.mxu0 0.0
    %5870 = vmatpush1.msra.mxu0 0.0
    %5871 = vmatprep.subr.mxu0 0.0
    %5872 = vmatpush1.msra.mxu0 0.0
    %5873 = vmatprep.subr.mxu0 0.0
    %5874 = vmatpush1.msra.mxu0 0.0
    %5875 = vmatprep.mubr.f32.mxu0 0.0
    %5876 = vmatmul.mubr.f32.gmra.mrb[0].mxu0 %v5806
    %v5877 = vpop.f32.mrb[0].mxu0
    %v5878 = vadd.f32 0.0, %v5877
    %v5879 = vpop.f32.mrb[0].mxu0
    %5880 = vmatprep.mubr.f32.mxu0 0.0
    %5881 = vmatmul.mubr.f32.gmra.mrb[0].mxu0 %v5809
    %v5882 = vpop.f32.mrb[0].mxu0
    %v5883 = vadd.f32 0.0, %v5882
    %v5884 = vpop.f32.mrb[0].mxu0
    %5885 = vdwg.mxu0
    %5886 = vrot.lane.b32.xlu0 %v5290, 120
    %v5887 = vpop.permute.xlu0 %5886
    %5888 = vrot.lane.b32.xlu0 %v5295, 120
    %v5889 = vpop.permute.xlu0 %5888
    %5890 = vrot.lane.b32.xlu0 %v5385, 120
    %v5891 = vpop.permute.xlu0 %5890
    %5892 = vrot.lane.b32.xlu0 %v5390, 120
    %v5893 = vpop.permute.xlu0 %5892
    %v5894 = vsel %vm723, %v5887, 0
    %v5896 = vsel %vm723, %v5889, 0
    %v5898 = vsel %vm723, %v5891, 0
    %v5900 = vsel %vm723, %v5893, 0
    %5902 = vmatprep.subr.mxu0 0.0
    %5903 = vmatpush1.xpose.msra.mxu0 %v5898
    %5904 = vmatprep.subr.mxu0 0.0
    %5905 = vmatpush1.xpose.msra.mxu0 %v5900
    %5906 = vmatprep.subr.mxu0 0.0
    %5907 = vmatpush1.xpose.msra.mxu0 0.0
    %5908 = vmatprep.subr.mxu0 0.0
    %5909 = vmatpush1.xpose.msra.mxu0 0.0
    %5910 = vmatprep.subr.mxu0 0.0
    %5911 = vmatpush1.xpose.msra.mxu0 0.0
    %5912 = vmatprep.subr.mxu0 0.0
    %5913 = vmatpush1.xpose.msra.mxu0 0.0
    %5914 = vmatprep.subr.mxu0 0.0
    %5915 = vmatpush1.xpose.msra.mxu0 0.0
    %5916 = vmatprep.subr.mxu0 0.0
    %5917 = vmatpush1.xpose.msra.mxu0 0.0
    %5918 = vmatprep.subr.mxu0 0.0
    %5919 = vmatpush1.xpose.msra.mxu0 0.0
    %5920 = vmatprep.subr.mxu0 0.0
    %5921 = vmatpush1.xpose.msra.mxu0 0.0
    %5922 = vmatprep.subr.mxu0 0.0
    %5923 = vmatpush1.xpose.msra.mxu0 0.0
    %5924 = vmatprep.subr.mxu0 0.0
    %5925 = vmatpush1.xpose.msra.mxu0 0.0
    %5926 = vmatprep.subr.mxu0 0.0
    %5927 = vmatpush1.xpose.msra.mxu0 0.0
    %5928 = vmatprep.subr.mxu0 0.0
    %5929 = vmatpush1.xpose.msra.mxu0 0.0
    %5930 = vmatprep.subr.mxu0 0.0
    %5931 = vmatpush1.xpose.msra.mxu0 0.0
    %5932 = vmatprep.subr.mxu0 0.0
    %5933 = vmatpush1.xpose.msra.mxu0 0.0
    %5934 = vmatprep.subr.mxu0 0.0
    %5935 = vmatpush1.xpose.msra.mxu0 0.0
    %5936 = vmatprep.subr.mxu0 0.0
    %5937 = vmatpush1.xpose.msra.mxu0 0.0
    %5938 = vmatprep.subr.mxu0 0.0
    %5939 = vmatpush1.xpose.msra.mxu0 0.0
    %5940 = vmatprep.subr.mxu0 0.0
    %5941 = vmatpush1.xpose.msra.mxu0 0.0
    %5942 = vmatprep.subr.mxu0 0.0
    %5943 = vmatpush1.xpose.msra.mxu0 0.0
    %5944 = vmatprep.subr.mxu0 0.0
    %5945 = vmatpush1.xpose.msra.mxu0 0.0
    %5946 = vmatprep.subr.mxu0 0.0
    %5947 = vmatpush1.xpose.msra.mxu0 0.0
    %5948 = vmatprep.subr.mxu0 0.0
    %5949 = vmatpush1.xpose.msra.mxu0 0.0
    %5950 = vmatprep.subr.mxu0 0.0
    %5951 = vmatpush1.xpose.msra.mxu0 0.0
    %5952 = vmatprep.subr.mxu0 0.0
    %5953 = vmatpush1.xpose.msra.mxu0 0.0
    %5954 = vmatprep.subr.mxu0 0.0
    %5955 = vmatpush1.xpose.msra.mxu0 0.0
    %5956 = vmatprep.subr.mxu0 0.0
    %5957 = vmatpush1.xpose.msra.mxu0 0.0
    %5958 = vmatprep.subr.mxu0 0.0
    %5959 = vmatpush1.xpose.msra.mxu0 0.0
    %5960 = vmatprep.subr.mxu0 0.0
    %5961 = vmatpush1.xpose.msra.mxu0 0.0
    %5962 = vmatprep.subr.mxu0 0.0
    %5963 = vmatpush1.xpose.msra.mxu0 0.0
    %5964 = vmatprep.subr.mxu0 0.0
    %5965 = vmatpush1.xpose.msra.mxu0 0.0
    %5966 = vmatprep.mubr.f32.mxu0 0.0
    %5967 = vmatmul.mubr.f32.gmra.mrb[0].mxu0 %v5894
    %v5968 = vpop.f32.mrb[0].mxu0
    %v5969 = vadd.f32 0.0, %v5968
    %v5970 = vpop.f32.mrb[0].mxu0
    %5971 = vmatprep.mubr.f32.mxu0 0.0
    %5972 = vmatmul.mubr.f32.gmra.mrb[0].mxu0 %v5896
    %v5973 = vpop.f32.mrb[0].mxu0
    %v5974 = vadd.f32 0.0, %v5973
    %v5975 = vpop.f32.mrb[0].mxu0
    %5976 = vdwg.mxu0
    %5977 = vrot.lane.b32.xlu0 %v5300, 120
    %v5978 = vpop.permute.xlu0 %5977
    %5979 = vrot.lane.b32.xlu0 %v5305, 120
    %v5980 = vpop.permute.xlu0 %5979
    %5981 = vrot.lane.b32.xlu0 %v5395, 120
    %v5982 = vpop.permute.xlu0 %5981
    %5983 = vrot.lane.b32.xlu0 %v5400, 120
    %v5984 = vpop.permute.xlu0 %5983
    %v5985 = vsel %vm723, %v5978, 0
    %v5987 = vsel %vm723, %v5980, 0
    %v5989 = vsel %vm723, %v5982, 0
    %v5991 = vsel %vm723, %v5984, 0
    %5993 = vmatprep.subr.mxu0 0.0
    %5994 = vmatpush1.xpose.msra.mxu0 %v5989
    %5995 = vmatprep.subr.mxu0 0.0
    %5996 = vmatpush1.xpose.msra.mxu0 %v5991
    %5997 = vmatprep.subr.mxu0 0.0
    %5998 = vmatpush1.xpose.msra.mxu0 0.0
    %5999 = vmatprep.subr.mxu0 0.0
    %6000 = vmatpush1.xpose.msra.mxu0 0.0
    %6001 = vmatprep.subr.mxu0 0.0
    %6002 = vmatpush1.xpose.msra.mxu0 0.0
    %6003 = vmatprep.subr.mxu0 0.0
    %6004 = vmatpush1.xpose.msra.mxu0 0.0
    %6005 = vmatprep.subr.mxu0 0.0
    %6006 = vmatpush1.xpose.msra.mxu0 0.0
    %6007 = vmatprep.subr.mxu0 0.0
    %6008 = vmatpush1.xpose.msra.mxu0 0.0
    %6009 = vmatprep.subr.mxu0 0.0
    %6010 = vmatpush1.xpose.msra.mxu0 0.0
    %6011 = vmatprep.subr.mxu0 0.0
    %6012 = vmatpush1.xpose.msra.mxu0 0.0
    %6013 = vmatprep.subr.mxu0 0.0
    %6014 = vmatpush1.xpose.msra.mxu0 0.0
    %6015 = vmatprep.subr.mxu0 0.0
    %6016 = vmatpush1.xpose.msra.mxu0 0.0
    %6017 = vmatprep.subr.mxu0 0.0
    %6018 = vmatpush1.xpose.msra.mxu0 0.0
    %6019 = vmatprep.subr.mxu0 0.0
    %6020 = vmatpush1.xpose.msra.mxu0 0.0
    %6021 = vmatprep.subr.mxu0 0.0
    %6022 = vmatpush1.xpose.msra.mxu0 0.0
    %6023 = vmatprep.subr.mxu0 0.0
    %6024 = vmatpush1.xpose.msra.mxu0 0.0
    %6025 = vmatprep.subr.mxu0 0.0
    %6026 = vmatpush1.xpose.msra.mxu0 0.0
    %6027 = vmatprep.subr.mxu0 0.0
    %6028 = vmatpush1.xpose.msra.mxu0 0.0
    %6029 = vmatprep.subr.mxu0 0.0
    %6030 = vmatpush1.xpose.msra.mxu0 0.0
    %6031 = vmatprep.subr.mxu0 0.0
    %6032 = vmatpush1.xpose.msra.mxu0 0.0
    %6033 = vmatprep.subr.mxu0 0.0
    %6034 = vmatpush1.xpose.msra.mxu0 0.0
    %6035 = vmatprep.subr.mxu0 0.0
    %6036 = vmatpush1.xpose.msra.mxu0 0.0
    %6037 = vmatprep.subr.mxu0 0.0
    %6038 = vmatpush1.xpose.msra.mxu0 0.0
    %6039 = vmatprep.subr.mxu0 0.0
    %6040 = vmatpush1.xpose.msra.mxu0 0.0
    %6041 = vmatprep.subr.mxu0 0.0
    %6042 = vmatpush1.xpose.msra.mxu0 0.0
    %6043 = vmatprep.subr.mxu0 0.0
    %6044 = vmatpush1.xpose.msra.mxu0 0.0
    %6045 = vmatprep.subr.mxu0 0.0
    %6046 = vmatpush1.xpose.msra.mxu0 0.0
    %6047 = vmatprep.subr.mxu0 0.0
    %6048 = vmatpush1.xpose.msra.mxu0 0.0
    %6049 = vmatprep.subr.mxu0 0.0
    %6050 = vmatpush1.xpose.msra.mxu0 0.0
    %6051 = vmatprep.subr.mxu0 0.0
    %6052 = vmatpush1.xpose.msra.mxu0 0.0
    %6053 = vmatprep.subr.mxu0 0.0
    %6054 = vmatpush1.xpose.msra.mxu0 0.0
    %6055 = vmatprep.subr.mxu0 0.0
    %6056 = vmatpush1.xpose.msra.mxu0 0.0
    %6057 = vmatprep.mubr.f32.mxu0 0.0
    %6058 = vmatmul.mubr.f32.gmra.mrb[0].mxu0 %v5985
    %v6059 = vpop.f32.mrb[0].mxu0
    %v6060 = vadd.f32 0.0, %v6059
    %v6061 = vpop.f32.mrb[0].mxu0
    %6062 = vmatprep.mubr.f32.mxu0 0.0
    %6063 = vmatmul.mubr.f32.gmra.mrb[0].mxu0 %v5987
    %v6064 = vpop.f32.mrb[0].mxu0
    %v6065 = vadd.f32 0.0, %v6064
    %v6066 = vpop.f32.mrb[0].mxu0
    %6067 = vdwg.mxu0
    %v6068 = vmul.f32 %v5969, 0.35355338
    %v6069 = vmul.f32 %v5974, 0.35355338
    %v6070 = vmul.f32 %v6060, 0.35355338
    %v6071 = vmul.f32 %v6065, 0.35355338
    %v6072 = vsel %vm910, -inf, %v6068
    %v6073 = vsel %vm910, -inf, %v6069
    %v6074 = vsel %vm911, -inf, %v6070
    %v6075 = vsel %vm911, -inf, %v6071
    %v6076 = vsel %vm916, %v6072, -inf
    %6077 = vmax.xlane.f32.xlu0 %v6076
    %v6078 = vpop.xlane.xlu0 %6077
    %v6079 = vsel %vm916, %v6073, -inf
    %6080 = vmax.xlane.f32.xlu0 %v6079
    %v6081 = vpop.xlane.xlu0 %6080
    %v6082 = vsel %vm916, %v6074, -inf
    %6083 = vmax.xlane.f32.xlu0 %v6082
    %v6084 = vpop.xlane.xlu0 %6083
    %v6085 = vsel %vm916, %v6075, -inf
    %6086 = vmax.xlane.f32.xlu0 %v6085
    %v6087 = vpop.xlane.xlu0 %6086
    %v6088 = vsub.f32 %v6072, %v6078
    %v6089 = vsub.f32 %v6073, %v6081
    %v6090 = vsub.f32 %v6074, %v6084
    %v6091 = vsub.f32 %v6075, %v6087
    %v6092 = vmul.f32 %v6088, 1.442695
    %v6093 = vpow.pop %v6092
    %v6094 = vmul.f32 %v6089, 1.442695
    %v6095 = vpow.pop %v6094
    %v6096 = vmul.f32 %v6090, 1.442695
    %v6097 = vpow.pop %v6096
    %v6098 = vmul.f32 %v6091, 1.442695
    %v6099 = vpow.pop %v6098
    %v6100 = vsel %vm916, %v6093, 0.0
    %6101 = vadd.xlane.f32.xlu0 %v6100
    %v6102 = vpop.xlane.xlu0 %6101
    %v6103 = vsel %vm916, %v6095, 0.0
    %6104 = vadd.xlane.f32.xlu0 %v6103
    %v6105 = vpop.xlane.xlu0 %6104
    %v6106 = vsel %vm916, %v6097, 0.0
    %6107 = vadd.xlane.f32.xlu0 %v6106
    %v6108 = vpop.xlane.xlu0 %6107
    %v6109 = vsel %vm916, %v6099, 0.0
    %6110 = vadd.xlane.f32.xlu0 %v6109
    %v6111 = vpop.xlane.xlu0 %6110
    %v6112 = vrcp.pop %v6102
    %v6113 = vmul.f32 %v6093, %v6112
    %v6114 = vrcp.pop %v6105
    %v6115 = vmul.f32 %v6095, %v6114
    %v6116 = vrcp.pop %v6108
    %v6117 = vmul.f32 %v6097, %v6116
    %v6118 = vrcp.pop %v6111
    %v6119 = vmul.f32 %v6099, %v6118
    %6122 = vrot.lane.b32.xlu0 %v5480, 120
    %v6123 = vpop.permute.xlu0 %6122
    %6124 = vrot.lane.b32.xlu0 %v5485, 120
    %v6125 = vpop.permute.xlu0 %6124
    %v6129 = vsel %vm916, %v6113, 0
    %v6132 = vsel %vm916, %v6115, 0
    %6134 = vmatprep.subr.mxu0 0.0
    %6135 = vmatpush1.msra.mxu0 %v6123
    %6136 = vmatprep.subr.mxu0 0.0
    %6137 = vmatpush1.msra.mxu0 %v6125
    %6138 = vmatprep.subr.mxu0 0.0
    %6139 = vmatpush1.msra.mxu0 0.0
    %6140 = vmatprep.subr.mxu0 0.0
    %6141 = vmatpush1.msra.mxu0 0.0
    %6142 = vmatprep.subr.mxu0 0.0
    %6143 = vmatpush1.msra.mxu0 0.0
    %6144 = vmatprep.subr.mxu0 0.0
    %6145 = vmatpush1.msra.mxu0 0.0
    %6146 = vmatprep.subr.mxu0 0.0
    %6147 = vmatpush1.msra.mxu0 0.0
    %6148 = vmatprep.subr.mxu0 0.0
    %6149 = vmatpush1.msra.mxu0 0.0
    %6150 = vmatprep.subr.mxu0 0.0
    %6151 = vmatpush1.msra.mxu0 0.0
    %6152 = vmatprep.subr.mxu0 0.0
    %6153 = vmatpush1.msra.mxu0 0.0
    %6154 = vmatprep.subr.mxu0 0.0
    %6155 = vmatpush1.msra.mxu0 0.0
    %6156 = vmatprep.subr.mxu0 0.0
    %6157 = vmatpush1.msra.mxu0 0.0
    %6158 = vmatprep.subr.mxu0 0.0
    %6159 = vmatpush1.msra.mxu0 0.0
    %6160 = vmatprep.subr.mxu0 0.0
    %6161 = vmatpush1.msra.mxu0 0.0
    %6162 = vmatprep.subr.mxu0 0.0
    %6163 = vmatpush1.msra.mxu0 0.0
    %6164 = vmatprep.subr.mxu0 0.0
    %6165 = vmatpush1.msra.mxu0 0.0
    %6166 = vmatprep.subr.mxu0 0.0
    %6167 = vmatpush1.msra.mxu0 0.0
    %6168 = vmatprep.subr.mxu0 0.0
    %6169 = vmatpush1.msra.mxu0 0.0
    %6170 = vmatprep.subr.mxu0 0.0
    %6171 = vmatpush1.msra.mxu0 0.0
    %6172 = vmatprep.subr.mxu0 0.0
    %6173 = vmatpush1.msra.mxu0 0.0
    %6174 = vmatprep.subr.mxu0 0.0
    %6175 = vmatpush1.msra.mxu0 0.0
    %6176 = vmatprep.subr.mxu0 0.0
    %6177 = vmatpush1.msra.mxu0 0.0
    %6178 = vmatprep.subr.mxu0 0.0
    %6179 = vmatpush1.msra.mxu0 0.0
    %6180 = vmatprep.subr.mxu0 0.0
    %6181 = vmatpush1.msra.mxu0 0.0
    %6182 = vmatprep.subr.mxu0 0.0
    %6183 = vmatpush1.msra.mxu0 0.0
    %6184 = vmatprep.subr.mxu0 0.0
    %6185 = vmatpush1.msra.mxu0 0.0
    %6186 = vmatprep.subr.mxu0 0.0
    %6187 = vmatpush1.msra.mxu0 0.0
    %6188 = vmatprep.subr.mxu0 0.0
    %6189 = vmatpush1.msra.mxu0 0.0
    %6190 = vmatprep.subr.mxu0 0.0
    %6191 = vmatpush1.msra.mxu0 0.0
    %6192 = vmatprep.subr.mxu0 0.0
    %6193 = vmatpush1.msra.mxu0 0.0
    %6194 = vmatprep.subr.mxu0 0.0
    %6195 = vmatpush1.msra.mxu0 0.0
    %6196 = vmatprep.subr.mxu0 0.0
    %6197 = vmatpush1.msra.mxu0 0.0
    %6198 = vmatprep.mubr.f32.mxu0 0.0
    %6199 = vmatmul.mubr.f32.gmra.mrb[0].mxu0 %v6129
    %v6200 = vpop.f32.mrb[0].mxu0
    %v6201 = vadd.f32 0.0, %v6200
    %v6202 = vpop.f32.mrb[0].mxu0
    %6203 = vmatprep.mubr.f32.mxu0 0.0
    %6204 = vmatmul.mubr.f32.gmra.mrb[0].mxu0 %v6132
    %v6205 = vpop.f32.mrb[0].mxu0
    %v6206 = vadd.f32 0.0, %v6205
    %v6207 = vpop.f32.mrb[0].mxu0
    %6208 = vdwg.mxu0
    %6211 = vrot.lane.b32.xlu0 %v5490, 120
    %v6212 = vpop.permute.xlu0 %6211
    %6213 = vrot.lane.b32.xlu0 %v5495, 120
    %v6214 = vpop.permute.xlu0 %6213
    %v6218 = vsel %vm916, %v6117, 0
    %v6221 = vsel %vm916, %v6119, 0
    %6223 = vmatprep.subr.mxu0 0.0
    %6224 = vmatpush1.msra.mxu0 %v6212
    %6225 = vmatprep.subr.mxu0 0.0
    %6226 = vmatpush1.msra.mxu0 %v6214
    %6227 = vmatprep.subr.mxu0 0.0
    %6228 = vmatpush1.msra.mxu0 0.0
    %6229 = vmatprep.subr.mxu0 0.0
    %6230 = vmatpush1.msra.mxu0 0.0
    %6231 = vmatprep.subr.mxu0 0.0
    %6232 = vmatpush1.msra.mxu0 0.0
    %6233 = vmatprep.subr.mxu0 0.0
    %6234 = vmatpush1.msra.mxu0 0.0
    %6235 = vmatprep.subr.mxu0 0.0
    %6236 = vmatpush1.msra.mxu0 0.0
    %6237 = vmatprep.subr.mxu0 0.0
    %6238 = vmatpush1.msra.mxu0 0.0
    %6239 = vmatprep.subr.mxu0 0.0
    %6240 = vmatpush1.msra.mxu0 0.0
    %6241 = vmatprep.subr.mxu0 0.0
    %6242 = vmatpush1.msra.mxu0 0.0
    %6243 = vmatprep.subr.mxu0 0.0
    %6244 = vmatpush1.msra.mxu0 0.0
    %6245 = vmatprep.subr.mxu0 0.0
    %6246 = vmatpush1.msra.mxu0 0.0
    %6247 = vmatprep.subr.mxu0 0.0
    %6248 = vmatpush1.msra.mxu0 0.0
    %6249 = vmatprep.subr.mxu0 0.0
    %6250 = vmatpush1.msra.mxu0 0.0
    %6251 = vmatprep.subr.mxu0 0.0
    %6252 = vmatpush1.msra.mxu0 0.0
    %6253 = vmatprep.subr.mxu0 0.0
    %6254 = vmatpush1.msra.mxu0 0.0
    %6255 = vmatprep.subr.mxu0 0.0
    %6256 = vmatpush1.msra.mxu0 0.0
    %6257 = vmatprep.subr.mxu0 0.0
    %6258 = vmatpush1.msra.mxu0 0.0
    %6259 = vmatprep.subr.mxu0 0.0
    %6260 = vmatpush1.msra.mxu0 0.0
    %6261 = vmatprep.subr.mxu0 0.0
    %6262 = vmatpush1.msra.mxu0 0.0
    %6263 = vmatprep.subr.mxu0 0.0
    %6264 = vmatpush1.msra.mxu0 0.0
    %6265 = vmatprep.subr.mxu0 0.0
    %6266 = vmatpush1.msra.mxu0 0.0
    %6267 = vmatprep.subr.mxu0 0.0
    %6268 = vmatpush1.msra.mxu0 0.0
    %6269 = vmatprep.subr.mxu0 0.0
    %6270 = vmatpush1.msra.mxu0 0.0
    %6271 = vmatprep.subr.mxu0 0.0
    %6272 = vmatpush1.msra.mxu0 0.0
    %6273 = vmatprep.subr.mxu0 0.0
    %6274 = vmatpush1.msra.mxu0 0.0
    %6275 = vmatprep.subr.mxu0 0.0
    %6276 = vmatpush1.msra.mxu0 0.0
    %6277 = vmatprep.subr.mxu0 0.0
    %6278 = vmatpush1.msra.mxu0 0.0
    %6279 = vmatprep.subr.mxu0 0.0
    %6280 = vmatpush1.msra.mxu0 0.0
    %6281 = vmatprep.subr.mxu0 0.0
    %6282 = vmatpush1.msra.mxu0 0.0
    %6283 = vmatprep.subr.mxu0 0.0
    %6284 = vmatpush1.msra.mxu0 0.0
    %6285 = vmatprep.subr.mxu0 0.0
    %6286 = vmatpush1.msra.mxu0 0.0
    %6287 = vmatprep.mubr.f32.mxu0 0.0
    %6288 = vmatmul.mubr.f32.gmra.mrb[0].mxu0 %v6218
    %v6289 = vpop.f32.mrb[0].mxu0
    %v6290 = vadd.f32 0.0, %v6289
    %v6291 = vpop.f32.mrb[0].mxu0
    %6292 = vmatprep.mubr.f32.mxu0 0.0
    %6293 = vmatmul.mubr.f32.gmra.mrb[0].mxu0 %v6221
    %v6294 = vpop.f32.mrb[0].mxu0
    %v6295 = vadd.f32 0.0, %v6294
    %v6296 = vpop.f32.mrb[0].mxu0
    %6297 = vdwg.mxu0
    %6298 = vrot.lane.b32.xlu0 %v5290, 112
    %v6299 = vpop.permute.xlu0 %6298
    %6300 = vrot.lane.b32.xlu0 %v5295, 112
    %v6301 = vpop.permute.xlu0 %6300
    %6302 = vrot.lane.b32.xlu0 %v5385, 112
    %v6303 = vpop.permute.xlu0 %6302
    %6304 = vrot.lane.b32.xlu0 %v5390, 112
    %v6305 = vpop.permute.xlu0 %6304
    %v6306 = vsel %vm723, %v6299, 0
    %v6308 = vsel %vm723, %v6301, 0
    %v6310 = vsel %vm723, %v6303, 0
    %v6312 = vsel %vm723, %v6305, 0
    %6314 = vmatprep.subr.mxu0 0.0
    %6315 = vmatpush1.xpose.msra.mxu0 %v6310
    %6316 = vmatprep.subr.mxu0 0.0
    %6317 = vmatpush1.xpose.msra.mxu0 %v6312
    %6318 = vmatprep.subr.mxu0 0.0
    %6319 = vmatpush1.xpose.msra.mxu0 0.0
    %6320 = vmatprep.subr.mxu0 0.0
    %6321 = vmatpush1.xpose.msra.mxu0 0.0
    %6322 = vmatprep.subr.mxu0 0.0
    %6323 = vmatpush1.xpose.msra.mxu0 0.0
    %6324 = vmatprep.subr.mxu0 0.0
    %6325 = vmatpush1.xpose.msra.mxu0 0.0
    %6326 = vmatprep.subr.mxu0 0.0
    %6327 = vmatpush1.xpose.msra.mxu0 0.0
    %6328 = vmatprep.subr.mxu0 0.0
    %6329 = vmatpush1.xpose.msra.mxu0 0.0
    %6330 = vmatprep.subr.mxu0 0.0
    %6331 = vmatpush1.xpose.msra.mxu0 0.0
    %6332 = vmatprep.subr.mxu0 0.0
    %6333 = vmatpush1.xpose.msra.mxu0 0.0
    %6334 = vmatprep.subr.mxu0 0.0
    %6335 = vmatpush1.xpose.msra.mxu0 0.0
    %6336 = vmatprep.subr.mxu0 0.0
    %6337 = vmatpush1.xpose.msra.mxu0 0.0
    %6338 = vmatprep.subr.mxu0 0.0
    %6339 = vmatpush1.xpose.msra.mxu0 0.0
    %6340 = vmatprep.subr.mxu0 0.0
    %6341 = vmatpush1.xpose.msra.mxu0 0.0
    %6342 = vmatprep.subr.mxu0 0.0
    %6343 = vmatpush1.xpose.msra.mxu0 0.0
    %6344 = vmatprep.subr.mxu0 0.0
    %6345 = vmatpush1.xpose.msra.mxu0 0.0
    %6346 = vmatprep.subr.mxu0 0.0
    %6347 = vmatpush1.xpose.msra.mxu0 0.0
    %6348 = vmatprep.subr.mxu0 0.0
    %6349 = vmatpush1.xpose.msra.mxu0 0.0
    %6350 = vmatprep.subr.mxu0 0.0
    %6351 = vmatpush1.xpose.msra.mxu0 0.0
    %6352 = vmatprep.subr.mxu0 0.0
    %6353 = vmatpush1.xpose.msra.mxu0 0.0
    %6354 = vmatprep.subr.mxu0 0.0
    %6355 = vmatpush1.xpose.msra.mxu0 0.0
    %6356 = vmatprep.subr.mxu0 0.0
    %6357 = vmatpush1.xpose.msra.mxu0 0.0
    %6358 = vmatprep.subr.mxu0 0.0
    %6359 = vmatpush1.xpose.msra.mxu0 0.0
    %6360 = vmatprep.subr.mxu0 0.0
    %6361 = vmatpush1.xpose.msra.mxu0 0.0
    %6362 = vmatprep.subr.mxu0 0.0
    %6363 = vmatpush1.xpose.msra.mxu0 0.0
    %6364 = vmatprep.subr.mxu0 0.0
    %6365 = vmatpush1.xpose.msra.mxu0 0.0
    %6366 = vmatprep.subr.mxu0 0.0
    %6367 = vmatpush1.xpose.msra.mxu0 0.0
    %6368 = vmatprep.subr.mxu0 0.0
    %6369 = vmatpush1.xpose.msra.mxu0 0.0
    %6370 = vmatprep.subr.mxu0 0.0
    %6371 = vmatpush1.xpose.msra.mxu0 0.0
    %6372 = vmatprep.subr.mxu0 0.0
    %6373 = vmatpush1.xpose.msra.mxu0 0.0
    %6374 = vmatprep.subr.mxu0 0.0
    %6375 = vmatpush1.xpose.msra.mxu0 0.0
    %6376 = vmatprep.subr.mxu0 0.0
    %6377 = vmatpush1.xpose.msra.mxu0 0.0
    %6378 = vmatprep.mubr.f32.mxu0 0.0
    %6379 = vmatmul.mubr.f32.gmra.mrb[0].mxu0 %v6306
    %v6380 = vpop.f32.mrb[0].mxu0
    %v6381 = vadd.f32 0.0, %v6380
    %v6382 = vpop.f32.mrb[0].mxu0
    %6383 = vmatprep.mubr.f32.mxu0 0.0
    %6384 = vmatmul.mubr.f32.gmra.mrb[0].mxu0 %v6308
    %v6385 = vpop.f32.mrb[0].mxu0
    %v6386 = vadd.f32 0.0, %v6385
    %v6387 = vpop.f32.mrb[0].mxu0
    %6388 = vdwg.mxu0
    %6389 = vrot.lane.b32.xlu0 %v5300, 112
    %v6390 = vpop.permute.xlu0 %6389
    %6391 = vrot.lane.b32.xlu0 %v5305, 112
    %v6392 = vpop.permute.xlu0 %6391
    %6393 = vrot.lane.b32.xlu0 %v5395, 112
    %v6394 = vpop.permute.xlu0 %6393
    %6395 = vrot.lane.b32.xlu0 %v5400, 112
    %v6396 = vpop.permute.xlu0 %6395
    %v6397 = vsel %vm723, %v6390, 0
    %v6399 = vsel %vm723, %v6392, 0
    %v6401 = vsel %vm723, %v6394, 0
    %v6403 = vsel %vm723, %v6396, 0
    %6405 = vmatprep.subr.mxu0 0.0
    %6406 = vmatpush1.xpose.msra.mxu0 %v6401
    %6407 = vmatprep.subr.mxu0 0.0
    %6408 = vmatpush1.xpose.msra.mxu0 %v6403
    %6409 = vmatprep.subr.mxu0 0.0
    %6410 = vmatpush1.xpose.msra.mxu0 0.0
    %6411 = vmatprep.subr.mxu0 0.0
    %6412 = vmatpush1.xpose.msra.mxu0 0.0
    %6413 = vmatprep.subr.mxu0 0.0
    %6414 = vmatpush1.xpose.msra.mxu0 0.0
    %6415 = vmatprep.subr.mxu0 0.0
    %6416 = vmatpush1.xpose.msra.mxu0 0.0
    %6417 = vmatprep.subr.mxu0 0.0
    %6418 = vmatpush1.xpose.msra.mxu0 0.0
    %6419 = vmatprep.subr.mxu0 0.0
    %6420 = vmatpush1.xpose.msra.mxu0 0.0
    %6421 = vmatprep.subr.mxu0 0.0
    %6422 = vmatpush1.xpose.msra.mxu0 0.0
    %6423 = vmatprep.subr.mxu0 0.0
    %6424 = vmatpush1.xpose.msra.mxu0 0.0
    %6425 = vmatprep.subr.mxu0 0.0
    %6426 = vmatpush1.xpose.msra.mxu0 0.0
    %6427 = vmatprep.subr.mxu0 0.0
    %6428 = vmatpush1.xpose.msra.mxu0 0.0
    %6429 = vmatprep.subr.mxu0 0.0
    %6430 = vmatpush1.xpose.msra.mxu0 0.0
    %6431 = vmatprep.subr.mxu0 0.0
    %6432 = vmatpush1.xpose.msra.mxu0 0.0
    %6433 = vmatprep.subr.mxu0 0.0
    %6434 = vmatpush1.xpose.msra.mxu0 0.0
    %6435 = vmatprep.subr.mxu0 0.0
    %6436 = vmatpush1.xpose.msra.mxu0 0.0
    %6437 = vmatprep.subr.mxu0 0.0
    %6438 = vmatpush1.xpose.msra.mxu0 0.0
    %6439 = vmatprep.subr.mxu0 0.0
    %6440 = vmatpush1.xpose.msra.mxu0 0.0
    %6441 = vmatprep.subr.mxu0 0.0
    %6442 = vmatpush1.xpose.msra.mxu0 0.0
    %6443 = vmatprep.subr.mxu0 0.0
    %6444 = vmatpush1.xpose.msra.mxu0 0.0
    %6445 = vmatprep.subr.mxu0 0.0
    %6446 = vmatpush1.xpose.msra.mxu0 0.0
    %6447 = vmatprep.subr.mxu0 0.0
    %6448 = vmatpush1.xpose.msra.mxu0 0.0
    %6449 = vmatprep.subr.mxu0 0.0
    %6450 = vmatpush1.xpose.msra.mxu0 0.0
    %6451 = vmatprep.subr.mxu0 0.0
    %6452 = vmatpush1.xpose.msra.mxu0 0.0
    %6453 = vmatprep.subr.mxu0 0.0
    %6454 = vmatpush1.xpose.msra.mxu0 0.0
    %6455 = vmatprep.subr.mxu0 0.0
    %6456 = vmatpush1.xpose.msra.mxu0 0.0
    %6457 = vmatprep.subr.mxu0 0.0
    %6458 = vmatpush1.xpose.msra.mxu0 0.0
    %6459 = vmatprep.subr.mxu0 0.0
    %6460 = vmatpush1.xpose.msra.mxu0 0.0
    %6461 = vmatprep.subr.mxu0 0.0
    %6462 = vmatpush1.xpose.msra.mxu0 0.0
    %6463 = vmatprep.subr.mxu0 0.0
    %6464 = vmatpush1.xpose.msra.mxu0 0.0
    %6465 = vmatprep.subr.mxu0 0.0
    %6466 = vmatpush1.xpose.msra.mxu0 0.0
    %6467 = vmatprep.subr.mxu0 0.0
    %6468 = vmatpush1.xpose.msra.mxu0 0.0
    %6469 = vmatprep.mubr.f32.mxu0 0.0
    %6470 = vmatmul.mubr.f32.gmra.mrb[0].mxu0 %v6397
    %v6471 = vpop.f32.mrb[0].mxu0
    %v6472 = vadd.f32 0.0, %v6471
    %v6473 = vpop.f32.mrb[0].mxu0
    %6474 = vmatprep.mubr.f32.mxu0 0.0
    %6475 = vmatmul.mubr.f32.gmra.mrb[0].mxu0 %v6399
    %v6476 = vpop.f32.mrb[0].mxu0
    %v6477 = vadd.f32 0.0, %v6476
    %v6478 = vpop.f32.mrb[0].mxu0
    %6479 = vdwg.mxu0
    %v6480 = vmul.f32 %v6381, 0.35355338
    %v6481 = vmul.f32 %v6386, 0.35355338
    %v6482 = vmul.f32 %v6472, 0.35355338
    %v6483 = vmul.f32 %v6477, 0.35355338
    %v6484 = vsel %vm910, -inf, %v6480
    %v6485 = vsel %vm910, -inf, %v6481
    %v6486 = vsel %vm911, -inf, %v6482
    %v6487 = vsel %vm911, -inf, %v6483
    %v6488 = vsel %vm916, %v6484, -inf
    %6489 = vmax.xlane.f32.xlu0 %v6488
    %v6490 = vpop.xlane.xlu0 %6489
    %v6491 = vsel %vm916, %v6485, -inf
    %6492 = vmax.xlane.f32.xlu0 %v6491
    %v6493 = vpop.xlane.xlu0 %6492
    %v6494 = vsel %vm916, %v6486, -inf
    %6495 = vmax.xlane.f32.xlu0 %v6494
    %v6496 = vpop.xlane.xlu0 %6495
    %v6497 = vsel %vm916, %v6487, -inf
    %6498 = vmax.xlane.f32.xlu0 %v6497
    %v6499 = vpop.xlane.xlu0 %6498
    %v6500 = vsub.f32 %v6484, %v6490
    %v6501 = vsub.f32 %v6485, %v6493
    %v6502 = vsub.f32 %v6486, %v6496
    %v6503 = vsub.f32 %v6487, %v6499
    %v6504 = vmul.f32 %v6500, 1.442695
    %v6505 = vpow.pop %v6504
    %v6506 = vmul.f32 %v6501, 1.442695
    %v6507 = vpow.pop %v6506
    %v6508 = vmul.f32 %v6502, 1.442695
    %v6509 = vpow.pop %v6508
    %v6510 = vmul.f32 %v6503, 1.442695
    %v6511 = vpow.pop %v6510
    %v6512 = vsel %vm916, %v6505, 0.0
    %6513 = vadd.xlane.f32.xlu0 %v6512
    %v6514 = vpop.xlane.xlu0 %6513
    %v6515 = vsel %vm916, %v6507, 0.0
    %6516 = vadd.xlane.f32.xlu0 %v6515
    %v6517 = vpop.xlane.xlu0 %6516
    %v6518 = vsel %vm916, %v6509, 0.0
    %6519 = vadd.xlane.f32.xlu0 %v6518
    %v6520 = vpop.xlane.xlu0 %6519
    %v6521 = vsel %vm916, %v6511, 0.0
    %6522 = vadd.xlane.f32.xlu0 %v6521
    %v6523 = vpop.xlane.xlu0 %6522
    %v6524 = vrcp.pop %v6514
    %v6525 = vmul.f32 %v6505, %v6524
    %v6526 = vrcp.pop %v6517
    %v6527 = vmul.f32 %v6507, %v6526
    %v6528 = vrcp.pop %v6520
    %v6529 = vmul.f32 %v6509, %v6528
    %v6530 = vrcp.pop %v6523
    %v6531 = vmul.f32 %v6511, %v6530
    %6532 = vrot.lane.b32.xlu0 %v5480, 112
    %v6533 = vpop.permute.xlu0 %6532
    %6534 = vrot.lane.b32.xlu0 %v5485, 112
    %v6535 = vpop.permute.xlu0 %6534
    %v6539 = vsel %vm916, %v6525, 0
    %v6542 = vsel %vm916, %v6527, 0
    %6544 = vmatprep.subr.mxu0 0.0
    %6545 = vmatpush1.msra.mxu0 %v6533
    %6546 = vmatprep.subr.mxu0 0.0
    %6547 = vmatpush1.msra.mxu0 %v6535
    %6548 = vmatprep.subr.mxu0 0.0
    %6549 = vmatpush1.msra.mxu0 0.0
    %6550 = vmatprep.subr.mxu0 0.0
    %6551 = vmatpush1.msra.mxu0 0.0
    %6552 = vmatprep.subr.mxu0 0.0
    %6553 = vmatpush1.msra.mxu0 0.0
    %6554 = vmatprep.subr.mxu0 0.0
    %6555 = vmatpush1.msra.mxu0 0.0
    %6556 = vmatprep.subr.mxu0 0.0
    %6557 = vmatpush1.msra.mxu0 0.0
    %6558 = vmatprep.subr.mxu0 0.0
    %6559 = vmatpush1.msra.mxu0 0.0
    %6560 = vmatprep.subr.mxu0 0.0
    %6561 = vmatpush1.msra.mxu0 0.0
    %6562 = vmatprep.subr.mxu0 0.0
    %6563 = vmatpush1.msra.mxu0 0.0
    %6564 = vmatprep.subr.mxu0 0.0
    %6565 = vmatpush1.msra.mxu0 0.0
    %6566 = vmatprep.subr.mxu0 0.0
    %6567 = vmatpush1.msra.mxu0 0.0
    %6568 = vmatprep.subr.mxu0 0.0
    %6569 = vmatpush1.msra.mxu0 0.0
    %6570 = vmatprep.subr.mxu0 0.0
    %6571 = vmatpush1.msra.mxu0 0.0
    %6572 = vmatprep.subr.mxu0 0.0
    %6573 = vmatpush1.msra.mxu0 0.0
    %6574 = vmatprep.subr.mxu0 0.0
    %6575 = vmatpush1.msra.mxu0 0.0
    %6576 = vmatprep.subr.mxu0 0.0
    %6577 = vmatpush1.msra.mxu0 0.0
    %6578 = vmatprep.subr.mxu0 0.0
    %6579 = vmatpush1.msra.mxu0 0.0
    %6580 = vmatprep.subr.mxu0 0.0
    %6581 = vmatpush1.msra.mxu0 0.0
    %6582 = vmatprep.subr.mxu0 0.0
    %6583 = vmatpush1.msra.mxu0 0.0
    %6584 = vmatprep.subr.mxu0 0.0
    %6585 = vmatpush1.msra.mxu0 0.0
    %6586 = vmatprep.subr.mxu0 0.0
    %6587 = vmatpush1.msra.mxu0 0.0
    %6588 = vmatprep.subr.mxu0 0.0
    %6589 = vmatpush1.msra.mxu0 0.0
    %6590 = vmatprep.subr.mxu0 0.0
    %6591 = vmatpush1.msra.mxu0 0.0
    %6592 = vmatprep.subr.mxu0 0.0
    %6593 = vmatpush1.msra.mxu0 0.0
    %6594 = vmatprep.subr.mxu0 0.0
    %6595 = vmatpush1.msra.mxu0 0.0
    %6596 = vmatprep.subr.mxu0 0.0
    %6597 = vmatpush1.msra.mxu0 0.0
    %6598 = vmatprep.subr.mxu0 0.0
    %6599 = vmatpush1.msra.mxu0 0.0
    %6600 = vmatprep.subr.mxu0 0.0
    %6601 = vmatpush1.msra.mxu0 0.0
    %6602 = vmatprep.subr.mxu0 0.0
    %6603 = vmatpush1.msra.mxu0 0.0
    %6604 = vmatprep.subr.mxu0 0.0
    %6605 = vmatpush1.msra.mxu0 0.0
    %6606 = vmatprep.subr.mxu0 0.0
    %6607 = vmatpush1.msra.mxu0 0.0
    %6608 = vmatprep.mubr.f32.mxu0 0.0
    %6609 = vmatmul.mubr.f32.gmra.mrb[0].mxu0 %v6539
    %v6610 = vpop.f32.mrb[0].mxu0
    %v6611 = vadd.f32 0.0, %v6610
    %v6612 = vpop.f32.mrb[0].mxu0
    %6613 = vmatprep.mubr.f32.mxu0 0.0
    %6614 = vmatmul.mubr.f32.gmra.mrb[0].mxu0 %v6542
    %v6615 = vpop.f32.mrb[0].mxu0
    %v6616 = vadd.f32 0.0, %v6615
    %v6617 = vpop.f32.mrb[0].mxu0
    %6618 = vdwg.mxu0
    %6619 = vrot.lane.b32.xlu0 %v5490, 112
    %v6620 = vpop.permute.xlu0 %6619
    %6621 = vrot.lane.b32.xlu0 %v5495, 112
    %v6622 = vpop.permute.xlu0 %6621
    %v6626 = vsel %vm916, %v6529, 0
    %v6629 = vsel %vm916, %v6531, 0
    %6631 = vmatprep.subr.mxu0 0.0
    %6632 = vmatpush1.msra.mxu0 %v6620
    %6633 = vmatprep.subr.mxu0 0.0
    %6634 = vmatpush1.msra.mxu0 %v6622
    %6635 = vmatprep.subr.mxu0 0.0
    %6636 = vmatpush1.msra.mxu0 0.0
    %6637 = vmatprep.subr.mxu0 0.0
    %6638 = vmatpush1.msra.mxu0 0.0
    %6639 = vmatprep.subr.mxu0 0.0
    %6640 = vmatpush1.msra.mxu0 0.0
    %6641 = vmatprep.subr.mxu0 0.0
    %6642 = vmatpush1.msra.mxu0 0.0
    %6643 = vmatprep.subr.mxu0 0.0
    %6644 = vmatpush1.msra.mxu0 0.0
    %6645 = vmatprep.subr.mxu0 0.0
    %6646 = vmatpush1.msra.mxu0 0.0
    %6647 = vmatprep.subr.mxu0 0.0
    %6648 = vmatpush1.msra.mxu0 0.0
    %6649 = vmatprep.subr.mxu0 0.0
    %6650 = vmatpush1.msra.mxu0 0.0
    %6651 = vmatprep.subr.mxu0 0.0
    %6652 = vmatpush1.msra.mxu0 0.0
    %6653 = vmatprep.subr.mxu0 0.0
    %6654 = vmatpush1.msra.mxu0 0.0
    %6655 = vmatprep.subr.mxu0 0.0
    %6656 = vmatpush1.msra.mxu0 0.0
    %6657 = vmatprep.subr.mxu0 0.0
    %6658 = vmatpush1.msra.mxu0 0.0
    %6659 = vmatprep.subr.mxu0 0.0
    %6660 = vmatpush1.msra.mxu0 0.0
    %6661 = vmatprep.subr.mxu0 0.0
    %6662 = vmatpush1.msra.mxu0 0.0
    %6663 = vmatprep.subr.mxu0 0.0
    %6664 = vmatpush1.msra.mxu0 0.0
    %6665 = vmatprep.subr.mxu0 0.0
    %6666 = vmatpush1.msra.mxu0 0.0
    %6667 = vmatprep.subr.mxu0 0.0
    %6668 = vmatpush1.msra.mxu0 0.0
    %6669 = vmatprep.subr.mxu0 0.0
    %6670 = vmatpush1.msra.mxu0 0.0
    %6671 = vmatprep.subr.mxu0 0.0
    %6672 = vmatpush1.msra.mxu0 0.0
    %6673 = vmatprep.subr.mxu0 0.0
    %6674 = vmatpush1.msra.mxu0 0.0
    %6675 = vmatprep.subr.mxu0 0.0
    %6676 = vmatpush1.msra.mxu0 0.0
    %6677 = vmatprep.subr.mxu0 0.0
    %6678 = vmatpush1.msra.mxu0 0.0
    %6679 = vmatprep.subr.mxu0 0.0
    %6680 = vmatpush1.msra.mxu0 0.0
    %6681 = vmatprep.subr.mxu0 0.0
    %6682 = vmatpush1.msra.mxu0 0.0
    %6683 = vmatprep.subr.mxu0 0.0
    %6684 = vmatpush1.msra.mxu0 0.0
    %6685 = vmatprep.subr.mxu0 0.0
    %6686 = vmatpush1.msra.mxu0 0.0
    %6687 = vmatprep.subr.mxu0 0.0
    %6688 = vmatpush1.msra.mxu0 0.0
    %6689 = vmatprep.subr.mxu0 0.0
    %6690 = vmatpush1.msra.mxu0 0.0
    %6691 = vmatprep.subr.mxu0 0.0
    %6692 = vmatpush1.msra.mxu0 0.0
    %6693 = vmatprep.subr.mxu0 0.0
    %6694 = vmatpush1.msra.mxu0 0.0
    %6695 = vmatprep.mubr.f32.mxu0 0.0
    %6696 = vmatmul.mubr.f32.gmra.mrb[0].mxu0 %v6626
    %v6697 = vpop.f32.mrb[0].mxu0
    %v6698 = vadd.f32 0.0, %v6697
    %v6699 = vpop.f32.mrb[0].mxu0
    %6700 = vmatprep.mubr.f32.mxu0 0.0
    %6701 = vmatmul.mubr.f32.gmra.mrb[0].mxu0 %v6629
    %v6702 = vpop.f32.mrb[0].mxu0
    %v6703 = vadd.f32 0.0, %v6702
    %v6704 = vpop.f32.mrb[0].mxu0
    %6705 = vdwg.mxu0
    %6706 = vrot.lane.b32.xlu0 %v5290, 104
    %v6707 = vpop.permute.xlu0 %6706
    %6708 = vrot.lane.b32.xlu0 %v5295, 104
    %v6709 = vpop.permute.xlu0 %6708
    %6710 = vrot.lane.b32.xlu0 %v5385, 104
    %v6711 = vpop.permute.xlu0 %6710
    %6712 = vrot.lane.b32.xlu0 %v5390, 104
    %v6713 = vpop.permute.xlu0 %6712
    %v6714 = vsel %vm723, %v6707, 0
    %v6716 = vsel %vm723, %v6709, 0
    %v6718 = vsel %vm723, %v6711, 0
    %v6720 = vsel %vm723, %v6713, 0
    %6722 = vmatprep.subr.mxu0 0.0
    %6723 = vmatpush1.xpose.msra.mxu0 %v6718
    %6724 = vmatprep.subr.mxu0 0.0
    %6725 = vmatpush1.xpose.msra.mxu0 %v6720
    %6726 = vmatprep.subr.mxu0 0.0
    %6727 = vmatpush1.xpose.msra.mxu0 0.0
    %6728 = vmatprep.subr.mxu0 0.0
    %6729 = vmatpush1.xpose.msra.mxu0 0.0
    %6730 = vmatprep.subr.mxu0 0.0
    %6731 = vmatpush1.xpose.msra.mxu0 0.0
    %6732 = vmatprep.subr.mxu0 0.0
    %6733 = vmatpush1.xpose.msra.mxu0 0.0
    %6734 = vmatprep.subr.mxu0 0.0
    %6735 = vmatpush1.xpose.msra.mxu0 0.0
    %6736 = vmatprep.subr.mxu0 0.0
    %6737 = vmatpush1.xpose.msra.mxu0 0.0
    %6738 = vmatprep.subr.mxu0 0.0
    %6739 = vmatpush1.xpose.msra.mxu0 0.0
    %6740 = vmatprep.subr.mxu0 0.0
    %6741 = vmatpush1.xpose.msra.mxu0 0.0
    %6742 = vmatprep.subr.mxu0 0.0
    %6743 = vmatpush1.xpose.msra.mxu0 0.0
    %6744 = vmatprep.subr.mxu0 0.0
    %6745 = vmatpush1.xpose.msra.mxu0 0.0
    %6746 = vmatprep.subr.mxu0 0.0
    %6747 = vmatpush1.xpose.msra.mxu0 0.0
    %6748 = vmatprep.subr.mxu0 0.0
    %6749 = vmatpush1.xpose.msra.mxu0 0.0
    %6750 = vmatprep.subr.mxu0 0.0
    %6751 = vmatpush1.xpose.msra.mxu0 0.0
    %6752 = vmatprep.subr.mxu0 0.0
    %6753 = vmatpush1.xpose.msra.mxu0 0.0
    %6754 = vmatprep.subr.mxu0 0.0
    %6755 = vmatpush1.xpose.msra.mxu0 0.0
    %6756 = vmatprep.subr.mxu0 0.0
    %6757 = vmatpush1.xpose.msra.mxu0 0.0
    %6758 = vmatprep.subr.mxu0 0.0
    %6759 = vmatpush1.xpose.msra.mxu0 0.0
    %6760 = vmatprep.subr.mxu0 0.0
    %6761 = vmatpush1.xpose.msra.mxu0 0.0
    %6762 = vmatprep.subr.mxu0 0.0
    %6763 = vmatpush1.xpose.msra.mxu0 0.0
    %6764 = vmatprep.subr.mxu0 0.0
    %6765 = vmatpush1.xpose.msra.mxu0 0.0
    %6766 = vmatprep.subr.mxu0 0.0
    %6767 = vmatpush1.xpose.msra.mxu0 0.0
    %6768 = vmatprep.subr.mxu0 0.0
    %6769 = vmatpush1.xpose.msra.mxu0 0.0
    %6770 = vmatprep.subr.mxu0 0.0
    %6771 = vmatpush1.xpose.msra.mxu0 0.0
    %6772 = vmatprep.subr.mxu0 0.0
    %6773 = vmatpush1.xpose.msra.mxu0 0.0
    %6774 = vmatprep.subr.mxu0 0.0
    %6775 = vmatpush1.xpose.msra.mxu0 0.0
    %6776 = vmatprep.subr.mxu0 0.0
    %6777 = vmatpush1.xpose.msra.mxu0 0.0
    %6778 = vmatprep.subr.mxu0 0.0
    %6779 = vmatpush1.xpose.msra.mxu0 0.0
    %6780 = vmatprep.subr.mxu0 0.0
    %6781 = vmatpush1.xpose.msra.mxu0 0.0
    %6782 = vmatprep.subr.mxu0 0.0
    %6783 = vmatpush1.xpose.msra.mxu0 0.0
    %6784 = vmatprep.subr.mxu0 0.0
    %6785 = vmatpush1.xpose.msra.mxu0 0.0
    %6786 = vmatprep.mubr.f32.mxu0 0.0
    %6787 = vmatmul.mubr.f32.gmra.mrb[0].mxu0 %v6714
    %v6788 = vpop.f32.mrb[0].mxu0
    %v6789 = vadd.f32 0.0, %v6788
    %v6790 = vpop.f32.mrb[0].mxu0
    %6791 = vmatprep.mubr.f32.mxu0 0.0
    %6792 = vmatmul.mubr.f32.gmra.mrb[0].mxu0 %v6716
    %v6793 = vpop.f32.mrb[0].mxu0
    %v6794 = vadd.f32 0.0, %v6793
    %v6795 = vpop.f32.mrb[0].mxu0
    %6796 = vdwg.mxu0
    %6797 = vrot.lane.b32.xlu0 %v5300, 104
    %v6798 = vpop.permute.xlu0 %6797
    %6799 = vrot.lane.b32.xlu0 %v5305, 104
    %v6800 = vpop.permute.xlu0 %6799
    %6801 = vrot.lane.b32.xlu0 %v5395, 104
    %v6802 = vpop.permute.xlu0 %6801
    %6803 = vrot.lane.b32.xlu0 %v5400, 104
    %v6804 = vpop.permute.xlu0 %6803
    %v6805 = vsel %vm723, %v6798, 0
    %v6807 = vsel %vm723, %v6800, 0
    %v6809 = vsel %vm723, %v6802, 0
    %v6811 = vsel %vm723, %v6804, 0
    %6813 = vmatprep.subr.mxu0 0.0
    %6814 = vmatpush1.xpose.msra.mxu0 %v6809
    %6815 = vmatprep.subr.mxu0 0.0
    %6816 = vmatpush1.xpose.msra.mxu0 %v6811
    %6817 = vmatprep.subr.mxu0 0.0
    %6818 = vmatpush1.xpose.msra.mxu0 0.0
    %6819 = vmatprep.subr.mxu0 0.0
    %6820 = vmatpush1.xpose.msra.mxu0 0.0
    %6821 = vmatprep.subr.mxu0 0.0
    %6822 = vmatpush1.xpose.msra.mxu0 0.0
    %6823 = vmatprep.subr.mxu0 0.0
    %6824 = vmatpush1.xpose.msra.mxu0 0.0
    %6825 = vmatprep.subr.mxu0 0.0
    %6826 = vmatpush1.xpose.msra.mxu0 0.0
    %6827 = vmatprep.subr.mxu0 0.0
    %6828 = vmatpush1.xpose.msra.mxu0 0.0
    %6829 = vmatprep.subr.mxu0 0.0
    %6830 = vmatpush1.xpose.msra.mxu0 0.0
    %6831 = vmatprep.subr.mxu0 0.0
    %6832 = vmatpush1.xpose.msra.mxu0 0.0
    %6833 = vmatprep.subr.mxu0 0.0
    %6834 = vmatpush1.xpose.msra.mxu0 0.0
    %6835 = vmatprep.subr.mxu0 0.0
    %6836 = vmatpush1.xpose.msra.mxu0 0.0
    %6837 = vmatprep.subr.mxu0 0.0
    %6838 = vmatpush1.xpose.msra.mxu0 0.0
    %6839 = vmatprep.subr.mxu0 0.0
    %6840 = vmatpush1.xpose.msra.mxu0 0.0
    %6841 = vmatprep.subr.mxu0 0.0
    %6842 = vmatpush1.xpose.msra.mxu0 0.0
    %6843 = vmatprep.subr.mxu0 0.0
    %6844 = vmatpush1.xpose.msra.mxu0 0.0
    %6845 = vmatprep.subr.mxu0 0.0
    %6846 = vmatpush1.xpose.msra.mxu0 0.0
    %6847 = vmatprep.subr.mxu0 0.0
    %6848 = vmatpush1.xpose.msra.mxu0 0.0
    %6849 = vmatprep.subr.mxu0 0.0
    %6850 = vmatpush1.xpose.msra.mxu0 0.0
    %6851 = vmatprep.subr.mxu0 0.0
    %6852 = vmatpush1.xpose.msra.mxu0 0.0
    %6853 = vmatprep.subr.mxu0 0.0
    %6854 = vmatpush1.xpose.msra.mxu0 0.0
    %6855 = vmatprep.subr.mxu0 0.0
    %6856 = vmatpush1.xpose.msra.mxu0 0.0
    %6857 = vmatprep.subr.mxu0 0.0
    %6858 = vmatpush1.xpose.msra.mxu0 0.0
    %6859 = vmatprep.subr.mxu0 0.0
    %6860 = vmatpush1.xpose.msra.mxu0 0.0
    %6861 = vmatprep.subr.mxu0 0.0
    %6862 = vmatpush1.xpose.msra.mxu0 0.0
    %6863 = vmatprep.subr.mxu0 0.0
    %6864 = vmatpush1.xpose.msra.mxu0 0.0
    %6865 = vmatprep.subr.mxu0 0.0
    %6866 = vmatpush1.xpose.msra.mxu0 0.0
    %6867 = vmatprep.subr.mxu0 0.0
    %6868 = vmatpush1.xpose.msra.mxu0 0.0
    %6869 = vmatprep.subr.mxu0 0.0
    %6870 = vmatpush1.xpose.msra.mxu0 0.0
    %6871 = vmatprep.subr.mxu0 0.0
    %6872 = vmatpush1.xpose.msra.mxu0 0.0
    %6873 = vmatprep.subr.mxu0 0.0
    %6874 = vmatpush1.xpose.msra.mxu0 0.0
    %6875 = vmatprep.subr.mxu0 0.0
    %6876 = vmatpush1.xpose.msra.mxu0 0.0
    %6877 = vmatprep.mubr.f32.mxu0 0.0
    %6878 = vmatmul.mubr.f32.gmra.mrb[0].mxu0 %v6805
    %v6879 = vpop.f32.mrb[0].mxu0
    %v6880 = vadd.f32 0.0, %v6879
    %v6881 = vpop.f32.mrb[0].mxu0
    %6882 = vmatprep.mubr.f32.mxu0 0.0
    %6883 = vmatmul.mubr.f32.gmra.mrb[0].mxu0 %v6807
    %v6884 = vpop.f32.mrb[0].mxu0
    %v6885 = vadd.f32 0.0, %v6884
    %v6886 = vpop.f32.mrb[0].mxu0
    %6887 = vdwg.mxu0
    %v6888 = vmul.f32 %v6789, 0.35355338
    %v6889 = vmul.f32 %v6794, 0.35355338
    %v6890 = vmul.f32 %v6880, 0.35355338
    %v6891 = vmul.f32 %v6885, 0.35355338
    %v6892 = vsel %vm910, -inf, %v6888
    %v6893 = vsel %vm910, -inf, %v6889
    %v6894 = vsel %vm911, -inf, %v6890
    %v6895 = vsel %vm911, -inf, %v6891
    %v6896 = vsel %vm916, %v6892, -inf
    %6897 = vmax.xlane.f32.xlu0 %v6896
    %v6898 = vpop.xlane.xlu0 %6897
    %v6899 = vsel %vm916, %v6893, -inf
    %6900 = vmax.xlane.f32.xlu0 %v6899
    %v6901 = vpop.xlane.xlu0 %6900
    %v6902 = vsel %vm916, %v6894, -inf
    %6903 = vmax.xlane.f32.xlu0 %v6902
    %v6904 = vpop.xlane.xlu0 %6903
    %v6905 = vsel %vm916, %v6895, -inf
    %6906 = vmax.xlane.f32.xlu0 %v6905
    %v6907 = vpop.xlane.xlu0 %6906
    %v6908 = vsub.f32 %v6892, %v6898
    %v6909 = vsub.f32 %v6893, %v6901
    %v6910 = vsub.f32 %v6894, %v6904
    %v6911 = vsub.f32 %v6895, %v6907
    %v6912 = vmul.f32 %v6908, 1.442695
    %v6913 = vpow.pop %v6912
    %v6914 = vmul.f32 %v6909, 1.442695
    %v6915 = vpow.pop %v6914
    %v6916 = vmul.f32 %v6910, 1.442695
    %v6917 = vpow.pop %v6916
    %v6918 = vmul.f32 %v6911, 1.442695
    %v6919 = vpow.pop %v6918
    %v6920 = vsel %vm916, %v6913, 0.0
    %6921 = vadd.xlane.f32.xlu0 %v6920
    %v6922 = vpop.xlane.xlu0 %6921
    %v6923 = vsel %vm916, %v6915, 0.0
    %6924 = vadd.xlane.f32.xlu0 %v6923
    %v6925 = vpop.xlane.xlu0 %6924
    %v6926 = vsel %vm916, %v6917, 0.0
    %6927 = vadd.xlane.f32.xlu0 %v6926
    %v6928 = vpop.xlane.xlu0 %6927
    %v6929 = vsel %vm916, %v6919, 0.0
    %6930 = vadd.xlane.f32.xlu0 %v6929
    %v6931 = vpop.xlane.xlu0 %6930
    %v6932 = vrcp.pop %v6922
    %v6933 = vmul.f32 %v6913, %v6932
    %v6934 = vrcp.pop %v6925
    %v6935 = vmul.f32 %v6915, %v6934
    %v6936 = vrcp.pop %v6928
    %v6937 = vmul.f32 %v6917, %v6936
    %v6938 = vrcp.pop %v6931
    %v6939 = vmul.f32 %v6919, %v6938
    %6940 = vrot.lane.b32.xlu0 %v5480, 104
    %v6941 = vpop.permute.xlu0 %6940
    %6942 = vrot.lane.b32.xlu0 %v5485, 104
    %v6943 = vpop.permute.xlu0 %6942
    %v6947 = vsel %vm916, %v6933, 0
    %v6950 = vsel %vm916, %v6935, 0
    %6952 = vmatprep.subr.mxu0 0.0
    %6953 = vmatpush1.msra.mxu0 %v6941
    %6954 = vmatprep.subr.mxu0 0.0
    %6955 = vmatpush1.msra.mxu0 %v6943
    %6956 = vmatprep.subr.mxu0 0.0
    %6957 = vmatpush1.msra.mxu0 0.0
    %6958 = vmatprep.subr.mxu0 0.0
    %6959 = vmatpush1.msra.mxu0 0.0
    %6960 = vmatprep.subr.mxu0 0.0
    %6961 = vmatpush1.msra.mxu0 0.0
    %6962 = vmatprep.subr.mxu0 0.0
    %6963 = vmatpush1.msra.mxu0 0.0
    %6964 = vmatprep.subr.mxu0 0.0
    %6965 = vmatpush1.msra.mxu0 0.0
    %6966 = vmatprep.subr.mxu0 0.0
    %6967 = vmatpush1.msra.mxu0 0.0
    %6968 = vmatprep.subr.mxu0 0.0
    %6969 = vmatpush1.msra.mxu0 0.0
    %6970 = vmatprep.subr.mxu0 0.0
    %6971 = vmatpush1.msra.mxu0 0.0
    %6972 = vmatprep.subr.mxu0 0.0
    %6973 = vmatpush1.msra.mxu0 0.0
    %6974 = vmatprep.subr.mxu0 0.0
    %6975 = vmatpush1.msra.mxu0 0.0
    %6976 = vmatprep.subr.mxu0 0.0
    %6977 = vmatpush1.msra.mxu0 0.0
    %6978 = vmatprep.subr.mxu0 0.0
    %6979 = vmatpush1.msra.mxu0 0.0
    %6980 = vmatprep.subr.mxu0 0.0
    %6981 = vmatpush1.msra.mxu0 0.0
    %6982 = vmatprep.subr.mxu0 0.0
    %6983 = vmatpush1.msra.mxu0 0.0
    %6984 = vmatprep.subr.mxu0 0.0
    %6985 = vmatpush1.msra.mxu0 0.0
    %6986 = vmatprep.subr.mxu0 0.0
    %6987 = vmatpush1.msra.mxu0 0.0
    %6988 = vmatprep.subr.mxu0 0.0
    %6989 = vmatpush1.msra.mxu0 0.0
    %6990 = vmatprep.subr.mxu0 0.0
    %6991 = vmatpush1.msra.mxu0 0.0
    %6992 = vmatprep.subr.mxu0 0.0
    %6993 = vmatpush1.msra.mxu0 0.0
    %6994 = vmatprep.subr.mxu0 0.0
    %6995 = vmatpush1.msra.mxu0 0.0
    %6996 = vmatprep.subr.mxu0 0.0
    %6997 = vmatpush1.msra.mxu0 0.0
    %6998 = vmatprep.subr.mxu0 0.0
    %6999 = vmatpush1.msra.mxu0 0.0
    %7000 = vmatprep.subr.mxu0 0.0
    %7001 = vmatpush1.msra.mxu0 0.0
    %7002 = vmatprep.subr.mxu0 0.0
    %7003 = vmatpush1.msra.mxu0 0.0
    %7004 = vmatprep.subr.mxu0 0.0
    %7005 = vmatpush1.msra.mxu0 0.0
    %7006 = vmatprep.subr.mxu0 0.0
    %7007 = vmatpush1.msra.mxu0 0.0
    %7008 = vmatprep.subr.mxu0 0.0
    %7009 = vmatpush1.msra.mxu0 0.0
    %7010 = vmatprep.subr.mxu0 0.0
    %7011 = vmatpush1.msra.mxu0 0.0
    %7012 = vmatprep.subr.mxu0 0.0
    %7013 = vmatpush1.msra.mxu0 0.0
    %7014 = vmatprep.subr.mxu0 0.0
    %7015 = vmatpush1.msra.mxu0 0.0
    %7016 = vmatprep.mubr.f32.mxu0 0.0
    %7017 = vmatmul.mubr.f32.gmra.mrb[0].mxu0 %v6947
    %v7018 = vpop.f32.mrb[0].mxu0
    %v7019 = vadd.f32 0.0, %v7018
    %v7020 = vpop.f32.mrb[0].mxu0
    %7021 = vmatprep.mubr.f32.mxu0 0.0
    %7022 = vmatmul.mubr.f32.gmra.mrb[0].mxu0 %v6950
    %v7023 = vpop.f32.mrb[0].mxu0
    %v7024 = vadd.f32 0.0, %v7023
    %v7025 = vpop.f32.mrb[0].mxu0
    %7026 = vdwg.mxu0
    %7027 = vrot.lane.b32.xlu0 %v5490, 104
    %v7028 = vpop.permute.xlu0 %7027
    %7029 = vrot.lane.b32.xlu0 %v5495, 104
    %v7030 = vpop.permute.xlu0 %7029
    %v7034 = vsel %vm916, %v6937, 0
    %v7037 = vsel %vm916, %v6939, 0
    %7039 = vmatprep.subr.mxu0 0.0
    %7040 = vmatpush1.msra.mxu0 %v7028
    %7041 = vmatprep.subr.mxu0 0.0
    %7042 = vmatpush1.msra.mxu0 %v7030
    %7043 = vmatprep.subr.mxu0 0.0
    %7044 = vmatpush1.msra.mxu0 0.0
    %7045 = vmatprep.subr.mxu0 0.0
    %7046 = vmatpush1.msra.mxu0 0.0
    %7047 = vmatprep.subr.mxu0 0.0
    %7048 = vmatpush1.msra.mxu0 0.0
    %7049 = vmatprep.subr.mxu0 0.0
    %7050 = vmatpush1.msra.mxu0 0.0
    %7051 = vmatprep.subr.mxu0 0.0
    %7052 = vmatpush1.msra.mxu0 0.0
    %7053 = vmatprep.subr.mxu0 0.0
    %7054 = vmatpush1.msra.mxu0 0.0
    %7055 = vmatprep.subr.mxu0 0.0
    %7056 = vmatpush1.msra.mxu0 0.0
    %7057 = vmatprep.subr.mxu0 0.0
    %7058 = vmatpush1.msra.mxu0 0.0
    %7059 = vmatprep.subr.mxu0 0.0
    %7060 = vmatpush1.msra.mxu0 0.0
    %7061 = vmatprep.subr.mxu0 0.0
    %7062 = vmatpush1.msra.mxu0 0.0
    %7063 = vmatprep.subr.mxu0 0.0
    %7064 = vmatpush1.msra.mxu0 0.0
    %7065 = vmatprep.subr.mxu0 0.0
    %7066 = vmatpush1.msra.mxu0 0.0
    %7067 = vmatprep.subr.mxu0 0.0
    %7068 = vmatpush1.msra.mxu0 0.0
    %7069 = vmatprep.subr.mxu0 0.0
    %7070 = vmatpush1.msra.mxu0 0.0
    %7071 = vmatprep.subr.mxu0 0.0
    %7072 = vmatpush1.msra.mxu0 0.0
    %7073 = vmatprep.subr.mxu0 0.0
    %7074 = vmatpush1.msra.mxu0 0.0
    %7075 = vmatprep.subr.mxu0 0.0
    %7076 = vmatpush1.msra.mxu0 0.0
    %7077 = vmatprep.subr.mxu0 0.0
    %7078 = vmatpush1.msra.mxu0 0.0
    %7079 = vmatprep.subr.mxu0 0.0
    %7080 = vmatpush1.msra.mxu0 0.0
    %7081 = vmatprep.subr.mxu0 0.0
    %7082 = vmatpush1.msra.mxu0 0.0
    %7083 = vmatprep.subr.mxu0 0.0
    %7084 = vmatpush1.msra.mxu0 0.0
    %7085 = vmatprep.subr.mxu0 0.0
    %7086 = vmatpush1.msra.mxu0 0.0
    %7087 = vmatprep.subr.mxu0 0.0
    %7088 = vmatpush1.msra.mxu0 0.0
    %7089 = vmatprep.subr.mxu0 0.0
    %7090 = vmatpush1.msra.mxu0 0.0
    %7091 = vmatprep.subr.mxu0 0.0
    %7092 = vmatpush1.msra.mxu0 0.0
    %7093 = vmatprep.subr.mxu0 0.0
    %7094 = vmatpush1.msra.mxu0 0.0
    %7095 = vmatprep.subr.mxu0 0.0
    %7096 = vmatpush1.msra.mxu0 0.0
    %7097 = vmatprep.subr.mxu0 0.0
    %7098 = vmatpush1.msra.mxu0 0.0
    %7099 = vmatprep.subr.mxu0 0.0
    %7100 = vmatpush1.msra.mxu0 0.0
    %7101 = vmatprep.subr.mxu0 0.0
    %7102 = vmatpush1.msra.mxu0 0.0
    %7103 = vmatprep.mubr.f32.mxu0 0.0
    %7104 = vmatmul.mubr.f32.gmra.mrb[0].mxu0 %v7034
    %v7105 = vpop.f32.mrb[0].mxu0
    %v7106 = vadd.f32 0.0, %v7105
    %v7107 = vpop.f32.mrb[0].mxu0
    %7108 = vmatprep.mubr.f32.mxu0 0.0
    %7109 = vmatmul.mubr.f32.gmra.mrb[0].mxu0 %v7037
    %v7110 = vpop.f32.mrb[0].mxu0
    %v7111 = vadd.f32 0.0, %v7110
    %v7112 = vpop.f32.mrb[0].mxu0
    %7113 = vdwg.mxu0
    %7118 = vrot.lane.b32.xlu0 %v6201, 8
    %v7119 = vpop.permute.xlu0 %7118
    %7120 = vrot.lane.b32.xlu0 %v6206, 8
    %v7121 = vpop.permute.xlu0 %7120
    %7122 = vrot.lane.b32.xlu0 %v6290, 8
    %v7123 = vpop.permute.xlu0 %7122
    %7124 = vrot.lane.b32.xlu0 %v6295, 8
    %v7125 = vpop.permute.xlu0 %7124
    %7134 = vrot.lane.b32.xlu0 %v6611, 16
    %v7135 = vpop.permute.xlu0 %7134
    %7136 = vrot.lane.b32.xlu0 %v6616, 16
    %v7137 = vpop.permute.xlu0 %7136
    %7138 = vrot.lane.b32.xlu0 %v6698, 16
    %v7139 = vpop.permute.xlu0 %7138
    %7140 = vrot.lane.b32.xlu0 %v6703, 16
    %v7141 = vpop.permute.xlu0 %7140
    %7150 = vrot.lane.b32.xlu0 %v7019, 24
    %v7151 = vpop.permute.xlu0 %7150
    %7152 = vrot.lane.b32.xlu0 %v7024, 24
    %v7153 = vpop.permute.xlu0 %7152
    %7154 = vrot.lane.b32.xlu0 %v7106, 24
    %v7155 = vpop.permute.xlu0 %7154
    %7156 = vrot.lane.b32.xlu0 %v7111, 24
    %v7157 = vpop.permute.xlu0 %7156
    %v7162 = vsel %vm723, %v5797, %v7119
    %v7163 = vsel %vm723, %v5802, %v7121
    %v7164 = vsel %vm723, %v5878, %v7123
    %v7165 = vsel %vm723, %v5883, %v7125
    %v7166 = vsel %vm916, %v7162, %v7135
    %v7167 = vsel %vm916, %v7163, %v7137
    %v7168 = vsel %vm916, %v7164, %v7139
    %v7169 = vsel %vm916, %v7165, %v7141
    %v7170 = vsel %vm2407, %v7166, %v7151
    %v7171 = vsel %vm2407, %v7167, %v7153
    %v7172 = vsel %vm2407, %v7168, %v7155
    %v7173 = vsel %vm2407, %v7169, %v7157
    %s7174 = scalar_lea.vmem [#allocation2], 384
    %v7175 = vld [vmem:[%s7174] sm:$0xff]
    %v7176 = vld [vmem:[%s7174 + $0x8] sm:$0xff]
    %v7177 = vld [vmem:[%s7174 + $0x10] sm:$0xff]
    %v7178 = vld [vmem:[%s7174 + $0x18] sm:$0xff]
    %v7179 = vld [vmem:[%s4 + $0x17] sm:$0x1]
    %v7180 = vlaneseq
    %v7181 = vshrl.u32 %v7180, 7
    %v7182 = vsub.s32 0, %v7181
    %v7183 = vrot.slane %v7179, %v7182
    %v7185 = vsel %vm64, %v7170, 0
    %v7188 = vsel %vm64, %v7171, 0
    %v7191 = vsel %vm64, %v7172, 0
    %v7194 = vsel %vm64, %v7173, 0
    %7196 = vmatprep.subr.mxu0 0.0
    %7197 = vmatpush1.msra.mxu0 %v7175
    %7198 = vmatprep.subr.mxu0 0.0
    %7199 = vmatpush1.msra.mxu0 %v7176
    %7200 = vmatprep.subr.mxu0 0.0
    %7201 = vmatpush1.msra.mxu0 %v7177
    %7202 = vmatprep.subr.mxu0 0.0
    %7203 = vmatpush1.msra.mxu0 %v7178
    %7204 = vmatprep.subr.mxu0 0.0
    %7205 = vmatpush1.msra.mxu0 0.0
    %7206 = vmatprep.subr.mxu0 0.0
    %7207 = vmatpush1.msra.mxu0 0.0
    %7208 = vmatprep.subr.mxu0 0.0
    %7209 = vmatpush1.msra.mxu0 0.0
    %7210 = vmatprep.subr.mxu0 0.0
    %7211 = vmatpush1.msra.mxu0 0.0
    %7212 = vmatprep.subr.mxu0 0.0
    %7213 = vmatpush1.msra.mxu0 0.0
    %7214 = vmatprep.subr.mxu0 0.0
    %7215 = vmatpush1.msra.mxu0 0.0
    %7216 = vmatprep.subr.mxu0 0.0
    %7217 = vmatpush1.msra.mxu0 0.0
    %7218 = vmatprep.subr.mxu0 0.0
    %7219 = vmatpush1.msra.mxu0 0.0
    %7220 = vmatprep.subr.mxu0 0.0
    %7221 = vmatpush1.msra.mxu0 0.0
    %7222 = vmatprep.subr.mxu0 0.0
    %7223 = vmatpush1.msra.mxu0 0.0
    %7224 = vmatprep.subr.mxu0 0.0
    %7225 = vmatpush1.msra.mxu0 0.0
    %7226 = vmatprep.subr.mxu0 0.0
    %7227 = vmatpush1.msra.mxu0 0.0
    %7228 = vmatprep.subr.mxu0 0.0
    %7229 = vmatpush1.msra.mxu0 0.0
    %7230 = vmatprep.subr.mxu0 0.0
    %7231 = vmatpush1.msra.mxu0 0.0
    %7232 = vmatprep.subr.mxu0 0.0
    %7233 = vmatpush1.msra.mxu0 0.0
    %7234 = vmatprep.subr.mxu0 0.0
    %7235 = vmatpush1.msra.mxu0 0.0
    %7236 = vmatprep.subr.mxu0 0.0
    %7237 = vmatpush1.msra.mxu0 0.0
    %7238 = vmatprep.subr.mxu0 0.0
    %7239 = vmatpush1.msra.mxu0 0.0
    %7240 = vmatprep.subr.mxu0 0.0
    %7241 = vmatpush1.msra.mxu0 0.0
    %7242 = vmatprep.subr.mxu0 0.0
    %7243 = vmatpush1.msra.mxu0 0.0
    %7244 = vmatprep.subr.mxu0 0.0
    %7245 = vmatpush1.msra.mxu0 0.0
    %7246 = vmatprep.subr.mxu0 0.0
    %7247 = vmatpush1.msra.mxu0 0.0
    %7248 = vmatprep.subr.mxu0 0.0
    %7249 = vmatpush1.msra.mxu0 0.0
    %7250 = vmatprep.subr.mxu0 0.0
    %7251 = vmatpush1.msra.mxu0 0.0
    %7252 = vmatprep.subr.mxu0 0.0
    %7253 = vmatpush1.msra.mxu0 0.0
    %7254 = vmatprep.subr.mxu0 0.0
    %7255 = vmatpush1.msra.mxu0 0.0
    %7256 = vmatprep.subr.mxu0 0.0
    %7257 = vmatpush1.msra.mxu0 0.0
    %7258 = vmatprep.subr.mxu0 0.0
    %7259 = vmatpush1.msra.mxu0 0.0
    %7260 = vmatprep.mubr.f32.mxu0 0.0
    %7261 = vmatmul.mubr.f32.gmra.mrb[0].mxu0 %v7185
    %v7262 = vpop.f32.mrb[0].mxu0
    %v7263 = vadd.f32 %v7183, %v7262
    %v7264 = vpop.f32.mrb[0].mxu0
    %7265 = vmatprep.mubr.f32.mxu0 0.0
    %7266 = vmatmul.mubr.f32.gmra.mrb[0].mxu0 %v7188
    %v7267 = vpop.f32.mrb[0].mxu0
    %v7268 = vadd.f32 %v7183, %v7267
    %v7269 = vpop.f32.mrb[0].mxu0
    %7270 = vmatprep.mubr.f32.mxu0 0.0
    %7271 = vmatmul.mubr.f32.gmra.mrb[0].mxu0 %v7191
    %v7272 = vpop.f32.mrb[0].mxu0
    %v7273 = vadd.f32 %v7183, %v7272
    %v7274 = vpop.f32.mrb[0].mxu0
    %7275 = vmatprep.mubr.f32.mxu0 0.0
    %7276 = vmatmul.mubr.f32.gmra.mrb[0].mxu0 %v7194
    %v7277 = vpop.f32.mrb[0].mxu0
    %v7278 = vadd.f32 %v7183, %v7277
    %v7279 = vpop.f32.mrb[0].mxu0
    %7280 = vdwg.mxu0
    %v7281 = vadd.f32 %v5197, %v7263
    %v7282 = vadd.f32 %v5198, %v7268
    %v7283 = vadd.f32 %v5199, %v7273
    %v7284 = vadd.f32 %v5200, %v7278
    %v7285 = vld [vmem:[%s4 + $0x18] sm:$0x1]
    %v7286 = vld [vmem:[%s4 + $0x19] sm:$0x1]
    %v7287 = vsel %vm64, %v7281, 0.0
    %7288 = vadd.xlane.f32.xlu0 %v7287
    %v7289 = vpop.xlane.xlu0 %7288
    %v7290 = vsel %vm64, %v7282, 0.0
    %7291 = vadd.xlane.f32.xlu0 %v7290
    %v7292 = vpop.xlane.xlu0 %7291
    %v7293 = vsel %vm64, %v7283, 0.0
    %7294 = vadd.xlane.f32.xlu0 %v7293
    %v7295 = vpop.xlane.xlu0 %7294
    %v7296 = vsel %vm64, %v7284, 0.0
    %7297 = vadd.xlane.f32.xlu0 %v7296
    %v7298 = vpop.xlane.xlu0 %7297
    %v7299 = vmul.f32 %v7289, %v205
    %v7300 = vmul.f32 %v7292, %v205
    %v7301 = vmul.f32 %v7295, %v205
    %v7302 = vmul.f32 %v7298, %v205
    %v7303 = vsub.f32 %v7281, %v7299
    %v7304 = vsub.f32 %v7282, %v7300
    %v7305 = vsub.f32 %v7283, %v7301
    %v7306 = vsub.f32 %v7284, %v7302
    %v7307 = vmul.f32 %v7303, %v7303
    %v7308 = vmul.f32 %v7304, %v7304
    %v7309 = vmul.f32 %v7305, %v7305
    %v7310 = vmul.f32 %v7306, %v7306
    %v7311 = vsel %vm64, %v7307, 0.0
    %7312 = vadd.xlane.f32.xlu0 %v7311
    %v7313 = vpop.xlane.xlu0 %7312
    %v7314 = vsel %vm64, %v7308, 0.0
    %7315 = vadd.xlane.f32.xlu0 %v7314
    %v7316 = vpop.xlane.xlu0 %7315
    %v7317 = vsel %vm64, %v7309, 0.0
    %7318 = vadd.xlane.f32.xlu0 %v7317
    %v7319 = vpop.xlane.xlu0 %7318
    %v7320 = vsel %vm64, %v7310, 0.0
    %7321 = vadd.xlane.f32.xlu0 %v7320
    %v7322 = vpop.xlane.xlu0 %7321
    %v7323 = vmul.f32 %v7313, %v205
    %v7324 = vmul.f32 %v7316, %v205
    %v7325 = vmul.f32 %v7319, %v205
    %v7326 = vmul.f32 %v7322, %v205
    %v7327 = vadd.f32 %v7323, 1e-05
    %v7328 = vadd.f32 %v7324, 1e-05
    %v7329 = vadd.f32 %v7325, 1e-05
    %v7330 = vadd.f32 %v7326, 1e-05
    %v7331 = vrsqrt.pop %v7327
    %v7332 = vrsqrt.pop %v7328
    %v7333 = vrsqrt.pop %v7329
    %v7334 = vrsqrt.pop %v7330
    %v7335 = vmul.f32 %v7303, %v7331
    %v7336 = vmul.f32 %v7304, %v7332
    %v7337 = vmul.f32 %v7305, %v7333
    %v7338 = vmul.f32 %v7306, %v7334
    %v7339 = vlaneseq
    %v7340 = vshrl.u32 %v7339, 7
    %v7341 = vsub.s32 0, %v7340
    %v7342 = vrot.slane %v7285, %v7341
    %v7343 = vmul.f32 %v7335, %v7342
    %v7344 = vmul.f32 %v7336, %v7342
    %v7345 = vmul.f32 %v7337, %v7342
    %v7346 = vmul.f32 %v7338, %v7342
    %v7347 = vlaneseq
    %v7348 = vshrl.u32 %v7347, 7
    %v7349 = vsub.s32 0, %v7348
    %v7350 = vrot.slane %v7286, %v7349
    %v7351 = vadd.f32 %v7343, %v7350
    %v7352 = vadd.f32 %v7344, %v7350
    %v7353 = vadd.f32 %v7345, %v7350
    %v7354 = vadd.f32 %v7346, %v7350
    %s7355 = scalar_lea.vmem [#allocation2], 416
    %v7356 = vld [vmem:[%s7355] sm:$0xff]
    %v7357 = vld [vmem:[%s7355 + $0x8] sm:$0xff]
    %v7358 = vld [vmem:[%s7355 + $0x10] sm:$0xff]
    %v7359 = vld [vmem:[%s7355 + $0x18] sm:$0xff]
    %v7360 = vld [vmem:[%s4 + $0x1a] sm:$0x1]
    %v7361 = vlaneseq
    %v7362 = vshrl.u32 %v7361, 7
    %v7363 = vsub.s32 0, %v7362
    %v7364 = vrot.slane %v7360, %v7363
    %7365 = vmatprep.subr.mxu0 0.0
    %7366 = vmatpush1.msra.mxu0 %v7356
    %7367 = vmatprep.subr.mxu0 0.0
    %7368 = vmatpush1.msra.mxu0 %v7357
    %7369 = vmatprep.subr.mxu0 0.0
    %7370 = vmatpush1.msra.mxu0 %v7358
    %7371 = vmatprep.subr.mxu0 0.0
    %7372 = vmatpush1.msra.mxu0 %v7359
    %7373 = vmatprep.subr.mxu0 0.0
    %7374 = vmatpush1.msra.mxu0 0.0
    %7375 = vmatprep.subr.mxu0 0.0
    %7376 = vmatpush1.msra.mxu0 0.0
    %7377 = vmatprep.subr.mxu0 0.0
    %7378 = vmatpush1.msra.mxu0 0.0
    %7379 = vmatprep.subr.mxu0 0.0
    %7380 = vmatpush1.msra.mxu0 0.0
    %7381 = vmatprep.subr.mxu0 0.0
    %7382 = vmatpush1.msra.mxu0 0.0
    %7383 = vmatprep.subr.mxu0 0.0
    %7384 = vmatpush1.msra.mxu0 0.0
    %7385 = vmatprep.subr.mxu0 0.0
    %7386 = vmatpush1.msra.mxu0 0.0
    %7387 = vmatprep.subr.mxu0 0.0
    %7388 = vmatpush1.msra.mxu0 0.0
    %7389 = vmatprep.subr.mxu0 0.0
    %7390 = vmatpush1.msra.mxu0 0.0
    %7391 = vmatprep.subr.mxu0 0.0
    %7392 = vmatpush1.msra.mxu0 0.0
    %7393 = vmatprep.subr.mxu0 0.0
    %7394 = vmatpush1.msra.mxu0 0.0
    %7395 = vmatprep.subr.mxu0 0.0
    %7396 = vmatpush1.msra.mxu0 0.0
    %7397 = vmatprep.subr.mxu0 0.0
    %7398 = vmatpush1.msra.mxu0 0.0
    %7399 = vmatprep.subr.mxu0 0.0
    %7400 = vmatpush1.msra.mxu0 0.0
    %7401 = vmatprep.subr.mxu0 0.0
    %7402 = vmatpush1.msra.mxu0 0.0
    %7403 = vmatprep.subr.mxu0 0.0
    %7404 = vmatpush1.msra.mxu0 0.0
    %7405 = vmatprep.subr.mxu0 0.0
    %7406 = vmatpush1.msra.mxu0 0.0
    %7407 = vmatprep.subr.mxu0 0.0
    %7408 = vmatpush1.msra.mxu0 0.0
    %7409 = vmatprep.subr.mxu0 0.0
    %7410 = vmatpush1.msra.mxu0 0.0
    %7411 = vmatprep.subr.mxu0 0.0
    %7412 = vmatpush1.msra.mxu0 0.0
    %7413 = vmatprep.subr.mxu0 0.0
    %7414 = vmatpush1.msra.mxu0 0.0
    %7415 = vmatprep.subr.mxu0 0.0
    %7416 = vmatpush1.msra.mxu0 0.0
    %7417 = vmatprep.subr.mxu0 0.0
    %7418 = vmatpush1.msra.mxu0 0.0
    %7419 = vmatprep.subr.mxu0 0.0
    %7420 = vmatpush1.msra.mxu0 0.0
    %7421 = vmatprep.subr.mxu0 0.0
    %7422 = vmatpush1.msra.mxu0 0.0
    %7423 = vmatprep.subr.mxu0 0.0
    %7424 = vmatpush1.msra.mxu0 0.0
    %7425 = vmatprep.subr.mxu0 0.0
    %7426 = vmatpush1.msra.mxu0 0.0
    %7427 = vmatprep.subr.mxu0 0.0
    %7428 = vmatpush1.msra.mxu0 0.0
    %7429 = vmatprep.mubr.f32.mxu0 0.0
    %7430 = vmatmul.mubr.f32.gmra.mrb[0].mxu0 %v5212
    %v7431 = vpop.f32.mrb[0].mxu0
    %v7432 = vadd.f32 %v7364, %v7431
    %v7433 = vpop.f32.mrb[0].mxu0
    %7434 = vmatprep.mubr.f32.mxu0 0.0
    %7435 = vmatmul.mubr.f32.gmra.mrb[0].mxu0 %v5215
    %v7436 = vpop.f32.mrb[0].mxu0
    %v7437 = vadd.f32 %v7364, %v7436
    %v7438 = vpop.f32.mrb[0].mxu0
    %7439 = vmatprep.mubr.f32.mxu0 0.0
    %7440 = vmatmul.mubr.f32.gmra.mrb[0].mxu0 %v5218
    %v7441 = vpop.f32.mrb[0].mxu0
    %v7442 = vadd.f32 %v7364, %v7441
    %v7443 = vpop.f32.mrb[0].mxu0
    %7444 = vmatprep.mubr.f32.mxu0 0.0
    %7445 = vmatmul.mubr.f32.gmra.mrb[0].mxu0 %v5221
    %v7446 = vpop.f32.mrb[0].mxu0
    %v7447 = vadd.f32 %v7364, %v7446
    %v7448 = vpop.f32.mrb[0].mxu0
    %7449 = vdwg.mxu0
    %s7450 = scalar_lea.vmem [#allocation2], 448
    %v7451 = vld [vmem:[%s7450] sm:$0xff]
    %v7452 = vld [vmem:[%s7450 + $0x8] sm:$0xff]
    %v7453 = vld [vmem:[%s7450 + $0x10] sm:$0xff]
    %v7454 = vld [vmem:[%s7450 + $0x18] sm:$0xff]
    %v7455 = vld [vmem:[%s4 + $0x1b] sm:$0x1]
    %v7456 = vlaneseq
    %v7457 = vshrl.u32 %v7456, 7
    %v7458 = vsub.s32 0, %v7457
    %v7459 = vrot.slane %v7455, %v7458
    %7460 = vmatprep.subr.mxu0 0.0
    %7461 = vmatpush1.msra.mxu0 %v7451
    %7462 = vmatprep.subr.mxu0 0.0
    %7463 = vmatpush1.msra.mxu0 %v7452
    %7464 = vmatprep.subr.mxu0 0.0
    %7465 = vmatpush1.msra.mxu0 %v7453
    %7466 = vmatprep.subr.mxu0 0.0
    %7467 = vmatpush1.msra.mxu0 %v7454
    %7468 = vmatprep.subr.mxu0 0.0
    %7469 = vmatpush1.msra.mxu0 0.0
    %7470 = vmatprep.subr.mxu0 0.0
    %7471 = vmatpush1.msra.mxu0 0.0
    %7472 = vmatprep.subr.mxu0 0.0
    %7473 = vmatpush1.msra.mxu0 0.0
    %7474 = vmatprep.subr.mxu0 0.0
    %7475 = vmatpush1.msra.mxu0 0.0
    %7476 = vmatprep.subr.mxu0 0.0
    %7477 = vmatpush1.msra.mxu0 0.0
    %7478 = vmatprep.subr.mxu0 0.0
    %7479 = vmatpush1.msra.mxu0 0.0
    %7480 = vmatprep.subr.mxu0 0.0
    %7481 = vmatpush1.msra.mxu0 0.0
    %7482 = vmatprep.subr.mxu0 0.0
    %7483 = vmatpush1.msra.mxu0 0.0
    %7484 = vmatprep.subr.mxu0 0.0
    %7485 = vmatpush1.msra.mxu0 0.0
    %7486 = vmatprep.subr.mxu0 0.0
    %7487 = vmatpush1.msra.mxu0 0.0
    %7488 = vmatprep.subr.mxu0 0.0
    %7489 = vmatpush1.msra.mxu0 0.0
    %7490 = vmatprep.subr.mxu0 0.0
    %7491 = vmatpush1.msra.mxu0 0.0
    %7492 = vmatprep.subr.mxu0 0.0
    %7493 = vmatpush1.msra.mxu0 0.0
    %7494 = vmatprep.subr.mxu0 0.0
    %7495 = vmatpush1.msra.mxu0 0.0
    %7496 = vmatprep.subr.mxu0 0.0
    %7497 = vmatpush1.msra.mxu0 0.0
    %7498 = vmatprep.subr.mxu0 0.0
    %7499 = vmatpush1.msra.mxu0 0.0
    %7500 = vmatprep.subr.mxu0 0.0
    %7501 = vmatpush1.msra.mxu0 0.0
    %7502 = vmatprep.subr.mxu0 0.0
    %7503 = vmatpush1.msra.mxu0 0.0
    %7504 = vmatprep.subr.mxu0 0.0
    %7505 = vmatpush1.msra.mxu0 0.0
    %7506 = vmatprep.subr.mxu0 0.0
    %7507 = vmatpush1.msra.mxu0 0.0
    %7508 = vmatprep.subr.mxu0 0.0
    %7509 = vmatpush1.msra.mxu0 0.0
    %7510 = vmatprep.subr.mxu0 0.0
    %7511 = vmatpush1.msra.mxu0 0.0
    %7512 = vmatprep.subr.mxu0 0.0
    %7513 = vmatpush1.msra.mxu0 0.0
    %7514 = vmatprep.subr.mxu0 0.0
    %7515 = vmatpush1.msra.mxu0 0.0
    %7516 = vmatprep.subr.mxu0 0.0
    %7517 = vmatpush1.msra.mxu0 0.0
    %7518 = vmatprep.subr.mxu0 0.0
    %7519 = vmatpush1.msra.mxu0 0.0
    %7520 = vmatprep.subr.mxu0 0.0
    %7521 = vmatpush1.msra.mxu0 0.0
    %7522 = vmatprep.subr.mxu0 0.0
    %7523 = vmatpush1.msra.mxu0 0.0
    %7524 = vmatprep.mubr.f32.mxu0 0.0
    %7525 = vmatmul.mubr.f32.gmra.mrb[0].mxu0 %v5212
    %v7526 = vpop.f32.mrb[0].mxu0
    %v7527 = vadd.f32 %v7459, %v7526
    %v7528 = vpop.f32.mrb[0].mxu0
    %7529 = vmatprep.mubr.f32.mxu0 0.0
    %7530 = vmatmul.mubr.f32.gmra.mrb[0].mxu0 %v5215
    %v7531 = vpop.f32.mrb[0].mxu0
    %v7532 = vadd.f32 %v7459, %v7531
    %v7533 = vpop.f32.mrb[0].mxu0
    %7534 = vmatprep.mubr.f32.mxu0 0.0
    %7535 = vmatmul.mubr.f32.gmra.mrb[0].mxu0 %v5218
    %v7536 = vpop.f32.mrb[0].mxu0
    %v7537 = vadd.f32 %v7459, %v7536
    %v7538 = vpop.f32.mrb[0].mxu0
    %7539 = vmatprep.mubr.f32.mxu0 0.0
    %7540 = vmatmul.mubr.f32.gmra.mrb[0].mxu0 %v5221
    %v7541 = vpop.f32.mrb[0].mxu0
    %v7542 = vadd.f32 %v7459, %v7541
    %v7543 = vpop.f32.mrb[0].mxu0
    %7544 = vdwg.mxu0
    %s7545 = scalar_lea.vmem [#allocation2], 480
    %v7546 = vld [vmem:[%s7545] sm:$0xff]
    %v7547 = vld [vmem:[%s7545 + $0x8] sm:$0xff]
    %v7548 = vld [vmem:[%s7545 + $0x10] sm:$0xff]
    %v7549 = vld [vmem:[%s7545 + $0x18] sm:$0xff]
    %v7550 = vld [vmem:[%s4 + $0x1c] sm:$0x1]
    %v7551 = vlaneseq
    %v7552 = vshrl.u32 %v7551, 7
    %v7553 = vsub.s32 0, %v7552
    %v7554 = vrot.slane %v7550, %v7553
    %7555 = vmatprep.subr.mxu0 0.0
    %7556 = vmatpush1.msra.mxu0 %v7546
    %7557 = vmatprep.subr.mxu0 0.0
    %7558 = vmatpush1.msra.mxu0 %v7547
    %7559 = vmatprep.subr.mxu0 0.0
    %7560 = vmatpush1.msra.mxu0 %v7548
    %7561 = vmatprep.subr.mxu0 0.0
    %7562 = vmatpush1.msra.mxu0 %v7549
    %7563 = vmatprep.subr.mxu0 0.0
    %7564 = vmatpush1.msra.mxu0 0.0
    %7565 = vmatprep.subr.mxu0 0.0
    %7566 = vmatpush1.msra.mxu0 0.0
    %7567 = vmatprep.subr.mxu0 0.0
    %7568 = vmatpush1.msra.mxu0 0.0
    %7569 = vmatprep.subr.mxu0 0.0
    %7570 = vmatpush1.msra.mxu0 0.0
    %7571 = vmatprep.subr.mxu0 0.0
    %7572 = vmatpush1.msra.mxu0 0.0
    %7573 = vmatprep.subr.mxu0 0.0
    %7574 = vmatpush1.msra.mxu0 0.0
    %7575 = vmatprep.subr.mxu0 0.0
    %7576 = vmatpush1.msra.mxu0 0.0
    %7577 = vmatprep.subr.mxu0 0.0
    %7578 = vmatpush1.msra.mxu0 0.0
    %7579 = vmatprep.subr.mxu0 0.0
    %7580 = vmatpush1.msra.mxu0 0.0
    %7581 = vmatprep.subr.mxu0 0.0
    %7582 = vmatpush1.msra.mxu0 0.0
    %7583 = vmatprep.subr.mxu0 0.0
    %7584 = vmatpush1.msra.mxu0 0.0
    %7585 = vmatprep.subr.mxu0 0.0
    %7586 = vmatpush1.msra.mxu0 0.0
    %7587 = vmatprep.subr.mxu0 0.0
    %7588 = vmatpush1.msra.mxu0 0.0
    %7589 = vmatprep.subr.mxu0 0.0
    %7590 = vmatpush1.msra.mxu0 0.0
    %7591 = vmatprep.subr.mxu0 0.0
    %7592 = vmatpush1.msra.mxu0 0.0
    %7593 = vmatprep.subr.mxu0 0.0
    %7594 = vmatpush1.msra.mxu0 0.0
    %7595 = vmatprep.subr.mxu0 0.0
    %7596 = vmatpush1.msra.mxu0 0.0
    %7597 = vmatprep.subr.mxu0 0.0
    %7598 = vmatpush1.msra.mxu0 0.0
    %7599 = vmatprep.subr.mxu0 0.0
    %7600 = vmatpush1.msra.mxu0 0.0
    %7601 = vmatprep.subr.mxu0 0.0
    %7602 = vmatpush1.msra.mxu0 0.0
    %7603 = vmatprep.subr.mxu0 0.0
    %7604 = vmatpush1.msra.mxu0 0.0
    %7605 = vmatprep.subr.mxu0 0.0
    %7606 = vmatpush1.msra.mxu0 0.0
    %7607 = vmatprep.subr.mxu0 0.0
    %7608 = vmatpush1.msra.mxu0 0.0
    %7609 = vmatprep.subr.mxu0 0.0
    %7610 = vmatpush1.msra.mxu0 0.0
    %7611 = vmatprep.subr.mxu0 0.0
    %7612 = vmatpush1.msra.mxu0 0.0
    %7613 = vmatprep.subr.mxu0 0.0
    %7614 = vmatpush1.msra.mxu0 0.0
    %7615 = vmatprep.subr.mxu0 0.0
    %7616 = vmatpush1.msra.mxu0 0.0
    %7617 = vmatprep.subr.mxu0 0.0
    %7618 = vmatpush1.msra.mxu0 0.0
    %7619 = vmatprep.mubr.f32.mxu0 0.0
    %7620 = vmatmul.mubr.f32.gmra.mrb[0].mxu0 %v5212
    %v7621 = vpop.f32.mrb[0].mxu0
    %v7622 = vadd.f32 %v7554, %v7621
    %v7623 = vpop.f32.mrb[0].mxu0
    %7624 = vmatprep.mubr.f32.mxu0 0.0
    %7625 = vmatmul.mubr.f32.gmra.mrb[0].mxu0 %v5215
    %v7626 = vpop.f32.mrb[0].mxu0
    %v7627 = vadd.f32 %v7554, %v7626
    %v7628 = vpop.f32.mrb[0].mxu0
    %7629 = vmatprep.mubr.f32.mxu0 0.0
    %7630 = vmatmul.mubr.f32.gmra.mrb[0].mxu0 %v5218
    %v7631 = vpop.f32.mrb[0].mxu0
    %v7632 = vadd.f32 %v7554, %v7631
    %v7633 = vpop.f32.mrb[0].mxu0
    %7634 = vmatprep.mubr.f32.mxu0 0.0
    %7635 = vmatmul.mubr.f32.gmra.mrb[0].mxu0 %v5221
    %v7636 = vpop.f32.mrb[0].mxu0
    %v7637 = vadd.f32 %v7554, %v7636
    %v7638 = vpop.f32.mrb[0].mxu0
    %7639 = vdwg.mxu0
    %7640 = vxpose.xlu0.b32.start [1/16] %v7432, 128
    %7641 = vxpose.xlu0.b32.cont [2/16] %v7437, 128
    %7642 = vxpose.xlu0.b32.cont [3/16] 0.0, 128
    %7643 = vxpose.xlu0.b32.cont [4/16] 0.0, 128
    %7644 = vxpose.xlu0.b32.cont [5/16] 0.0, 128
    %7645 = vxpose.xlu0.b32.cont [6/16] 0.0, 128
    %7646 = vxpose.xlu0.b32.cont [7/16] 0.0, 128
    %7647 = vxpose.xlu0.b32.cont [8/16] 0.0, 128
    %7648 = vxpose.xlu0.b32.cont [9/16] 0.0, 128
    %7649 = vxpose.xlu0.b32.cont [10/16] 0.0, 128
    %7650 = vxpose.xlu0.b32.cont [11/16] 0.0, 128
    %7651 = vxpose.xlu0.b32.cont [12/16] 0.0, 128
    %7652 = vxpose.xlu0.b32.cont [13/16] 0.0, 128
    %7653 = vxpose.xlu0.b32.cont [14/16] 0.0, 128
    %7654 = vxpose.xlu0.b32.cont [15/16] 0.0, 128
    %7655 = vxpose.xlu0.b32.end [16/16] 0.0, 128
    %v7656 = vpop.trf.xlu0
    %v7657 = vpop.trf.xlu0
    %v7658 = vpop.trf.xlu0
    %v7659 = vpop.trf.xlu0
    %v7660 = vpop.trf.xlu0
    %v7661 = vpop.trf.xlu0
    %v7662 = vpop.trf.xlu0
    %v7663 = vpop.trf.xlu0
    %v7664 = vpop.trf.xlu0
    %v7665 = vpop.trf.xlu0
    %v7666 = vpop.trf.xlu0
    %v7667 = vpop.trf.xlu0
    %v7668 = vpop.trf.xlu0
    %v7669 = vpop.trf.xlu0
    %v7670 = vpop.trf.xlu0
    %v7671 = vpop.trf.xlu0
    %v7673 = vsel %vm916, %v7656, 0
    %7675 = vmatprep.subr.mxu0 0.0
    %7676 = vmatpush1.msra.mxu0 %v7527
    %7677 = vmatprep.subr.mxu0 0.0
    %7678 = vmatpush1.msra.mxu0 %v7532
    %7679 = vmatprep.subr.mxu0 0.0
    %7680 = vmatpush1.msra.mxu0 0.0
    %7681 = vmatprep.subr.mxu0 0.0
    %7682 = vmatpush1.msra.mxu0 0.0
    %7683 = vmatprep.subr.mxu0 0.0
    %7684 = vmatpush1.msra.mxu0 0.0
    %7685 = vmatprep.subr.mxu0 0.0
    %7686 = vmatpush1.msra.mxu0 0.0
    %7687 = vmatprep.subr.mxu0 0.0
    %7688 = vmatpush1.msra.mxu0 0.0
    %7689 = vmatprep.subr.mxu0 0.0
    %7690 = vmatpush1.msra.mxu0 0.0
    %7691 = vmatprep.subr.mxu0 0.0
    %7692 = vmatpush1.msra.mxu0 0.0
    %7693 = vmatprep.subr.mxu0 0.0
    %7694 = vmatpush1.msra.mxu0 0.0
    %7695 = vmatprep.subr.mxu0 0.0
    %7696 = vmatpush1.msra.mxu0 0.0
    %7697 = vmatprep.subr.mxu0 0.0
    %7698 = vmatpush1.msra.mxu0 0.0
    %7699 = vmatprep.subr.mxu0 0.0
    %7700 = vmatpush1.msra.mxu0 0.0
    %7701 = vmatprep.subr.mxu0 0.0
    %7702 = vmatpush1.msra.mxu0 0.0
    %7703 = vmatprep.subr.mxu0 0.0
    %7704 = vmatpush1.msra.mxu0 0.0
    %7705 = vmatprep.subr.mxu0 0.0
    %7706 = vmatpush1.msra.mxu0 0.0
    %7707 = vmatprep.subr.mxu0 0.0
    %7708 = vmatpush1.msra.mxu0 0.0
    %7709 = vmatprep.subr.mxu0 0.0
    %7710 = vmatpush1.msra.mxu0 0.0
    %7711 = vmatprep.subr.mxu0 0.0
    %7712 = vmatpush1.msra.mxu0 0.0
    %7713 = vmatprep.subr.mxu0 0.0
    %7714 = vmatpush1.msra.mxu0 0.0
    %7715 = vmatprep.subr.mxu0 0.0
    %7716 = vmatpush1.msra.mxu0 0.0
    %7717 = vmatprep.subr.mxu0 0.0
    %7718 = vmatpush1.msra.mxu0 0.0
    %7719 = vmatprep.subr.mxu0 0.0
    %7720 = vmatpush1.msra.mxu0 0.0
    %7721 = vmatprep.subr.mxu0 0.0
    %7722 = vmatpush1.msra.mxu0 0.0
    %7723 = vmatprep.subr.mxu0 0.0
    %7724 = vmatpush1.msra.mxu0 0.0
    %7725 = vmatprep.subr.mxu0 0.0
    %7726 = vmatpush1.msra.mxu0 0.0
    %7727 = vmatprep.subr.mxu0 0.0
    %7728 = vmatpush1.msra.mxu0 0.0
    %7729 = vmatprep.subr.mxu0 0.0
    %7730 = vmatpush1.msra.mxu0 0.0
    %7731 = vmatprep.subr.mxu0 0.0
    %7732 = vmatpush1.msra.mxu0 0.0
    %7733 = vmatprep.subr.mxu0 0.0
    %7734 = vmatpush1.msra.mxu0 0.0
    %7735 = vmatprep.subr.mxu0 0.0
    %7736 = vmatpush1.msra.mxu0 0.0
    %7737 = vmatprep.subr.mxu0 0.0
    %7738 = vmatpush1.msra.mxu0 0.0
    %7739 = vmatprep.mubr.f32.mxu0 0.0
    %7740 = vmatmul.mubr.f32.gmra.mrb[0].mxu0 %v7673
    %v7741 = vpop.f32.mrb[0].mxu0
    %v7742 = vadd.f32 0.0, %v7741
    %v7743 = vpop.f32.mrb[0].mxu0
    %7744 = vdwg.mxu0
    %7745 = vxpose.xlu0.b32.start [1/16] %v7442, 128
    %7746 = vxpose.xlu0.b32.cont [2/16] %v7447, 128
    %7747 = vxpose.xlu0.b32.cont [3/16] 0.0, 128
    %7748 = vxpose.xlu0.b32.cont [4/16] 0.0, 128
    %7749 = vxpose.xlu0.b32.cont [5/16] 0.0, 128
    %7750 = vxpose.xlu0.b32.cont [6/16] 0.0, 128
    %7751 = vxpose.xlu0.b32.cont [7/16] 0.0, 128
    %7752 = vxpose.xlu0.b32.cont [8/16] 0.0, 128
    %7753 = vxpose.xlu0.b32.cont [9/16] 0.0, 128
    %7754 = vxpose.xlu0.b32.cont [10/16] 0.0, 128
    %7755 = vxpose.xlu0.b32.cont [11/16] 0.0, 128
    %7756 = vxpose.xlu0.b32.cont [12/16] 0.0, 128
    %7757 = vxpose.xlu0.b32.cont [13/16] 0.0, 128
    %7758 = vxpose.xlu0.b32.cont [14/16] 0.0, 128
    %7759 = vxpose.xlu0.b32.cont [15/16] 0.0, 128
    %7760 = vxpose.xlu0.b32.end [16/16] 0.0, 128
    %v7761 = vpop.trf.xlu0
    %v7762 = vpop.trf.xlu0
    %v7763 = vpop.trf.xlu0
    %v7764 = vpop.trf.xlu0
    %v7765 = vpop.trf.xlu0
    %v7766 = vpop.trf.xlu0
    %v7767 = vpop.trf.xlu0
    %v7768 = vpop.trf.xlu0
    %v7769 = vpop.trf.xlu0
    %v7770 = vpop.trf.xlu0
    %v7771 = vpop.trf.xlu0
    %v7772 = vpop.trf.xlu0
    %v7773 = vpop.trf.xlu0
    %v7774 = vpop.trf.xlu0
    %v7775 = vpop.trf.xlu0
    %v7776 = vpop.trf.xlu0
    %v7778 = vsel %vm916, %v7761, 0
    %7780 = vmatprep.subr.mxu0 0.0
    %7781 = vmatpush1.msra.mxu0 %v7537
    %7782 = vmatprep.subr.mxu0 0.0
    %7783 = vmatpush1.msra.mxu0 %v7542
    %7784 = vmatprep.subr.mxu0 0.0
    %7785 = vmatpush1.msra.mxu0 0.0
    %7786 = vmatprep.subr.mxu0 0.0
    %7787 = vmatpush1.msra.mxu0 0.0
    %7788 = vmatprep.subr.mxu0 0.0
    %7789 = vmatpush1.msra.mxu0 0.0
    %7790 = vmatprep.subr.mxu0 0.0
    %7791 = vmatpush1.msra.mxu0 0.0
    %7792 = vmatprep.subr.mxu0 0.0
    %7793 = vmatpush1.msra.mxu0 0.0
    %7794 = vmatprep.subr.mxu0 0.0
    %7795 = vmatpush1.msra.mxu0 0.0
    %7796 = vmatprep.subr.mxu0 0.0
    %7797 = vmatpush1.msra.mxu0 0.0
    %7798 = vmatprep.subr.mxu0 0.0
    %7799 = vmatpush1.msra.mxu0 0.0
    %7800 = vmatprep.subr.mxu0 0.0
    %7801 = vmatpush1.msra.mxu0 0.0
    %7802 = vmatprep.subr.mxu0 0.0
    %7803 = vmatpush1.msra.mxu0 0.0
    %7804 = vmatprep.subr.mxu0 0.0
    %7805 = vmatpush1.msra.mxu0 0.0
    %7806 = vmatprep.subr.mxu0 0.0
    %7807 = vmatpush1.msra.mxu0 0.0
    %7808 = vmatprep.subr.mxu0 0.0
    %7809 = vmatpush1.msra.mxu0 0.0
    %7810 = vmatprep.subr.mxu0 0.0
    %7811 = vmatpush1.msra.mxu0 0.0
    %7812 = vmatprep.subr.mxu0 0.0
    %7813 = vmatpush1.msra.mxu0 0.0
    %7814 = vmatprep.subr.mxu0 0.0
    %7815 = vmatpush1.msra.mxu0 0.0
    %7816 = vmatprep.subr.mxu0 0.0
    %7817 = vmatpush1.msra.mxu0 0.0
    %7818 = vmatprep.subr.mxu0 0.0
    %7819 = vmatpush1.msra.mxu0 0.0
    %7820 = vmatprep.subr.mxu0 0.0
    %7821 = vmatpush1.msra.mxu0 0.0
    %7822 = vmatprep.subr.mxu0 0.0
    %7823 = vmatpush1.msra.mxu0 0.0
    %7824 = vmatprep.subr.mxu0 0.0
    %7825 = vmatpush1.msra.mxu0 0.0
    %7826 = vmatprep.subr.mxu0 0.0
    %7827 = vmatpush1.msra.mxu0 0.0
    %7828 = vmatprep.subr.mxu0 0.0
    %7829 = vmatpush1.msra.mxu0 0.0
    %7830 = vmatprep.subr.mxu0 0.0
    %7831 = vmatpush1.msra.mxu0 0.0
    %7832 = vmatprep.subr.mxu0 0.0
    %7833 = vmatpush1.msra.mxu0 0.0
    %7834 = vmatprep.subr.mxu0 0.0
    %7835 = vmatpush1.msra.mxu0 0.0
    %7836 = vmatprep.subr.mxu0 0.0
    %7837 = vmatpush1.msra.mxu0 0.0
    %7838 = vmatprep.subr.mxu0 0.0
    %7839 = vmatpush1.msra.mxu0 0.0
    %7840 = vmatprep.subr.mxu0 0.0
    %7841 = vmatpush1.msra.mxu0 0.0
    %7842 = vmatprep.subr.mxu0 0.0
    %7843 = vmatpush1.msra.mxu0 0.0
    %7844 = vmatprep.mubr.f32.mxu0 0.0
    %7845 = vmatmul.mubr.f32.gmra.mrb[0].mxu0 %v7778
    %v7846 = vpop.f32.mrb[0].mxu0
    %v7847 = vadd.f32 0.0, %v7846
    %v7848 = vpop.f32.mrb[0].mxu0
    %7849 = vdwg.mxu0
    %v7850 = vmul.f32 %v7742, 0.25
    %v7851 = vmul.f32 %v7847, 0.25
    %v7852 = vsel %vm723, %v7850, -inf
    %7853 = vmax.xlane.f32.xlu0 %v7852
    %v7854 = vpop.xlane.xlu0 %7853
    %v7855 = vsel %vm723, %v7851, -inf
    %7856 = vmax.xlane.f32.xlu0 %v7855
    %v7857 = vpop.xlane.xlu0 %7856
    %v7858 = vsub.f32 %v7850, %v7854
    %v7859 = vsub.f32 %v7851, %v7857
    %v7860 = vmul.f32 %v7858, 1.442695
    %v7861 = vpow.pop %v7860
    %v7862 = vmul.f32 %v7859, 1.442695
    %v7863 = vpow.pop %v7862
    %v7864 = vsel %vm723, %v7861, 0.0
    %7865 = vadd.xlane.f32.xlu0 %v7864
    %v7866 = vpop.xlane.xlu0 %7865
    %v7867 = vsel %vm723, %v7863, 0.0
    %7868 = vadd.xlane.f32.xlu0 %v7867
    %v7869 = vpop.xlane.xlu0 %7868
    %v7870 = vrcp.pop %v7866
    %v7871 = vmul.f32 %v7861, %v7870
    %v7872 = vrcp.pop %v7869
    %v7873 = vmul.f32 %v7863, %v7872
    %v7875 = vsel %vm723, %v7622, 0
    %v7878 = vsel %vm723, %v7627, 0
    %v7881 = vsel %vm723, %v7871, 0
    %7883 = vmatprep.subr.mxu0 0.0
    %7884 = vmatpush1.xpose.msra.mxu0 %v7881
    %7885 = vmatprep.subr.mxu0 0.0
    %7886 = vmatpush1.xpose.msra.mxu0 0.0
    %7887 = vmatprep.subr.mxu0 0.0
    %7888 = vmatpush1.xpose.msra.mxu0 0.0
    %7889 = vmatprep.subr.mxu0 0.0
    %7890 = vmatpush1.xpose.msra.mxu0 0.0
    %7891 = vmatprep.subr.mxu0 0.0
    %7892 = vmatpush1.xpose.msra.mxu0 0.0
    %7893 = vmatprep.subr.mxu0 0.0
    %7894 = vmatpush1.xpose.msra.mxu0 0.0
    %7895 = vmatprep.subr.mxu0 0.0
    %7896 = vmatpush1.xpose.msra.mxu0 0.0
    %7897 = vmatprep.subr.mxu0 0.0
    %7898 = vmatpush1.xpose.msra.mxu0 0.0
    %7899 = vmatprep.subr.mxu0 0.0
    %7900 = vmatpush1.xpose.msra.mxu0 0.0
    %7901 = vmatprep.subr.mxu0 0.0
    %7902 = vmatpush1.xpose.msra.mxu0 0.0
    %7903 = vmatprep.subr.mxu0 0.0
    %7904 = vmatpush1.xpose.msra.mxu0 0.0
    %7905 = vmatprep.subr.mxu0 0.0
    %7906 = vmatpush1.xpose.msra.mxu0 0.0
    %7907 = vmatprep.subr.mxu0 0.0
    %7908 = vmatpush1.xpose.msra.mxu0 0.0
    %7909 = vmatprep.subr.mxu0 0.0
    %7910 = vmatpush1.xpose.msra.mxu0 0.0
    %7911 = vmatprep.subr.mxu0 0.0
    %7912 = vmatpush1.xpose.msra.mxu0 0.0
    %7913 = vmatprep.subr.mxu0 0.0
    %7914 = vmatpush1.xpose.msra.mxu0 0.0
    %7915 = vmatprep.subr.mxu0 0.0
    %7916 = vmatpush1.xpose.msra.mxu0 0.0
    %7917 = vmatprep.subr.mxu0 0.0
    %7918 = vmatpush1.xpose.msra.mxu0 0.0
    %7919 = vmatprep.subr.mxu0 0.0
    %7920 = vmatpush1.xpose.msra.mxu0 0.0
    %7921 = vmatprep.subr.mxu0 0.0
    %7922 = vmatpush1.xpose.msra.mxu0 0.0
    %7923 = vmatprep.subr.mxu0 0.0
    %7924 = vmatpush1.xpose.msra.mxu0 0.0
    %7925 = vmatprep.subr.mxu0 0.0
    %7926 = vmatpush1.xpose.msra.mxu0 0.0
    %7927 = vmatprep.subr.mxu0 0.0
    %7928 = vmatpush1.xpose.msra.mxu0 0.0
    %7929 = vmatprep.subr.mxu0 0.0
    %7930 = vmatpush1.xpose.msra.mxu0 0.0
    %7931 = vmatprep.subr.mxu0 0.0
    %7932 = vmatpush1.xpose.msra.mxu0 0.0
    %7933 = vmatprep.subr.mxu0 0.0
    %7934 = vmatpush1.xpose.msra.mxu0 0.0
    %7935 = vmatprep.subr.mxu0 0.0
    %7936 = vmatpush1.xpose.msra.mxu0 0.0
    %7937 = vmatprep.subr.mxu0 0.0
    %7938 = vmatpush1.xpose.msra.mxu0 0.0
    %7939 = vmatprep.subr.mxu0 0.0
    %7940 = vmatpush1.xpose.msra.mxu0 0.0
    %7941 = vmatprep.subr.mxu0 0.0
    %7942 = vmatpush1.xpose.msra.mxu0 0.0
    %7943 = vmatprep.subr.mxu0 0.0
    %7944 = vmatpush1.xpose.msra.mxu0 0.0
    %7945 = vmatprep.subr.mxu0 0.0
    %7946 = vmatpush1.xpose.msra.mxu0 0.0
    %7947 = vmatprep.mubr.f32.mxu0 0.0
    %7948 = vmatmul.mubr.f32.gmra.mrb[0].mxu0 %v7875
    %v7949 = vpop.f32.mrb[0].mxu0
    %v7950 = vadd.f32 0.0, %v7949
    %v7951 = vpop.f32.mrb[0].mxu0
    %7952 = vmatprep.mubr.f32.mxu0 0.0
    %7953 = vmatmul.mubr.f32.gmra.mrb[0].mxu0 %v7878
    %v7954 = vpop.f32.mrb[0].mxu0
    %v7955 = vadd.f32 0.0, %v7954
    %v7956 = vpop.f32.mrb[0].mxu0
    %7957 = vdwg.mxu0
    %v7959 = vsel %vm723, %v7632, 0
    %v7962 = vsel %vm723, %v7637, 0
    %v7965 = vsel %vm723, %v7873, 0
    %7967 = vmatprep.subr.mxu0 0.0
    %7968 = vmatpush1.xpose.msra.mxu0 %v7965
    %7969 = vmatprep.subr.mxu0 0.0
    %7970 = vmatpush1.xpose.msra.mxu0 0.0
    %7971 = vmatprep.subr.mxu0 0.0
    %7972 = vmatpush1.xpose.msra.mxu0 0.0
    %7973 = vmatprep.subr.mxu0 0.0
    %7974 = vmatpush1.xpose.msra.mxu0 0.0
    %7975 = vmatprep.subr.mxu0 0.0
    %7976 = vmatpush1.xpose.msra.mxu0 0.0
    %7977 = vmatprep.subr.mxu0 0.0
    %7978 = vmatpush1.xpose.msra.mxu0 0.0
    %7979 = vmatprep.subr.mxu0 0.0
    %7980 = vmatpush1.xpose.msra.mxu0 0.0
    %7981 = vmatprep.subr.mxu0 0.0
    %7982 = vmatpush1.xpose.msra.mxu0 0.0
    %7983 = vmatprep.subr.mxu0 0.0
    %7984 = vmatpush1.xpose.msra.mxu0 0.0
    %7985 = vmatprep.subr.mxu0 0.0
    %7986 = vmatpush1.xpose.msra.mxu0 0.0
    %7987 = vmatprep.subr.mxu0 0.0
    %7988 = vmatpush1.xpose.msra.mxu0 0.0
    %7989 = vmatprep.subr.mxu0 0.0
    %7990 = vmatpush1.xpose.msra.mxu0 0.0
    %7991 = vmatprep.subr.mxu0 0.0
    %7992 = vmatpush1.xpose.msra.mxu0 0.0
    %7993 = vmatprep.subr.mxu0 0.0
    %7994 = vmatpush1.xpose.msra.mxu0 0.0
    %7995 = vmatprep.subr.mxu0 0.0
    %7996 = vmatpush1.xpose.msra.mxu0 0.0
    %7997 = vmatprep.subr.mxu0 0.0
    %7998 = vmatpush1.xpose.msra.mxu0 0.0
    %7999 = vmatprep.subr.mxu0 0.0
    %8000 = vmatpush1.xpose.msra.mxu0 0.0
    %8001 = vmatprep.subr.mxu0 0.0
    %8002 = vmatpush1.xpose.msra.mxu0 0.0
    %8003 = vmatprep.subr.mxu0 0.0
    %8004 = vmatpush1.xpose.msra.mxu0 0.0
    %8005 = vmatprep.subr.mxu0 0.0
    %8006 = vmatpush1.xpose.msra.mxu0 0.0
    %8007 = vmatprep.subr.mxu0 0.0
    %8008 = vmatpush1.xpose.msra.mxu0 0.0
    %8009 = vmatprep.subr.mxu0 0.0
    %8010 = vmatpush1.xpose.msra.mxu0 0.0
    %8011 = vmatprep.subr.mxu0 0.0
    %8012 = vmatpush1.xpose.msra.mxu0 0.0
    %8013 = vmatprep.subr.mxu0 0.0
    %8014 = vmatpush1.xpose.msra.mxu0 0.0
    %8015 = vmatprep.subr.mxu0 0.0
    %8016 = vmatpush1.xpose.msra.mxu0 0.0
    %8017 = vmatprep.subr.mxu0 0.0
    %8018 = vmatpush1.xpose.msra.mxu0 0.0
    %8019 = vmatprep.subr.mxu0 0.0
    %8020 = vmatpush1.xpose.msra.mxu0 0.0
    %8021 = vmatprep.subr.mxu0 0.0
    %8022 = vmatpush1.xpose.msra.mxu0 0.0
    %8023 = vmatprep.subr.mxu0 0.0
    %8024 = vmatpush1.xpose.msra.mxu0 0.0
    %8025 = vmatprep.subr.mxu0 0.0
    %8026 = vmatpush1.xpose.msra.mxu0 0.0
    %8027 = vmatprep.subr.mxu0 0.0
    %8028 = vmatpush1.xpose.msra.mxu0 0.0
    %8029 = vmatprep.subr.mxu0 0.0
    %8030 = vmatpush1.xpose.msra.mxu0 0.0
    %8031 = vmatprep.mubr.f32.mxu0 0.0
    %8032 = vmatmul.mubr.f32.gmra.mrb[0].mxu0 %v7959
    %v8033 = vpop.f32.mrb[0].mxu0
    %v8034 = vadd.f32 0.0, %v8033
    %v8035 = vpop.f32.mrb[0].mxu0
    %8036 = vmatprep.mubr.f32.mxu0 0.0
    %8037 = vmatmul.mubr.f32.gmra.mrb[0].mxu0 %v7962
    %v8038 = vpop.f32.mrb[0].mxu0
    %v8039 = vadd.f32 0.0, %v8038
    %v8040 = vpop.f32.mrb[0].mxu0
    %8041 = vdwg.mxu0
    %8044 = vrot.lane.b32.xlu0 %v7432, 120
    %v8045 = vpop.permute.xlu0 %8044
    %8046 = vrot.lane.b32.xlu0 %v7437, 120
    %v8047 = vpop.permute.xlu0 %8046
    %8050 = vxpose.xlu0.b32.start [1/16] %v8045, 128
    %8051 = vxpose.xlu0.b32.cont [2/16] %v8047, 128
    %8052 = vxpose.xlu0.b32.cont [3/16] 0.0, 128
    %8053 = vxpose.xlu0.b32.cont [4/16] 0.0, 128
    %8054 = vxpose.xlu0.b32.cont [5/16] 0.0, 128
    %8055 = vxpose.xlu0.b32.cont [6/16] 0.0, 128
    %8056 = vxpose.xlu0.b32.cont [7/16] 0.0, 128
    %8057 = vxpose.xlu0.b32.cont [8/16] 0.0, 128
    %8058 = vxpose.xlu0.b32.cont [9/16] 0.0, 128
    %8059 = vxpose.xlu0.b32.cont [10/16] 0.0, 128
    %8060 = vxpose.xlu0.b32.cont [11/16] 0.0, 128
    %8061 = vxpose.xlu0.b32.cont [12/16] 0.0, 128
    %8062 = vxpose.xlu0.b32.cont [13/16] 0.0, 128
    %8063 = vxpose.xlu0.b32.cont [14/16] 0.0, 128
    %8064 = vxpose.xlu0.b32.cont [15/16] 0.0, 128
    %8065 = vxpose.xlu0.b32.end [16/16] 0.0, 128
    %v8066 = vpop.trf.xlu0
    %v8067 = vpop.trf.xlu0
    %v8068 = vpop.trf.xlu0
    %v8069 = vpop.trf.xlu0
    %v8070 = vpop.trf.xlu0
    %v8071 = vpop.trf.xlu0
    %v8072 = vpop.trf.xlu0
    %v8073 = vpop.trf.xlu0
    %v8074 = vpop.trf.xlu0
    %v8075 = vpop.trf.xlu0
    %v8076 = vpop.trf.xlu0
    %v8077 = vpop.trf.xlu0
    %v8078 = vpop.trf.xlu0
    %v8079 = vpop.trf.xlu0
    %v8080 = vpop.trf.xlu0
    %v8081 = vpop.trf.xlu0
    %8084 = vrot.lane.b32.xlu0 %v7527, 120
    %v8085 = vpop.permute.xlu0 %8084
    %8086 = vrot.lane.b32.xlu0 %v7532, 120
    %v8087 = vpop.permute.xlu0 %8086
    %v8091 = vsel %vm916, %v8066, 0
    %8093 = vmatprep.subr.mxu0 0.0
    %8094 = vmatpush1.msra.mxu0 %v8085
    %8095 = vmatprep.subr.mxu0 0.0
    %8096 = vmatpush1.msra.mxu0 %v8087
    %8097 = vmatprep.subr.mxu0 0.0
    %8098 = vmatpush1.msra.mxu0 0.0
    %8099 = vmatprep.subr.mxu0 0.0
    %8100 = vmatpush1.msra.mxu0 0.0
    %8101 = vmatprep.subr.mxu0 0.0
    %8102 = vmatpush1.msra.mxu0 0.0
    %8103 = vmatprep.subr.mxu0 0.0
    %8104 = vmatpush1.msra.mxu0 0.0
    %8105 = vmatprep.subr.mxu0 0.0
    %8106 = vmatpush1.msra.mxu0 0.0
    %8107 = vmatprep.subr.mxu0 0.0
    %8108 = vmatpush1.msra.mxu0 0.0
    %8109 = vmatprep.subr.mxu0 0.0
    %8110 = vmatpush1.msra.mxu0 0.0
    %8111 = vmatprep.subr.mxu0 0.0
    %8112 = vmatpush1.msra.mxu0 0.0
    %8113 = vmatprep.subr.mxu0 0.0
    %8114 = vmatpush1.msra.mxu0 0.0
    %8115 = vmatprep.subr.mxu0 0.0
    %8116 = vmatpush1.msra.mxu0 0.0
    %8117 = vmatprep.subr.mxu0 0.0
    %8118 = vmatpush1.msra.mxu0 0.0
    %8119 = vmatprep.subr.mxu0 0.0
    %8120 = vmatpush1.msra.mxu0 0.0
    %8121 = vmatprep.subr.mxu0 0.0
    %8122 = vmatpush1.msra.mxu0 0.0
    %8123 = vmatprep.subr.mxu0 0.0
    %8124 = vmatpush1.msra.mxu0 0.0
    %8125 = vmatprep.subr.mxu0 0.0
    %8126 = vmatpush1.msra.mxu0 0.0
    %8127 = vmatprep.subr.mxu0 0.0
    %8128 = vmatpush1.msra.mxu0 0.0
    %8129 = vmatprep.subr.mxu0 0.0
    %8130 = vmatpush1.msra.mxu0 0.0
    %8131 = vmatprep.subr.mxu0 0.0
    %8132 = vmatpush1.msra.mxu0 0.0
    %8133 = vmatprep.subr.mxu0 0.0
    %8134 = vmatpush1.msra.mxu0 0.0
    %8135 = vmatprep.subr.mxu0 0.0
    %8136 = vmatpush1.msra.mxu0 0.0
    %8137 = vmatprep.subr.mxu0 0.0
    %8138 = vmatpush1.msra.mxu0 0.0
    %8139 = vmatprep.subr.mxu0 0.0
    %8140 = vmatpush1.msra.mxu0 0.0
    %8141 = vmatprep.subr.mxu0 0.0
    %8142 = vmatpush1.msra.mxu0 0.0
    %8143 = vmatprep.subr.mxu0 0.0
    %8144 = vmatpush1.msra.mxu0 0.0
    %8145 = vmatprep.subr.mxu0 0.0
    %8146 = vmatpush1.msra.mxu0 0.0
    %8147 = vmatprep.subr.mxu0 0.0
    %8148 = vmatpush1.msra.mxu0 0.0
    %8149 = vmatprep.subr.mxu0 0.0
    %8150 = vmatpush1.msra.mxu0 0.0
    %8151 = vmatprep.subr.mxu0 0.0
    %8152 = vmatpush1.msra.mxu0 0.0
    %8153 = vmatprep.subr.mxu0 0.0
    %8154 = vmatpush1.msra.mxu0 0.0
    %8155 = vmatprep.subr.mxu0 0.0
    %8156 = vmatpush1.msra.mxu0 0.0
    %8157 = vmatprep.mubr.f32.mxu0 0.0
    %8158 = vmatmul.mubr.f32.gmra.mrb[0].mxu0 %v8091
    %v8159 = vpop.f32.mrb[0].mxu0
    %v8160 = vadd.f32 0.0, %v8159
    %v8161 = vpop.f32.mrb[0].mxu0
    %8162 = vdwg.mxu0
    %8165 = vrot.lane.b32.xlu0 %v7442, 120
    %v8166 = vpop.permute.xlu0 %8165
    %8167 = vrot.lane.b32.xlu0 %v7447, 120
    %v8168 = vpop.permute.xlu0 %8167
    %8171 = vxpose.xlu0.b32.start [1/16] %v8166, 128
    %8172 = vxpose.xlu0.b32.cont [2/16] %v8168, 128
    %8173 = vxpose.xlu0.b32.cont [3/16] 0.0, 128
    %8174 = vxpose.xlu0.b32.cont [4/16] 0.0, 128
    %8175 = vxpose.xlu0.b32.cont [5/16] 0.0, 128
    %8176 = vxpose.xlu0.b32.cont [6/16] 0.0, 128
    %8177 = vxpose.xlu0.b32.cont [7/16] 0.0, 128
    %8178 = vxpose.xlu0.b32.cont [8/16] 0.0, 128
    %8179 = vxpose.xlu0.b32.cont [9/16] 0.0, 128
    %8180 = vxpose.xlu0.b32.cont [10/16] 0.0, 128
    %8181 = vxpose.xlu0.b32.cont [11/16] 0.0, 128
    %8182 = vxpose.xlu0.b32.cont [12/16] 0.0, 128
    %8183 = vxpose.xlu0.b32.cont [13/16] 0.0, 128
    %8184 = vxpose.xlu0.b32.cont [14/16] 0.0, 128
    %8185 = vxpose.xlu0.b32.cont [15/16] 0.0, 128
    %8186 = vxpose.xlu0.b32.end [16/16] 0.0, 128
    %v8187 = vpop.trf.xlu0
    %v8188 = vpop.trf.xlu0
    %v8189 = vpop.trf.xlu0
    %v8190 = vpop.trf.xlu0
    %v8191 = vpop.trf.xlu0
    %v8192 = vpop.trf.xlu0
    %v8193 = vpop.trf.xlu0
    %v8194 = vpop.trf.xlu0
    %v8195 = vpop.trf.xlu0
    %v8196 = vpop.trf.xlu0
    %v8197 = vpop.trf.xlu0
    %v8198 = vpop.trf.xlu0
    %v8199 = vpop.trf.xlu0
    %v8200 = vpop.trf.xlu0
    %v8201 = vpop.trf.xlu0
    %v8202 = vpop.trf.xlu0
    %8205 = vrot.lane.b32.xlu0 %v7537, 120
    %v8206 = vpop.permute.xlu0 %8205
    %8207 = vrot.lane.b32.xlu0 %v7542, 120
    %v8208 = vpop.permute.xlu0 %8207
    %v8212 = vsel %vm916, %v8187, 0
    %8214 = vmatprep.subr.mxu0 0.0
    %8215 = vmatpush1.msra.mxu0 %v8206
    %8216 = vmatprep.subr.mxu0 0.0
    %8217 = vmatpush1.msra.mxu0 %v8208
    %8218 = vmatprep.subr.mxu0 0.0
    %8219 = vmatpush1.msra.mxu0 0.0
    %8220 = vmatprep.subr.mxu0 0.0
    %8221 = vmatpush1.msra.mxu0 0.0
    %8222 = vmatprep.subr.mxu0 0.0
    %8223 = vmatpush1.msra.mxu0 0.0
    %8224 = vmatprep.subr.mxu0 0.0
    %8225 = vmatpush1.msra.mxu0 0.0
    %8226 = vmatprep.subr.mxu0 0.0
    %8227 = vmatpush1.msra.mxu0 0.0
    %8228 = vmatprep.subr.mxu0 0.0
    %8229 = vmatpush1.msra.mxu0 0.0
    %8230 = vmatprep.subr.mxu0 0.0
    %8231 = vmatpush1.msra.mxu0 0.0
    %8232 = vmatprep.subr.mxu0 0.0
    %8233 = vmatpush1.msra.mxu0 0.0
    %8234 = vmatprep.subr.mxu0 0.0
    %8235 = vmatpush1.msra.mxu0 0.0
    %8236 = vmatprep.subr.mxu0 0.0
    %8237 = vmatpush1.msra.mxu0 0.0
    %8238 = vmatprep.subr.mxu0 0.0
    %8239 = vmatpush1.msra.mxu0 0.0
    %8240 = vmatprep.subr.mxu0 0.0
    %8241 = vmatpush1.msra.mxu0 0.0
    %8242 = vmatprep.subr.mxu0 0.0
    %8243 = vmatpush1.msra.mxu0 0.0
    %8244 = vmatprep.subr.mxu0 0.0
    %8245 = vmatpush1.msra.mxu0 0.0
    %8246 = vmatprep.subr.mxu0 0.0
    %8247 = vmatpush1.msra.mxu0 0.0
    %8248 = vmatprep.subr.mxu0 0.0
    %8249 = vmatpush1.msra.mxu0 0.0
    %8250 = vmatprep.subr.mxu0 0.0
    %8251 = vmatpush1.msra.mxu0 0.0
    %8252 = vmatprep.subr.mxu0 0.0
    %8253 = vmatpush1.msra.mxu0 0.0
    %8254 = vmatprep.subr.mxu0 0.0
    %8255 = vmatpush1.msra.mxu0 0.0
    %8256 = vmatprep.subr.mxu0 0.0
    %8257 = vmatpush1.msra.mxu0 0.0
    %8258 = vmatprep.subr.mxu0 0.0
    %8259 = vmatpush1.msra.mxu0 0.0
    %8260 = vmatprep.subr.mxu0 0.0
    %8261 = vmatpush1.msra.mxu0 0.0
    %8262 = vmatprep.subr.mxu0 0.0
    %8263 = vmatpush1.msra.mxu0 0.0
    %8264 = vmatprep.subr.mxu0 0.0
    %8265 = vmatpush1.msra.mxu0 0.0
    %8266 = vmatprep.subr.mxu0 0.0
    %8267 = vmatpush1.msra.mxu0 0.0
    %8268 = vmatprep.subr.mxu0 0.0
    %8269 = vmatpush1.msra.mxu0 0.0
    %8270 = vmatprep.subr.mxu0 0.0
    %8271 = vmatpush1.msra.mxu0 0.0
    %8272 = vmatprep.subr.mxu0 0.0
    %8273 = vmatpush1.msra.mxu0 0.0
    %8274 = vmatprep.subr.mxu0 0.0
    %8275 = vmatpush1.msra.mxu0 0.0
    %8276 = vmatprep.subr.mxu0 0.0
    %8277 = vmatpush1.msra.mxu0 0.0
    %8278 = vmatprep.mubr.f32.mxu0 0.0
    %8279 = vmatmul.mubr.f32.gmra.mrb[0].mxu0 %v8212
    %v8280 = vpop.f32.mrb[0].mxu0
    %v8281 = vadd.f32 0.0, %v8280
    %v8282 = vpop.f32.mrb[0].mxu0
    %8283 = vdwg.mxu0
    %v8284 = vmul.f32 %v8160, 0.25
    %v8285 = vmul.f32 %v8281, 0.25
    %v8286 = vsel %vm723, %v8284, -inf
    %8287 = vmax.xlane.f32.xlu0 %v8286
    %v8288 = vpop.xlane.xlu0 %8287
    %v8289 = vsel %vm723, %v8285, -inf
    %8290 = vmax.xlane.f32.xlu0 %v8289
    %v8291 = vpop.xlane.xlu0 %8290
    %v8292 = vsub.f32 %v8284, %v8288
    %v8293 = vsub.f32 %v8285, %v8291
    %v8294 = vmul.f32 %v8292, 1.442695
    %v8295 = vpow.pop %v8294
    %v8296 = vmul.f32 %v8293, 1.442695
    %v8297 = vpow.pop %v8296
    %v8298 = vsel %vm723, %v8295, 0.0
    %8299 = vadd.xlane.f32.xlu0 %v8298
    %v8300 = vpop.xlane.xlu0 %8299
    %v8301 = vsel %vm723, %v8297, 0.0
    %8302 = vadd.xlane.f32.xlu0 %v8301
    %v8303 = vpop.xlane.xlu0 %8302
    %v8304 = vrcp.pop %v8300
    %v8305 = vmul.f32 %v8295, %v8304
    %v8306 = vrcp.pop %v8303
    %v8307 = vmul.f32 %v8297, %v8306
    %8308 = vrot.lane.b32.xlu0 %v7622, 120
    %v8309 = vpop.permute.xlu0 %8308
    %8310 = vrot.lane.b32.xlu0 %v7627, 120
    %v8311 = vpop.permute.xlu0 %8310
    %v8312 = vsel %vm723, %v8309, 0
    %v8314 = vsel %vm723, %v8311, 0
    %v8317 = vsel %vm723, %v8305, 0
    %8319 = vmatprep.subr.mxu0 0.0
    %8320 = vmatpush1.xpose.msra.mxu0 %v8317
    %8321 = vmatprep.subr.mxu0 0.0
    %8322 = vmatpush1.xpose.msra.mxu0 0.0
    %8323 = vmatprep.subr.mxu0 0.0
    %8324 = vmatpush1.xpose.msra.mxu0 0.0
    %8325 = vmatprep.subr.mxu0 0.0
    %8326 = vmatpush1.xpose.msra.mxu0 0.0
    %8327 = vmatprep.subr.mxu0 0.0
    %8328 = vmatpush1.xpose.msra.mxu0 0.0
    %8329 = vmatprep.subr.mxu0 0.0
    %8330 = vmatpush1.xpose.msra.mxu0 0.0
    %8331 = vmatprep.subr.mxu0 0.0
    %8332 = vmatpush1.xpose.msra.mxu0 0.0
    %8333 = vmatprep.subr.mxu0 0.0
    %8334 = vmatpush1.xpose.msra.mxu0 0.0
    %8335 = vmatprep.subr.mxu0 0.0
    %8336 = vmatpush1.xpose.msra.mxu0 0.0
    %8337 = vmatprep.subr.mxu0 0.0
    %8338 = vmatpush1.xpose.msra.mxu0 0.0
    %8339 = vmatprep.subr.mxu0 0.0
    %8340 = vmatpush1.xpose.msra.mxu0 0.0
    %8341 = vmatprep.subr.mxu0 0.0
    %8342 = vmatpush1.xpose.msra.mxu0 0.0
    %8343 = vmatprep.subr.mxu0 0.0
    %8344 = vmatpush1.xpose.msra.mxu0 0.0
    %8345 = vmatprep.subr.mxu0 0.0
    %8346 = vmatpush1.xpose.msra.mxu0 0.0
    %8347 = vmatprep.subr.mxu0 0.0
    %8348 = vmatpush1.xpose.msra.mxu0 0.0
    %8349 = vmatprep.subr.mxu0 0.0
    %8350 = vmatpush1.xpose.msra.mxu0 0.0
    %8351 = vmatprep.subr.mxu0 0.0
    %8352 = vmatpush1.xpose.msra.mxu0 0.0
    %8353 = vmatprep.subr.mxu0 0.0
    %8354 = vmatpush1.xpose.msra.mxu0 0.0
    %8355 = vmatprep.subr.mxu0 0.0
    %8356 = vmatpush1.xpose.msra.mxu0 0.0
    %8357 = vmatprep.subr.mxu0 0.0
    %8358 = vmatpush1.xpose.msra.mxu0 0.0
    %8359 = vmatprep.subr.mxu0 0.0
    %8360 = vmatpush1.xpose.msra.mxu0 0.0
    %8361 = vmatprep.subr.mxu0 0.0
    %8362 = vmatpush1.xpose.msra.mxu0 0.0
    %8363 = vmatprep.subr.mxu0 0.0
    %8364 = vmatpush1.xpose.msra.mxu0 0.0
    %8365 = vmatprep.subr.mxu0 0.0
    %8366 = vmatpush1.xpose.msra.mxu0 0.0
    %8367 = vmatprep.subr.mxu0 0.0
    %8368 = vmatpush1.xpose.msra.mxu0 0.0
    %8369 = vmatprep.subr.mxu0 0.0
    %8370 = vmatpush1.xpose.msra.mxu0 0.0
    %8371 = vmatprep.subr.mxu0 0.0
    %8372 = vmatpush1.xpose.msra.mxu0 0.0
    %8373 = vmatprep.subr.mxu0 0.0
    %8374 = vmatpush1.xpose.msra.mxu0 0.0
    %8375 = vmatprep.subr.mxu0 0.0
    %8376 = vmatpush1.xpose.msra.mxu0 0.0
    %8377 = vmatprep.subr.mxu0 0.0
    %8378 = vmatpush1.xpose.msra.mxu0 0.0
    %8379 = vmatprep.subr.mxu0 0.0
    %8380 = vmatpush1.xpose.msra.mxu0 0.0
    %8381 = vmatprep.subr.mxu0 0.0
    %8382 = vmatpush1.xpose.msra.mxu0 0.0
    %8383 = vmatprep.mubr.f32.mxu0 0.0
    %8384 = vmatmul.mubr.f32.gmra.mrb[0].mxu0 %v8312
    %v8385 = vpop.f32.mrb[0].mxu0
    %v8386 = vadd.f32 0.0, %v8385
    %v8387 = vpop.f32.mrb[0].mxu0
    %8388 = vmatprep.mubr.f32.mxu0 0.0
    %8389 = vmatmul.mubr.f32.gmra.mrb[0].mxu0 %v8314
    %v8390 = vpop.f32.mrb[0].mxu0
    %v8391 = vadd.f32 0.0, %v8390
    %v8392 = vpop.f32.mrb[0].mxu0
    %8393 = vdwg.mxu0
    %8394 = vrot.lane.b32.xlu0 %v7632, 120
    %v8395 = vpop.permute.xlu0 %8394
    %8396 = vrot.lane.b32.xlu0 %v7637, 120
    %v8397 = vpop.permute.xlu0 %8396
    %v8398 = vsel %vm723, %v8395, 0
    %v8400 = vsel %vm723, %v8397, 0
    %v8403 = vsel %vm723, %v8307, 0
    %8405 = vmatprep.subr.mxu0 0.0
    %8406 = vmatpush1.xpose.msra.mxu0 %v8403
    %8407 = vmatprep.subr.mxu0 0.0
    %8408 = vmatpush1.xpose.msra.mxu0 0.0
    %8409 = vmatprep.subr.mxu0 0.0
    %8410 = vmatpush1.xpose.msra.mxu0 0.0
    %8411 = vmatprep.subr.mxu0 0.0
    %8412 = vmatpush1.xpose.msra.mxu0 0.0
    %8413 = vmatprep.subr.mxu0 0.0
    %8414 = vmatpush1.xpose.msra.mxu0 0.0
    %8415 = vmatprep.subr.mxu0 0.0
    %8416 = vmatpush1.xpose.msra.mxu0 0.0
    %8417 = vmatprep.subr.mxu0 0.0
    %8418 = vmatpush1.xpose.msra.mxu0 0.0
    %8419 = vmatprep.subr.mxu0 0.0
    %8420 = vmatpush1.xpose.msra.mxu0 0.0
    %8421 = vmatprep.subr.mxu0 0.0
    %8422 = vmatpush1.xpose.msra.mxu0 0.0
    %8423 = vmatprep.subr.mxu0 0.0
    %8424 = vmatpush1.xpose.msra.mxu0 0.0
    %8425 = vmatprep.subr.mxu0 0.0
    %8426 = vmatpush1.xpose.msra.mxu0 0.0
    %8427 = vmatprep.subr.mxu0 0.0
    %8428 = vmatpush1.xpose.msra.mxu0 0.0
    %8429 = vmatprep.subr.mxu0 0.0
    %8430 = vmatpush1.xpose.msra.mxu0 0.0
    %8431 = vmatprep.subr.mxu0 0.0
    %8432 = vmatpush1.xpose.msra.mxu0 0.0
    %8433 = vmatprep.subr.mxu0 0.0
    %8434 = vmatpush1.xpose.msra.mxu0 0.0
    %8435 = vmatprep.subr.mxu0 0.0
    %8436 = vmatpush1.xpose.msra.mxu0 0.0
    %8437 = vmatprep.subr.mxu0 0.0
    %8438 = vmatpush1.xpose.msra.mxu0 0.0
    %8439 = vmatprep.subr.mxu0 0.0
    %8440 = vmatpush1.xpose.msra.mxu0 0.0
    %8441 = vmatprep.subr.mxu0 0.0
    %8442 = vmatpush1.xpose.msra.mxu0 0.0
    %8443 = vmatprep.subr.mxu0 0.0
    %8444 = vmatpush1.xpose.msra.mxu0 0.0
    %8445 = vmatprep.subr.mxu0 0.0
    %8446 = vmatpush1.xpose.msra.mxu0 0.0
    %8447 = vmatprep.subr.mxu0 0.0
    %8448 = vmatpush1.xpose.msra.mxu0 0.0
    %8449 = vmatprep.subr.mxu0 0.0
    %8450 = vmatpush1.xpose.msra.mxu0 0.0
    %8451 = vmatprep.subr.mxu0 0.0
    %8452 = vmatpush1.xpose.msra.mxu0 0.0
    %8453 = vmatprep.subr.mxu0 0.0
    %8454 = vmatpush1.xpose.msra.mxu0 0.0
    %8455 = vmatprep.subr.mxu0 0.0
    %8456 = vmatpush1.xpose.msra.mxu0 0.0
    %8457 = vmatprep.subr.mxu0 0.0
    %8458 = vmatpush1.xpose.msra.mxu0 0.0
    %8459 = vmatprep.subr.mxu0 0.0
    %8460 = vmatpush1.xpose.msra.mxu0 0.0
    %8461 = vmatprep.subr.mxu0 0.0
    %8462 = vmatpush1.xpose.msra.mxu0 0.0
    %8463 = vmatprep.subr.mxu0 0.0
    %8464 = vmatpush1.xpose.msra.mxu0 0.0
    %8465 = vmatprep.subr.mxu0 0.0
    %8466 = vmatpush1.xpose.msra.mxu0 0.0
    %8467 = vmatprep.subr.mxu0 0.0
    %8468 = vmatpush1.xpose.msra.mxu0 0.0
    %8469 = vmatprep.mubr.f32.mxu0 0.0
    %8470 = vmatmul.mubr.f32.gmra.mrb[0].mxu0 %v8398
    %v8471 = vpop.f32.mrb[0].mxu0
    %v8472 = vadd.f32 0.0, %v8471
    %v8473 = vpop.f32.mrb[0].mxu0
    %8474 = vmatprep.mubr.f32.mxu0 0.0
    %8475 = vmatmul.mubr.f32.gmra.mrb[0].mxu0 %v8400
    %v8476 = vpop.f32.mrb[0].mxu0
    %v8477 = vadd.f32 0.0, %v8476
    %v8478 = vpop.f32.mrb[0].mxu0
    %8479 = vdwg.mxu0
    %8480 = vrot.lane.b32.xlu0 %v7432, 112
    %v8481 = vpop.permute.xlu0 %8480
    %8482 = vrot.lane.b32.xlu0 %v7437, 112
    %v8483 = vpop.permute.xlu0 %8482
    %8486 = vxpose.xlu0.b32.start [1/16] %v8481, 128
    %8487 = vxpose.xlu0.b32.cont [2/16] %v8483, 128
    %8488 = vxpose.xlu0.b32.cont [3/16] 0.0, 128
    %8489 = vxpose.xlu0.b32.cont [4/16] 0.0, 128
    %8490 = vxpose.xlu0.b32.cont [5/16] 0.0, 128
    %8491 = vxpose.xlu0.b32.cont [6/16] 0.0, 128
    %8492 = vxpose.xlu0.b32.cont [7/16] 0.0, 128
    %8493 = vxpose.xlu0.b32.cont [8/16] 0.0, 128
    %8494 = vxpose.xlu0.b32.cont [9/16] 0.0, 128
    %8495 = vxpose.xlu0.b32.cont [10/16] 0.0, 128
    %8496 = vxpose.xlu0.b32.cont [11/16] 0.0, 128
    %8497 = vxpose.xlu0.b32.cont [12/16] 0.0, 128
    %8498 = vxpose.xlu0.b32.cont [13/16] 0.0, 128
    %8499 = vxpose.xlu0.b32.cont [14/16] 0.0, 128
    %8500 = vxpose.xlu0.b32.cont [15/16] 0.0, 128
    %8501 = vxpose.xlu0.b32.end [16/16] 0.0, 128
    %v8502 = vpop.trf.xlu0
    %v8503 = vpop.trf.xlu0
    %v8504 = vpop.trf.xlu0
    %v8505 = vpop.trf.xlu0
    %v8506 = vpop.trf.xlu0
    %v8507 = vpop.trf.xlu0
    %v8508 = vpop.trf.xlu0
    %v8509 = vpop.trf.xlu0
    %v8510 = vpop.trf.xlu0
    %v8511 = vpop.trf.xlu0
    %v8512 = vpop.trf.xlu0
    %v8513 = vpop.trf.xlu0
    %v8514 = vpop.trf.xlu0
    %v8515 = vpop.trf.xlu0
    %v8516 = vpop.trf.xlu0
    %v8517 = vpop.trf.xlu0
    %8518 = vrot.lane.b32.xlu0 %v7527, 112
    %v8519 = vpop.permute.xlu0 %8518
    %8520 = vrot.lane.b32.xlu0 %v7532, 112
    %v8521 = vpop.permute.xlu0 %8520
    %v8525 = vsel %vm916, %v8502, 0
    %8527 = vmatprep.subr.mxu0 0.0
    %8528 = vmatpush1.msra.mxu0 %v8519
    %8529 = vmatprep.subr.mxu0 0.0
    %8530 = vmatpush1.msra.mxu0 %v8521
    %8531 = vmatprep.subr.mxu0 0.0
    %8532 = vmatpush1.msra.mxu0 0.0
    %8533 = vmatprep.subr.mxu0 0.0
    %8534 = vmatpush1.msra.mxu0 0.0
    %8535 = vmatprep.subr.mxu0 0.0
    %8536 = vmatpush1.msra.mxu0 0.0
    %8537 = vmatprep.subr.mxu0 0.0
    %8538 = vmatpush1.msra.mxu0 0.0
    %8539 = vmatprep.subr.mxu0 0.0
    %8540 = vmatpush1.msra.mxu0 0.0
    %8541 = vmatprep.subr.mxu0 0.0
    %8542 = vmatpush1.msra.mxu0 0.0
    %8543 = vmatprep.subr.mxu0 0.0
    %8544 = vmatpush1.msra.mxu0 0.0
    %8545 = vmatprep.subr.mxu0 0.0
    %8546 = vmatpush1.msra.mxu0 0.0
    %8547 = vmatprep.subr.mxu0 0.0
    %8548 = vmatpush1.msra.mxu0 0.0
    %8549 = vmatprep.subr.mxu0 0.0
    %8550 = vmatpush1.msra.mxu0 0.0
    %8551 = vmatprep.subr.mxu0 0.0
    %8552 = vmatpush1.msra.mxu0 0.0
    %8553 = vmatprep.subr.mxu0 0.0
    %8554 = vmatpush1.msra.mxu0 0.0
    %8555 = vmatprep.subr.mxu0 0.0
    %8556 = vmatpush1.msra.mxu0 0.0
    %8557 = vmatprep.subr.mxu0 0.0
    %8558 = vmatpush1.msra.mxu0 0.0
    %8559 = vmatprep.subr.mxu0 0.0
    %8560 = vmatpush1.msra.mxu0 0.0
    %8561 = vmatprep.subr.mxu0 0.0
    %8562 = vmatpush1.msra.mxu0 0.0
    %8563 = vmatprep.subr.mxu0 0.0
    %8564 = vmatpush1.msra.mxu0 0.0
    %8565 = vmatprep.subr.mxu0 0.0
    %8566 = vmatpush1.msra.mxu0 0.0
    %8567 = vmatprep.subr.mxu0 0.0
    %8568 = vmatpush1.msra.mxu0 0.0
    %8569 = vmatprep.subr.mxu0 0.0
    %8570 = vmatpush1.msra.mxu0 0.0
    %8571 = vmatprep.subr.mxu0 0.0
    %8572 = vmatpush1.msra.mxu0 0.0
    %8573 = vmatprep.subr.mxu0 0.0
    %8574 = vmatpush1.msra.mxu0 0.0
    %8575 = vmatprep.subr.mxu0 0.0
    %8576 = vmatpush1.msra.mxu0 0.0
    %8577 = vmatprep.subr.mxu0 0.0
    %8578 = vmatpush1.msra.mxu0 0.0
    %8579 = vmatprep.subr.mxu0 0.0
    %8580 = vmatpush1.msra.mxu0 0.0
    %8581 = vmatprep.subr.mxu0 0.0
    %8582 = vmatpush1.msra.mxu0 0.0
    %8583 = vmatprep.subr.mxu0 0.0
    %8584 = vmatpush1.msra.mxu0 0.0
    %8585 = vmatprep.subr.mxu0 0.0
    %8586 = vmatpush1.msra.mxu0 0.0
    %8587 = vmatprep.subr.mxu0 0.0
    %8588 = vmatpush1.msra.mxu0 0.0
    %8589 = vmatprep.subr.mxu0 0.0
    %8590 = vmatpush1.msra.mxu0 0.0
    %8591 = vmatprep.mubr.f32.mxu0 0.0
    %8592 = vmatmul.mubr.f32.gmra.mrb[0].mxu0 %v8525
    %v8593 = vpop.f32.mrb[0].mxu0
    %v8594 = vadd.f32 0.0, %v8593
    %v8595 = vpop.f32.mrb[0].mxu0
    %8596 = vdwg.mxu0
    %8597 = vrot.lane.b32.xlu0 %v7442, 112
    %v8598 = vpop.permute.xlu0 %8597
    %8599 = vrot.lane.b32.xlu0 %v7447, 112
    %v8600 = vpop.permute.xlu0 %8599
    %8603 = vxpose.xlu0.b32.start [1/16] %v8598, 128
    %8604 = vxpose.xlu0.b32.cont [2/16] %v8600, 128
    %8605 = vxpose.xlu0.b32.cont [3/16] 0.0, 128
    %8606 = vxpose.xlu0.b32.cont [4/16] 0.0, 128
    %8607 = vxpose.xlu0.b32.cont [5/16] 0.0, 128
    %8608 = vxpose.xlu0.b32.cont [6/16] 0.0, 128
    %8609 = vxpose.xlu0.b32.cont [7/16] 0.0, 128
    %8610 = vxpose.xlu0.b32.cont [8/16] 0.0, 128
    %8611 = vxpose.xlu0.b32.cont [9/16] 0.0, 128
    %8612 = vxpose.xlu0.b32.cont [10/16] 0.0, 128
    %8613 = vxpose.xlu0.b32.cont [11/16] 0.0, 128
    %8614 = vxpose.xlu0.b32.cont [12/16] 0.0, 128
    %8615 = vxpose.xlu0.b32.cont [13/16] 0.0, 128
    %8616 = vxpose.xlu0.b32.cont [14/16] 0.0, 128
    %8617 = vxpose.xlu0.b32.cont [15/16] 0.0, 128
    %8618 = vxpose.xlu0.b32.end [16/16] 0.0, 128
    %v8619 = vpop.trf.xlu0
    %v8620 = vpop.trf.xlu0
    %v8621 = vpop.trf.xlu0
    %v8622 = vpop.trf.xlu0
    %v8623 = vpop.trf.xlu0
    %v8624 = vpop.trf.xlu0
    %v8625 = vpop.trf.xlu0
    %v8626 = vpop.trf.xlu0
    %v8627 = vpop.trf.xlu0
    %v8628 = vpop.trf.xlu0
    %v8629 = vpop.trf.xlu0
    %v8630 = vpop.trf.xlu0
    %v8631 = vpop.trf.xlu0
    %v8632 = vpop.trf.xlu0
    %v8633 = vpop.trf.xlu0
    %v8634 = vpop.trf.xlu0
    %8635 = vrot.lane.b32.xlu0 %v7537, 112
    %v8636 = vpop.permute.xlu0 %8635
    %8637 = vrot.lane.b32.xlu0 %v7542, 112
    %v8638 = vpop.permute.xlu0 %8637
    %v8642 = vsel %vm916, %v8619, 0
    %8644 = vmatprep.subr.mxu0 0.0
    %8645 = vmatpush1.msra.mxu0 %v8636
    %8646 = vmatprep.subr.mxu0 0.0
    %8647 = vmatpush1.msra.mxu0 %v8638
    %8648 = vmatprep.subr.mxu0 0.0
    %8649 = vmatpush1.msra.mxu0 0.0
    %8650 = vmatprep.subr.mxu0 0.0
    %8651 = vmatpush1.msra.mxu0 0.0
    %8652 = vmatprep.subr.mxu0 0.0
    %8653 = vmatpush1.msra.mxu0 0.0
    %8654 = vmatprep.subr.mxu0 0.0
    %8655 = vmatpush1.msra.mxu0 0.0
    %8656 = vmatprep.subr.mxu0 0.0
    %8657 = vmatpush1.msra.mxu0 0.0
    %8658 = vmatprep.subr.mxu0 0.0
    %8659 = vmatpush1.msra.mxu0 0.0
    %8660 = vmatprep.subr.mxu0 0.0
    %8661 = vmatpush1.msra.mxu0 0.0
    %8662 = vmatprep.subr.mxu0 0.0
    %8663 = vmatpush1.msra.mxu0 0.0
    %8664 = vmatprep.subr.mxu0 0.0
    %8665 = vmatpush1.msra.mxu0 0.0
    %8666 = vmatprep.subr.mxu0 0.0
    %8667 = vmatpush1.msra.mxu0 0.0
    %8668 = vmatprep.subr.mxu0 0.0
    %8669 = vmatpush1.msra.mxu0 0.0
    %8670 = vmatprep.subr.mxu0 0.0
    %8671 = vmatpush1.msra.mxu0 0.0
    %8672 = vmatprep.subr.mxu0 0.0
    %8673 = vmatpush1.msra.mxu0 0.0
    %8674 = vmatprep.subr.mxu0 0.0
    %8675 = vmatpush1.msra.mxu0 0.0
    %8676 = vmatprep.subr.mxu0 0.0
    %8677 = vmatpush1.msra.mxu0 0.0
    %8678 = vmatprep.subr.mxu0 0.0
    %8679 = vmatpush1.msra.mxu0 0.0
    %8680 = vmatprep.subr.mxu0 0.0
    %8681 = vmatpush1.msra.mxu0 0.0
    %8682 = vmatprep.subr.mxu0 0.0
    %8683 = vmatpush1.msra.mxu0 0.0
    %8684 = vmatprep.subr.mxu0 0.0
    %8685 = vmatpush1.msra.mxu0 0.0
    %8686 = vmatprep.subr.mxu0 0.0
    %8687 = vmatpush1.msra.mxu0 0.0
    %8688 = vmatprep.subr.mxu0 0.0
    %8689 = vmatpush1.msra.mxu0 0.0
    %8690 = vmatprep.subr.mxu0 0.0
    %8691 = vmatpush1.msra.mxu0 0.0
    %8692 = vmatprep.subr.mxu0 0.0
    %8693 = vmatpush1.msra.mxu0 0.0
    %8694 = vmatprep.subr.mxu0 0.0
    %8695 = vmatpush1.msra.mxu0 0.0
    %8696 = vmatprep.subr.mxu0 0.0
    %8697 = vmatpush1.msra.mxu0 0.0
    %8698 = vmatprep.subr.mxu0 0.0
    %8699 = vmatpush1.msra.mxu0 0.0
    %8700 = vmatprep.subr.mxu0 0.0
    %8701 = vmatpush1.msra.mxu0 0.0
    %8702 = vmatprep.subr.mxu0 0.0
    %8703 = vmatpush1.msra.mxu0 0.0
    %8704 = vmatprep.subr.mxu0 0.0
    %8705 = vmatpush1.msra.mxu0 0.0
    %8706 = vmatprep.subr.mxu0 0.0
    %8707 = vmatpush1.msra.mxu0 0.0
    %8708 = vmatprep.mubr.f32.mxu0 0.0
    %8709 = vmatmul.mubr.f32.gmra.mrb[0].mxu0 %v8642
    %v8710 = vpop.f32.mrb[0].mxu0
    %v8711 = vadd.f32 0.0, %v8710
    %v8712 = vpop.f32.mrb[0].mxu0
    %8713 = vdwg.mxu0
    %v8714 = vmul.f32 %v8594, 0.25
    %v8715 = vmul.f32 %v8711, 0.25
    %v8716 = vsel %vm723, %v8714, -inf
    %8717 = vmax.xlane.f32.xlu0 %v8716
    %v8718 = vpop.xlane.xlu0 %8717
    %v8719 = vsel %vm723, %v8715, -inf
    %8720 = vmax.xlane.f32.xlu0 %v8719
    %v8721 = vpop.xlane.xlu0 %8720
    %v8722 = vsub.f32 %v8714, %v8718
    %v8723 = vsub.f32 %v8715, %v8721
    %v8724 = vmul.f32 %v8722, 1.442695
    %v8725 = vpow.pop %v8724
    %v8726 = vmul.f32 %v8723, 1.442695
    %v8727 = vpow.pop %v8726
    %v8728 = vsel %vm723, %v8725, 0.0
    %8729 = vadd.xlane.f32.xlu0 %v8728
    %v8730 = vpop.xlane.xlu0 %8729
    %v8731 = vsel %vm723, %v8727, 0.0
    %8732 = vadd.xlane.f32.xlu0 %v8731
    %v8733 = vpop.xlane.xlu0 %8732
    %v8734 = vrcp.pop %v8730
    %v8735 = vmul.f32 %v8725, %v8734
    %v8736 = vrcp.pop %v8733
    %v8737 = vmul.f32 %v8727, %v8736
    %8738 = vrot.lane.b32.xlu0 %v7622, 112
    %v8739 = vpop.permute.xlu0 %8738
    %8740 = vrot.lane.b32.xlu0 %v7627, 112
    %v8741 = vpop.permute.xlu0 %8740
    %v8742 = vsel %vm723, %v8739, 0
    %v8744 = vsel %vm723, %v8741, 0
    %v8747 = vsel %vm723, %v8735, 0
    %8749 = vmatprep.subr.mxu0 0.0
    %8750 = vmatpush1.xpose.msra.mxu0 %v8747
    %8751 = vmatprep.subr.mxu0 0.0
    %8752 = vmatpush1.xpose.msra.mxu0 0.0
    %8753 = vmatprep.subr.mxu0 0.0
    %8754 = vmatpush1.xpose.msra.mxu0 0.0
    %8755 = vmatprep.subr.mxu0 0.0
    %8756 = vmatpush1.xpose.msra.mxu0 0.0
    %8757 = vmatprep.subr.mxu0 0.0
    %8758 = vmatpush1.xpose.msra.mxu0 0.0
    %8759 = vmatprep.subr.mxu0 0.0
    %8760 = vmatpush1.xpose.msra.mxu0 0.0
    %8761 = vmatprep.subr.mxu0 0.0
    %8762 = vmatpush1.xpose.msra.mxu0 0.0
    %8763 = vmatprep.subr.mxu0 0.0
    %8764 = vmatpush1.xpose.msra.mxu0 0.0
    %8765 = vmatprep.subr.mxu0 0.0
    %8766 = vmatpush1.xpose.msra.mxu0 0.0
    %8767 = vmatprep.subr.mxu0 0.0
    %8768 = vmatpush1.xpose.msra.mxu0 0.0
    %8769 = vmatprep.subr.mxu0 0.0
    %8770 = vmatpush1.xpose.msra.mxu0 0.0
    %8771 = vmatprep.subr.mxu0 0.0
    %8772 = vmatpush1.xpose.msra.mxu0 0.0
    %8773 = vmatprep.subr.mxu0 0.0
    %8774 = vmatpush1.xpose.msra.mxu0 0.0
    %8775 = vmatprep.subr.mxu0 0.0
    %8776 = vmatpush1.xpose.msra.mxu0 0.0
    %8777 = vmatprep.subr.mxu0 0.0
    %8778 = vmatpush1.xpose.msra.mxu0 0.0
    %8779 = vmatprep.subr.mxu0 0.0
    %8780 = vmatpush1.xpose.msra.mxu0 0.0
    %8781 = vmatprep.subr.mxu0 0.0
    %8782 = vmatpush1.xpose.msra.mxu0 0.0
    %8783 = vmatprep.subr.mxu0 0.0
    %8784 = vmatpush1.xpose.msra.mxu0 0.0
    %8785 = vmatprep.subr.mxu0 0.0
    %8786 = vmatpush1.xpose.msra.mxu0 0.0
    %8787 = vmatprep.subr.mxu0 0.0
    %8788 = vmatpush1.xpose.msra.mxu0 0.0
    %8789 = vmatprep.subr.mxu0 0.0
    %8790 = vmatpush1.xpose.msra.mxu0 0.0
    %8791 = vmatprep.subr.mxu0 0.0
    %8792 = vmatpush1.xpose.msra.mxu0 0.0
    %8793 = vmatprep.subr.mxu0 0.0
    %8794 = vmatpush1.xpose.msra.mxu0 0.0
    %8795 = vmatprep.subr.mxu0 0.0
    %8796 = vmatpush1.xpose.msra.mxu0 0.0
    %8797 = vmatprep.subr.mxu0 0.0
    %8798 = vmatpush1.xpose.msra.mxu0 0.0
    %8799 = vmatprep.subr.mxu0 0.0
    %8800 = vmatpush1.xpose.msra.mxu0 0.0
    %8801 = vmatprep.subr.mxu0 0.0
    %8802 = vmatpush1.xpose.msra.mxu0 0.0
    %8803 = vmatprep.subr.mxu0 0.0
    %8804 = vmatpush1.xpose.msra.mxu0 0.0
    %8805 = vmatprep.subr.mxu0 0.0
    %8806 = vmatpush1.xpose.msra.mxu0 0.0
    %8807 = vmatprep.subr.mxu0 0.0
    %8808 = vmatpush1.xpose.msra.mxu0 0.0
    %8809 = vmatprep.subr.mxu0 0.0
    %8810 = vmatpush1.xpose.msra.mxu0 0.0
    %8811 = vmatprep.subr.mxu0 0.0
    %8812 = vmatpush1.xpose.msra.mxu0 0.0
    %8813 = vmatprep.mubr.f32.mxu0 0.0
    %8814 = vmatmul.mubr.f32.gmra.mrb[0].mxu0 %v8742
    %v8815 = vpop.f32.mrb[0].mxu0
    %v8816 = vadd.f32 0.0, %v8815
    %v8817 = vpop.f32.mrb[0].mxu0
    %8818 = vmatprep.mubr.f32.mxu0 0.0
    %8819 = vmatmul.mubr.f32.gmra.mrb[0].mxu0 %v8744
    %v8820 = vpop.f32.mrb[0].mxu0
    %v8821 = vadd.f32 0.0, %v8820
    %v8822 = vpop.f32.mrb[0].mxu0
    %8823 = vdwg.mxu0
    %8824 = vrot.lane.b32.xlu0 %v7632, 112
    %v8825 = vpop.permute.xlu0 %8824
    %8826 = vrot.lane.b32.xlu0 %v7637, 112
    %v8827 = vpop.permute.xlu0 %8826
    %v8828 = vsel %vm723, %v8825, 0
    %v8830 = vsel %vm723, %v8827, 0
    %v8833 = vsel %vm723, %v8737, 0
    %8835 = vmatprep.subr.mxu0 0.0
    %8836 = vmatpush1.xpose.msra.mxu0 %v8833
    %8837 = vmatprep.subr.mxu0 0.0
    %8838 = vmatpush1.xpose.msra.mxu0 0.0
    %8839 = vmatprep.subr.mxu0 0.0
    %8840 = vmatpush1.xpose.msra.mxu0 0.0
    %8841 = vmatprep.subr.mxu0 0.0
    %8842 = vmatpush1.xpose.msra.mxu0 0.0
    %8843 = vmatprep.subr.mxu0 0.0
    %8844 = vmatpush1.xpose.msra.mxu0 0.0
    %8845 = vmatprep.subr.mxu0 0.0
    %8846 = vmatpush1.xpose.msra.mxu0 0.0
    %8847 = vmatprep.subr.mxu0 0.0
    %8848 = vmatpush1.xpose.msra.mxu0 0.0
    %8849 = vmatprep.subr.mxu0 0.0
    %8850 = vmatpush1.xpose.msra.mxu0 0.0
    %8851 = vmatprep.subr.mxu0 0.0
    %8852 = vmatpush1.xpose.msra.mxu0 0.0
    %8853 = vmatprep.subr.mxu0 0.0
    %8854 = vmatpush1.xpose.msra.mxu0 0.0
    %8855 = vmatprep.subr.mxu0 0.0
    %8856 = vmatpush1.xpose.msra.mxu0 0.0
    %8857 = vmatprep.subr.mxu0 0.0
    %8858 = vmatpush1.xpose.msra.mxu0 0.0
    %8859 = vmatprep.subr.mxu0 0.0
    %8860 = vmatpush1.xpose.msra.mxu0 0.0
    %8861 = vmatprep.subr.mxu0 0.0
    %8862 = vmatpush1.xpose.msra.mxu0 0.0
    %8863 = vmatprep.subr.mxu0 0.0
    %8864 = vmatpush1.xpose.msra.mxu0 0.0
    %8865 = vmatprep.subr.mxu0 0.0
    %8866 = vmatpush1.xpose.msra.mxu0 0.0
    %8867 = vmatprep.subr.mxu0 0.0
    %8868 = vmatpush1.xpose.msra.mxu0 0.0
    %8869 = vmatprep.subr.mxu0 0.0
    %8870 = vmatpush1.xpose.msra.mxu0 0.0
    %8871 = vmatprep.subr.mxu0 0.0
    %8872 = vmatpush1.xpose.msra.mxu0 0.0
    %8873 = vmatprep.subr.mxu0 0.0
    %8874 = vmatpush1.xpose.msra.mxu0 0.0
    %8875 = vmatprep.subr.mxu0 0.0
    %8876 = vmatpush1.xpose.msra.mxu0 0.0
    %8877 = vmatprep.subr.mxu0 0.0
    %8878 = vmatpush1.xpose.msra.mxu0 0.0
    %8879 = vmatprep.subr.mxu0 0.0
    %8880 = vmatpush1.xpose.msra.mxu0 0.0
    %8881 = vmatprep.subr.mxu0 0.0
    %8882 = vmatpush1.xpose.msra.mxu0 0.0
    %8883 = vmatprep.subr.mxu0 0.0
    %8884 = vmatpush1.xpose.msra.mxu0 0.0
    %8885 = vmatprep.subr.mxu0 0.0
    %8886 = vmatpush1.xpose.msra.mxu0 0.0
    %8887 = vmatprep.subr.mxu0 0.0
    %8888 = vmatpush1.xpose.msra.mxu0 0.0
    %8889 = vmatprep.subr.mxu0 0.0
    %8890 = vmatpush1.xpose.msra.mxu0 0.0
    %8891 = vmatprep.subr.mxu0 0.0
    %8892 = vmatpush1.xpose.msra.mxu0 0.0
    %8893 = vmatprep.subr.mxu0 0.0
    %8894 = vmatpush1.xpose.msra.mxu0 0.0
    %8895 = vmatprep.subr.mxu0 0.0
    %8896 = vmatpush1.xpose.msra.mxu0 0.0
    %8897 = vmatprep.subr.mxu0 0.0
    %8898 = vmatpush1.xpose.msra.mxu0 0.0
    %8899 = vmatprep.mubr.f32.mxu0 0.0
    %8900 = vmatmul.mubr.f32.gmra.mrb[0].mxu0 %v8828
    %v8901 = vpop.f32.mrb[0].mxu0
    %v8902 = vadd.f32 0.0, %v8901
    %v8903 = vpop.f32.mrb[0].mxu0
    %8904 = vmatprep.mubr.f32.mxu0 0.0
    %8905 = vmatmul.mubr.f32.gmra.mrb[0].mxu0 %v8830
    %v8906 = vpop.f32.mrb[0].mxu0
    %v8907 = vadd.f32 0.0, %v8906
    %v8908 = vpop.f32.mrb[0].mxu0
    %8909 = vdwg.mxu0
    %8910 = vrot.lane.b32.xlu0 %v7432, 104
    %v8911 = vpop.permute.xlu0 %8910
    %8912 = vrot.lane.b32.xlu0 %v7437, 104
    %v8913 = vpop.permute.xlu0 %8912
    %8916 = vxpose.xlu0.b32.start [1/16] %v8911, 128
    %8917 = vxpose.xlu0.b32.cont [2/16] %v8913, 128
    %8918 = vxpose.xlu0.b32.cont [3/16] 0.0, 128
    %8919 = vxpose.xlu0.b32.cont [4/16] 0.0, 128
    %8920 = vxpose.xlu0.b32.cont [5/16] 0.0, 128
    %8921 = vxpose.xlu0.b32.cont [6/16] 0.0, 128
    %8922 = vxpose.xlu0.b32.cont [7/16] 0.0, 128
    %8923 = vxpose.xlu0.b32.cont [8/16] 0.0, 128
    %8924 = vxpose.xlu0.b32.cont [9/16] 0.0, 128
    %8925 = vxpose.xlu0.b32.cont [10/16] 0.0, 128
    %8926 = vxpose.xlu0.b32.cont [11/16] 0.0, 128
    %8927 = vxpose.xlu0.b32.cont [12/16] 0.0, 128
    %8928 = vxpose.xlu0.b32.cont [13/16] 0.0, 128
    %8929 = vxpose.xlu0.b32.cont [14/16] 0.0, 128
    %8930 = vxpose.xlu0.b32.cont [15/16] 0.0, 128
    %8931 = vxpose.xlu0.b32.end [16/16] 0.0, 128
    %v8932 = vpop.trf.xlu0
    %v8933 = vpop.trf.xlu0
    %v8934 = vpop.trf.xlu0
    %v8935 = vpop.trf.xlu0
    %v8936 = vpop.trf.xlu0
    %v8937 = vpop.trf.xlu0
    %v8938 = vpop.trf.xlu0
    %v8939 = vpop.trf.xlu0
    %v8940 = vpop.trf.xlu0
    %v8941 = vpop.trf.xlu0
    %v8942 = vpop.trf.xlu0
    %v8943 = vpop.trf.xlu0
    %v8944 = vpop.trf.xlu0
    %v8945 = vpop.trf.xlu0
    %v8946 = vpop.trf.xlu0
    %v8947 = vpop.trf.xlu0
    %8948 = vrot.lane.b32.xlu0 %v7527, 104
    %v8949 = vpop.permute.xlu0 %8948
    %8950 = vrot.lane.b32.xlu0 %v7532, 104
    %v8951 = vpop.permute.xlu0 %8950
    %v8955 = vsel %vm916, %v8932, 0
    %8957 = vmatprep.subr.mxu0 0.0
    %8958 = vmatpush1.msra.mxu0 %v8949
    %8959 = vmatprep.subr.mxu0 0.0
    %8960 = vmatpush1.msra.mxu0 %v8951
    %8961 = vmatprep.subr.mxu0 0.0
    %8962 = vmatpush1.msra.mxu0 0.0
    %8963 = vmatprep.subr.mxu0 0.0
    %8964 = vmatpush1.msra.mxu0 0.0
    %8965 = vmatprep.subr.mxu0 0.0
    %8966 = vmatpush1.msra.mxu0 0.0
    %8967 = vmatprep.subr.mxu0 0.0
    %8968 = vmatpush1.msra.mxu0 0.0
    %8969 = vmatprep.subr.mxu0 0.0
    %8970 = vmatpush1.msra.mxu0 0.0
    %8971 = vmatprep.subr.mxu0 0.0
    %8972 = vmatpush1.msra.mxu0 0.0
    %8973 = vmatprep.subr.mxu0 0.0
    %8974 = vmatpush1.msra.mxu0 0.0
    %8975 = vmatprep.subr.mxu0 0.0
    %8976 = vmatpush1.msra.mxu0 0.0
    %8977 = vmatprep.subr.mxu0 0.0
    %8978 = vmatpush1.msra.mxu0 0.0
    %8979 = vmatprep.subr.mxu0 0.0
    %8980 = vmatpush1.msra.mxu0 0.0
    %8981 = vmatprep.subr.mxu0 0.0
    %8982 = vmatpush1.msra.mxu0 0.0
    %8983 = vmatprep.subr.mxu0 0.0
    %8984 = vmatpush1.msra.mxu0 0.0
    %8985 = vmatprep.subr.mxu0 0.0
    %8986 = vmatpush1.msra.mxu0 0.0
    %8987 = vmatprep.subr.mxu0 0.0
    %8988 = vmatpush1.msra.mxu0 0.0
    %8989 = vmatprep.subr.mxu0 0.0
    %8990 = vmatpush1.msra.mxu0 0.0
    %8991 = vmatprep.subr.mxu0 0.0
    %8992 = vmatpush1.msra.mxu0 0.0
    %8993 = vmatprep.subr.mxu0 0.0
    %8994 = vmatpush1.msra.mxu0 0.0
    %8995 = vmatprep.subr.mxu0 0.0
    %8996 = vmatpush1.msra.mxu0 0.0
    %8997 = vmatprep.subr.mxu0 0.0
    %8998 = vmatpush1.msra.mxu0 0.0
    %8999 = vmatprep.subr.mxu0 0.0
    %9000 = vmatpush1.msra.mxu0 0.0
    %9001 = vmatprep.subr.mxu0 0.0
    %9002 = vmatpush1.msra.mxu0 0.0
    %9003 = vmatprep.subr.mxu0 0.0
    %9004 = vmatpush1.msra.mxu0 0.0
    %9005 = vmatprep.subr.mxu0 0.0
    %9006 = vmatpush1.msra.mxu0 0.0
    %9007 = vmatprep.subr.mxu0 0.0
    %9008 = vmatpush1.msra.mxu0 0.0
    %9009 = vmatprep.subr.mxu0 0.0
    %9010 = vmatpush1.msra.mxu0 0.0
    %9011 = vmatprep.subr.mxu0 0.0
    %9012 = vmatpush1.msra.mxu0 0.0
    %9013 = vmatprep.subr.mxu0 0.0
    %9014 = vmatpush1.msra.mxu0 0.0
    %9015 = vmatprep.subr.mxu0 0.0
    %9016 = vmatpush1.msra.mxu0 0.0
    %9017 = vmatprep.subr.mxu0 0.0
    %9018 = vmatpush1.msra.mxu0 0.0
    %9019 = vmatprep.subr.mxu0 0.0
    %9020 = vmatpush1.msra.mxu0 0.0
    %9021 = vmatprep.mubr.f32.mxu0 0.0
    %9022 = vmatmul.mubr.f32.gmra.mrb[0].mxu0 %v8955
    %v9023 = vpop.f32.mrb[0].mxu0
    %v9024 = vadd.f32 0.0, %v9023
    %v9025 = vpop.f32.mrb[0].mxu0
    %9026 = vdwg.mxu0
    %9027 = vrot.lane.b32.xlu0 %v7442, 104
    %v9028 = vpop.permute.xlu0 %9027
    %9029 = vrot.lane.b32.xlu0 %v7447, 104
    %v9030 = vpop.permute.xlu0 %9029
    %9033 = vxpose.xlu0.b32.start [1/16] %v9028, 128
    %9034 = vxpose.xlu0.b32.cont [2/16] %v9030, 128
    %9035 = vxpose.xlu0.b32.cont [3/16] 0.0, 128
    %9036 = vxpose.xlu0.b32.cont [4/16] 0.0, 128
    %9037 = vxpose.xlu0.b32.cont [5/16] 0.0, 128
    %9038 = vxpose.xlu0.b32.cont [6/16] 0.0, 128
    %9039 = vxpose.xlu0.b32.cont [7/16] 0.0, 128
    %9040 = vxpose.xlu0.b32.cont [8/16] 0.0, 128
    %9041 = vxpose.xlu0.b32.cont [9/16] 0.0, 128
    %9042 = vxpose.xlu0.b32.cont [10/16] 0.0, 128
    %9043 = vxpose.xlu0.b32.cont [11/16] 0.0, 128
    %9044 = vxpose.xlu0.b32.cont [12/16] 0.0, 128
    %9045 = vxpose.xlu0.b32.cont [13/16] 0.0, 128
    %9046 = vxpose.xlu0.b32.cont [14/16] 0.0, 128
    %9047 = vxpose.xlu0.b32.cont [15/16] 0.0, 128
    %9048 = vxpose.xlu0.b32.end [16/16] 0.0, 128
    %v9049 = vpop.trf.xlu0
    %v9050 = vpop.trf.xlu0
    %v9051 = vpop.trf.xlu0
    %v9052 = vpop.trf.xlu0
    %v9053 = vpop.trf.xlu0
    %v9054 = vpop.trf.xlu0
    %v9055 = vpop.trf.xlu0
    %v9056 = vpop.trf.xlu0
    %v9057 = vpop.trf.xlu0
    %v9058 = vpop.trf.xlu0
    %v9059 = vpop.trf.xlu0
    %v9060 = vpop.trf.xlu0
    %v9061 = vpop.trf.xlu0
    %v9062 = vpop.trf.xlu0
    %v9063 = vpop.trf.xlu0
    %v9064 = vpop.trf.xlu0
    %9065 = vrot.lane.b32.xlu0 %v7537, 104
    %v9066 = vpop.permute.xlu0 %9065
    %9067 = vrot.lane.b32.xlu0 %v7542, 104
    %v9068 = vpop.permute.xlu0 %9067
    %v9072 = vsel %vm916, %v9049, 0
    %9074 = vmatprep.subr.mxu0 0.0
    %9075 = vmatpush1.msra.mxu0 %v9066
    %9076 = vmatprep.subr.mxu0 0.0
    %9077 = vmatpush1.msra.mxu0 %v9068
    %9078 = vmatprep.subr.mxu0 0.0
    %9079 = vmatpush1.msra.mxu0 0.0
    %9080 = vmatprep.subr.mxu0 0.0
    %9081 = vmatpush1.msra.mxu0 0.0
    %9082 = vmatprep.subr.mxu0 0.0
    %9083 = vmatpush1.msra.mxu0 0.0
    %9084 = vmatprep.subr.mxu0 0.0
    %9085 = vmatpush1.msra.mxu0 0.0
    %9086 = vmatprep.subr.mxu0 0.0
    %9087 = vmatpush1.msra.mxu0 0.0
    %9088 = vmatprep.subr.mxu0 0.0
    %9089 = vmatpush1.msra.mxu0 0.0
    %9090 = vmatprep.subr.mxu0 0.0
    %9091 = vmatpush1.msra.mxu0 0.0
    %9092 = vmatprep.subr.mxu0 0.0
    %9093 = vmatpush1.msra.mxu0 0.0
    %9094 = vmatprep.subr.mxu0 0.0
    %9095 = vmatpush1.msra.mxu0 0.0
    %9096 = vmatprep.subr.mxu0 0.0
    %9097 = vmatpush1.msra.mxu0 0.0
    %9098 = vmatprep.subr.mxu0 0.0
    %9099 = vmatpush1.msra.mxu0 0.0
    %9100 = vmatprep.subr.mxu0 0.0
    %9101 = vmatpush1.msra.mxu0 0.0
    %9102 = vmatprep.subr.mxu0 0.0
    %9103 = vmatpush1.msra.mxu0 0.0
    %9104 = vmatprep.subr.mxu0 0.0
    %9105 = vmatpush1.msra.mxu0 0.0
    %9106 = vmatprep.subr.mxu0 0.0
    %9107 = vmatpush1.msra.mxu0 0.0
    %9108 = vmatprep.subr.mxu0 0.0
    %9109 = vmatpush1.msra.mxu0 0.0
    %9110 = vmatprep.subr.mxu0 0.0
    %9111 = vmatpush1.msra.mxu0 0.0
    %9112 = vmatprep.subr.mxu0 0.0
    %9113 = vmatpush1.msra.mxu0 0.0
    %9114 = vmatprep.subr.mxu0 0.0
    %9115 = vmatpush1.msra.mxu0 0.0
    %9116 = vmatprep.subr.mxu0 0.0
    %9117 = vmatpush1.msra.mxu0 0.0
    %9118 = vmatprep.subr.mxu0 0.0
    %9119 = vmatpush1.msra.mxu0 0.0
    %9120 = vmatprep.subr.mxu0 0.0
    %9121 = vmatpush1.msra.mxu0 0.0
    %9122 = vmatprep.subr.mxu0 0.0
    %9123 = vmatpush1.msra.mxu0 0.0
    %9124 = vmatprep.subr.mxu0 0.0
    %9125 = vmatpush1.msra.mxu0 0.0
    %9126 = vmatprep.subr.mxu0 0.0
    %9127 = vmatpush1.msra.mxu0 0.0
    %9128 = vmatprep.subr.mxu0 0.0
    %9129 = vmatpush1.msra.mxu0 0.0
    %9130 = vmatprep.subr.mxu0 0.0
    %9131 = vmatpush1.msra.mxu0 0.0
    %9132 = vmatprep.subr.mxu0 0.0
    %9133 = vmatpush1.msra.mxu0 0.0
    %9134 = vmatprep.subr.mxu0 0.0
    %9135 = vmatpush1.msra.mxu0 0.0
    %9136 = vmatprep.subr.mxu0 0.0
    %9137 = vmatpush1.msra.mxu0 0.0
    %9138 = vmatprep.mubr.f32.mxu0 0.0
    %9139 = vmatmul.mubr.f32.gmra.mrb[0].mxu0 %v9072
    %v9140 = vpop.f32.mrb[0].mxu0
    %v9141 = vadd.f32 0.0, %v9140
    %v9142 = vpop.f32.mrb[0].mxu0
    %9143 = vdwg.mxu0
    %v9144 = vmul.f32 %v9024, 0.25
    %v9145 = vmul.f32 %v9141, 0.25
    %v9146 = vsel %vm723, %v9144, -inf
    %9147 = vmax.xlane.f32.xlu0 %v9146
    %v9148 = vpop.xlane.xlu0 %9147
    %v9149 = vsel %vm723, %v9145, -inf
    %9150 = vmax.xlane.f32.xlu0 %v9149
    %v9151 = vpop.xlane.xlu0 %9150
    %v9152 = vsub.f32 %v9144, %v9148
    %v9153 = vsub.f32 %v9145, %v9151
    %v9154 = vmul.f32 %v9152, 1.442695
    %v9155 = vpow.pop %v9154
    %v9156 = vmul.f32 %v9153, 1.442695
    %v9157 = vpow.pop %v9156
    %v9158 = vsel %vm723, %v9155, 0.0
    %9159 = vadd.xlane.f32.xlu0 %v9158
    %v9160 = vpop.xlane.xlu0 %9159
    %v9161 = vsel %vm723, %v9157, 0.0
    %9162 = vadd.xlane.f32.xlu0 %v9161
    %v9163 = vpop.xlane.xlu0 %9162
    %v9164 = vrcp.pop %v9160
    %v9165 = vmul.f32 %v9155, %v9164
    %v9166 = vrcp.pop %v9163
    %v9167 = vmul.f32 %v9157, %v9166
    %9168 = vrot.lane.b32.xlu0 %v7622, 104
    %v9169 = vpop.permute.xlu0 %9168
    %9170 = vrot.lane.b32.xlu0 %v7627, 104
    %v9171 = vpop.permute.xlu0 %9170
    %v9172 = vsel %vm723, %v9169, 0
    %v9174 = vsel %vm723, %v9171, 0
    %v9177 = vsel %vm723, %v9165, 0
    %9179 = vmatprep.subr.mxu0 0.0
    %9180 = vmatpush1.xpose.msra.mxu0 %v9177
    %9181 = vmatprep.subr.mxu0 0.0
    %9182 = vmatpush1.xpose.msra.mxu0 0.0
    %9183 = vmatprep.subr.mxu0 0.0
    %9184 = vmatpush1.xpose.msra.mxu0 0.0
    %9185 = vmatprep.subr.mxu0 0.0
    %9186 = vmatpush1.xpose.msra.mxu0 0.0
    %9187 = vmatprep.subr.mxu0 0.0
    %9188 = vmatpush1.xpose.msra.mxu0 0.0
    %9189 = vmatprep.subr.mxu0 0.0
    %9190 = vmatpush1.xpose.msra.mxu0 0.0
    %9191 = vmatprep.subr.mxu0 0.0
    %9192 = vmatpush1.xpose.msra.mxu0 0.0
    %9193 = vmatprep.subr.mxu0 0.0
    %9194 = vmatpush1.xpose.msra.mxu0 0.0
    %9195 = vmatprep.subr.mxu0 0.0
    %9196 = vmatpush1.xpose.msra.mxu0 0.0
    %9197 = vmatprep.subr.mxu0 0.0
    %9198 = vmatpush1.xpose.msra.mxu0 0.0
    %9199 = vmatprep.subr.mxu0 0.0
    %9200 = vmatpush1.xpose.msra.mxu0 0.0
    %9201 = vmatprep.subr.mxu0 0.0
    %9202 = vmatpush1.xpose.msra.mxu0 0.0
    %9203 = vmatprep.subr.mxu0 0.0
    %9204 = vmatpush1.xpose.msra.mxu0 0.0
    %9205 = vmatprep.subr.mxu0 0.0
    %9206 = vmatpush1.xpose.msra.mxu0 0.0
    %9207 = vmatprep.subr.mxu0 0.0
    %9208 = vmatpush1.xpose.msra.mxu0 0.0
    %9209 = vmatprep.subr.mxu0 0.0
    %9210 = vmatpush1.xpose.msra.mxu0 0.0
    %9211 = vmatprep.subr.mxu0 0.0
    %9212 = vmatpush1.xpose.msra.mxu0 0.0
    %9213 = vmatprep.subr.mxu0 0.0
    %9214 = vmatpush1.xpose.msra.mxu0 0.0
    %9215 = vmatprep.subr.mxu0 0.0
    %9216 = vmatpush1.xpose.msra.mxu0 0.0
    %9217 = vmatprep.subr.mxu0 0.0
    %9218 = vmatpush1.xpose.msra.mxu0 0.0
    %9219 = vmatprep.subr.mxu0 0.0
    %9220 = vmatpush1.xpose.msra.mxu0 0.0
    %9221 = vmatprep.subr.mxu0 0.0
    %9222 = vmatpush1.xpose.msra.mxu0 0.0
    %9223 = vmatprep.subr.mxu0 0.0
    %9224 = vmatpush1.xpose.msra.mxu0 0.0
    %9225 = vmatprep.subr.mxu0 0.0
    %9226 = vmatpush1.xpose.msra.mxu0 0.0
    %9227 = vmatprep.subr.mxu0 0.0
    %9228 = vmatpush1.xpose.msra.mxu0 0.0
    %9229 = vmatprep.subr.mxu0 0.0
    %9230 = vmatpush1.xpose.msra.mxu0 0.0
    %9231 = vmatprep.subr.mxu0 0.0
    %9232 = vmatpush1.xpose.msra.mxu0 0.0
    %9233 = vmatprep.subr.mxu0 0.0
    %9234 = vmatpush1.xpose.msra.mxu0 0.0
    %9235 = vmatprep.subr.mxu0 0.0
    %9236 = vmatpush1.xpose.msra.mxu0 0.0
    %9237 = vmatprep.subr.mxu0 0.0
    %9238 = vmatpush1.xpose.msra.mxu0 0.0
    %9239 = vmatprep.subr.mxu0 0.0
    %9240 = vmatpush1.xpose.msra.mxu0 0.0
    %9241 = vmatprep.subr.mxu0 0.0
    %9242 = vmatpush1.xpose.msra.mxu0 0.0
    %9243 = vmatprep.mubr.f32.mxu0 0.0
    %9244 = vmatmul.mubr.f32.gmra.mrb[0].mxu0 %v9172
    %v9245 = vpop.f32.mrb[0].mxu0
    %v9246 = vadd.f32 0.0, %v9245
    %v9247 = vpop.f32.mrb[0].mxu0
    %9248 = vmatprep.mubr.f32.mxu0 0.0
    %9249 = vmatmul.mubr.f32.gmra.mrb[0].mxu0 %v9174
    %v9250 = vpop.f32.mrb[0].mxu0
    %v9251 = vadd.f32 0.0, %v9250
    %v9252 = vpop.f32.mrb[0].mxu0
    %9253 = vdwg.mxu0
    %9254 = vrot.lane.b32.xlu0 %v7632, 104
    %v9255 = vpop.permute.xlu0 %9254
    %9256 = vrot.lane.b32.xlu0 %v7637, 104
    %v9257 = vpop.permute.xlu0 %9256
    %v9258 = vsel %vm723, %v9255, 0
    %v9260 = vsel %vm723, %v9257, 0
    %v9263 = vsel %vm723, %v9167, 0
    %9265 = vmatprep.subr.mxu0 0.0
    %9266 = vmatpush1.xpose.msra.mxu0 %v9263
    %9267 = vmatprep.subr.mxu0 0.0
    %9268 = vmatpush1.xpose.msra.mxu0 0.0
    %9269 = vmatprep.subr.mxu0 0.0
    %9270 = vmatpush1.xpose.msra.mxu0 0.0
    %9271 = vmatprep.subr.mxu0 0.0
    %9272 = vmatpush1.xpose.msra.mxu0 0.0
    %9273 = vmatprep.subr.mxu0 0.0
    %9274 = vmatpush1.xpose.msra.mxu0 0.0
    %9275 = vmatprep.subr.mxu0 0.0
    %9276 = vmatpush1.xpose.msra.mxu0 0.0
    %9277 = vmatprep.subr.mxu0 0.0
    %9278 = vmatpush1.xpose.msra.mxu0 0.0
    %9279 = vmatprep.subr.mxu0 0.0
    %9280 = vmatpush1.xpose.msra.mxu0 0.0
    %9281 = vmatprep.subr.mxu0 0.0
    %9282 = vmatpush1.xpose.msra.mxu0 0.0
    %9283 = vmatprep.subr.mxu0 0.0
    %9284 = vmatpush1.xpose.msra.mxu0 0.0
    %9285 = vmatprep.subr.mxu0 0.0
    %9286 = vmatpush1.xpose.msra.mxu0 0.0
    %9287 = vmatprep.subr.mxu0 0.0
    %9288 = vmatpush1.xpose.msra.mxu0 0.0
    %9289 = vmatprep.subr.mxu0 0.0
    %9290 = vmatpush1.xpose.msra.mxu0 0.0
    %9291 = vmatprep.subr.mxu0 0.0
    %9292 = vmatpush1.xpose.msra.mxu0 0.0
    %9293 = vmatprep.subr.mxu0 0.0
    %9294 = vmatpush1.xpose.msra.mxu0 0.0
    %9295 = vmatprep.subr.mxu0 0.0
    %9296 = vmatpush1.xpose.msra.mxu0 0.0
    %9297 = vmatprep.subr.mxu0 0.0
    %9298 = vmatpush1.xpose.msra.mxu0 0.0
    %9299 = vmatprep.subr.mxu0 0.0
    %9300 = vmatpush1.xpose.msra.mxu0 0.0
    %9301 = vmatprep.subr.mxu0 0.0
    %9302 = vmatpush1.xpose.msra.mxu0 0.0
    %9303 = vmatprep.subr.mxu0 0.0
    %9304 = vmatpush1.xpose.msra.mxu0 0.0
    %9305 = vmatprep.subr.mxu0 0.0
    %9306 = vmatpush1.xpose.msra.mxu0 0.0
    %9307 = vmatprep.subr.mxu0 0.0
    %9308 = vmatpush1.xpose.msra.mxu0 0.0
    %9309 = vmatprep.subr.mxu0 0.0
    %9310 = vmatpush1.xpose.msra.mxu0 0.0
    %9311 = vmatprep.subr.mxu0 0.0
    %9312 = vmatpush1.xpose.msra.mxu0 0.0
    %9313 = vmatprep.subr.mxu0 0.0
    %9314 = vmatpush1.xpose.msra.mxu0 0.0
    %9315 = vmatprep.subr.mxu0 0.0
    %9316 = vmatpush1.xpose.msra.mxu0 0.0
    %9317 = vmatprep.subr.mxu0 0.0
    %9318 = vmatpush1.xpose.msra.mxu0 0.0
    %9319 = vmatprep.subr.mxu0 0.0
    %9320 = vmatpush1.xpose.msra.mxu0 0.0
    %9321 = vmatprep.subr.mxu0 0.0
    %9322 = vmatpush1.xpose.msra.mxu0 0.0
    %9323 = vmatprep.subr.mxu0 0.0
    %9324 = vmatpush1.xpose.msra.mxu0 0.0
    %9325 = vmatprep.subr.mxu0 0.0
    %9326 = vmatpush1.xpose.msra.mxu0 0.0
    %9327 = vmatprep.subr.mxu0 0.0
    %9328 = vmatpush1.xpose.msra.mxu0 0.0
    %9329 = vmatprep.mubr.f32.mxu0 0.0
    %9330 = vmatmul.mubr.f32.gmra.mrb[0].mxu0 %v9258
    %v9331 = vpop.f32.mrb[0].mxu0
    %v9332 = vadd.f32 0.0, %v9331
    %v9333 = vpop.f32.mrb[0].mxu0
    %9334 = vmatprep.mubr.f32.mxu0 0.0
    %9335 = vmatmul.mubr.f32.gmra.mrb[0].mxu0 %v9260
    %v9336 = vpop.f32.mrb[0].mxu0
    %v9337 = vadd.f32 0.0, %v9336
    %v9338 = vpop.f32.mrb[0].mxu0
    %9339 = vdwg.mxu0
    %9344 = vrot.lane.b32.xlu0 %v8386, 8
    %v9345 = vpop.permute.xlu0 %9344
    %9346 = vrot.lane.b32.xlu0 %v8391, 8
    %v9347 = vpop.permute.xlu0 %9346
    %9348 = vrot.lane.b32.xlu0 %v8472, 8
    %v9349 = vpop.permute.xlu0 %9348
    %9350 = vrot.lane.b32.xlu0 %v8477, 8
    %v9351 = vpop.permute.xlu0 %9350
    %9360 = vrot.lane.b32.xlu0 %v8816, 16
    %v9361 = vpop.permute.xlu0 %9360
    %9362 = vrot.lane.b32.xlu0 %v8821, 16
    %v9363 = vpop.permute.xlu0 %9362
    %9364 = vrot.lane.b32.xlu0 %v8902, 16
    %v9365 = vpop.permute.xlu0 %9364
    %9366 = vrot.lane.b32.xlu0 %v8907, 16
    %v9367 = vpop.permute.xlu0 %9366
    %9376 = vrot.lane.b32.xlu0 %v9246, 24
    %v9377 = vpop.permute.xlu0 %9376
    %9378 = vrot.lane.b32.xlu0 %v9251, 24
    %v9379 = vpop.permute.xlu0 %9378
    %9380 = vrot.lane.b32.xlu0 %v9332, 24
    %v9381 = vpop.permute.xlu0 %9380
    %9382 = vrot.lane.b32.xlu0 %v9337, 24
    %v9383 = vpop.permute.xlu0 %9382
    %v9388 = vsel %vm723, %v7950, %v9345
    %v9389 = vsel %vm723, %v7955, %v9347
    %v9390 = vsel %vm723, %v8034, %v9349
    %v9391 = vsel %vm723, %v8039, %v9351
    %v9392 = vsel %vm916, %v9388, %v9361
    %v9393 = vsel %vm916, %v9389, %v9363
    %v9394 = vsel %vm916, %v9390, %v9365
    %v9395 = vsel %vm916, %v9391, %v9367
    %v9396 = vsel %vm2407, %v9392, %v9377
    %v9397 = vsel %vm2407, %v9393, %v9379
    %v9398 = vsel %vm2407, %v9394, %v9381
    %v9399 = vsel %vm2407, %v9395, %v9383
    %s9400 = scalar_lea.vmem [#allocation2], 512
    %v9401 = vld [vmem:[%s9400] sm:$0xff]
    %v9402 = vld [vmem:[%s9400 + $0x8] sm:$0xff]
    %v9403 = vld [vmem:[%s9400 + $0x10] sm:$0xff]
    %v9404 = vld [vmem:[%s9400 + $0x18] sm:$0xff]
    %v9405 = vld [vmem:[%s4 + $0x1d] sm:$0x1]
    %v9406 = vlaneseq
    %v9407 = vshrl.u32 %v9406, 7
    %v9408 = vsub.s32 0, %v9407
    %v9409 = vrot.slane %v9405, %v9408
    %v9411 = vsel %vm64, %v9396, 0
    %v9414 = vsel %vm64, %v9397, 0
    %v9417 = vsel %vm64, %v9398, 0
    %v9420 = vsel %vm64, %v9399, 0
    %9422 = vmatprep.subr.mxu0 0.0
    %9423 = vmatpush1.msra.mxu0 %v9401
    %9424 = vmatprep.subr.mxu0 0.0
    %9425 = vmatpush1.msra.mxu0 %v9402
    %9426 = vmatprep.subr.mxu0 0.0
    %9427 = vmatpush1.msra.mxu0 %v9403
    %9428 = vmatprep.subr.mxu0 0.0
    %9429 = vmatpush1.msra.mxu0 %v9404
    %9430 = vmatprep.subr.mxu0 0.0
    %9431 = vmatpush1.msra.mxu0 0.0
    %9432 = vmatprep.subr.mxu0 0.0
    %9433 = vmatpush1.msra.mxu0 0.0
    %9434 = vmatprep.subr.mxu0 0.0
    %9435 = vmatpush1.msra.mxu0 0.0
    %9436 = vmatprep.subr.mxu0 0.0
    %9437 = vmatpush1.msra.mxu0 0.0
    %9438 = vmatprep.subr.mxu0 0.0
    %9439 = vmatpush1.msra.mxu0 0.0
    %9440 = vmatprep.subr.mxu0 0.0
    %9441 = vmatpush1.msra.mxu0 0.0
    %9442 = vmatprep.subr.mxu0 0.0
    %9443 = vmatpush1.msra.mxu0 0.0
    %9444 = vmatprep.subr.mxu0 0.0
    %9445 = vmatpush1.msra.mxu0 0.0
    %9446 = vmatprep.subr.mxu0 0.0
    %9447 = vmatpush1.msra.mxu0 0.0
    %9448 = vmatprep.subr.mxu0 0.0
    %9449 = vmatpush1.msra.mxu0 0.0
    %9450 = vmatprep.subr.mxu0 0.0
    %9451 = vmatpush1.msra.mxu0 0.0
    %9452 = vmatprep.subr.mxu0 0.0
    %9453 = vmatpush1.msra.mxu0 0.0
    %9454 = vmatprep.subr.mxu0 0.0
    %9455 = vmatpush1.msra.mxu0 0.0
    %9456 = vmatprep.subr.mxu0 0.0
    %9457 = vmatpush1.msra.mxu0 0.0
    %9458 = vmatprep.subr.mxu0 0.0
    %9459 = vmatpush1.msra.mxu0 0.0
    %9460 = vmatprep.subr.mxu0 0.0
    %9461 = vmatpush1.msra.mxu0 0.0
    %9462 = vmatprep.subr.mxu0 0.0
    %9463 = vmatpush1.msra.mxu0 0.0
    %9464 = vmatprep.subr.mxu0 0.0
    %9465 = vmatpush1.msra.mxu0 0.0
    %9466 = vmatprep.subr.mxu0 0.0
    %9467 = vmatpush1.msra.mxu0 0.0
    %9468 = vmatprep.subr.mxu0 0.0
    %9469 = vmatpush1.msra.mxu0 0.0
    %9470 = vmatprep.subr.mxu0 0.0
    %9471 = vmatpush1.msra.mxu0 0.0
    %9472 = vmatprep.subr.mxu0 0.0
    %9473 = vmatpush1.msra.mxu0 0.0
    %9474 = vmatprep.subr.mxu0 0.0
    %9475 = vmatpush1.msra.mxu0 0.0
    %9476 = vmatprep.subr.mxu0 0.0
    %9477 = vmatpush1.msra.mxu0 0.0
    %9478 = vmatprep.subr.mxu0 0.0
    %9479 = vmatpush1.msra.mxu0 0.0
    %9480 = vmatprep.subr.mxu0 0.0
    %9481 = vmatpush1.msra.mxu0 0.0
    %9482 = vmatprep.subr.mxu0 0.0
    %9483 = vmatpush1.msra.mxu0 0.0
    %9484 = vmatprep.subr.mxu0 0.0
    %9485 = vmatpush1.msra.mxu0 0.0
    %9486 = vmatprep.mubr.f32.mxu0 0.0
    %9487 = vmatmul.mubr.f32.gmra.mrb[0].mxu0 %v9411
    %v9488 = vpop.f32.mrb[0].mxu0
    %v9489 = vadd.f32 %v9409, %v9488
    %v9490 = vpop.f32.mrb[0].mxu0
    %9491 = vmatprep.mubr.f32.mxu0 0.0
    %9492 = vmatmul.mubr.f32.gmra.mrb[0].mxu0 %v9414
    %v9493 = vpop.f32.mrb[0].mxu0
    %v9494 = vadd.f32 %v9409, %v9493
    %v9495 = vpop.f32.mrb[0].mxu0
    %9496 = vmatprep.mubr.f32.mxu0 0.0
    %9497 = vmatmul.mubr.f32.gmra.mrb[0].mxu0 %v9417
    %v9498 = vpop.f32.mrb[0].mxu0
    %v9499 = vadd.f32 %v9409, %v9498
    %v9500 = vpop.f32.mrb[0].mxu0
    %9501 = vmatprep.mubr.f32.mxu0 0.0
    %9502 = vmatmul.mubr.f32.gmra.mrb[0].mxu0 %v9420
    %v9503 = vpop.f32.mrb[0].mxu0
    %v9504 = vadd.f32 %v9409, %v9503
    %v9505 = vpop.f32.mrb[0].mxu0
    %9506 = vdwg.mxu0
    %v9507 = vadd.f32 %v5197, %v9489
    %v9508 = vadd.f32 %v5198, %v9494
    %v9509 = vadd.f32 %v5199, %v9499
    %v9510 = vadd.f32 %v5200, %v9504
    %v9511 = vld [vmem:[%s4 + $0x1e] sm:$0x1]
    %v9512 = vld [vmem:[%s4 + $0x1f] sm:$0x1]
    %v9513 = vsel %vm64, %v9507, 0.0
    %9514 = vadd.xlane.f32.xlu0 %v9513
    %v9515 = vpop.xlane.xlu0 %9514
    %v9516 = vsel %vm64, %v9508, 0.0
    %9517 = vadd.xlane.f32.xlu0 %v9516
    %v9518 = vpop.xlane.xlu0 %9517
    %v9519 = vsel %vm64, %v9509, 0.0
    %9520 = vadd.xlane.f32.xlu0 %v9519
    %v9521 = vpop.xlane.xlu0 %9520
    %v9522 = vsel %vm64, %v9510, 0.0
    %9523 = vadd.xlane.f32.xlu0 %v9522
    %v9524 = vpop.xlane.xlu0 %9523
    %v9525 = vmul.f32 %v9515, %v205
    %v9526 = vmul.f32 %v9518, %v205
    %v9527 = vmul.f32 %v9521, %v205
    %v9528 = vmul.f32 %v9524, %v205
    %v9529 = vsub.f32 %v9507, %v9525
    %v9530 = vsub.f32 %v9508, %v9526
    %v9531 = vsub.f32 %v9509, %v9527
    %v9532 = vsub.f32 %v9510, %v9528
    %v9533 = vmul.f32 %v9529, %v9529
    %v9534 = vmul.f32 %v9530, %v9530
    %v9535 = vmul.f32 %v9531, %v9531
    %v9536 = vmul.f32 %v9532, %v9532
    %v9537 = vsel %vm64, %v9533, 0.0
    %9538 = vadd.xlane.f32.xlu0 %v9537
    %v9539 = vpop.xlane.xlu0 %9538
    %v9540 = vsel %vm64, %v9534, 0.0
    %9541 = vadd.xlane.f32.xlu0 %v9540
    %v9542 = vpop.xlane.xlu0 %9541
    %v9543 = vsel %vm64, %v9535, 0.0
    %9544 = vadd.xlane.f32.xlu0 %v9543
    %v9545 = vpop.xlane.xlu0 %9544
    %v9546 = vsel %vm64, %v9536, 0.0
    %9547 = vadd.xlane.f32.xlu0 %v9546
    %v9548 = vpop.xlane.xlu0 %9547
    %v9549 = vmul.f32 %v9539, %v205
    %v9550 = vmul.f32 %v9542, %v205
    %v9551 = vmul.f32 %v9545, %v205
    %v9552 = vmul.f32 %v9548, %v205
    %v9553 = vadd.f32 %v9549, 1e-05
    %v9554 = vadd.f32 %v9550, 1e-05
    %v9555 = vadd.f32 %v9551, 1e-05
    %v9556 = vadd.f32 %v9552, 1e-05
    %v9557 = vrsqrt.pop %v9553
    %v9558 = vrsqrt.pop %v9554
    %v9559 = vrsqrt.pop %v9555
    %v9560 = vrsqrt.pop %v9556
    %v9561 = vmul.f32 %v9529, %v9557
    %v9562 = vmul.f32 %v9530, %v9558
    %v9563 = vmul.f32 %v9531, %v9559
    %v9564 = vmul.f32 %v9532, %v9560
    %v9565 = vlaneseq
    %v9566 = vshrl.u32 %v9565, 7
    %v9567 = vsub.s32 0, %v9566
    %v9568 = vrot.slane %v9511, %v9567
    %v9569 = vmul.f32 %v9561, %v9568
    %v9570 = vmul.f32 %v9562, %v9568
    %v9571 = vmul.f32 %v9563, %v9568
    %v9572 = vmul.f32 %v9564, %v9568
    %v9573 = vlaneseq
    %v9574 = vshrl.u32 %v9573, 7
    %v9575 = vsub.s32 0, %v9574
    %v9576 = vrot.slane %v9512, %v9575
    %v9577 = vadd.f32 %v9569, %v9576
    %v9578 = vadd.f32 %v9570, %v9576
    %v9579 = vadd.f32 %v9571, %v9576
    %v9580 = vadd.f32 %v9572, %v9576
    %v9581 = vadd.f32 %v5197, %v7351
    %v9582 = vadd.f32 %v5198, %v7352
    %v9583 = vadd.f32 %v5199, %v7353
    %v9584 = vadd.f32 %v5200, %v7354
    %v9585 = vadd.f32 %v9581, %v9577
    %v9586 = vadd.f32 %v9582, %v9578
    %v9587 = vadd.f32 %v9583, %v9579
    %v9588 = vadd.f32 %v9584, %v9580
    %v9589 = vld [vmem:[%s4 + $0x20] sm:$0x1]
    %v9590 = vld [vmem:[%s4 + $0x21] sm:$0x1]
    %v9591 = vsel %vm64, %v9585, 0.0
    %9592 = vadd.xlane.f32.xlu0 %v9591
    %v9593 = vpop.xlane.xlu0 %9592
    %v9594 = vsel %vm64, %v9586, 0.0
    %9595 = vadd.xlane.f32.xlu0 %v9594
    %v9596 = vpop.xlane.xlu0 %9595
    %v9597 = vsel %vm64, %v9587, 0.0
    %9598 = vadd.xlane.f32.xlu0 %v9597
    %v9599 = vpop.xlane.xlu0 %9598
    %v9600 = vsel %vm64, %v9588, 0.0
    %9601 = vadd.xlane.f32.xlu0 %v9600
    %v9602 = vpop.xlane.xlu0 %9601
    %v9603 = vmul.f32 %v9593, %v205
    %v9604 = vmul.f32 %v9596, %v205
    %v9605 = vmul.f32 %v9599, %v205
    %v9606 = vmul.f32 %v9602, %v205
    %v9607 = vsub.f32 %v9585, %v9603
    %v9608 = vsub.f32 %v9586, %v9604
    %v9609 = vsub.f32 %v9587, %v9605
    %v9610 = vsub.f32 %v9588, %v9606
    %v9611 = vmul.f32 %v9607, %v9607
    %v9612 = vmul.f32 %v9608, %v9608
    %v9613 = vmul.f32 %v9609, %v9609
    %v9614 = vmul.f32 %v9610, %v9610
    %v9615 = vsel %vm64, %v9611, 0.0
    %9616 = vadd.xlane.f32.xlu0 %v9615
    %v9617 = vpop.xlane.xlu0 %9616
    %v9618 = vsel %vm64, %v9612, 0.0
    %9619 = vadd.xlane.f32.xlu0 %v9618
    %v9620 = vpop.xlane.xlu0 %9619
    %v9621 = vsel %vm64, %v9613, 0.0
    %9622 = vadd.xlane.f32.xlu0 %v9621
    %v9623 = vpop.xlane.xlu0 %9622
    %v9624 = vsel %vm64, %v9614, 0.0
    %9625 = vadd.xlane.f32.xlu0 %v9624
    %v9626 = vpop.xlane.xlu0 %9625
    %v9627 = vmul.f32 %v9617, %v205
    %v9628 = vmul.f32 %v9620, %v205
    %v9629 = vmul.f32 %v9623, %v205
    %v9630 = vmul.f32 %v9626, %v205
    %v9631 = vadd.f32 %v9627, 1e-05
    %v9632 = vadd.f32 %v9628, 1e-05
    %v9633 = vadd.f32 %v9629, 1e-05
    %v9634 = vadd.f32 %v9630, 1e-05
    %v9635 = vrsqrt.pop %v9631
    %v9636 = vrsqrt.pop %v9632
    %v9637 = vrsqrt.pop %v9633
    %v9638 = vrsqrt.pop %v9634
    %v9639 = vmul.f32 %v9607, %v9635
    %v9640 = vmul.f32 %v9608, %v9636
    %v9641 = vmul.f32 %v9609, %v9637
    %v9642 = vmul.f32 %v9610, %v9638
    %v9643 = vlaneseq
    %v9644 = vshrl.u32 %v9643, 7
    %v9645 = vsub.s32 0, %v9644
    %v9646 = vrot.slane %v9589, %v9645
    %v9647 = vmul.f32 %v9639, %v9646
    %v9648 = vmul.f32 %v9640, %v9646
    %v9649 = vmul.f32 %v9641, %v9646
    %v9650 = vmul.f32 %v9642, %v9646
    %v9651 = vlaneseq
    %v9652 = vshrl.u32 %v9651, 7
    %v9653 = vsub.s32 0, %v9652
    %v9654 = vrot.slane %v9590, %v9653
    %v9655 = vadd.f32 %v9647, %v9654
    %v9656 = vadd.f32 %v9648, %v9654
    %v9657 = vadd.f32 %v9649, %v9654
    %v9658 = vadd.f32 %v9650, %v9654
    %s9659 = scalar_lea.vmem [#allocation5], 64
    %v9660 = vld [vmem:[%s9659] sm:$0xff]
    %v9661 = vld [vmem:[%s9659 + $0x8] sm:$0xff]
    %v9662 = vld [vmem:[%s9659 + $0x10] sm:$0xff]
    %v9663 = vld [vmem:[%s9659 + $0x18] sm:$0xff]
    %v9664 = vld [vmem:[%s5 + $0x1] sm:$0x1]
    %v9665 = vlaneseq
    %v9666 = vshrl.u32 %v9665, 7
    %v9667 = vsub.s32 0, %v9666
    %v9668 = vrot.slane %v9664, %v9667
    %v9670 = vsel %vm64, %v9655, 0
    %v9673 = vsel %vm64, %v9656, 0
    %v9676 = vsel %vm64, %v9657, 0
    %v9679 = vsel %vm64, %v9658, 0
    %9681 = vmatprep.subr.mxu0 0.0
    %9682 = vmatpush1.msra.mxu0 %v9660
    %9683 = vmatprep.subr.mxu0 0.0
    %9684 = vmatpush1.msra.mxu0 %v9661
    %9685 = vmatprep.subr.mxu0 0.0
    %9686 = vmatpush1.msra.mxu0 %v9662
    %9687 = vmatprep.subr.mxu0 0.0
    %9688 = vmatpush1.msra.mxu0 %v9663
    %9689 = vmatprep.subr.mxu0 0.0
    %9690 = vmatpush1.msra.mxu0 0.0
    %9691 = vmatprep.subr.mxu0 0.0
    %9692 = vmatpush1.msra.mxu0 0.0
    %9693 = vmatprep.subr.mxu0 0.0
    %9694 = vmatpush1.msra.mxu0 0.0
    %9695 = vmatprep.subr.mxu0 0.0
    %9696 = vmatpush1.msra.mxu0 0.0
    %9697 = vmatprep.subr.mxu0 0.0
    %9698 = vmatpush1.msra.mxu0 0.0
    %9699 = vmatprep.subr.mxu0 0.0
    %9700 = vmatpush1.msra.mxu0 0.0
    %9701 = vmatprep.subr.mxu0 0.0
    %9702 = vmatpush1.msra.mxu0 0.0
    %9703 = vmatprep.subr.mxu0 0.0
    %9704 = vmatpush1.msra.mxu0 0.0
    %9705 = vmatprep.subr.mxu0 0.0
    %9706 = vmatpush1.msra.mxu0 0.0
    %9707 = vmatprep.subr.mxu0 0.0
    %9708 = vmatpush1.msra.mxu0 0.0
    %9709 = vmatprep.subr.mxu0 0.0
    %9710 = vmatpush1.msra.mxu0 0.0
    %9711 = vmatprep.subr.mxu0 0.0
    %9712 = vmatpush1.msra.mxu0 0.0
    %9713 = vmatprep.subr.mxu0 0.0
    %9714 = vmatpush1.msra.mxu0 0.0
    %9715 = vmatprep.subr.mxu0 0.0
    %9716 = vmatpush1.msra.mxu0 0.0
    %9717 = vmatprep.subr.mxu0 0.0
    %9718 = vmatpush1.msra.mxu0 0.0
    %9719 = vmatprep.subr.mxu0 0.0
    %9720 = vmatpush1.msra.mxu0 0.0
    %9721 = vmatprep.subr.mxu0 0.0
    %9722 = vmatpush1.msra.mxu0 0.0
    %9723 = vmatprep.subr.mxu0 0.0
    %9724 = vmatpush1.msra.mxu0 0.0
    %9725 = vmatprep.subr.mxu0 0.0
    %9726 = vmatpush1.msra.mxu0 0.0
    %9727 = vmatprep.subr.mxu0 0.0
    %9728 = vmatpush1.msra.mxu0 0.0
    %9729 = vmatprep.subr.mxu0 0.0
    %9730 = vmatpush1.msra.mxu0 0.0
    %9731 = vmatprep.subr.mxu0 0.0
    %9732 = vmatpush1.msra.mxu0 0.0
    %9733 = vmatprep.subr.mxu0 0.0
    %9734 = vmatpush1.msra.mxu0 0.0
    %9735 = vmatprep.subr.mxu0 0.0
    %9736 = vmatpush1.msra.mxu0 0.0
    %9737 = vmatprep.subr.mxu0 0.0
    %9738 = vmatpush1.msra.mxu0 0.0
    %9739 = vmatprep.subr.mxu0 0.0
    %9740 = vmatpush1.msra.mxu0 0.0
    %9741 = vmatprep.subr.mxu0 0.0
    %9742 = vmatpush1.msra.mxu0 0.0
    %9743 = vmatprep.subr.mxu0 0.0
    %9744 = vmatpush1.msra.mxu0 0.0
    %9745 = vmatprep.mubr.f32.mxu0 0.0
    %9746 = vmatmul.mubr.f32.gmra.mrb[0].mxu0 %v9670
    %v9747 = vpop.f32.mrb[0].mxu0
    %v9748 = vadd.f32 %v9668, %v9747
    %v9749 = vpop.f32.mrb[0].mxu0
    %9750 = vmatprep.mubr.f32.mxu0 0.0
    %9751 = vmatmul.mubr.f32.gmra.mrb[0].mxu0 %v9673
    %v9752 = vpop.f32.mrb[0].mxu0
    %v9753 = vadd.f32 %v9668, %v9752
    %v9754 = vpop.f32.mrb[0].mxu0
    %9755 = vmatprep.mubr.f32.mxu0 0.0
    %9756 = vmatmul.mubr.f32.gmra.mrb[0].mxu0 %v9676
    %v9757 = vpop.f32.mrb[0].mxu0
    %v9758 = vadd.f32 %v9668, %v9757
    %v9759 = vpop.f32.mrb[0].mxu0
    %9760 = vmatprep.mubr.f32.mxu0 0.0
    %9761 = vmatmul.mubr.f32.gmra.mrb[0].mxu0 %v9679
    %v9762 = vpop.f32.mrb[0].mxu0
    %v9763 = vadd.f32 %v9668, %v9762
    %v9764 = vpop.f32.mrb[0].mxu0
    %9765 = vdwg.mxu0
    %v9766 = vmax.f32 %v9748, 0.0
    %v9767 = vmax.f32 %v9753, 0.0
    %v9768 = vmax.f32 %v9758, 0.0
    %v9769 = vmax.f32 %v9763, 0.0
    %s9770 = scalar_lea.vmem [#allocation5], 96
    %v9771 = vld [vmem:[%s9770] sm:$0xff]
    %v9772 = vld [vmem:[%s9770 + $0x8] sm:$0xff]
    %v9773 = vld [vmem:[%s9770 + $0x10] sm:$0xff]
    %v9774 = vld [vmem:[%s9770 + $0x18] sm:$0xff]
    %v9775 = vld [vmem:[%s4 + $0x22] sm:$0x1]
    %v9776 = vlaneseq
    %v9777 = vshrl.u32 %v9776, 7
    %v9778 = vsub.s32 0, %v9777
    %v9779 = vrot.slane %v9775, %v9778
    %v9781 = vsel %vm5017, %v9766, 0
    %v9784 = vsel %vm5017, %v9767, 0
    %v9787 = vsel %vm5017, %v9768, 0
    %v9790 = vsel %vm5017, %v9769, 0
    %v9793 = vsel %vm5017, %v9771, 0
    %v9796 = vsel %vm5017, %v9772, 0
    %v9799 = vsel %vm5017, %v9773, 0
    %v9802 = vsel %vm5017, %v9774, 0
    %9804 = vmatprep.subr.mxu0 0.0
    %9805 = vmatpush1.xpose.msra.mxu0 %v9793
    %9806 = vmatprep.subr.mxu0 0.0
    %9807 = vmatpush1.xpose.msra.mxu0 %v9796
    %9808 = vmatprep.subr.mxu0 0.0
    %9809 = vmatpush1.xpose.msra.mxu0 %v9799
    %9810 = vmatprep.subr.mxu0 0.0
    %9811 = vmatpush1.xpose.msra.mxu0 %v9802
    %9812 = vmatprep.subr.mxu0 0.0
    %9813 = vmatpush1.xpose.msra.mxu0 0.0
    %9814 = vmatprep.subr.mxu0 0.0
    %9815 = vmatpush1.xpose.msra.mxu0 0.0
    %9816 = vmatprep.subr.mxu0 0.0
    %9817 = vmatpush1.xpose.msra.mxu0 0.0
    %9818 = vmatprep.subr.mxu0 0.0
    %9819 = vmatpush1.xpose.msra.mxu0 0.0
    %9820 = vmatprep.subr.mxu0 0.0
    %9821 = vmatpush1.xpose.msra.mxu0 0.0
    %9822 = vmatprep.subr.mxu0 0.0
    %9823 = vmatpush1.xpose.msra.mxu0 0.0
    %9824 = vmatprep.subr.mxu0 0.0
    %9825 = vmatpush1.xpose.msra.mxu0 0.0
    %9826 = vmatprep.subr.mxu0 0.0
    %9827 = vmatpush1.xpose.msra.mxu0 0.0
    %9828 = vmatprep.subr.mxu0 0.0
    %9829 = vmatpush1.xpose.msra.mxu0 0.0
    %9830 = vmatprep.subr.mxu0 0.0
    %9831 = vmatpush1.xpose.msra.mxu0 0.0
    %9832 = vmatprep.subr.mxu0 0.0
    %9833 = vmatpush1.xpose.msra.mxu0 0.0
    %9834 = vmatprep.subr.mxu0 0.0
    %9835 = vmatpush1.xpose.msra.mxu0 0.0
    %9836 = vmatprep.subr.mxu0 0.0
    %9837 = vmatpush1.xpose.msra.mxu0 0.0
    %9838 = vmatprep.subr.mxu0 0.0
    %9839 = vmatpush1.xpose.msra.mxu0 0.0
    %9840 = vmatprep.subr.mxu0 0.0
    %9841 = vmatpush1.xpose.msra.mxu0 0.0
    %9842 = vmatprep.subr.mxu0 0.0
    %9843 = vmatpush1.xpose.msra.mxu0 0.0
    %9844 = vmatprep.subr.mxu0 0.0
    %9845 = vmatpush1.xpose.msra.mxu0 0.0
    %9846 = vmatprep.subr.mxu0 0.0
    %9847 = vmatpush1.xpose.msra.mxu0 0.0
    %9848 = vmatprep.subr.mxu0 0.0
    %9849 = vmatpush1.xpose.msra.mxu0 0.0
    %9850 = vmatprep.subr.mxu0 0.0
    %9851 = vmatpush1.xpose.msra.mxu0 0.0
    %9852 = vmatprep.subr.mxu0 0.0
    %9853 = vmatpush1.xpose.msra.mxu0 0.0
    %9854 = vmatprep.subr.mxu0 0.0
    %9855 = vmatpush1.xpose.msra.mxu0 0.0
    %9856 = vmatprep.subr.mxu0 0.0
    %9857 = vmatpush1.xpose.msra.mxu0 0.0
    %9858 = vmatprep.subr.mxu0 0.0
    %9859 = vmatpush1.xpose.msra.mxu0 0.0
    %9860 = vmatprep.subr.mxu0 0.0
    %9861 = vmatpush1.xpose.msra.mxu0 0.0
    %9862 = vmatprep.subr.mxu0 0.0
    %9863 = vmatpush1.xpose.msra.mxu0 0.0
    %9864 = vmatprep.subr.mxu0 0.0
    %9865 = vmatpush1.xpose.msra.mxu0 0.0
    %9866 = vmatprep.subr.mxu0 0.0
    %9867 = vmatpush1.xpose.msra.mxu0 0.0
    %9868 = vmatprep.mubr.f32.mxu0 0.0
    %9869 = vmatmul.mubr.f32.gmra.mrb[0].mxu0 %v9781
    %v9870 = vpop.f32.mrb[0].mxu0
    %v9871 = vadd.f32 %v9779, %v9870
    %v9872 = vpop.f32.mrb[0].mxu0
    %9873 = vmatprep.mubr.f32.mxu0 0.0
    %9874 = vmatmul.mubr.f32.gmra.mrb[0].mxu0 %v9784
    %v9875 = vpop.f32.mrb[0].mxu0
    %v9876 = vadd.f32 %v9779, %v9875
    %v9877 = vpop.f32.mrb[0].mxu0
    %9878 = vmatprep.mubr.f32.mxu0 0.0
    %9879 = vmatmul.mubr.f32.gmra.mrb[0].mxu0 %v9787
    %v9880 = vpop.f32.mrb[0].mxu0
    %v9881 = vadd.f32 %v9779, %v9880
    %v9882 = vpop.f32.mrb[0].mxu0
    %9883 = vmatprep.mubr.f32.mxu0 0.0
    %9884 = vmatmul.mubr.f32.gmra.mrb[0].mxu0 %v9790
    %v9885 = vpop.f32.mrb[0].mxu0
    %v9886 = vadd.f32 %v9779, %v9885
    %v9887 = vpop.f32.mrb[0].mxu0
    %9888 = vdwg.mxu0
    %v9889 = vadd.f32 %v9655, %v9871
    %v9890 = vadd.f32 %v9656, %v9876
    %v9891 = vadd.f32 %v9657, %v9881
    %v9892 = vadd.f32 %v9658, %v9886
    %v9893 = vld [vmem:[%s4 + $0x23] sm:$0x1]
    %v9894 = vld [vmem:[%s4 + $0x24] sm:$0x1]
    %v9895 = vsel %vm64, %v9889, 0.0
    %9896 = vadd.xlane.f32.xlu0 %v9895
    %v9897 = vpop.xlane.xlu0 %9896
    %v9898 = vsel %vm64, %v9890, 0.0
    %9899 = vadd.xlane.f32.xlu0 %v9898
    %v9900 = vpop.xlane.xlu0 %9899
    %v9901 = vsel %vm64, %v9891, 0.0
    %9902 = vadd.xlane.f32.xlu0 %v9901
    %v9903 = vpop.xlane.xlu0 %9902
    %v9904 = vsel %vm64, %v9892, 0.0
    %9905 = vadd.xlane.f32.xlu0 %v9904
    %v9906 = vpop.xlane.xlu0 %9905
    %v9907 = vmul.f32 %v9897, %v205
    %v9908 = vmul.f32 %v9900, %v205
    %v9909 = vmul.f32 %v9903, %v205
    %v9910 = vmul.f32 %v9906, %v205
    %v9911 = vsub.f32 %v9889, %v9907
    %v9912 = vsub.f32 %v9890, %v9908
    %v9913 = vsub.f32 %v9891, %v9909
    %v9914 = vsub.f32 %v9892, %v9910
    %v9915 = vmul.f32 %v9911, %v9911
    %v9916 = vmul.f32 %v9912, %v9912
    %v9917 = vmul.f32 %v9913, %v9913
    %v9918 = vmul.f32 %v9914, %v9914
    %v9919 = vsel %vm64, %v9915, 0.0
    %9920 = vadd.xlane.f32.xlu0 %v9919
    %v9921 = vpop.xlane.xlu0 %9920
    %v9922 = vsel %vm64, %v9916, 0.0
    %9923 = vadd.xlane.f32.xlu0 %v9922
    %v9924 = vpop.xlane.xlu0 %9923
    %v9925 = vsel %vm64, %v9917, 0.0
    %9926 = vadd.xlane.f32.xlu0 %v9925
    %v9927 = vpop.xlane.xlu0 %9926
    %v9928 = vsel %vm64, %v9918, 0.0
    %9929 = vadd.xlane.f32.xlu0 %v9928
    %v9930 = vpop.xlane.xlu0 %9929
    %v9931 = vmul.f32 %v9921, %v205
    %v9932 = vmul.f32 %v9924, %v205
    %v9933 = vmul.f32 %v9927, %v205
    %v9934 = vmul.f32 %v9930, %v205
    %v9935 = vadd.f32 %v9931, 1e-05
    %v9936 = vadd.f32 %v9932, 1e-05
    %v9937 = vadd.f32 %v9933, 1e-05
    %v9938 = vadd.f32 %v9934, 1e-05
    %v9939 = vrsqrt.pop %v9935
    %v9940 = vrsqrt.pop %v9936
    %v9941 = vrsqrt.pop %v9937
    %v9942 = vrsqrt.pop %v9938
    %v9943 = vmul.f32 %v9911, %v9939
    %v9944 = vmul.f32 %v9912, %v9940
    %v9945 = vmul.f32 %v9913, %v9941
    %v9946 = vmul.f32 %v9914, %v9942
    %v9947 = vlaneseq
    %v9948 = vshrl.u32 %v9947, 7
    %v9949 = vsub.s32 0, %v9948
    %v9950 = vrot.slane %v9893, %v9949
    %v9951 = vmul.f32 %v9943, %v9950
    %v9952 = vmul.f32 %v9944, %v9950
    %v9953 = vmul.f32 %v9945, %v9950
    %v9954 = vmul.f32 %v9946, %v9950
    %v9955 = vlaneseq
    %v9956 = vshrl.u32 %v9955, 7
    %v9957 = vsub.s32 0, %v9956
    %v9958 = vrot.slane %v9894, %v9957
    %v9959 = vadd.f32 %v9951, %v9958
    %v9960 = vadd.f32 %v9952, %v9958
    %v9961 = vadd.f32 %v9953, %v9958
    %v9962 = vadd.f32 %v9954, %v9958
    %9963 = vst.msk [vmem:[#allocation7] sm:$0xff] %vm64, %v9959
    %9964 = vst.msk [vmem:[#allocation7 + $0x8] sm:$0xff] %vm64, %v9960
    %9965 = vst.msk [vmem:[#allocation7 + $0x10] sm:$0xff] %vm64, %v9961
    %9966 = vst.msk [vmem:[#allocation7 + $0x18] sm:$0xff] %vm64, %v9962
    // Predicated region
    $region34: #{transformer_encoder.1} parent=1 // pred_check
      _
    $region35: #{transformer_encoder.1} parent=1 // pred_check_branch
      %9968 = sbr.rel (0) target = $region37
    $region36: #{transformer_encoder.1} parent=1 // pred_region
      %s9970 = ssub.s32 512, 512
      %9971 = vsyncadd [#allocation4], %s9970
      %s9972 = sshll.u32 [#allocation7], 4
      %s9973 = int_to_ptr.vmem [resolvable:$true] %s9972
      %9978 = dma.vmem_to_hbm [thread:$0]  %s9973, 512, %s6, [#allocation4], 128, 128, 8
    $region37: #{transformer_encoder.1} parent=1 // pred_fallthru
      _
    // Predicated region
    $region38: #{transformer_encoder.1} parent=1 // pred_check
      _
    $region39: #{transformer_encoder.1} parent=1 // pred_check_branch
      %9980 = sbr.rel (0) target = $region41
    $region40: #{transformer_encoder.1} parent=1 // pred_region
      _
    $region41: #{transformer_encoder.1} parent=1 // pred_fallthru
      _
    // Predicated region
    $region42: #{transformer_encoder.1} parent=1 // pred_check
      _
    $region43: #{transformer_encoder.1} parent=1 // pred_check_branch
      %9982 = sbr.rel (0) target = $region45
    $region44: #{transformer_encoder.1} parent=1 // pred_region
      %9983 = dma.done [#allocation4], 512
    $region45: #{transformer_encoder.1} parent=1 // pred_fallthru
      _
    // Predicated region
    $region46: #{transformer_encoder.1} parent=1 // pred_check
      _
    $region47: #{transformer_encoder.1} parent=1 // pred_check_branch
      %9985 = sbr.rel (0) target = $region49
    $region48: #{transformer_encoder.1} parent=1 // pred_region
      _
    $region49: #{transformer_encoder.1} parent=1 // pred_fallthru
      _
    %9986 = vsyncpa [#allocation3], 1
    %9987 = vsyncpa [#allocation6], 1
    %9988 = vsyncpa [#allocation4], 1

</llo_original>
